<compile_context>
chip_gen: v5e
topology: v5e:2x2
jax: 0.10.0
libtpu: 0.0.40
codegen_flags: <defaults>
</compile_context>

<pallas_src>
import functools

import jax
import jax.numpy as jnp
from jax import lax
from jax.experimental import pallas as pl
from jax.experimental.pallas import tpu as pltpu

CHN_MID = 32
EPS = 0.1
LEAKY_SLOPE = 0.2

_SUB = 8      # sublane rows per I/O block (independent pixel streams)
_LANE = 128   # TPU lane width


def _round_up(x, m):
    return ((x + m - 1) // m) * m


def _leaky_relu(x, slope=LEAKY_SLOPE):
    # slope in (0,1)  =>  leaky_relu(x) == max(x, slope*x): one mul + one max.
    return jnp.maximum(x, slope * x)


def _fast_recip(x):
    # EUP approximate reciprocal + 1 Newton-Raphson step: far more accurate
    # than the bf16 rounding the features see right afterwards.
    r = pl.reciprocal(x, approx=True)
    return r * (2.0 - x * r)


def _dist2logit_kernel(d0_ref, d1_ref,
                       w1_ref, w2_ref, b2_ref, w3_ref, b3_ref,
                       o_ref, *, num_chunks, chunk_lanes, unroll):
    """d0/d1/o tiles: (8, BL) f32.
    Weights are Kronecker-expanded (W^T (x) I8), stored bf16:
      w1: (256, 48)  -- layer-1 bias folded into the last 8 columns
      w2: (256, 256)
      w3: (8, 256)
    Biases are pre-broadcast to chunk width:
      b2: (256, CL) bf16, b3: (8, CL) f32."""
    w1 = w1_ref[...]                       # (256, 48) bf16
    w2 = w2_ref[...]                       # (256, 256) bf16
    w3 = w3_ref[...]                       # (8, 256) bf16
    b2 = b2_ref[...]                       # (256, CL) bf16  (loaded once / grid step)
    b3 = b3_ref[...]                       # (8, CL) f32
    # Constant ones block feeding the folded layer-1 bias (hoisted out of loop).
    ones = jnp.ones((_SUB, chunk_lanes), jnp.float32)

    def body(c, carry):
        start = pl.multiple_of(c * chunk_lanes, chunk_lanes)
        sl = pl.ds(start, chunk_lanes)
        d0 = d0_ref[:, sl]                                   # (8, CL) f32
        d1 = d1_ref[:, sl]                                   # (8, CL) f32
        # torch.cat((d0, d1, d0-d1, d0/(d1+eps), d1/(d0+eps)), dim=1) laid out
        # feature-major as 5 stacked (8, CL) blocks, plus a ones block that
        # carries the folded layer-1 bias -> (48, CL); cast once to bf16.
        feats = jnp.concatenate(
            [d0, d1, d0 - d1,
             d0 * _fast_recip(d1 + EPS),
             d1 * _fast_recip(d0 + EPS),
             ones], axis=0).astype(jnp.bfloat16)             # (48, CL) bf16

        # Conv2d(5, 32, 1) + bias (folded) :  (W1^T (x) I8 | b1 (x) I8) @ feats
        h = jnp.dot(w1, feats, preferred_element_type=jnp.float32)     # (256, CL) f32
        h = _leaky_relu(h.astype(jnp.bfloat16))                        # bf16 epilogue
        # Conv2d(32, 32, 1)
        h = jnp.dot(w2, h, preferred_element_type=jnp.float32)         # (256, CL) f32
        h = _leaky_relu(h.astype(jnp.bfloat16) + b2)                   # bf16 epilogue
        # Conv2d(32, 1, 1) + Sigmoid  (final layer kept in f32)
        o = jnp.dot(w3, h, preferred_element_type=jnp.float32) + b3    # (8, CL) f32
        o_ref[:, sl] = jax.nn.sigmoid(o).astype(o_ref.dtype)
        return carry

    lax.fori_loop(0, num_chunks, body, 0, unroll=unroll)


def dist2logit_forward(d0, d1, params, *, block_lanes=16384, chunk_lanes=1024):
    """d0, d1: (N, 1, H, W) float32. Returns (N, 1, H, W) float32."""
    N, C, H, W = d0.shape
    assert C == 1 and d1.shape == d0.shape
    M = N * H * W

    chunk_lanes = max(_LANE, _round_up(chunk_lanes, _LANE))
    block_lanes = max(chunk_lanes, _round_up(block_lanes, chunk_lanes))

    if M <= _SUB * block_lanes:
        # Small/medium input: split into (up to) 2 chunk-aligned blocks so both
        # TensorCores get work on v7x; tiny inputs collapse to one block.
        per_block = _round_up(pl.cdiv(M, _SUB * 2), chunk_lanes)
        bl = max(chunk_lanes, per_block)
    else:
        bl = block_lanes
    blk_pix = _SUB * bl
    grid_n = pl.cdiv(M, blk_pix)
    m_pad = grid_n * blk_pix

    # Lay the flat pixel stream out lane-dense as (G*8, BL); pad (with zeros,
    # safe since eps=0.1 > 0) only when the size is not block-divisible so
    # aligned shapes incur no extra HBM copies.
    # (Ragged tails could also be masked in-kernel with @pl.when; the single
    #  pad copy is acceptable here.)
    d0f = d0.reshape(-1).astype(jnp.float32)
    d1f = d1.reshape(-1).astype(jnp.float32)
    if m_pad != M:
        d0f = jnp.pad(d0f, (0, m_pad - M))
        d1f = jnp.pad(d1f, (0, m_pad - M))
    d0f = d0f.reshape(grid_n * _SUB, bl)
    d1f = d1f.reshape(grid_n * _SUB, bl)

    w1, b1, w2, b2, w3, b3 = params   # (5,32) (1,32) (32,32) (1,32) (32,1) (1,1)
    eye = jnp.eye(_SUB, dtype=jnp.float32)
    # Kronecker expansion W^T (x) I8; layer-1 bias folded in as extra columns
    # driven by a ones-row block (K: 40 -> 48, still one MXU K-tile).
    w1k = jnp.kron(w1.T.astype(jnp.float32), eye)                       # (256, 40)
    b1cols = jnp.kron(b1.reshape(-1, 1).astype(jnp.float32), eye)       # (256, 8)
    w1a = jnp.concatenate([w1k, b1cols], axis=1).astype(jnp.bfloat16)   # (256, 48)
    w2k = jnp.kron(w2.T.astype(jnp.float32), eye).astype(jnp.bfloat16)  # (256, 256)
    w3k = jnp.kron(w3.T.astype(jnp.float32), eye).astype(jnp.bfloat16)  # (8, 256)
    # Biases pre-broadcast to chunk width (hoisted out of the chunk loop).
    b2k = jnp.repeat(b2.reshape(-1, 1), _SUB, axis=0)                   # (256, 1)
    b3k = jnp.repeat(b3.reshape(-1, 1), _SUB, axis=0)                   # (8, 1)
    b2b = jnp.broadcast_to(b2k, (CHN_MID * _SUB, chunk_lanes)).astype(jnp.bfloat16)
    b3b = jnp.broadcast_to(b3k, (_SUB, chunk_lanes)).astype(jnp.float32)

    num_chunks = bl // chunk_lanes
    unroll = num_chunks if num_chunks <= 2 else 2   # partial unroll for LLO overlap

    io_spec = pl.BlockSpec((_SUB, bl), lambda i: (i, 0))
    full = lambda a: pl.BlockSpec(a.shape, lambda i: (0, 0))

    kernel = functools.partial(_dist2logit_kernel,
                               num_chunks=num_chunks,
                               chunk_lanes=chunk_lanes,
                               unroll=unroll)

    out = pl.pallas_call(
        kernel,
        out_shape=jax.ShapeDtypeStruct((grid_n * _SUB, bl), jnp.float32),
        grid_spec=pltpu.PrefetchScalarGridSpec(
            num_scalar_prefetch=0,
            grid=(grid_n,),
            in_specs=[
                io_spec,            # d0 tile (8, BL)
                io_spec,            # d1 tile (8, BL)
                full(w1a), full(w2k), full(b2b), full(w3k), full(b3b),
            ],
            out_specs=io_spec,
        ),
        compiler_params=pltpu.CompilerParams(
            dimension_semantics=("parallel",),
            vmem_limit_bytes=32 * 1024 * 1024,
        ),
    )(d0f, d1f, w1a, w2k, b2b, w3k, b3b)

    out = out.reshape(-1)
    if m_pad != M:
        out = out[:M]
    return out.reshape(N, 1, H, W)


def init_params(key, chn_mid=CHN_MID):
    """Deterministic parameter init matching Conv2d(in, out, 1) shapes, stored
    as right-multiplication matrices of shape (in, out)."""
    k1, k2, k3, k4, k5, k6 = jax.random.split(key, 6)
    w1 = jax.random.normal(k1, (5, chn_mid), jnp.float32) * 0.2
    b1 = jax.random.normal(k2, (1, chn_mid), jnp.float32) * 0.05
    w2 = jax.random.normal(k3, (chn_mid, chn_mid), jnp.float32) * 0.1
    b2 = jax.random.normal(k4, (1, chn_mid), jnp.float32) * 0.05
    w3 = jax.random.normal(k5, (chn_mid, 1), jnp.float32) * 0.1
    b3 = jax.random.normal(k6, (1, 1), jnp.float32) * 0.05
    return (w1, b1, w2, b2, w3, b3)


def reference_forward(d0, d1, params):
    """Pure-JAX f32 reference of the PyTorch module (for correctness check)."""
    w1, b1, w2, b2, w3, b3 = params
    N, _, H, W = d0.shape
    d0_f = d0.reshape(-1, 1)
    d1_f = d1.reshape(-1, 1)
    feats = jnp.concatenate(
        [d0_f, d1_f, d0_f - d1_f, d0_f / (d1_f + EPS), d1_f / (d0_f + EPS)], axis=1)
    lrelu = lambda x: jnp.where(x > 0, x, LEAKY_SLOPE * x)
    h = lrelu(feats @ w1 + b1)
    h = lrelu(h @ w2 + b2)
    out = jax.nn.sigmoid(h @ w3 + b3)
    return out.reshape(N, 1, H, W)


if __name__ == "__main__":
    key = jax.random.PRNGKey(0)
    kp, kd0, kd1 = jax.random.split(key, 3)

    # Small shapes consistent with the module: distances are (N, 1, H, W).
    N, H, W = 2, 16, 16
    # Distances are non-negative in LPIPS; use abs of normals.
    d0 = jnp.abs(jax.random.normal(kd0, (N, 1, H, W), jnp.float32))
    d1 = jnp.abs(jax.random.normal(kd1, (N, 1, H, W), jnp.float32))

    params = init_params(kp)

    out = dist2logit_forward(d0, d1, params)
    out = jax.block_until_ready(out)

    ref = reference_forward(d0, d1, params)
    assert out.shape == (N, 1, H, W)
    # bf16 matmul operands / bf16 mid-layer epilogue introduce ~bf16-level
    # (0.4% relative) error pre-sigmoid; post-sigmoid absolute error stays in
    # the few-1e-3 range.  2e-2 max / 3e-3 mean still catches any layout or
    # Kronecker-expansion bug (which would produce O(0.1-0.5) errors).
    abs_err = jnp.abs(out - ref)
    max_err = float(jnp.max(abs_err))
    mean_err = float(jnp.mean(abs_err))
    assert max_err < 2e-2, f"max mismatch vs reference: {max_err}"
    assert mean_err < 3e-3, f"mean mismatch vs reference: {mean_err}"

    print("KERNEL_OK")
</pallas_src>

<mosaic_0001>
module attributes {stable_mosaic.version = 11 : i64} {
  func.func @_dist2logit_kernel(%arg0: i32, %arg1: memref<8x1024xf32, #tpu.memory_space<vmem>>, %arg2: memref<8x1024xf32, #tpu.memory_space<vmem>>, %arg3: memref<256x48xbf16, #tpu.memory_space<vmem>>, %arg4: memref<256x256xbf16, #tpu.memory_space<vmem>>, %arg5: memref<256x1024xbf16, #tpu.memory_space<vmem>>, %arg6: memref<8x256xbf16, #tpu.memory_space<vmem>>, %arg7: memref<8x1024xf32, #tpu.memory_space<vmem>>, %arg8: memref<8x1024xf32, #tpu.memory_space<vmem>>) attributes {dimension_semantics = [#tpu.dimension_semantics<parallel>], iteration_bounds = array<i64: 1>, scalar_prefetch = 0 : i64, scratch_operands = 0 : i64, tpu.core_type = #tpu.core_type<tc>, window_params = [{transform_indices = @transform_0, window_bounds = array<i64: 8, 1024>}, {transform_indices = @transform_1, window_bounds = array<i64: 8, 1024>}, {pipeline_mode = #tpu.pipeline_mode<synchronous>, transform_indices = @transform_2, window_bounds = array<i64: 256, 48>}, {pipeline_mode = #tpu.pipeline_mode<synchronous>, transform_indices = @transform_3, window_bounds = array<i64: 256, 256>}, {pipeline_mode = #tpu.pipeline_mode<synchronous>, transform_indices = @transform_4, window_bounds = array<i64: 256, 1024>}, {pipeline_mode = #tpu.pipeline_mode<synchronous>, transform_indices = @transform_5, window_bounds = array<i64: 8, 256>}, {pipeline_mode = #tpu.pipeline_mode<synchronous>, transform_indices = @transform_6, window_bounds = array<i64: 8, 1024>}, {transform_indices = @transform_7, window_bounds = array<i64: 8, 1024>}]} {
    %c0 = arith.constant 0 : index
    %c0_0 = arith.constant 0 : index
    %0 = vector.load %arg3[%c0, %c0_0] : memref<256x48xbf16, #tpu.memory_space<vmem>>, vector<256x48xbf16>
    %c0_1 = arith.constant 0 : index
    %c0_2 = arith.constant 0 : index
    %1 = vector.load %arg4[%c0_1, %c0_2] : memref<256x256xbf16, #tpu.memory_space<vmem>>, vector<256x256xbf16>
    %c0_3 = arith.constant 0 : index
    %c0_4 = arith.constant 0 : index
    %2 = vector.load %arg6[%c0_3, %c0_4] : memref<8x256xbf16, #tpu.memory_space<vmem>>, vector<8x256xbf16>
    %c0_5 = arith.constant 0 : index
    %c0_6 = arith.constant 0 : index
    %3 = vector.load %arg5[%c0_5, %c0_6] : memref<256x1024xbf16, #tpu.memory_space<vmem>>, vector<256x1024xbf16>
    %c0_7 = arith.constant 0 : index
    %c0_8 = arith.constant 0 : index
    %4 = vector.load %arg7[%c0_7, %c0_8] : memref<8x1024xf32, #tpu.memory_space<vmem>>, vector<8x1024xf32>
    %cst = arith.constant 1.000000e+00 : f32
    %5 = vector.broadcast %cst : f32 to vector<8x1024xf32>
    %c0_i32 = arith.constant 0 : i32
    %c1024_i32 = arith.constant 1024 : i32
    %6 = arith.muli %c0_i32, %c1024_i32 : i32
    %7 = tpu.assume_multiple %6, 1024 : i32
    %c0_9 = arith.constant 0 : index
    %8 = arith.index_cast %7 : i32 to index
    %9 = vector.load %arg1[%c0_9, %8] : memref<8x1024xf32, #tpu.memory_space<vmem>>, vector<8x1024xf32>
    %c0_10 = arith.constant 0 : index
    %10 = arith.index_cast %7 : i32 to index
    %11 = vector.load %arg2[%c0_10, %10] : memref<8x1024xf32, #tpu.memory_space<vmem>>, vector<8x1024xf32>
    %12 = arith.subf %9, %11 : vector<8x1024xf32>
    %cst_11 = arith.constant 1.000000e-01 : f32
    %13 = vector.broadcast %cst_11 : f32 to vector<8x1024xf32>
    %14 = arith.addf %11, %13 : vector<8x1024xf32>
    %15 = tpu.reciprocal %14 {approx = true} : vector<8x1024xf32> -> vector<8x1024xf32>
    %16 = arith.mulf %14, %15 : vector<8x1024xf32>
    %cst_12 = arith.constant 2.000000e+00 : f32
    %17 = vector.broadcast %cst_12 : f32 to vector<8x1024xf32>
    %18 = arith.subf %17, %16 : vector<8x1024xf32>
    %19 = arith.mulf %15, %18 : vector<8x1024xf32>
    %20 = arith.mulf %9, %19 : vector<8x1024xf32>
    %cst_13 = arith.constant 1.000000e-01 : f32
    %21 = vector.broadcast %cst_13 : f32 to vector<8x1024xf32>
    %22 = arith.addf %9, %21 : vector<8x1024xf32>
    %23 = tpu.reciprocal %22 {approx = true} : vector<8x1024xf32> -> vector<8x1024xf32>
    %24 = arith.mulf %22, %23 : vector<8x1024xf32>
    %cst_14 = arith.constant 2.000000e+00 : f32
    %25 = vector.broadcast %cst_14 : f32 to vector<8x1024xf32>
    %26 = arith.subf %25, %24 : vector<8x1024xf32>
    %27 = arith.mulf %23, %26 : vector<8x1024xf32>
    %28 = arith.mulf %11, %27 : vector<8x1024xf32>
    %29 = tpu.concatenate %9, %11, %12, %20, %28, %5 in 0 : vector<8x1024xf32>, vector<8x1024xf32>, vector<8x1024xf32>, vector<8x1024xf32>, vector<8x1024xf32>, vector<8x1024xf32> -> vector<48x1024xf32>
    %30 = arith.truncf %29 : vector<48x1024xf32> to vector<48x1024xbf16>
    %cst_15 = arith.constant dense<0.000000e+00> : vector<256x1024xf32>
    %31 = tpu.matmul %0, %30, %cst_15 {dimension_numbers = #tpu.dot_dimension_numbers<[1], [0], [0], [1], [0, 0, 1, 1], [], []>} : vector<256x48xbf16>, vector<48x1024xbf16>, vector<256x1024xf32> -> vector<256x1024xf32>
    %32 = arith.truncf %31 : vector<256x1024xf32> to vector<256x1024xbf16>
    %cst_16 = arith.constant 2.001950e-01 : bf16
    %33 = vector.broadcast %cst_16 : bf16 to vector<256x1024xbf16>
    %34 = arith.mulf %33, %32 : vector<256x1024xbf16>
    %35 = arith.maximumf %32, %34 : vector<256x1024xbf16>
    %cst_17 = arith.constant dense<0.000000e+00> : vector<256x1024xf32>
    %36 = tpu.matmul %1, %35, %cst_17 {dimension_numbers = #tpu.dot_dimension_numbers<[1], [0], [0], [1], [0, 0, 1, 1], [], []>} : vector<256x256xbf16>, vector<256x1024xbf16>, vector<256x1024xf32> -> vector<256x1024xf32>
    %37 = arith.truncf %36 : vector<256x1024xf32> to vector<256x1024xbf16>
    %38 = arith.addf %37, %3 : vector<256x1024xbf16>
    %cst_18 = arith.constant 2.001950e-01 : bf16
    %39 = vector.broadcast %cst_18 : bf16 to vector<256x1024xbf16>
    %40 = arith.mulf %39, %38 : vector<256x1024xbf16>
    %41 = arith.maximumf %38, %40 : vector<256x1024xbf16>
    %cst_19 = arith.constant dense<0.000000e+00> : vector<8x1024xf32>
    %42 = tpu.matmul %2, %41, %cst_19 {dimension_numbers = #tpu.dot_dimension_numbers<[1], [0], [0], [1], [0, 0, 1, 1], [], []>} : vector<8x256xbf16>, vector<256x1024xbf16>, vector<8x1024xf32> -> vector<8x1024xf32>
    %43 = arith.addf %42, %4 : vector<8x1024xf32>
    %44 = arith.negf %43 : vector<8x1024xf32>
    %45 = math.exp %44 : vector<8x1024xf32>
    %cst_20 = arith.constant 1.000000e+00 : f32
    %46 = vector.broadcast %cst_20 : f32 to vector<8x1024xf32>
    %47 = arith.addf %46, %45 : vector<8x1024xf32>
    %48 = arith.divf %46, %47 : vector<8x1024xf32>
    %c0_21 = arith.constant 0 : index
    %49 = arith.index_cast %7 : i32 to index
    %50 = vector.load %arg8[%c0_21, %49] : memref<8x1024xf32, #tpu.memory_space<vmem>>, vector<8x1024xf32>
    tpu.vector_store %arg8[%c0_21, %49], %48 {strides = array<i32>} : memref<8x1024xf32, #tpu.memory_space<vmem>>, vector<8x1024xf32>,
    %c1_i32 = arith.constant 1 : i32
    return
  }
  func.func @transform_0(%arg0: i32) -> (i32, i32) {
    %c0_i32 = arith.constant 0 : i32
    %c0_i32_0 = arith.constant 0 : i32
    return %arg0, %c0_i32 : i32, i32
  }
  func.func @transform_1(%arg0: i32) -> (i32, i32) {
    %c0_i32 = arith.constant 0 : i32
    %c0_i32_0 = arith.constant 0 : i32
    return %arg0, %c0_i32 : i32, i32
  }
  func.func @transform_2(%arg0: i32) -> (i32, i32) {
    %c0_i32 = arith.constant 0 : i32
    %c0_i32_0 = arith.constant 0 : i32
    %c0_i32_1 = arith.constant 0 : i32
    return %c0_i32, %c0_i32_0 : i32, i32
  }
  func.func @transform_3(%arg0: i32) -> (i32, i32) {
    %c0_i32 = arith.constant 0 : i32
    %c0_i32_0 = arith.constant 0 : i32
    %c0_i32_1 = arith.constant 0 : i32
    return %c0_i32, %c0_i32_0 : i32, i32
  }
  func.func @transform_4(%arg0: i32) -> (i32, i32) {
    %c0_i32 = arith.constant 0 : i32
    %c0_i32_0 = arith.constant 0 : i32
    %c0_i32_1 = arith.constant 0 : i32
    return %c0_i32, %c0_i32_0 : i32, i32
  }
  func.func @transform_5(%arg0: i32) -> (i32, i32) {
    %c0_i32 = arith.constant 0 : i32
    %c0_i32_0 = arith.constant 0 : i32
    %c0_i32_1 = arith.constant 0 : i32
    return %c0_i32, %c0_i32_0 : i32, i32
  }
  func.func @transform_6(%arg0: i32) -> (i32, i32) {
    %c0_i32 = arith.constant 0 : i32
    %c0_i32_0 = arith.constant 0 : i32
    %c0_i32_1 = arith.constant 0 : i32
    return %c0_i32, %c0_i32_0 : i32, i32
  }
  func.func @transform_7(%arg0: i32) -> (i32, i32) {
    %c0_i32 = arith.constant 0 : i32
    %c0_i32_0 = arith.constant 0 : i32
    return %arg0, %c0_i32 : i32, i32
  }
}

</mosaic_0001>

<llo_original>
// kernel: tpu_custom_call.1
$region0: #{tpu_custom_call.1}
  #allocation0 [shape = 'u32[]', space=smem, size = 0x4, offset = 0x4, fixed_abs, tag = 'smem constant byte address 0x4 - core index']
  #allocation1 [shape = 'u32[72,128]{1,0:T(1,128)}', space=vmem, size = 0x9000, scoped, tag = 'internal scratch']
  %s0 = inlined_call_operand.vmem [shape: f32[8,1024], index: 0, kind: input, shape index: {}]
  %s1 = inlined_call_operand.vmem [shape: f32[8,1024], index: 1, kind: input, shape index: {}]
  %s2 = inlined_call_operand.vmem [shape: bf16[256,48], index: 2, kind: input, shape index: {}]
  %s3 = inlined_call_operand.hbm [shape: bf16[256,256], index: 3, kind: input, shape index: {}]
  %s4 = inlined_call_operand.hbm [shape: bf16[256,1024], index: 4, kind: input, shape index: {}]
  %s5 = inlined_call_operand.vmem [shape: bf16[8,256], index: 5, kind: input, shape index: {}]
  %s6 = inlined_call_operand.hbm [shape: f32[8,1024], index: 6, kind: input, shape index: {}]
  %s7 = inlined_call_operand.hbm [shape: f32[8,1024], index: 7, kind: output, shape index: {}]
  %s8 = sld [smem:[#allocation0]]
  $region50: #{tpu_custom_call.1} parent=0
    _
  %s10 = ssub.s32 1, %s8
  %s11 = scalar_select 0, %s10, %s8
  $region1: #{tpu_custom_call.1} parent=0
    #allocation2 [shape = 'u8[131072]{0}', space=vmem, size = 0x20000, scoped, tag = 'input window, operand 3, single buffered']
    #allocation3 [shape = 's32[1]{0}', space=sflag, size = 0x4, scoped, tag = 'scoped memory for tpu_custom_call.1']
    #allocation4 [shape = 's32[1]{0}', space=sflag, size = 0x4, scoped, tag = 'scoped memory for tpu_custom_call.1']
    #allocation5 [shape = 'u8[524288]{0}', space=vmem, size = 0x80000, scoped, tag = 'input window, operand 4, single buffered']
    #allocation6 [shape = 's32[1]{0}', space=sflag, size = 0x4, scoped, tag = 'scoped memory for tpu_custom_call.1']
    #allocation7 [shape = 'u8[32768]{0}', space=vmem, size = 0x8000, scoped, tag = 'input window, operand 6, single buffered']
    #allocation8 [shape = 'u8[32768]{0}', space=vmem, size = 0x8000, scoped, tag = 'output window, operand 0, single buffered']
    %12 = vsyncpa [#allocation3], 0
    %13 = vsyncpa [#allocation6], 0
    %14 = vsyncpa [#allocation4], 0
    // Predicated region
    $region2: #{tpu_custom_call.1} parent=1 // pred_check
      _
    $region3: #{tpu_custom_call.1} parent=1 // pred_check_branch
      %16 = sbr.rel (0) target = $region5
    $region4: #{tpu_custom_call.1} parent=1 // pred_region
      _
    $region5: #{tpu_custom_call.1} parent=1 // pred_fallthru
      _
    // Predicated region
    $region6: #{tpu_custom_call.1} parent=1 // pred_check
      _
    $region7: #{tpu_custom_call.1} parent=1 // pred_check_branch
      %18 = sbr.rel (0) target = $region9
    $region8: #{tpu_custom_call.1} parent=1 // pred_region
      _
    $region9: #{tpu_custom_call.1} parent=1 // pred_fallthru
      _
    // Predicated region
    $region10: #{tpu_custom_call.1} parent=1 // pred_check
      _
    $region11: #{tpu_custom_call.1} parent=1 // pred_check_branch
      %20 = sbr.rel (0) target = $region13
    $region12: #{tpu_custom_call.1} parent=1 // pred_region
      _
    $region13: #{tpu_custom_call.1} parent=1 // pred_fallthru
      _
    // Predicated region
    $region14: #{tpu_custom_call.1} parent=1 // pred_check
      _
    $region15: #{tpu_custom_call.1} parent=1 // pred_check_branch
      %22 = sbr.rel (0) target = $region17
    $region16: #{tpu_custom_call.1} parent=1 // pred_region
      %24 = vsyncadd [#allocation3], 0
      %s25 = sshll.u32 %s3, 4
      %s26 = int_to_ptr.hbm [resolvable:$true] %s25
      %s27 = sshll.u32 [#allocation2], 4
      %s28 = int_to_ptr.vmem [resolvable:$true] %s27
      %33 = dma.hbm_to_vmem [thread:$0]  %s26, 4096, %s28, [#allocation3], 128, 128, 8
    $region17: #{tpu_custom_call.1} parent=1 // pred_fallthru
      _
    // Predicated region
    $region18: #{tpu_custom_call.1} parent=1 // pred_check
      _
    $region19: #{tpu_custom_call.1} parent=1 // pred_check_branch
      %35 = sbr.rel (0) target = $region21
    $region20: #{tpu_custom_call.1} parent=1 // pred_region
      %37 = vsyncadd [#allocation6], 0
      %s38 = sshll.u32 %s4, 4
      %s39 = int_to_ptr.hbm [resolvable:$true] %s38
      %s40 = sshll.u32 [#allocation5], 4
      %s41 = int_to_ptr.vmem [resolvable:$true] %s40
      %46 = dma.hbm_to_vmem [thread:$0]  %s39, 16384, %s41, [#allocation6], 512, 512, 32
    $region21: #{tpu_custom_call.1} parent=1 // pred_fallthru
      _
    // Predicated region
    $region22: #{tpu_custom_call.1} parent=1 // pred_check
      _
    $region23: #{tpu_custom_call.1} parent=1 // pred_check_branch
      %48 = sbr.rel (0) target = $region25
    $region24: #{tpu_custom_call.1} parent=1 // pred_region
      _
    $region25: #{tpu_custom_call.1} parent=1 // pred_fallthru
      _
    // Predicated region
    $region26: #{tpu_custom_call.1} parent=1 // pred_check
      _
    $region27: #{tpu_custom_call.1} parent=1 // pred_check_branch
      %50 = sbr.rel (0) target = $region29
    $region28: #{tpu_custom_call.1} parent=1 // pred_region
      %52 = vsyncadd [#allocation6], 0
      %s54 = sshll.u32 %s6, 4
      %s55 = int_to_ptr.hbm [resolvable:$true] %s54
      %s56 = sshll.u32 [#allocation7], 4
      %s57 = int_to_ptr.vmem [resolvable:$true] %s56
      %59 = dma.hbm_to_vmem [thread:$0]  %s55, 1024, %s57, [#allocation6]
    $region29: #{tpu_custom_call.1} parent=1 // pred_fallthru
      _
    // Predicated region
    $region30: #{tpu_custom_call.1} parent=1 // pred_check
      _
    $region31: #{tpu_custom_call.1} parent=1 // pred_check_branch
      %61 = sbr.rel (0) target = $region33
    $region32: #{tpu_custom_call.1} parent=1 // pred_region
      %63 = dma.done [#allocation3], 4096
    $region33: #{tpu_custom_call.1} parent=1 // pred_fallthru
      _
    // Predicated region
    $region34: #{tpu_custom_call.1} parent=1 // pred_check
      _
    $region35: #{tpu_custom_call.1} parent=1 // pred_check_branch
      %65 = sbr.rel (0) target = $region37
    $region36: #{tpu_custom_call.1} parent=1 // pred_region
      %67 = dma.done [#allocation6], 16384
    $region37: #{tpu_custom_call.1} parent=1 // pred_fallthru
      _
    // Predicated region
    $region38: #{tpu_custom_call.1} parent=1 // pred_check
      _
    $region39: #{tpu_custom_call.1} parent=1 // pred_check_branch
      %69 = sbr.rel (0) target = $region41
    $region40: #{tpu_custom_call.1} parent=1 // pred_region
      %71 = dma.done [#allocation6], 1024
    $region41: #{tpu_custom_call.1} parent=1 // pred_fallthru
      _
    %v73 = vld [vmem:[%s2] sm:$0xf]
    %v74 = vld [vmem:[%s2 + $0x4] sm:$0xf]
    %v75 = vld [vmem:[%s2 + $0x8] sm:$0xf]
    %v76 = vld [vmem:[%s2 + $0xc] sm:$0xf]
    %v77 = vld [vmem:[%s2 + $0x10] sm:$0xf]
    %v78 = vld [vmem:[%s2 + $0x14] sm:$0xf]
    %v79 = vld [vmem:[%s2 + $0x18] sm:$0xf]
    %v80 = vld [vmem:[%s2 + $0x1c] sm:$0xf]
    %v81 = vld [vmem:[%s2 + $0x20] sm:$0xf]
    %v82 = vld [vmem:[%s2 + $0x24] sm:$0xf]
    %v83 = vld [vmem:[%s2 + $0x28] sm:$0xf]
    %v84 = vld [vmem:[%s2 + $0x2c] sm:$0xf]
    %v85 = vld [vmem:[%s2 + $0x30] sm:$0xf]
    %v86 = vld [vmem:[%s2 + $0x34] sm:$0xf]
    %v87 = vld [vmem:[%s2 + $0x38] sm:$0xf]
    %v88 = vld [vmem:[%s2 + $0x3c] sm:$0xf]
    %v89 = vld [vmem:[%s2 + $0x40] sm:$0xf]
    %v90 = vld [vmem:[%s2 + $0x44] sm:$0xf]
    %v91 = vld [vmem:[%s2 + $0x48] sm:$0xf]
    %v92 = vld [vmem:[%s2 + $0x4c] sm:$0xf]
    %v93 = vld [vmem:[%s2 + $0x50] sm:$0xf]
    %v94 = vld [vmem:[%s2 + $0x54] sm:$0xf]
    %v95 = vld [vmem:[%s2 + $0x58] sm:$0xf]
    %v96 = vld [vmem:[%s2 + $0x5c] sm:$0xf]
    %v97 = vld [vmem:[%s2 + $0x60] sm:$0xf]
    %v98 = vld [vmem:[%s2 + $0x64] sm:$0xf]
    %v99 = vld [vmem:[%s2 + $0x68] sm:$0xf]
    %v100 = vld [vmem:[%s2 + $0x6c] sm:$0xf]
    %v101 = vld [vmem:[%s2 + $0x70] sm:$0xf]
    %v102 = vld [vmem:[%s2 + $0x74] sm:$0xf]
    %v103 = vld [vmem:[%s2 + $0x78] sm:$0xf]
    %v104 = vld [vmem:[%s2 + $0x7c] sm:$0xf]
    %v105 = vld [vmem:[#allocation2] sm:$0xff]
    %v106 = vld [vmem:[#allocation2 + $0x8] sm:$0xff]
    %v107 = vld [vmem:[#allocation2 + $0x10] sm:$0xff]
    %v108 = vld [vmem:[#allocation2 + $0x18] sm:$0xff]
    %v109 = vld [vmem:[#allocation2 + $0x20] sm:$0xff]
    %v110 = vld [vmem:[#allocation2 + $0x28] sm:$0xff]
    %v111 = vld [vmem:[#allocation2 + $0x30] sm:$0xff]
    %v112 = vld [vmem:[#allocation2 + $0x38] sm:$0xff]
    %v113 = vld [vmem:[#allocation2 + $0x40] sm:$0xff]
    %v114 = vld [vmem:[#allocation2 + $0x48] sm:$0xff]
    %v115 = vld [vmem:[#allocation2 + $0x50] sm:$0xff]
    %v116 = vld [vmem:[#allocation2 + $0x58] sm:$0xff]
    %v117 = vld [vmem:[#allocation2 + $0x60] sm:$0xff]
    %v118 = vld [vmem:[#allocation2 + $0x68] sm:$0xff]
    %v119 = vld [vmem:[#allocation2 + $0x70] sm:$0xff]
    %v120 = vld [vmem:[#allocation2 + $0x78] sm:$0xff]
    %v121 = vld [vmem:[#allocation2 + $0x80] sm:$0xff]
    %v122 = vld [vmem:[#allocation2 + $0x88] sm:$0xff]
    %v123 = vld [vmem:[#allocation2 + $0x90] sm:$0xff]
    %v124 = vld [vmem:[#allocation2 + $0x98] sm:$0xff]
    %v125 = vld [vmem:[#allocation2 + $0xa0] sm:$0xff]
    %v126 = vld [vmem:[#allocation2 + $0xa8] sm:$0xff]
    %v127 = vld [vmem:[#allocation2 + $0xb0] sm:$0xff]
    %v128 = vld [vmem:[#allocation2 + $0xb8] sm:$0xff]
    %v129 = vld [vmem:[#allocation2 + $0xc0] sm:$0xff]
    %v130 = vld [vmem:[#allocation2 + $0xc8] sm:$0xff]
    %v131 = vld [vmem:[#allocation2 + $0xd0] sm:$0xff]
    %v132 = vld [vmem:[#allocation2 + $0xd8] sm:$0xff]
    %v133 = vld [vmem:[#allocation2 + $0xe0] sm:$0xff]
    %v134 = vld [vmem:[#allocation2 + $0xe8] sm:$0xff]
    %v135 = vld [vmem:[#allocation2 + $0xf0] sm:$0xff]
    %v136 = vld [vmem:[#allocation2 + $0xf8] sm:$0xff]
    %v137 = vld [vmem:[%s5] sm:$0xff]
    %v138 = vld [vmem:[#allocation5] sm:$0xff]
    %v139 = vld [vmem:[#allocation5 + $0x8] sm:$0xff]
    %v140 = vld [vmem:[#allocation5 + $0x10] sm:$0xff]
    %v141 = vld [vmem:[#allocation5 + $0x18] sm:$0xff]
    %v142 = vld [vmem:[#allocation5 + $0x20] sm:$0xff]
    %v143 = vld [vmem:[#allocation5 + $0x28] sm:$0xff]
    %v144 = vld [vmem:[#allocation5 + $0x30] sm:$0xff]
    %v145 = vld [vmem:[#allocation5 + $0x38] sm:$0xff]
    %v146 = vld [vmem:[#allocation5 + $0x40] sm:$0xff]
    %v147 = vld [vmem:[#allocation5 + $0x48] sm:$0xff]
    %v148 = vld [vmem:[#allocation5 + $0x50] sm:$0xff]
    %v149 = vld [vmem:[#allocation5 + $0x58] sm:$0xff]
    %v150 = vld [vmem:[#allocation5 + $0x60] sm:$0xff]
    %v151 = vld [vmem:[#allocation5 + $0x68] sm:$0xff]
    %v152 = vld [vmem:[#allocation5 + $0x70] sm:$0xff]
    %v153 = vld [vmem:[#allocation5 + $0x78] sm:$0xff]
    %v154 = vld [vmem:[#allocation5 + $0x80] sm:$0xff]
    %v155 = vld [vmem:[#allocation5 + $0x88] sm:$0xff]
    %v156 = vld [vmem:[#allocation5 + $0x90] sm:$0xff]
    %v157 = vld [vmem:[#allocation5 + $0x98] sm:$0xff]
    %v158 = vld [vmem:[#allocation5 + $0xa0] sm:$0xff]
    %v159 = vld [vmem:[#allocation5 + $0xa8] sm:$0xff]
    %v160 = vld [vmem:[#allocation5 + $0xb0] sm:$0xff]
    %v161 = vld [vmem:[#allocation5 + $0xb8] sm:$0xff]
    %v162 = vld [vmem:[#allocation5 + $0xc0] sm:$0xff]
    %v163 = vld [vmem:[#allocation5 + $0xc8] sm:$0xff]
    %v164 = vld [vmem:[#allocation5 + $0xd0] sm:$0xff]
    %v165 = vld [vmem:[#allocation5 + $0xd8] sm:$0xff]
    %v166 = vld [vmem:[#allocation5 + $0xe0] sm:$0xff]
    %v167 = vld [vmem:[#allocation5 + $0xe8] sm:$0xff]
    %v168 = vld [vmem:[#allocation5 + $0xf0] sm:$0xff]
    %v169 = vld [vmem:[#allocation5 + $0xf8] sm:$0xff]
    %v170 = vld [vmem:[#allocation5 + $0x100] sm:$0xff]
    %v171 = vld [vmem:[#allocation5 + $0x108] sm:$0xff]
    %v172 = vld [vmem:[#allocation5 + $0x110] sm:$0xff]
    %v173 = vld [vmem:[#allocation5 + $0x118] sm:$0xff]
    %v174 = vld [vmem:[#allocation5 + $0x120] sm:$0xff]
    %v175 = vld [vmem:[#allocation5 + $0x128] sm:$0xff]
    %v176 = vld [vmem:[#allocation5 + $0x130] sm:$0xff]
    %v177 = vld [vmem:[#allocation5 + $0x138] sm:$0xff]
    %v178 = vld [vmem:[#allocation5 + $0x140] sm:$0xff]
    %v179 = vld [vmem:[#allocation5 + $0x148] sm:$0xff]
    %v180 = vld [vmem:[#allocation5 + $0x150] sm:$0xff]
    %v181 = vld [vmem:[#allocation5 + $0x158] sm:$0xff]
    %v182 = vld [vmem:[#allocation5 + $0x160] sm:$0xff]
    %v183 = vld [vmem:[#allocation5 + $0x168] sm:$0xff]
    %v184 = vld [vmem:[#allocation5 + $0x170] sm:$0xff]
    %v185 = vld [vmem:[#allocation5 + $0x178] sm:$0xff]
    %v186 = vld [vmem:[#allocation5 + $0x180] sm:$0xff]
    %v187 = vld [vmem:[#allocation5 + $0x188] sm:$0xff]
    %v188 = vld [vmem:[#allocation5 + $0x190] sm:$0xff]
    %v189 = vld [vmem:[#allocation5 + $0x198] sm:$0xff]
    %v190 = vld [vmem:[#allocation5 + $0x1a0] sm:$0xff]
    %v191 = vld [vmem:[#allocation5 + $0x1a8] sm:$0xff]
    %v192 = vld [vmem:[#allocation5 + $0x1b0] sm:$0xff]
    %v193 = vld [vmem:[#allocation5 + $0x1b8] sm:$0xff]
    %v194 = vld [vmem:[#allocation5 + $0x1c0] sm:$0xff]
    %v195 = vld [vmem:[#allocation5 + $0x1c8] sm:$0xff]
    %v196 = vld [vmem:[#allocation5 + $0x1d0] sm:$0xff]
    %v197 = vld [vmem:[#allocation5 + $0x1d8] sm:$0xff]
    %v198 = vld [vmem:[#allocation5 + $0x1e0] sm:$0xff]
    %v199 = vld [vmem:[#allocation5 + $0x1e8] sm:$0xff]
    %v200 = vld [vmem:[#allocation5 + $0x1f0] sm:$0xff]
    %v201 = vld [vmem:[#allocation5 + $0x1f8] sm:$0xff]
    %v202 = vld [vmem:[#allocation5 + $0x200] sm:$0xff]
    %v203 = vld [vmem:[#allocation5 + $0x208] sm:$0xff]
    %v204 = vld [vmem:[#allocation5 + $0x210] sm:$0xff]
    %v205 = vld [vmem:[#allocation5 + $0x218] sm:$0xff]
    %v206 = vld [vmem:[#allocation5 + $0x220] sm:$0xff]
    %v207 = vld [vmem:[#allocation5 + $0x228] sm:$0xff]
    %v208 = vld [vmem:[#allocation5 + $0x230] sm:$0xff]
    %v209 = vld [vmem:[#allocation5 + $0x238] sm:$0xff]
    %v210 = vld [vmem:[#allocation5 + $0x240] sm:$0xff]
    %v211 = vld [vmem:[#allocation5 + $0x248] sm:$0xff]
    %v212 = vld [vmem:[#allocation5 + $0x250] sm:$0xff]
    %v213 = vld [vmem:[#allocation5 + $0x258] sm:$0xff]
    %v214 = vld [vmem:[#allocation5 + $0x260] sm:$0xff]
    %v215 = vld [vmem:[#allocation5 + $0x268] sm:$0xff]
    %v216 = vld [vmem:[#allocation5 + $0x270] sm:$0xff]
    %v217 = vld [vmem:[#allocation5 + $0x278] sm:$0xff]
    %v218 = vld [vmem:[#allocation5 + $0x280] sm:$0xff]
    %v219 = vld [vmem:[#allocation5 + $0x288] sm:$0xff]
    %v220 = vld [vmem:[#allocation5 + $0x290] sm:$0xff]
    %v221 = vld [vmem:[#allocation5 + $0x298] sm:$0xff]
    %v222 = vld [vmem:[#allocation5 + $0x2a0] sm:$0xff]
    %v223 = vld [vmem:[#allocation5 + $0x2a8] sm:$0xff]
    %v224 = vld [vmem:[#allocation5 + $0x2b0] sm:$0xff]
    %v225 = vld [vmem:[#allocation5 + $0x2b8] sm:$0xff]
    %v226 = vld [vmem:[#allocation5 + $0x2c0] sm:$0xff]
    %v227 = vld [vmem:[#allocation5 + $0x2c8] sm:$0xff]
    %v228 = vld [vmem:[#allocation5 + $0x2d0] sm:$0xff]
    %v229 = vld [vmem:[#allocation5 + $0x2d8] sm:$0xff]
    %v230 = vld [vmem:[#allocation5 + $0x2e0] sm:$0xff]
    %v231 = vld [vmem:[#allocation5 + $0x2e8] sm:$0xff]
    %v232 = vld [vmem:[#allocation5 + $0x2f0] sm:$0xff]
    %v233 = vld [vmem:[#allocation5 + $0x2f8] sm:$0xff]
    %v234 = vld [vmem:[#allocation5 + $0x300] sm:$0xff]
    %v235 = vld [vmem:[#allocation5 + $0x308] sm:$0xff]
    %v236 = vld [vmem:[#allocation5 + $0x310] sm:$0xff]
    %v237 = vld [vmem:[#allocation5 + $0x318] sm:$0xff]
    %v238 = vld [vmem:[#allocation5 + $0x320] sm:$0xff]
    %v239 = vld [vmem:[#allocation5 + $0x328] sm:$0xff]
    %v240 = vld [vmem:[#allocation5 + $0x330] sm:$0xff]
    %v241 = vld [vmem:[#allocation5 + $0x338] sm:$0xff]
    %v242 = vld [vmem:[#allocation5 + $0x340] sm:$0xff]
    %v243 = vld [vmem:[#allocation5 + $0x348] sm:$0xff]
    %v244 = vld [vmem:[#allocation5 + $0x350] sm:$0xff]
    %v245 = vld [vmem:[#allocation5 + $0x358] sm:$0xff]
    %v246 = vld [vmem:[#allocation5 + $0x360] sm:$0xff]
    %v247 = vld [vmem:[#allocation5 + $0x368] sm:$0xff]
    %v248 = vld [vmem:[#allocation5 + $0x370] sm:$0xff]
    %v249 = vld [vmem:[#allocation5 + $0x378] sm:$0xff]
    %v250 = vld [vmem:[#allocation5 + $0x380] sm:$0xff]
    %v251 = vld [vmem:[#allocation5 + $0x388] sm:$0xff]
    %v252 = vld [vmem:[#allocation5 + $0x390] sm:$0xff]
    %v253 = vld [vmem:[#allocation5 + $0x398] sm:$0xff]
    %v254 = vld [vmem:[#allocation5 + $0x3a0] sm:$0xff]
    %v255 = vld [vmem:[#allocation5 + $0x3a8] sm:$0xff]
    %v256 = vld [vmem:[#allocation5 + $0x3b0] sm:$0xff]
    %v257 = vld [vmem:[#allocation5 + $0x3b8] sm:$0xff]
    %v258 = vld [vmem:[#allocation5 + $0x3c0] sm:$0xff]
    %v259 = vld [vmem:[#allocation5 + $0x3c8] sm:$0xff]
    %v260 = vld [vmem:[#allocation5 + $0x3d0] sm:$0xff]
    %v261 = vld [vmem:[#allocation5 + $0x3d8] sm:$0xff]
    %v262 = vld [vmem:[#allocation5 + $0x3e0] sm:$0xff]
    %v263 = vld [vmem:[#allocation5 + $0x3e8] sm:$0xff]
    %v264 = vld [vmem:[#allocation5 + $0x3f0] sm:$0xff]
    %v265 = vld [vmem:[#allocation5 + $0x3f8] sm:$0xff]
    %v266 = vld [vmem:[#allocation7] sm:$0xff]
    %v267 = vld [vmem:[#allocation7 + $0x8] sm:$0xff]
    %v268 = vld [vmem:[#allocation7 + $0x10] sm:$0xff]
    %v269 = vld [vmem:[#allocation7 + $0x18] sm:$0xff]
    %v270 = vld [vmem:[#allocation7 + $0x20] sm:$0xff]
    %v271 = vld [vmem:[#allocation7 + $0x28] sm:$0xff]
    %v272 = vld [vmem:[#allocation7 + $0x30] sm:$0xff]
    %v273 = vld [vmem:[#allocation7 + $0x38] sm:$0xff]
    %v274 = vld [vmem:[%s0] sm:$0xff]
    %v275 = vld [vmem:[%s0 + $0x8] sm:$0xff]
    %v276 = vld [vmem:[%s0 + $0x10] sm:$0xff]
    %v277 = vld [vmem:[%s0 + $0x18] sm:$0xff]
    %v278 = vld [vmem:[%s0 + $0x20] sm:$0xff]
    %v279 = vld [vmem:[%s0 + $0x28] sm:$0xff]
    %v280 = vld [vmem:[%s0 + $0x30] sm:$0xff]
    %v281 = vld [vmem:[%s0 + $0x38] sm:$0xff]
    %v282 = vld [vmem:[%s1] sm:$0xff]
    %v283 = vld [vmem:[%s1 + $0x8] sm:$0xff]
    %v284 = vld [vmem:[%s1 + $0x10] sm:$0xff]
    %v285 = vld [vmem:[%s1 + $0x18] sm:$0xff]
    %v286 = vld [vmem:[%s1 + $0x20] sm:$0xff]
    %v287 = vld [vmem:[%s1 + $0x28] sm:$0xff]
    %v288 = vld [vmem:[%s1 + $0x30] sm:$0xff]
    %v289 = vld [vmem:[%s1 + $0x38] sm:$0xff]
    %v290 = vsub.f32 %v274, %v282
    %v291 = vsub.f32 %v275, %v283
    %v292 = vsub.f32 %v276, %v284
    %v293 = vsub.f32 %v277, %v285
    %v294 = vsub.f32 %v278, %v286
    %v295 = vsub.f32 %v279, %v287
    %v296 = vsub.f32 %v280, %v288
    %v297 = vsub.f32 %v281, %v289
    %v298 = vadd.f32 %v282, 0.1
    %v299 = vadd.f32 %v283, 0.1
    %v300 = vadd.f32 %v284, 0.1
    %v301 = vadd.f32 %v285, 0.1
    %v302 = vadd.f32 %v286, 0.1
    %v303 = vadd.f32 %v287, 0.1
    %v304 = vadd.f32 %v288, 0.1
    %v305 = vadd.f32 %v289, 0.1
    %v306 = vrcp.pop %v298
    %v307 = vrcp.pop %v299
    %v308 = vrcp.pop %v300
    %v309 = vrcp.pop %v301
    %v310 = vrcp.pop %v302
    %v311 = vrcp.pop %v303
    %v312 = vrcp.pop %v304
    %v313 = vrcp.pop %v305
    %v314 = vmul.f32 %v298, %v306
    %v315 = vmul.f32 %v299, %v307
    %v316 = vmul.f32 %v300, %v308
    %v317 = vmul.f32 %v301, %v309
    %v318 = vmul.f32 %v302, %v310
    %v319 = vmul.f32 %v303, %v311
    %v320 = vmul.f32 %v304, %v312
    %v321 = vmul.f32 %v305, %v313
    %v322 = vsub.f32 2.0, %v314
    %v323 = vsub.f32 2.0, %v315
    %v324 = vsub.f32 2.0, %v316
    %v325 = vsub.f32 2.0, %v317
    %v326 = vsub.f32 2.0, %v318
    %v327 = vsub.f32 2.0, %v319
    %v328 = vsub.f32 2.0, %v320
    %v329 = vsub.f32 2.0, %v321
    %v330 = vmul.f32 %v306, %v322
    %v331 = vmul.f32 %v307, %v323
    %v332 = vmul.f32 %v308, %v324
    %v333 = vmul.f32 %v309, %v325
    %v334 = vmul.f32 %v310, %v326
    %v335 = vmul.f32 %v311, %v327
    %v336 = vmul.f32 %v312, %v328
    %v337 = vmul.f32 %v313, %v329
    %v338 = vmul.f32 %v274, %v330
    %v339 = vmul.f32 %v275, %v331
    %v340 = vmul.f32 %v276, %v332
    %v341 = vmul.f32 %v277, %v333
    %v342 = vmul.f32 %v278, %v334
    %v343 = vmul.f32 %v279, %v335
    %v344 = vmul.f32 %v280, %v336
    %v345 = vmul.f32 %v281, %v337
    %v346 = vadd.f32 %v274, 0.1
    %v347 = vadd.f32 %v275, 0.1
    %v348 = vadd.f32 %v276, 0.1
    %v349 = vadd.f32 %v277, 0.1
    %v350 = vadd.f32 %v278, 0.1
    %v351 = vadd.f32 %v279, 0.1
    %v352 = vadd.f32 %v280, 0.1
    %v353 = vadd.f32 %v281, 0.1
    %v354 = vrcp.pop %v346
    %v355 = vrcp.pop %v347
    %v356 = vrcp.pop %v348
    %v357 = vrcp.pop %v349
    %v358 = vrcp.pop %v350
    %v359 = vrcp.pop %v351
    %v360 = vrcp.pop %v352
    %v361 = vrcp.pop %v353
    %v362 = vmul.f32 %v346, %v354
    %v363 = vmul.f32 %v347, %v355
    %v364 = vmul.f32 %v348, %v356
    %v365 = vmul.f32 %v349, %v357
    %v366 = vmul.f32 %v350, %v358
    %v367 = vmul.f32 %v351, %v359
    %v368 = vmul.f32 %v352, %v360
    %v369 = vmul.f32 %v353, %v361
    %v370 = vsub.f32 2.0, %v362
    %v371 = vsub.f32 2.0, %v363
    %v372 = vsub.f32 2.0, %v364
    %v373 = vsub.f32 2.0, %v365
    %v374 = vsub.f32 2.0, %v366
    %v375 = vsub.f32 2.0, %v367
    %v376 = vsub.f32 2.0, %v368
    %v377 = vsub.f32 2.0, %v369
    %v378 = vmul.f32 %v354, %v370
    %v379 = vmul.f32 %v355, %v371
    %v380 = vmul.f32 %v356, %v372
    %v381 = vmul.f32 %v357, %v373
    %v382 = vmul.f32 %v358, %v374
    %v383 = vmul.f32 %v359, %v375
    %v384 = vmul.f32 %v360, %v376
    %v385 = vmul.f32 %v361, %v377
    %v386 = vmul.f32 %v282, %v378
    %v387 = vmul.f32 %v283, %v379
    %v388 = vmul.f32 %v284, %v380
    %v389 = vmul.f32 %v285, %v381
    %v390 = vmul.f32 %v286, %v382
    %v391 = vmul.f32 %v287, %v383
    %v392 = vmul.f32 %v288, %v384
    %v393 = vmul.f32 %v289, %v385
    %v394 = vpack.c.bf16 %v282, %v274
    %v395 = vpack.c.bf16 %v283, %v275
    %v396 = vpack.c.bf16 %v284, %v276
    %v397 = vpack.c.bf16 %v285, %v277
    %v398 = vpack.c.bf16 %v286, %v278
    %v399 = vpack.c.bf16 %v287, %v279
    %v400 = vpack.c.bf16 %v288, %v280
    %v401 = vpack.c.bf16 %v289, %v281
    %v402 = vpack.c.bf16 %v338, %v290
    %v403 = vpack.c.bf16 %v339, %v291
    %v404 = vpack.c.bf16 %v340, %v292
    %v405 = vpack.c.bf16 %v341, %v293
    %v406 = vpack.c.bf16 %v342, %v294
    %v407 = vpack.c.bf16 %v343, %v295
    %v408 = vpack.c.bf16 %v344, %v296
    %v409 = vpack.c.bf16 %v345, %v297
    %v410 = vpack.c.bf16 1.0, %v386
    %v411 = vpack.c.bf16 1.0, %v387
    %v412 = vpack.c.bf16 1.0, %v388
    %v413 = vpack.c.bf16 1.0, %v389
    %v414 = vpack.c.bf16 1.0, %v390
    %v415 = vpack.c.bf16 1.0, %v391
    %v416 = vpack.c.bf16 1.0, %v392
    %v417 = vpack.c.bf16 1.0, %v393
    %v450 = vunpack.c.l.b16 %v73
    %v451 = vunpack.c.l.b16 %v74
    %v452 = vunpack.c.l.b16 %v75
    %v453 = vunpack.c.l.b16 %v76
    %v454 = vunpack.c.l.b16 %v77
    %v455 = vunpack.c.l.b16 %v78
    %v456 = vunpack.c.l.b16 %v79
    %v457 = vunpack.c.l.b16 %v80
    %v458 = vunpack.c.l.b16 %v81
    %v459 = vunpack.c.l.b16 %v82
    %v460 = vunpack.c.l.b16 %v83
    %v461 = vunpack.c.l.b16 %v84
    %v462 = vunpack.c.l.b16 %v85
    %v463 = vunpack.c.l.b16 %v86
    %v464 = vunpack.c.l.b16 %v87
    %v465 = vunpack.c.l.b16 %v88
    %v466 = vunpack.c.l.b16 %v89
    %v467 = vunpack.c.l.b16 %v90
    %v468 = vunpack.c.l.b16 %v91
    %v469 = vunpack.c.l.b16 %v92
    %v470 = vunpack.c.l.b16 %v93
    %v471 = vunpack.c.l.b16 %v94
    %v472 = vunpack.c.l.b16 %v95
    %v473 = vunpack.c.l.b16 %v96
    %v474 = vunpack.c.l.b16 %v97
    %v475 = vunpack.c.l.b16 %v98
    %v476 = vunpack.c.l.b16 %v99
    %v477 = vunpack.c.l.b16 %v100
    %v478 = vunpack.c.l.b16 %v101
    %v479 = vunpack.c.l.b16 %v102
    %v480 = vunpack.c.l.b16 %v103
    %v481 = vunpack.c.l.b16 %v104
    %v482 = vpack.c.b16 %v451, %v450
    %v483 = vpack.c.b16 %v453, %v452
    %v484 = vpack.c.b16 %v455, %v454
    %v485 = vpack.c.b16 %v457, %v456
    %v486 = vpack.c.b16 %v459, %v458
    %v487 = vpack.c.b16 %v461, %v460
    %v488 = vpack.c.b16 %v463, %v462
    %v489 = vpack.c.b16 %v465, %v464
    %v490 = vpack.c.b16 %v467, %v466
    %v491 = vpack.c.b16 %v469, %v468
    %v492 = vpack.c.b16 %v471, %v470
    %v493 = vpack.c.b16 %v473, %v472
    %v494 = vpack.c.b16 %v475, %v474
    %v495 = vpack.c.b16 %v477, %v476
    %v496 = vpack.c.b16 %v479, %v478
    %v497 = vpack.c.b16 %v481, %v480
    %vm498 = vcmask 392192
    %v500 = vsel %vm498, %v482, 0
    %v503 = vsel %vm498, %v483, 0
    %v506 = vsel %vm498, %v484, 0
    %v509 = vsel %vm498, %v485, 0
    %v512 = vsel %vm498, %v486, 0
    %v515 = vsel %vm498, %v487, 0
    %v518 = vsel %vm498, %v488, 0
    %v521 = vsel %vm498, %v489, 0
    %v524 = vsel %vm498, %v490, 0
    %v527 = vsel %vm498, %v491, 0
    %v530 = vsel %vm498, %v492, 0
    %v533 = vsel %vm498, %v493, 0
    %v536 = vsel %vm498, %v494, 0
    %v539 = vsel %vm498, %v495, 0
    %v542 = vsel %vm498, %v496, 0
    %v545 = vsel %vm498, %v497, 0
    %547 = vmatpush.bf16.msra.mxu0 0
    %548 = vmatpush.bf16.msra.mxu0 0
    %549 = vmatpush.bf16.msra.mxu0 0
    %550 = vmatpush.bf16.msra.mxu0 0
    %551 = vmatpush.bf16.msra.mxu0 0
    %552 = vmatpush.bf16.msra.mxu0 %v410
    %553 = vmatpush.bf16.msra.mxu0 %v402
    %554 = vmatpush.bf16.msra.mxu0 %v394
    %555 = vmatmul.bf16.gmra.mxu0 %v500
    %v556 = vpop.f32.mrf.mxu0
    %v557 = vadd.f32 0.0, %v556
    %v558 = vpop.f32.mrf.mxu0
    %v559 = vadd.f32 0.0, %v558
    %560 = vmatmul.bf16.gmra.mxu0 %v503
    %v561 = vpop.f32.mrf.mxu0
    %v562 = vadd.f32 0.0, %v561
    %v563 = vpop.f32.mrf.mxu0
    %v564 = vadd.f32 0.0, %v563
    %565 = vmatmul.bf16.gmra.mxu0 %v506
    %v566 = vpop.f32.mrf.mxu0
    %v567 = vadd.f32 0.0, %v566
    %v568 = vpop.f32.mrf.mxu0
    %v569 = vadd.f32 0.0, %v568
    %570 = vmatmul.bf16.gmra.mxu0 %v509
    %v571 = vpop.f32.mrf.mxu0
    %v572 = vadd.f32 0.0, %v571
    %v573 = vpop.f32.mrf.mxu0
    %v574 = vadd.f32 0.0, %v573
    %575 = vmatmul.bf16.gmra.mxu0 %v512
    %v576 = vpop.f32.mrf.mxu0
    %v577 = vadd.f32 0.0, %v576
    %v578 = vpop.f32.mrf.mxu0
    %v579 = vadd.f32 0.0, %v578
    %580 = vmatmul.bf16.gmra.mxu0 %v515
    %v581 = vpop.f32.mrf.mxu0
    %v582 = vadd.f32 0.0, %v581
    %v583 = vpop.f32.mrf.mxu0
    %v584 = vadd.f32 0.0, %v583
    %585 = vmatmul.bf16.gmra.mxu0 %v518
    %v586 = vpop.f32.mrf.mxu0
    %v587 = vadd.f32 0.0, %v586
    %v588 = vpop.f32.mrf.mxu0
    %v589 = vadd.f32 0.0, %v588
    %590 = vmatmul.bf16.gmra.mxu0 %v521
    %v591 = vpop.f32.mrf.mxu0
    %v592 = vadd.f32 0.0, %v591
    %v593 = vpop.f32.mrf.mxu0
    %v594 = vadd.f32 0.0, %v593
    %595 = vmatmul.bf16.gmra.mxu0 %v524
    %v596 = vpop.f32.mrf.mxu0
    %v597 = vadd.f32 0.0, %v596
    %v598 = vpop.f32.mrf.mxu0
    %v599 = vadd.f32 0.0, %v598
    %600 = vmatmul.bf16.gmra.mxu0 %v527
    %v601 = vpop.f32.mrf.mxu0
    %v602 = vadd.f32 0.0, %v601
    %v603 = vpop.f32.mrf.mxu0
    %v604 = vadd.f32 0.0, %v603
    %605 = vmatmul.bf16.gmra.mxu0 %v530
    %v606 = vpop.f32.mrf.mxu0
    %v607 = vadd.f32 0.0, %v606
    %v608 = vpop.f32.mrf.mxu0
    %v609 = vadd.f32 0.0, %v608
    %610 = vmatmul.bf16.gmra.mxu0 %v533
    %v611 = vpop.f32.mrf.mxu0
    %v612 = vadd.f32 0.0, %v611
    %v613 = vpop.f32.mrf.mxu0
    %v614 = vadd.f32 0.0, %v613
    %615 = vmatmul.bf16.gmra.mxu0 %v536
    %v616 = vpop.f32.mrf.mxu0
    %v617 = vadd.f32 0.0, %v616
    %v618 = vpop.f32.mrf.mxu0
    %v619 = vadd.f32 0.0, %v618
    %620 = vmatmul.bf16.gmra.mxu0 %v539
    %v621 = vpop.f32.mrf.mxu0
    %v622 = vadd.f32 0.0, %v621
    %v623 = vpop.f32.mrf.mxu0
    %v624 = vadd.f32 0.0, %v623
    %625 = vmatmul.bf16.gmra.mxu0 %v542
    %v626 = vpop.f32.mrf.mxu0
    %v627 = vadd.f32 0.0, %v626
    %v628 = vpop.f32.mrf.mxu0
    %v629 = vadd.f32 0.0, %v628
    %630 = vmatmul.bf16.gmra.mxu0 %v545
    %v631 = vpop.f32.mrf.mxu0
    %v632 = vadd.f32 0.0, %v631
    %v633 = vpop.f32.mrf.mxu0
    %v634 = vadd.f32 0.0, %v633
    %635 = vdwg.mxu0
    %636 = vmatpush.bf16.msra.mxu0 0
    %637 = vmatpush.bf16.msra.mxu0 0
    %638 = vmatpush.bf16.msra.mxu0 0
    %639 = vmatpush.bf16.msra.mxu0 0
    %640 = vmatpush.bf16.msra.mxu0 0
    %641 = vmatpush.bf16.msra.mxu0 %v411
    %642 = vmatpush.bf16.msra.mxu0 %v403
    %643 = vmatpush.bf16.msra.mxu0 %v395
    %644 = vmatmul.bf16.gmra.mxu0 %v500
    %v645 = vpop.f32.mrf.mxu0
    %v646 = vadd.f32 0.0, %v645
    %v647 = vpop.f32.mrf.mxu0
    %v648 = vadd.f32 0.0, %v647
    %649 = vmatmul.bf16.gmra.mxu0 %v503
    %v650 = vpop.f32.mrf.mxu0
    %v651 = vadd.f32 0.0, %v650
    %v652 = vpop.f32.mrf.mxu0
    %v653 = vadd.f32 0.0, %v652
    %654 = vmatmul.bf16.gmra.mxu0 %v506
    %v655 = vpop.f32.mrf.mxu0
    %v656 = vadd.f32 0.0, %v655
    %v657 = vpop.f32.mrf.mxu0
    %v658 = vadd.f32 0.0, %v657
    %659 = vmatmul.bf16.gmra.mxu0 %v509
    %v660 = vpop.f32.mrf.mxu0
    %v661 = vadd.f32 0.0, %v660
    %v662 = vpop.f32.mrf.mxu0
    %v663 = vadd.f32 0.0, %v662
    %664 = vmatmul.bf16.gmra.mxu0 %v512
    %v665 = vpop.f32.mrf.mxu0
    %v666 = vadd.f32 0.0, %v665
    %v667 = vpop.f32.mrf.mxu0
    %v668 = vadd.f32 0.0, %v667
    %669 = vmatmul.bf16.gmra.mxu0 %v515
    %v670 = vpop.f32.mrf.mxu0
    %v671 = vadd.f32 0.0, %v670
    %v672 = vpop.f32.mrf.mxu0
    %v673 = vadd.f32 0.0, %v672
    %674 = vmatmul.bf16.gmra.mxu0 %v518
    %v675 = vpop.f32.mrf.mxu0
    %v676 = vadd.f32 0.0, %v675
    %v677 = vpop.f32.mrf.mxu0
    %v678 = vadd.f32 0.0, %v677
    %679 = vmatmul.bf16.gmra.mxu0 %v521
    %v680 = vpop.f32.mrf.mxu0
    %v681 = vadd.f32 0.0, %v680
    %v682 = vpop.f32.mrf.mxu0
    %v683 = vadd.f32 0.0, %v682
    %684 = vmatmul.bf16.gmra.mxu0 %v524
    %v685 = vpop.f32.mrf.mxu0
    %v686 = vadd.f32 0.0, %v685
    %v687 = vpop.f32.mrf.mxu0
    %v688 = vadd.f32 0.0, %v687
    %689 = vmatmul.bf16.gmra.mxu0 %v527
    %v690 = vpop.f32.mrf.mxu0
    %v691 = vadd.f32 0.0, %v690
    %v692 = vpop.f32.mrf.mxu0
    %v693 = vadd.f32 0.0, %v692
    %694 = vmatmul.bf16.gmra.mxu0 %v530
    %v695 = vpop.f32.mrf.mxu0
    %v696 = vadd.f32 0.0, %v695
    %v697 = vpop.f32.mrf.mxu0
    %v698 = vadd.f32 0.0, %v697
    %699 = vmatmul.bf16.gmra.mxu0 %v533
    %v700 = vpop.f32.mrf.mxu0
    %v701 = vadd.f32 0.0, %v700
    %v702 = vpop.f32.mrf.mxu0
    %v703 = vadd.f32 0.0, %v702
    %704 = vmatmul.bf16.gmra.mxu0 %v536
    %v705 = vpop.f32.mrf.mxu0
    %v706 = vadd.f32 0.0, %v705
    %v707 = vpop.f32.mrf.mxu0
    %v708 = vadd.f32 0.0, %v707
    %709 = vmatmul.bf16.gmra.mxu0 %v539
    %v710 = vpop.f32.mrf.mxu0
    %v711 = vadd.f32 0.0, %v710
    %v712 = vpop.f32.mrf.mxu0
    %v713 = vadd.f32 0.0, %v712
    %714 = vmatmul.bf16.gmra.mxu0 %v542
    %v715 = vpop.f32.mrf.mxu0
    %v716 = vadd.f32 0.0, %v715
    %v717 = vpop.f32.mrf.mxu0
    %v718 = vadd.f32 0.0, %v717
    %719 = vmatmul.bf16.gmra.mxu0 %v545
    %v720 = vpop.f32.mrf.mxu0
    %v721 = vadd.f32 0.0, %v720
    %v722 = vpop.f32.mrf.mxu0
    %v723 = vadd.f32 0.0, %v722
    %724 = vdwg.mxu0
    %725 = vmatpush.bf16.msra.mxu0 0
    %726 = vmatpush.bf16.msra.mxu0 0
    %727 = vmatpush.bf16.msra.mxu0 0
    %728 = vmatpush.bf16.msra.mxu0 0
    %729 = vmatpush.bf16.msra.mxu0 0
    %730 = vmatpush.bf16.msra.mxu0 %v412
    %731 = vmatpush.bf16.msra.mxu0 %v404
    %732 = vmatpush.bf16.msra.mxu0 %v396
    %733 = vmatmul.bf16.gmra.mxu0 %v500
    %v734 = vpop.f32.mrf.mxu0
    %v735 = vadd.f32 0.0, %v734
    %v736 = vpop.f32.mrf.mxu0
    %v737 = vadd.f32 0.0, %v736
    %738 = vmatmul.bf16.gmra.mxu0 %v503
    %v739 = vpop.f32.mrf.mxu0
    %v740 = vadd.f32 0.0, %v739
    %v741 = vpop.f32.mrf.mxu0
    %v742 = vadd.f32 0.0, %v741
    %743 = vmatmul.bf16.gmra.mxu0 %v506
    %v744 = vpop.f32.mrf.mxu0
    %v745 = vadd.f32 0.0, %v744
    %v746 = vpop.f32.mrf.mxu0
    %v747 = vadd.f32 0.0, %v746
    %748 = vmatmul.bf16.gmra.mxu0 %v509
    %v749 = vpop.f32.mrf.mxu0
    %v750 = vadd.f32 0.0, %v749
    %v751 = vpop.f32.mrf.mxu0
    %v752 = vadd.f32 0.0, %v751
    %753 = vmatmul.bf16.gmra.mxu0 %v512
    %v754 = vpop.f32.mrf.mxu0
    %v755 = vadd.f32 0.0, %v754
    %v756 = vpop.f32.mrf.mxu0
    %v757 = vadd.f32 0.0, %v756
    %758 = vmatmul.bf16.gmra.mxu0 %v515
    %v759 = vpop.f32.mrf.mxu0
    %v760 = vadd.f32 0.0, %v759
    %v761 = vpop.f32.mrf.mxu0
    %v762 = vadd.f32 0.0, %v761
    %763 = vmatmul.bf16.gmra.mxu0 %v518
    %v764 = vpop.f32.mrf.mxu0
    %v765 = vadd.f32 0.0, %v764
    %v766 = vpop.f32.mrf.mxu0
    %v767 = vadd.f32 0.0, %v766
    %768 = vmatmul.bf16.gmra.mxu0 %v521
    %v769 = vpop.f32.mrf.mxu0
    %v770 = vadd.f32 0.0, %v769
    %v771 = vpop.f32.mrf.mxu0
    %v772 = vadd.f32 0.0, %v771
    %773 = vmatmul.bf16.gmra.mxu0 %v524
    %v774 = vpop.f32.mrf.mxu0
    %v775 = vadd.f32 0.0, %v774
    %v776 = vpop.f32.mrf.mxu0
    %v777 = vadd.f32 0.0, %v776
    %778 = vmatmul.bf16.gmra.mxu0 %v527
    %v779 = vpop.f32.mrf.mxu0
    %v780 = vadd.f32 0.0, %v779
    %v781 = vpop.f32.mrf.mxu0
    %v782 = vadd.f32 0.0, %v781
    %783 = vmatmul.bf16.gmra.mxu0 %v530
    %v784 = vpop.f32.mrf.mxu0
    %v785 = vadd.f32 0.0, %v784
    %v786 = vpop.f32.mrf.mxu0
    %v787 = vadd.f32 0.0, %v786
    %788 = vmatmul.bf16.gmra.mxu0 %v533
    %v789 = vpop.f32.mrf.mxu0
    %v790 = vadd.f32 0.0, %v789
    %v791 = vpop.f32.mrf.mxu0
    %v792 = vadd.f32 0.0, %v791
    %793 = vmatmul.bf16.gmra.mxu0 %v536
    %v794 = vpop.f32.mrf.mxu0
    %v795 = vadd.f32 0.0, %v794
    %v796 = vpop.f32.mrf.mxu0
    %v797 = vadd.f32 0.0, %v796
    %798 = vmatmul.bf16.gmra.mxu0 %v539
    %v799 = vpop.f32.mrf.mxu0
    %v800 = vadd.f32 0.0, %v799
    %v801 = vpop.f32.mrf.mxu0
    %v802 = vadd.f32 0.0, %v801
    %803 = vmatmul.bf16.gmra.mxu0 %v542
    %v804 = vpop.f32.mrf.mxu0
    %v805 = vadd.f32 0.0, %v804
    %v806 = vpop.f32.mrf.mxu0
    %v807 = vadd.f32 0.0, %v806
    %808 = vmatmul.bf16.gmra.mxu0 %v545
    %v809 = vpop.f32.mrf.mxu0
    %v810 = vadd.f32 0.0, %v809
    %v811 = vpop.f32.mrf.mxu0
    %v812 = vadd.f32 0.0, %v811
    %813 = vdwg.mxu0
    %814 = vmatpush.bf16.msra.mxu0 0
    %815 = vmatpush.bf16.msra.mxu0 0
    %816 = vmatpush.bf16.msra.mxu0 0
    %817 = vmatpush.bf16.msra.mxu0 0
    %818 = vmatpush.bf16.msra.mxu0 0
    %819 = vmatpush.bf16.msra.mxu0 %v413
    %820 = vmatpush.bf16.msra.mxu0 %v405
    %821 = vmatpush.bf16.msra.mxu0 %v397
    %822 = vmatmul.bf16.gmra.mxu0 %v500
    %v823 = vpop.f32.mrf.mxu0
    %v824 = vadd.f32 0.0, %v823
    %v825 = vpop.f32.mrf.mxu0
    %v826 = vadd.f32 0.0, %v825
    %827 = vmatmul.bf16.gmra.mxu0 %v503
    %v828 = vpop.f32.mrf.mxu0
    %v829 = vadd.f32 0.0, %v828
    %v830 = vpop.f32.mrf.mxu0
    %v831 = vadd.f32 0.0, %v830
    %832 = vmatmul.bf16.gmra.mxu0 %v506
    %v833 = vpop.f32.mrf.mxu0
    %v834 = vadd.f32 0.0, %v833
    %v835 = vpop.f32.mrf.mxu0
    %v836 = vadd.f32 0.0, %v835
    %837 = vmatmul.bf16.gmra.mxu0 %v509
    %v838 = vpop.f32.mrf.mxu0
    %v839 = vadd.f32 0.0, %v838
    %v840 = vpop.f32.mrf.mxu0
    %v841 = vadd.f32 0.0, %v840
    %842 = vmatmul.bf16.gmra.mxu0 %v512
    %v843 = vpop.f32.mrf.mxu0
    %v844 = vadd.f32 0.0, %v843
    %v845 = vpop.f32.mrf.mxu0
    %v846 = vadd.f32 0.0, %v845
    %847 = vmatmul.bf16.gmra.mxu0 %v515
    %v848 = vpop.f32.mrf.mxu0
    %v849 = vadd.f32 0.0, %v848
    %v850 = vpop.f32.mrf.mxu0
    %v851 = vadd.f32 0.0, %v850
    %852 = vmatmul.bf16.gmra.mxu0 %v518
    %v853 = vpop.f32.mrf.mxu0
    %v854 = vadd.f32 0.0, %v853
    %v855 = vpop.f32.mrf.mxu0
    %v856 = vadd.f32 0.0, %v855
    %857 = vmatmul.bf16.gmra.mxu0 %v521
    %v858 = vpop.f32.mrf.mxu0
    %v859 = vadd.f32 0.0, %v858
    %v860 = vpop.f32.mrf.mxu0
    %v861 = vadd.f32 0.0, %v860
    %862 = vmatmul.bf16.gmra.mxu0 %v524
    %v863 = vpop.f32.mrf.mxu0
    %v864 = vadd.f32 0.0, %v863
    %v865 = vpop.f32.mrf.mxu0
    %v866 = vadd.f32 0.0, %v865
    %867 = vmatmul.bf16.gmra.mxu0 %v527
    %v868 = vpop.f32.mrf.mxu0
    %v869 = vadd.f32 0.0, %v868
    %v870 = vpop.f32.mrf.mxu0
    %v871 = vadd.f32 0.0, %v870
    %872 = vmatmul.bf16.gmra.mxu0 %v530
    %v873 = vpop.f32.mrf.mxu0
    %v874 = vadd.f32 0.0, %v873
    %v875 = vpop.f32.mrf.mxu0
    %v876 = vadd.f32 0.0, %v875
    %877 = vmatmul.bf16.gmra.mxu0 %v533
    %v878 = vpop.f32.mrf.mxu0
    %v879 = vadd.f32 0.0, %v878
    %v880 = vpop.f32.mrf.mxu0
    %v881 = vadd.f32 0.0, %v880
    %882 = vmatmul.bf16.gmra.mxu0 %v536
    %v883 = vpop.f32.mrf.mxu0
    %v884 = vadd.f32 0.0, %v883
    %v885 = vpop.f32.mrf.mxu0
    %v886 = vadd.f32 0.0, %v885
    %887 = vmatmul.bf16.gmra.mxu0 %v539
    %v888 = vpop.f32.mrf.mxu0
    %v889 = vadd.f32 0.0, %v888
    %v890 = vpop.f32.mrf.mxu0
    %v891 = vadd.f32 0.0, %v890
    %892 = vmatmul.bf16.gmra.mxu0 %v542
    %v893 = vpop.f32.mrf.mxu0
    %v894 = vadd.f32 0.0, %v893
    %v895 = vpop.f32.mrf.mxu0
    %v896 = vadd.f32 0.0, %v895
    %897 = vmatmul.bf16.gmra.mxu0 %v545
    %v898 = vpop.f32.mrf.mxu0
    %v899 = vadd.f32 0.0, %v898
    %v900 = vpop.f32.mrf.mxu0
    %v901 = vadd.f32 0.0, %v900
    %902 = vdwg.mxu0
    %903 = vmatpush.bf16.msra.mxu0 0
    %904 = vmatpush.bf16.msra.mxu0 0
    %905 = vmatpush.bf16.msra.mxu0 0
    %906 = vmatpush.bf16.msra.mxu0 0
    %907 = vmatpush.bf16.msra.mxu0 0
    %908 = vmatpush.bf16.msra.mxu0 %v414
    %909 = vmatpush.bf16.msra.mxu0 %v406
    %910 = vmatpush.bf16.msra.mxu0 %v398
    %911 = vmatmul.bf16.gmra.mxu0 %v500
    %v912 = vpop.f32.mrf.mxu0
    %v913 = vadd.f32 0.0, %v912
    %v914 = vpop.f32.mrf.mxu0
    %v915 = vadd.f32 0.0, %v914
    %916 = vmatmul.bf16.gmra.mxu0 %v503
    %v917 = vpop.f32.mrf.mxu0
    %v918 = vadd.f32 0.0, %v917
    %v919 = vpop.f32.mrf.mxu0
    %v920 = vadd.f32 0.0, %v919
    %921 = vmatmul.bf16.gmra.mxu0 %v506
    %v922 = vpop.f32.mrf.mxu0
    %v923 = vadd.f32 0.0, %v922
    %v924 = vpop.f32.mrf.mxu0
    %v925 = vadd.f32 0.0, %v924
    %926 = vmatmul.bf16.gmra.mxu0 %v509
    %v927 = vpop.f32.mrf.mxu0
    %v928 = vadd.f32 0.0, %v927
    %v929 = vpop.f32.mrf.mxu0
    %v930 = vadd.f32 0.0, %v929
    %931 = vmatmul.bf16.gmra.mxu0 %v512
    %v932 = vpop.f32.mrf.mxu0
    %v933 = vadd.f32 0.0, %v932
    %v934 = vpop.f32.mrf.mxu0
    %v935 = vadd.f32 0.0, %v934
    %936 = vmatmul.bf16.gmra.mxu0 %v515
    %v937 = vpop.f32.mrf.mxu0
    %v938 = vadd.f32 0.0, %v937
    %v939 = vpop.f32.mrf.mxu0
    %v940 = vadd.f32 0.0, %v939
    %941 = vmatmul.bf16.gmra.mxu0 %v518
    %v942 = vpop.f32.mrf.mxu0
    %v943 = vadd.f32 0.0, %v942
    %v944 = vpop.f32.mrf.mxu0
    %v945 = vadd.f32 0.0, %v944
    %946 = vmatmul.bf16.gmra.mxu0 %v521
    %v947 = vpop.f32.mrf.mxu0
    %v948 = vadd.f32 0.0, %v947
    %v949 = vpop.f32.mrf.mxu0
    %v950 = vadd.f32 0.0, %v949
    %951 = vmatmul.bf16.gmra.mxu0 %v524
    %v952 = vpop.f32.mrf.mxu0
    %v953 = vadd.f32 0.0, %v952
    %v954 = vpop.f32.mrf.mxu0
    %v955 = vadd.f32 0.0, %v954
    %956 = vmatmul.bf16.gmra.mxu0 %v527
    %v957 = vpop.f32.mrf.mxu0
    %v958 = vadd.f32 0.0, %v957
    %v959 = vpop.f32.mrf.mxu0
    %v960 = vadd.f32 0.0, %v959
    %961 = vmatmul.bf16.gmra.mxu0 %v530
    %v962 = vpop.f32.mrf.mxu0
    %v963 = vadd.f32 0.0, %v962
    %v964 = vpop.f32.mrf.mxu0
    %v965 = vadd.f32 0.0, %v964
    %966 = vmatmul.bf16.gmra.mxu0 %v533
    %v967 = vpop.f32.mrf.mxu0
    %v968 = vadd.f32 0.0, %v967
    %v969 = vpop.f32.mrf.mxu0
    %v970 = vadd.f32 0.0, %v969
    %971 = vmatmul.bf16.gmra.mxu0 %v536
    %v972 = vpop.f32.mrf.mxu0
    %v973 = vadd.f32 0.0, %v972
    %v974 = vpop.f32.mrf.mxu0
    %v975 = vadd.f32 0.0, %v974
    %976 = vmatmul.bf16.gmra.mxu0 %v539
    %v977 = vpop.f32.mrf.mxu0
    %v978 = vadd.f32 0.0, %v977
    %v979 = vpop.f32.mrf.mxu0
    %v980 = vadd.f32 0.0, %v979
    %981 = vmatmul.bf16.gmra.mxu0 %v542
    %v982 = vpop.f32.mrf.mxu0
    %v983 = vadd.f32 0.0, %v982
    %v984 = vpop.f32.mrf.mxu0
    %v985 = vadd.f32 0.0, %v984
    %986 = vmatmul.bf16.gmra.mxu0 %v545
    %v987 = vpop.f32.mrf.mxu0
    %v988 = vadd.f32 0.0, %v987
    %v989 = vpop.f32.mrf.mxu0
    %v990 = vadd.f32 0.0, %v989
    %991 = vdwg.mxu0
    %992 = vmatpush.bf16.msra.mxu0 0
    %993 = vmatpush.bf16.msra.mxu0 0
    %994 = vmatpush.bf16.msra.mxu0 0
    %995 = vmatpush.bf16.msra.mxu0 0
    %996 = vmatpush.bf16.msra.mxu0 0
    %997 = vmatpush.bf16.msra.mxu0 %v415
    %998 = vmatpush.bf16.msra.mxu0 %v407
    %999 = vmatpush.bf16.msra.mxu0 %v399
    %1000 = vmatmul.bf16.gmra.mxu0 %v500
    %v1001 = vpop.f32.mrf.mxu0
    %v1002 = vadd.f32 0.0, %v1001
    %v1003 = vpop.f32.mrf.mxu0
    %v1004 = vadd.f32 0.0, %v1003
    %1005 = vmatmul.bf16.gmra.mxu0 %v503
    %v1006 = vpop.f32.mrf.mxu0
    %v1007 = vadd.f32 0.0, %v1006
    %v1008 = vpop.f32.mrf.mxu0
    %v1009 = vadd.f32 0.0, %v1008
    %1010 = vmatmul.bf16.gmra.mxu0 %v506
    %v1011 = vpop.f32.mrf.mxu0
    %v1012 = vadd.f32 0.0, %v1011
    %v1013 = vpop.f32.mrf.mxu0
    %v1014 = vadd.f32 0.0, %v1013
    %1015 = vmatmul.bf16.gmra.mxu0 %v509
    %v1016 = vpop.f32.mrf.mxu0
    %v1017 = vadd.f32 0.0, %v1016
    %v1018 = vpop.f32.mrf.mxu0
    %v1019 = vadd.f32 0.0, %v1018
    %1020 = vmatmul.bf16.gmra.mxu0 %v512
    %v1021 = vpop.f32.mrf.mxu0
    %v1022 = vadd.f32 0.0, %v1021
    %v1023 = vpop.f32.mrf.mxu0
    %v1024 = vadd.f32 0.0, %v1023
    %1025 = vmatmul.bf16.gmra.mxu0 %v515
    %v1026 = vpop.f32.mrf.mxu0
    %v1027 = vadd.f32 0.0, %v1026
    %v1028 = vpop.f32.mrf.mxu0
    %v1029 = vadd.f32 0.0, %v1028
    %1030 = vmatmul.bf16.gmra.mxu0 %v518
    %v1031 = vpop.f32.mrf.mxu0
    %v1032 = vadd.f32 0.0, %v1031
    %v1033 = vpop.f32.mrf.mxu0
    %v1034 = vadd.f32 0.0, %v1033
    %1035 = vmatmul.bf16.gmra.mxu0 %v521
    %v1036 = vpop.f32.mrf.mxu0
    %v1037 = vadd.f32 0.0, %v1036
    %v1038 = vpop.f32.mrf.mxu0
    %v1039 = vadd.f32 0.0, %v1038
    %1040 = vmatmul.bf16.gmra.mxu0 %v524
    %v1041 = vpop.f32.mrf.mxu0
    %v1042 = vadd.f32 0.0, %v1041
    %v1043 = vpop.f32.mrf.mxu0
    %v1044 = vadd.f32 0.0, %v1043
    %1045 = vmatmul.bf16.gmra.mxu0 %v527
    %v1046 = vpop.f32.mrf.mxu0
    %v1047 = vadd.f32 0.0, %v1046
    %v1048 = vpop.f32.mrf.mxu0
    %v1049 = vadd.f32 0.0, %v1048
    %1050 = vmatmul.bf16.gmra.mxu0 %v530
    %v1051 = vpop.f32.mrf.mxu0
    %v1052 = vadd.f32 0.0, %v1051
    %v1053 = vpop.f32.mrf.mxu0
    %v1054 = vadd.f32 0.0, %v1053
    %1055 = vmatmul.bf16.gmra.mxu0 %v533
    %v1056 = vpop.f32.mrf.mxu0
    %v1057 = vadd.f32 0.0, %v1056
    %v1058 = vpop.f32.mrf.mxu0
    %v1059 = vadd.f32 0.0, %v1058
    %1060 = vmatmul.bf16.gmra.mxu0 %v536
    %v1061 = vpop.f32.mrf.mxu0
    %v1062 = vadd.f32 0.0, %v1061
    %v1063 = vpop.f32.mrf.mxu0
    %v1064 = vadd.f32 0.0, %v1063
    %1065 = vmatmul.bf16.gmra.mxu0 %v539
    %v1066 = vpop.f32.mrf.mxu0
    %v1067 = vadd.f32 0.0, %v1066
    %v1068 = vpop.f32.mrf.mxu0
    %v1069 = vadd.f32 0.0, %v1068
    %1070 = vmatmul.bf16.gmra.mxu0 %v542
    %v1071 = vpop.f32.mrf.mxu0
    %v1072 = vadd.f32 0.0, %v1071
    %v1073 = vpop.f32.mrf.mxu0
    %v1074 = vadd.f32 0.0, %v1073
    %1075 = vmatmul.bf16.gmra.mxu0 %v545
    %v1076 = vpop.f32.mrf.mxu0
    %v1077 = vadd.f32 0.0, %v1076
    %v1078 = vpop.f32.mrf.mxu0
    %v1079 = vadd.f32 0.0, %v1078
    %1080 = vdwg.mxu0
    %1081 = vmatpush.bf16.msra.mxu0 0
    %1082 = vmatpush.bf16.msra.mxu0 0
    %1083 = vmatpush.bf16.msra.mxu0 0
    %1084 = vmatpush.bf16.msra.mxu0 0
    %1085 = vmatpush.bf16.msra.mxu0 0
    %1086 = vmatpush.bf16.msra.mxu0 %v416
    %1087 = vmatpush.bf16.msra.mxu0 %v408
    %1088 = vmatpush.bf16.msra.mxu0 %v400
    %1089 = vmatmul.bf16.gmra.mxu0 %v500
    %v1090 = vpop.f32.mrf.mxu0
    %v1091 = vadd.f32 0.0, %v1090
    %v1092 = vpop.f32.mrf.mxu0
    %v1093 = vadd.f32 0.0, %v1092
    %1094 = vmatmul.bf16.gmra.mxu0 %v503
    %v1095 = vpop.f32.mrf.mxu0
    %v1096 = vadd.f32 0.0, %v1095
    %v1097 = vpop.f32.mrf.mxu0
    %v1098 = vadd.f32 0.0, %v1097
    %1099 = vmatmul.bf16.gmra.mxu0 %v506
    %v1100 = vpop.f32.mrf.mxu0
    %v1101 = vadd.f32 0.0, %v1100
    %v1102 = vpop.f32.mrf.mxu0
    %v1103 = vadd.f32 0.0, %v1102
    %1104 = vmatmul.bf16.gmra.mxu0 %v509
    %v1105 = vpop.f32.mrf.mxu0
    %v1106 = vadd.f32 0.0, %v1105
    %v1107 = vpop.f32.mrf.mxu0
    %v1108 = vadd.f32 0.0, %v1107
    %1109 = vmatmul.bf16.gmra.mxu0 %v512
    %v1110 = vpop.f32.mrf.mxu0
    %v1111 = vadd.f32 0.0, %v1110
    %v1112 = vpop.f32.mrf.mxu0
    %v1113 = vadd.f32 0.0, %v1112
    %1114 = vmatmul.bf16.gmra.mxu0 %v515
    %v1115 = vpop.f32.mrf.mxu0
    %v1116 = vadd.f32 0.0, %v1115
    %v1117 = vpop.f32.mrf.mxu0
    %v1118 = vadd.f32 0.0, %v1117
    %1119 = vmatmul.bf16.gmra.mxu0 %v518
    %v1120 = vpop.f32.mrf.mxu0
    %v1121 = vadd.f32 0.0, %v1120
    %v1122 = vpop.f32.mrf.mxu0
    %v1123 = vadd.f32 0.0, %v1122
    %1124 = vmatmul.bf16.gmra.mxu0 %v521
    %v1125 = vpop.f32.mrf.mxu0
    %v1126 = vadd.f32 0.0, %v1125
    %v1127 = vpop.f32.mrf.mxu0
    %v1128 = vadd.f32 0.0, %v1127
    %1129 = vmatmul.bf16.gmra.mxu0 %v524
    %v1130 = vpop.f32.mrf.mxu0
    %v1131 = vadd.f32 0.0, %v1130
    %v1132 = vpop.f32.mrf.mxu0
    %v1133 = vadd.f32 0.0, %v1132
    %1134 = vmatmul.bf16.gmra.mxu0 %v527
    %v1135 = vpop.f32.mrf.mxu0
    %v1136 = vadd.f32 0.0, %v1135
    %v1137 = vpop.f32.mrf.mxu0
    %v1138 = vadd.f32 0.0, %v1137
    %1139 = vmatmul.bf16.gmra.mxu0 %v530
    %v1140 = vpop.f32.mrf.mxu0
    %v1141 = vadd.f32 0.0, %v1140
    %v1142 = vpop.f32.mrf.mxu0
    %v1143 = vadd.f32 0.0, %v1142
    %1144 = vmatmul.bf16.gmra.mxu0 %v533
    %v1145 = vpop.f32.mrf.mxu0
    %v1146 = vadd.f32 0.0, %v1145
    %v1147 = vpop.f32.mrf.mxu0
    %v1148 = vadd.f32 0.0, %v1147
    %1149 = vmatmul.bf16.gmra.mxu0 %v536
    %v1150 = vpop.f32.mrf.mxu0
    %v1151 = vadd.f32 0.0, %v1150
    %v1152 = vpop.f32.mrf.mxu0
    %v1153 = vadd.f32 0.0, %v1152
    %1154 = vmatmul.bf16.gmra.mxu0 %v539
    %v1155 = vpop.f32.mrf.mxu0
    %v1156 = vadd.f32 0.0, %v1155
    %v1157 = vpop.f32.mrf.mxu0
    %v1158 = vadd.f32 0.0, %v1157
    %1159 = vmatmul.bf16.gmra.mxu0 %v542
    %v1160 = vpop.f32.mrf.mxu0
    %v1161 = vadd.f32 0.0, %v1160
    %v1162 = vpop.f32.mrf.mxu0
    %v1163 = vadd.f32 0.0, %v1162
    %1164 = vmatmul.bf16.gmra.mxu0 %v545
    %v1165 = vpop.f32.mrf.mxu0
    %v1166 = vadd.f32 0.0, %v1165
    %v1167 = vpop.f32.mrf.mxu0
    %v1168 = vadd.f32 0.0, %v1167
    %1169 = vdwg.mxu0
    %1170 = vmatpush.bf16.msra.mxu0 0
    %1171 = vmatpush.bf16.msra.mxu0 0
    %1172 = vmatpush.bf16.msra.mxu0 0
    %1173 = vmatpush.bf16.msra.mxu0 0
    %1174 = vmatpush.bf16.msra.mxu0 0
    %1175 = vmatpush.bf16.msra.mxu0 %v417
    %1176 = vmatpush.bf16.msra.mxu0 %v409
    %1177 = vmatpush.bf16.msra.mxu0 %v401
    %1178 = vmatmul.bf16.gmra.mxu0 %v500
    %v1179 = vpop.f32.mrf.mxu0
    %v1180 = vadd.f32 0.0, %v1179
    %v1181 = vpop.f32.mrf.mxu0
    %v1182 = vadd.f32 0.0, %v1181
    %1183 = vmatmul.bf16.gmra.mxu0 %v503
    %v1184 = vpop.f32.mrf.mxu0
    %v1185 = vadd.f32 0.0, %v1184
    %v1186 = vpop.f32.mrf.mxu0
    %v1187 = vadd.f32 0.0, %v1186
    %1188 = vmatmul.bf16.gmra.mxu0 %v506
    %v1189 = vpop.f32.mrf.mxu0
    %v1190 = vadd.f32 0.0, %v1189
    %v1191 = vpop.f32.mrf.mxu0
    %v1192 = vadd.f32 0.0, %v1191
    %1193 = vmatmul.bf16.gmra.mxu0 %v509
    %v1194 = vpop.f32.mrf.mxu0
    %v1195 = vadd.f32 0.0, %v1194
    %v1196 = vpop.f32.mrf.mxu0
    %v1197 = vadd.f32 0.0, %v1196
    %1198 = vmatmul.bf16.gmra.mxu0 %v512
    %v1199 = vpop.f32.mrf.mxu0
    %v1200 = vadd.f32 0.0, %v1199
    %v1201 = vpop.f32.mrf.mxu0
    %v1202 = vadd.f32 0.0, %v1201
    %1203 = vmatmul.bf16.gmra.mxu0 %v515
    %v1204 = vpop.f32.mrf.mxu0
    %v1205 = vadd.f32 0.0, %v1204
    %v1206 = vpop.f32.mrf.mxu0
    %v1207 = vadd.f32 0.0, %v1206
    %1208 = vmatmul.bf16.gmra.mxu0 %v518
    %v1209 = vpop.f32.mrf.mxu0
    %v1210 = vadd.f32 0.0, %v1209
    %v1211 = vpop.f32.mrf.mxu0
    %v1212 = vadd.f32 0.0, %v1211
    %1213 = vmatmul.bf16.gmra.mxu0 %v521
    %v1214 = vpop.f32.mrf.mxu0
    %v1215 = vadd.f32 0.0, %v1214
    %v1216 = vpop.f32.mrf.mxu0
    %v1217 = vadd.f32 0.0, %v1216
    %1218 = vmatmul.bf16.gmra.mxu0 %v524
    %v1219 = vpop.f32.mrf.mxu0
    %v1220 = vadd.f32 0.0, %v1219
    %v1221 = vpop.f32.mrf.mxu0
    %v1222 = vadd.f32 0.0, %v1221
    %1223 = vmatmul.bf16.gmra.mxu0 %v527
    %v1224 = vpop.f32.mrf.mxu0
    %v1225 = vadd.f32 0.0, %v1224
    %v1226 = vpop.f32.mrf.mxu0
    %v1227 = vadd.f32 0.0, %v1226
    %1228 = vmatmul.bf16.gmra.mxu0 %v530
    %v1229 = vpop.f32.mrf.mxu0
    %v1230 = vadd.f32 0.0, %v1229
    %v1231 = vpop.f32.mrf.mxu0
    %v1232 = vadd.f32 0.0, %v1231
    %1233 = vmatmul.bf16.gmra.mxu0 %v533
    %v1234 = vpop.f32.mrf.mxu0
    %v1235 = vadd.f32 0.0, %v1234
    %v1236 = vpop.f32.mrf.mxu0
    %v1237 = vadd.f32 0.0, %v1236
    %1238 = vmatmul.bf16.gmra.mxu0 %v536
    %v1239 = vpop.f32.mrf.mxu0
    %v1240 = vadd.f32 0.0, %v1239
    %v1241 = vpop.f32.mrf.mxu0
    %v1242 = vadd.f32 0.0, %v1241
    %1243 = vmatmul.bf16.gmra.mxu0 %v539
    %v1244 = vpop.f32.mrf.mxu0
    %v1245 = vadd.f32 0.0, %v1244
    %v1246 = vpop.f32.mrf.mxu0
    %v1247 = vadd.f32 0.0, %v1246
    %1248 = vmatmul.bf16.gmra.mxu0 %v542
    %v1249 = vpop.f32.mrf.mxu0
    %v1250 = vadd.f32 0.0, %v1249
    %v1251 = vpop.f32.mrf.mxu0
    %v1252 = vadd.f32 0.0, %v1251
    %1253 = vmatmul.bf16.gmra.mxu0 %v545
    %v1254 = vpop.f32.mrf.mxu0
    %v1255 = vadd.f32 0.0, %v1254
    %v1256 = vpop.f32.mrf.mxu0
    %v1257 = vadd.f32 0.0, %v1256
    %1258 = vdwg.mxu0
    %v1259 = vpack.c.bf16 %v646, %v557
    %v1260 = vpack.c.bf16 %v824, %v735
    %v1261 = vpack.c.bf16 %v1002, %v913
    %v1262 = vpack.c.bf16 %v1180, %v1091
    %v1263 = vpack.c.bf16 %v648, %v559
    %v1264 = vpack.c.bf16 %v826, %v737
    %v1265 = vpack.c.bf16 %v1004, %v915
    %v1266 = vpack.c.bf16 %v1182, %v1093
    %v1267 = vpack.c.bf16 %v651, %v562
    %v1268 = vpack.c.bf16 %v829, %v740
    %v1269 = vpack.c.bf16 %v1007, %v918
    %v1270 = vpack.c.bf16 %v1185, %v1096
    %v1271 = vpack.c.bf16 %v653, %v564
    %v1272 = vpack.c.bf16 %v831, %v742
    %v1273 = vpack.c.bf16 %v1009, %v920
    %v1274 = vpack.c.bf16 %v1187, %v1098
    %v1275 = vpack.c.bf16 %v656, %v567
    %v1276 = vpack.c.bf16 %v834, %v745
    %v1277 = vpack.c.bf16 %v1012, %v923
    %v1278 = vpack.c.bf16 %v1190, %v1101
    %v1279 = vpack.c.bf16 %v658, %v569
    %v1280 = vpack.c.bf16 %v836, %v747
    %v1281 = vpack.c.bf16 %v1014, %v925
    %v1282 = vpack.c.bf16 %v1192, %v1103
    %v1283 = vpack.c.bf16 %v661, %v572
    %v1284 = vpack.c.bf16 %v839, %v750
    %v1285 = vpack.c.bf16 %v1017, %v928
    %v1286 = vpack.c.bf16 %v1195, %v1106
    %v1287 = vpack.c.bf16 %v663, %v574
    %v1288 = vpack.c.bf16 %v841, %v752
    %v1289 = vpack.c.bf16 %v1019, %v930
    %v1290 = vpack.c.bf16 %v1197, %v1108
    %v1291 = vpack.c.bf16 %v666, %v577
    %v1292 = vpack.c.bf16 %v844, %v755
    %v1293 = vpack.c.bf16 %v1022, %v933
    %v1294 = vpack.c.bf16 %v1200, %v1111
    %v1295 = vpack.c.bf16 %v668, %v579
    %v1296 = vpack.c.bf16 %v846, %v757
    %v1297 = vpack.c.bf16 %v1024, %v935
    %v1298 = vpack.c.bf16 %v1202, %v1113
    %v1299 = vpack.c.bf16 %v671, %v582
    %v1300 = vpack.c.bf16 %v849, %v760
    %v1301 = vpack.c.bf16 %v1027, %v938
    %v1302 = vpack.c.bf16 %v1205, %v1116
    %v1303 = vpack.c.bf16 %v673, %v584
    %v1304 = vpack.c.bf16 %v851, %v762
    %v1305 = vpack.c.bf16 %v1029, %v940
    %v1306 = vpack.c.bf16 %v1207, %v1118
    %v1307 = vpack.c.bf16 %v676, %v587
    %v1308 = vpack.c.bf16 %v854, %v765
    %v1309 = vpack.c.bf16 %v1032, %v943
    %v1310 = vpack.c.bf16 %v1210, %v1121
    %v1311 = vpack.c.bf16 %v678, %v589
    %v1312 = vpack.c.bf16 %v856, %v767
    %v1313 = vpack.c.bf16 %v1034, %v945
    %v1314 = vpack.c.bf16 %v1212, %v1123
    %v1315 = vpack.c.bf16 %v681, %v592
    %v1316 = vpack.c.bf16 %v859, %v770
    %v1317 = vpack.c.bf16 %v1037, %v948
    %v1318 = vpack.c.bf16 %v1215, %v1126
    %v1319 = vpack.c.bf16 %v683, %v594
    %v1320 = vpack.c.bf16 %v861, %v772
    %v1321 = vpack.c.bf16 %v1039, %v950
    %v1322 = vpack.c.bf16 %v1217, %v1128
    %v1323 = vpack.c.bf16 %v686, %v597
    %v1324 = vpack.c.bf16 %v864, %v775
    %v1325 = vpack.c.bf16 %v1042, %v953
    %v1326 = vpack.c.bf16 %v1220, %v1131
    %v1327 = vpack.c.bf16 %v688, %v599
    %v1328 = vpack.c.bf16 %v866, %v777
    %v1329 = vpack.c.bf16 %v1044, %v955
    %v1330 = vpack.c.bf16 %v1222, %v1133
    %v1331 = vpack.c.bf16 %v691, %v602
    %v1332 = vpack.c.bf16 %v869, %v780
    %v1333 = vpack.c.bf16 %v1047, %v958
    %v1334 = vpack.c.bf16 %v1225, %v1136
    %v1335 = vpack.c.bf16 %v693, %v604
    %v1336 = vpack.c.bf16 %v871, %v782
    %v1337 = vpack.c.bf16 %v1049, %v960
    %v1338 = vpack.c.bf16 %v1227, %v1138
    %v1339 = vpack.c.bf16 %v696, %v607
    %v1340 = vpack.c.bf16 %v874, %v785
    %v1341 = vpack.c.bf16 %v1052, %v963
    %v1342 = vpack.c.bf16 %v1230, %v1141
    %v1343 = vpack.c.bf16 %v698, %v609
    %v1344 = vpack.c.bf16 %v876, %v787
    %v1345 = vpack.c.bf16 %v1054, %v965
    %v1346 = vpack.c.bf16 %v1232, %v1143
    %v1347 = vpack.c.bf16 %v701, %v612
    %v1348 = vpack.c.bf16 %v879, %v790
    %v1349 = vpack.c.bf16 %v1057, %v968
    %v1350 = vpack.c.bf16 %v1235, %v1146
    %v1351 = vpack.c.bf16 %v703, %v614
    %v1352 = vpack.c.bf16 %v881, %v792
    %v1353 = vpack.c.bf16 %v1059, %v970
    %v1354 = vpack.c.bf16 %v1237, %v1148
    %v1355 = vpack.c.bf16 %v706, %v617
    %v1356 = vpack.c.bf16 %v884, %v795
    %v1357 = vpack.c.bf16 %v1062, %v973
    %v1358 = vpack.c.bf16 %v1240, %v1151
    %v1359 = vpack.c.bf16 %v708, %v619
    %v1360 = vpack.c.bf16 %v886, %v797
    %v1361 = vpack.c.bf16 %v1064, %v975
    %v1362 = vpack.c.bf16 %v1242, %v1153
    %v1363 = vpack.c.bf16 %v711, %v622
    %v1364 = vpack.c.bf16 %v889, %v800
    %v1365 = vpack.c.bf16 %v1067, %v978
    %v1366 = vpack.c.bf16 %v1245, %v1156
    %v1367 = vpack.c.bf16 %v713, %v624
    %v1368 = vpack.c.bf16 %v891, %v802
    %v1369 = vpack.c.bf16 %v1069, %v980
    %v1370 = vpack.c.bf16 %v1247, %v1158
    %v1371 = vpack.c.bf16 %v716, %v627
    %v1372 = vpack.c.bf16 %v894, %v805
    %v1373 = vpack.c.bf16 %v1072, %v983
    %v1374 = vpack.c.bf16 %v1250, %v1161
    %v1375 = vpack.c.bf16 %v718, %v629
    %v1376 = vpack.c.bf16 %v896, %v807
    %v1377 = vpack.c.bf16 %v1074, %v985
    %v1378 = vpack.c.bf16 %v1252, %v1163
    %v1379 = vpack.c.bf16 %v721, %v632
    %v1380 = vpack.c.bf16 %v899, %v810
    %v1381 = vpack.c.bf16 %v1077, %v988
    %v1382 = vpack.c.bf16 %v1255, %v1166
    %v1383 = vpack.c.bf16 %v723, %v634
    %v1384 = vpack.c.bf16 %v901, %v812
    %v1385 = vpack.c.bf16 %v1079, %v990
    %v1386 = vpack.c.bf16 %v1257, %v1168
    %v1387 = vunpack.c.l.bf16 %v1259
    %v1388 = vunpack.c.h.bf16 %v1259
    %v1389 = vunpack.c.l.bf16 %v1260
    %v1390 = vunpack.c.h.bf16 %v1260
    %v1391 = vunpack.c.l.bf16 %v1261
    %v1392 = vunpack.c.h.bf16 %v1261
    %v1393 = vunpack.c.l.bf16 %v1262
    %v1394 = vunpack.c.h.bf16 %v1262
    %v1395 = vunpack.c.l.bf16 %v1263
    %v1396 = vunpack.c.h.bf16 %v1263
    %v1397 = vunpack.c.l.bf16 %v1264
    %v1398 = vunpack.c.h.bf16 %v1264
    %v1399 = vunpack.c.l.bf16 %v1265
    %v1400 = vunpack.c.h.bf16 %v1265
    %v1401 = vunpack.c.l.bf16 %v1266
    %v1402 = vunpack.c.h.bf16 %v1266
    %v1403 = vunpack.c.l.bf16 %v1267
    %v1404 = vunpack.c.h.bf16 %v1267
    %v1405 = vunpack.c.l.bf16 %v1268
    %v1406 = vunpack.c.h.bf16 %v1268
    %v1407 = vunpack.c.l.bf16 %v1269
    %v1408 = vunpack.c.h.bf16 %v1269
    %v1409 = vunpack.c.l.bf16 %v1270
    %v1410 = vunpack.c.h.bf16 %v1270
    %v1411 = vunpack.c.l.bf16 %v1271
    %v1412 = vunpack.c.h.bf16 %v1271
    %v1413 = vunpack.c.l.bf16 %v1272
    %v1414 = vunpack.c.h.bf16 %v1272
    %v1415 = vunpack.c.l.bf16 %v1273
    %v1416 = vunpack.c.h.bf16 %v1273
    %v1417 = vunpack.c.l.bf16 %v1274
    %v1418 = vunpack.c.h.bf16 %v1274
    %v1419 = vunpack.c.l.bf16 %v1275
    %v1420 = vunpack.c.h.bf16 %v1275
    %v1421 = vunpack.c.l.bf16 %v1276
    %v1422 = vunpack.c.h.bf16 %v1276
    %v1423 = vunpack.c.l.bf16 %v1277
    %v1424 = vunpack.c.h.bf16 %v1277
    %v1425 = vunpack.c.l.bf16 %v1278
    %v1426 = vunpack.c.h.bf16 %v1278
    %v1427 = vunpack.c.l.bf16 %v1279
    %v1428 = vunpack.c.h.bf16 %v1279
    %v1429 = vunpack.c.l.bf16 %v1280
    %v1430 = vunpack.c.h.bf16 %v1280
    %v1431 = vunpack.c.l.bf16 %v1281
    %v1432 = vunpack.c.h.bf16 %v1281
    %v1433 = vunpack.c.l.bf16 %v1282
    %v1434 = vunpack.c.h.bf16 %v1282
    %v1435 = vunpack.c.l.bf16 %v1283
    %v1436 = vunpack.c.h.bf16 %v1283
    %v1437 = vunpack.c.l.bf16 %v1284
    %v1438 = vunpack.c.h.bf16 %v1284
    %v1439 = vunpack.c.l.bf16 %v1285
    %v1440 = vunpack.c.h.bf16 %v1285
    %v1441 = vunpack.c.l.bf16 %v1286
    %v1442 = vunpack.c.h.bf16 %v1286
    %v1443 = vunpack.c.l.bf16 %v1287
    %v1444 = vunpack.c.h.bf16 %v1287
    %v1445 = vunpack.c.l.bf16 %v1288
    %v1446 = vunpack.c.h.bf16 %v1288
    %v1447 = vunpack.c.l.bf16 %v1289
    %v1448 = vunpack.c.h.bf16 %v1289
    %v1449 = vunpack.c.l.bf16 %v1290
    %v1450 = vunpack.c.h.bf16 %v1290
    %v1451 = vunpack.c.l.bf16 %v1291
    %v1452 = vunpack.c.h.bf16 %v1291
    %v1453 = vunpack.c.l.bf16 %v1292
    %v1454 = vunpack.c.h.bf16 %v1292
    %v1455 = vunpack.c.l.bf16 %v1293
    %v1456 = vunpack.c.h.bf16 %v1293
    %v1457 = vunpack.c.l.bf16 %v1294
    %v1458 = vunpack.c.h.bf16 %v1294
    %v1459 = vunpack.c.l.bf16 %v1295
    %v1460 = vunpack.c.h.bf16 %v1295
    %v1461 = vunpack.c.l.bf16 %v1296
    %v1462 = vunpack.c.h.bf16 %v1296
    %v1463 = vunpack.c.l.bf16 %v1297
    %v1464 = vunpack.c.h.bf16 %v1297
    %v1465 = vunpack.c.l.bf16 %v1298
    %v1466 = vunpack.c.h.bf16 %v1298
    %v1467 = vunpack.c.l.bf16 %v1299
    %v1468 = vunpack.c.h.bf16 %v1299
    %v1469 = vunpack.c.l.bf16 %v1300
    %v1470 = vunpack.c.h.bf16 %v1300
    %v1471 = vunpack.c.l.bf16 %v1301
    %v1472 = vunpack.c.h.bf16 %v1301
    %v1473 = vunpack.c.l.bf16 %v1302
    %v1474 = vunpack.c.h.bf16 %v1302
    %v1475 = vunpack.c.l.bf16 %v1303
    %v1476 = vunpack.c.h.bf16 %v1303
    %v1477 = vunpack.c.l.bf16 %v1304
    %v1478 = vunpack.c.h.bf16 %v1304
    %v1479 = vunpack.c.l.bf16 %v1305
    %v1480 = vunpack.c.h.bf16 %v1305
    %v1481 = vunpack.c.l.bf16 %v1306
    %v1482 = vunpack.c.h.bf16 %v1306
    %v1483 = vunpack.c.l.bf16 %v1307
    %v1484 = vunpack.c.h.bf16 %v1307
    %v1485 = vunpack.c.l.bf16 %v1308
    %v1486 = vunpack.c.h.bf16 %v1308
    %v1487 = vunpack.c.l.bf16 %v1309
    %v1488 = vunpack.c.h.bf16 %v1309
    %v1489 = vunpack.c.l.bf16 %v1310
    %v1490 = vunpack.c.h.bf16 %v1310
    %v1491 = vunpack.c.l.bf16 %v1311
    %v1492 = vunpack.c.h.bf16 %v1311
    %v1493 = vunpack.c.l.bf16 %v1312
    %v1494 = vunpack.c.h.bf16 %v1312
    %v1495 = vunpack.c.l.bf16 %v1313
    %v1496 = vunpack.c.h.bf16 %v1313
    %v1497 = vunpack.c.l.bf16 %v1314
    %v1498 = vunpack.c.h.bf16 %v1314
    %v1499 = vunpack.c.l.bf16 %v1315
    %v1500 = vunpack.c.h.bf16 %v1315
    %v1501 = vunpack.c.l.bf16 %v1316
    %v1502 = vunpack.c.h.bf16 %v1316
    %v1503 = vunpack.c.l.bf16 %v1317
    %v1504 = vunpack.c.h.bf16 %v1317
    %v1505 = vunpack.c.l.bf16 %v1318
    %v1506 = vunpack.c.h.bf16 %v1318
    %v1507 = vunpack.c.l.bf16 %v1319
    %v1508 = vunpack.c.h.bf16 %v1319
    %v1509 = vunpack.c.l.bf16 %v1320
    %v1510 = vunpack.c.h.bf16 %v1320
    %v1511 = vunpack.c.l.bf16 %v1321
    %v1512 = vunpack.c.h.bf16 %v1321
    %v1513 = vunpack.c.l.bf16 %v1322
    %v1514 = vunpack.c.h.bf16 %v1322
    %v1515 = vunpack.c.l.bf16 %v1323
    %v1516 = vunpack.c.h.bf16 %v1323
    %v1517 = vunpack.c.l.bf16 %v1324
    %v1518 = vunpack.c.h.bf16 %v1324
    %v1519 = vunpack.c.l.bf16 %v1325
    %v1520 = vunpack.c.h.bf16 %v1325
    %v1521 = vunpack.c.l.bf16 %v1326
    %v1522 = vunpack.c.h.bf16 %v1326
    %v1523 = vunpack.c.l.bf16 %v1327
    %v1524 = vunpack.c.h.bf16 %v1327
    %v1525 = vunpack.c.l.bf16 %v1328
    %v1526 = vunpack.c.h.bf16 %v1328
    %v1527 = vunpack.c.l.bf16 %v1329
    %v1528 = vunpack.c.h.bf16 %v1329
    %v1529 = vunpack.c.l.bf16 %v1330
    %v1530 = vunpack.c.h.bf16 %v1330
    %v1531 = vunpack.c.l.bf16 %v1331
    %v1532 = vunpack.c.h.bf16 %v1331
    %v1533 = vunpack.c.l.bf16 %v1332
    %v1534 = vunpack.c.h.bf16 %v1332
    %v1535 = vunpack.c.l.bf16 %v1333
    %v1536 = vunpack.c.h.bf16 %v1333
    %v1537 = vunpack.c.l.bf16 %v1334
    %v1538 = vunpack.c.h.bf16 %v1334
    %v1539 = vunpack.c.l.bf16 %v1335
    %v1540 = vunpack.c.h.bf16 %v1335
    %v1541 = vunpack.c.l.bf16 %v1336
    %v1542 = vunpack.c.h.bf16 %v1336
    %v1543 = vunpack.c.l.bf16 %v1337
    %v1544 = vunpack.c.h.bf16 %v1337
    %v1545 = vunpack.c.l.bf16 %v1338
    %v1546 = vunpack.c.h.bf16 %v1338
    %v1547 = vunpack.c.l.bf16 %v1339
    %v1548 = vunpack.c.h.bf16 %v1339
    %v1549 = vunpack.c.l.bf16 %v1340
    %v1550 = vunpack.c.h.bf16 %v1340
    %v1551 = vunpack.c.l.bf16 %v1341
    %v1552 = vunpack.c.h.bf16 %v1341
    %v1553 = vunpack.c.l.bf16 %v1342
    %v1554 = vunpack.c.h.bf16 %v1342
    %v1555 = vunpack.c.l.bf16 %v1343
    %v1556 = vunpack.c.h.bf16 %v1343
    %v1557 = vunpack.c.l.bf16 %v1344
    %v1558 = vunpack.c.h.bf16 %v1344
    %v1559 = vunpack.c.l.bf16 %v1345
    %v1560 = vunpack.c.h.bf16 %v1345
    %v1561 = vunpack.c.l.bf16 %v1346
    %v1562 = vunpack.c.h.bf16 %v1346
    %v1563 = vunpack.c.l.bf16 %v1347
    %v1564 = vunpack.c.h.bf16 %v1347
    %v1565 = vunpack.c.l.bf16 %v1348
    %v1566 = vunpack.c.h.bf16 %v1348
    %v1567 = vunpack.c.l.bf16 %v1349
    %v1568 = vunpack.c.h.bf16 %v1349
    %v1569 = vunpack.c.l.bf16 %v1350
    %v1570 = vunpack.c.h.bf16 %v1350
    %v1571 = vunpack.c.l.bf16 %v1351
    %v1572 = vunpack.c.h.bf16 %v1351
    %v1573 = vunpack.c.l.bf16 %v1352
    %v1574 = vunpack.c.h.bf16 %v1352
    %v1575 = vunpack.c.l.bf16 %v1353
    %v1576 = vunpack.c.h.bf16 %v1353
    %v1577 = vunpack.c.l.bf16 %v1354
    %v1578 = vunpack.c.h.bf16 %v1354
    %v1579 = vunpack.c.l.bf16 %v1355
    %v1580 = vunpack.c.h.bf16 %v1355
    %v1581 = vunpack.c.l.bf16 %v1356
    %v1582 = vunpack.c.h.bf16 %v1356
    %v1583 = vunpack.c.l.bf16 %v1357
    %v1584 = vunpack.c.h.bf16 %v1357
    %v1585 = vunpack.c.l.bf16 %v1358
    %v1586 = vunpack.c.h.bf16 %v1358
    %v1587 = vunpack.c.l.bf16 %v1359
    %v1588 = vunpack.c.h.bf16 %v1359
    %v1589 = vunpack.c.l.bf16 %v1360
    %v1590 = vunpack.c.h.bf16 %v1360
    %v1591 = vunpack.c.l.bf16 %v1361
    %v1592 = vunpack.c.h.bf16 %v1361
    %v1593 = vunpack.c.l.bf16 %v1362
    %v1594 = vunpack.c.h.bf16 %v1362
    %v1595 = vunpack.c.l.bf16 %v1363
    %v1596 = vunpack.c.h.bf16 %v1363
    %v1597 = vunpack.c.l.bf16 %v1364
    %v1598 = vunpack.c.h.bf16 %v1364
    %v1599 = vunpack.c.l.bf16 %v1365
    %v1600 = vunpack.c.h.bf16 %v1365
    %v1601 = vunpack.c.l.bf16 %v1366
    %v1602 = vunpack.c.h.bf16 %v1366
    %v1603 = vunpack.c.l.bf16 %v1367
    %v1604 = vunpack.c.h.bf16 %v1367
    %v1605 = vunpack.c.l.bf16 %v1368
    %v1606 = vunpack.c.h.bf16 %v1368
    %v1607 = vunpack.c.l.bf16 %v1369
    %v1608 = vunpack.c.h.bf16 %v1369
    %v1609 = vunpack.c.l.bf16 %v1370
    %v1610 = vunpack.c.h.bf16 %v1370
    %v1611 = vunpack.c.l.bf16 %v1371
    %v1612 = vunpack.c.h.bf16 %v1371
    %v1613 = vunpack.c.l.bf16 %v1372
    %v1614 = vunpack.c.h.bf16 %v1372
    %v1615 = vunpack.c.l.bf16 %v1373
    %v1616 = vunpack.c.h.bf16 %v1373
    %v1617 = vunpack.c.l.bf16 %v1374
    %v1618 = vunpack.c.h.bf16 %v1374
    %v1619 = vunpack.c.l.bf16 %v1375
    %v1620 = vunpack.c.h.bf16 %v1375
    %v1621 = vunpack.c.l.bf16 %v1376
    %v1622 = vunpack.c.h.bf16 %v1376
    %v1623 = vunpack.c.l.bf16 %v1377
    %v1624 = vunpack.c.h.bf16 %v1377
    %v1625 = vunpack.c.l.bf16 %v1378
    %v1626 = vunpack.c.h.bf16 %v1378
    %v1627 = vunpack.c.l.bf16 %v1379
    %v1628 = vunpack.c.h.bf16 %v1379
    %v1629 = vunpack.c.l.bf16 %v1380
    %v1630 = vunpack.c.h.bf16 %v1380
    %v1631 = vunpack.c.l.bf16 %v1381
    %v1632 = vunpack.c.h.bf16 %v1381
    %v1633 = vunpack.c.l.bf16 %v1382
    %v1634 = vunpack.c.h.bf16 %v1382
    %v1635 = vunpack.c.l.bf16 %v1383
    %v1636 = vunpack.c.h.bf16 %v1383
    %v1637 = vunpack.c.l.bf16 %v1384
    %v1638 = vunpack.c.h.bf16 %v1384
    %v1639 = vunpack.c.l.bf16 %v1385
    %v1640 = vunpack.c.h.bf16 %v1385
    %v1641 = vunpack.c.l.bf16 %v1386
    %v1642 = vunpack.c.h.bf16 %v1386
    %v1643 = vmul.f32 %v1387, 0.20019531
    %v1644 = vmul.f32 %v1388, 0.20019531
    %v1645 = vmul.f32 %v1389, 0.20019531
    %v1646 = vmul.f32 %v1390, 0.20019531
    %v1647 = vmul.f32 %v1391, 0.20019531
    %v1648 = vmul.f32 %v1392, 0.20019531
    %v1649 = vmul.f32 %v1393, 0.20019531
    %v1650 = vmul.f32 %v1394, 0.20019531
    %v1651 = vmul.f32 %v1395, 0.20019531
    %v1652 = vmul.f32 %v1396, 0.20019531
    %v1653 = vmul.f32 %v1397, 0.20019531
    %v1654 = vmul.f32 %v1398, 0.20019531
    %v1655 = vmul.f32 %v1399, 0.20019531
    %v1656 = vmul.f32 %v1400, 0.20019531
    %v1657 = vmul.f32 %v1401, 0.20019531
    %v1658 = vmul.f32 %v1402, 0.20019531
    %v1659 = vmul.f32 %v1403, 0.20019531
    %v1660 = vmul.f32 %v1404, 0.20019531
    %v1661 = vmul.f32 %v1405, 0.20019531
    %v1662 = vmul.f32 %v1406, 0.20019531
    %v1663 = vmul.f32 %v1407, 0.20019531
    %v1664 = vmul.f32 %v1408, 0.20019531
    %v1665 = vmul.f32 %v1409, 0.20019531
    %v1666 = vmul.f32 %v1410, 0.20019531
    %v1667 = vmul.f32 %v1411, 0.20019531
    %v1668 = vmul.f32 %v1412, 0.20019531
    %v1669 = vmul.f32 %v1413, 0.20019531
    %v1670 = vmul.f32 %v1414, 0.20019531
    %v1671 = vmul.f32 %v1415, 0.20019531
    %v1672 = vmul.f32 %v1416, 0.20019531
    %v1673 = vmul.f32 %v1417, 0.20019531
    %v1674 = vmul.f32 %v1418, 0.20019531
    %v1675 = vmul.f32 %v1419, 0.20019531
    %v1676 = vmul.f32 %v1420, 0.20019531
    %v1677 = vmul.f32 %v1421, 0.20019531
    %v1678 = vmul.f32 %v1422, 0.20019531
    %v1679 = vmul.f32 %v1423, 0.20019531
    %v1680 = vmul.f32 %v1424, 0.20019531
    %v1681 = vmul.f32 %v1425, 0.20019531
    %v1682 = vmul.f32 %v1426, 0.20019531
    %v1683 = vmul.f32 %v1427, 0.20019531
    %v1684 = vmul.f32 %v1428, 0.20019531
    %v1685 = vmul.f32 %v1429, 0.20019531
    %v1686 = vmul.f32 %v1430, 0.20019531
    %v1687 = vmul.f32 %v1431, 0.20019531
    %v1688 = vmul.f32 %v1432, 0.20019531
    %v1689 = vmul.f32 %v1433, 0.20019531
    %v1690 = vmul.f32 %v1434, 0.20019531
    %v1691 = vmul.f32 %v1435, 0.20019531
    %v1692 = vmul.f32 %v1436, 0.20019531
    %v1693 = vmul.f32 %v1437, 0.20019531
    %v1694 = vmul.f32 %v1438, 0.20019531
    %v1695 = vmul.f32 %v1439, 0.20019531
    %v1696 = vmul.f32 %v1440, 0.20019531
    %v1697 = vmul.f32 %v1441, 0.20019531
    %v1698 = vmul.f32 %v1442, 0.20019531
    %v1699 = vmul.f32 %v1443, 0.20019531
    %v1700 = vmul.f32 %v1444, 0.20019531
    %v1701 = vmul.f32 %v1445, 0.20019531
    %v1702 = vmul.f32 %v1446, 0.20019531
    %v1703 = vmul.f32 %v1447, 0.20019531
    %v1704 = vmul.f32 %v1448, 0.20019531
    %v1705 = vmul.f32 %v1449, 0.20019531
    %v1706 = vmul.f32 %v1450, 0.20019531
    %v1707 = vmul.f32 %v1451, 0.20019531
    %v1708 = vmul.f32 %v1452, 0.20019531
    %v1709 = vmul.f32 %v1453, 0.20019531
    %v1710 = vmul.f32 %v1454, 0.20019531
    %v1711 = vmul.f32 %v1455, 0.20019531
    %v1712 = vmul.f32 %v1456, 0.20019531
    %v1713 = vmul.f32 %v1457, 0.20019531
    %v1714 = vmul.f32 %v1458, 0.20019531
    %v1715 = vmul.f32 %v1459, 0.20019531
    %v1716 = vmul.f32 %v1460, 0.20019531
    %v1717 = vmul.f32 %v1461, 0.20019531
    %v1718 = vmul.f32 %v1462, 0.20019531
    %v1719 = vmul.f32 %v1463, 0.20019531
    %v1720 = vmul.f32 %v1464, 0.20019531
    %v1721 = vmul.f32 %v1465, 0.20019531
    %v1722 = vmul.f32 %v1466, 0.20019531
    %v1723 = vmul.f32 %v1467, 0.20019531
    %v1724 = vmul.f32 %v1468, 0.20019531
    %v1725 = vmul.f32 %v1469, 0.20019531
    %v1726 = vmul.f32 %v1470, 0.20019531
    %v1727 = vmul.f32 %v1471, 0.20019531
    %v1728 = vmul.f32 %v1472, 0.20019531
    %v1729 = vmul.f32 %v1473, 0.20019531
    %v1730 = vmul.f32 %v1474, 0.20019531
    %v1731 = vmul.f32 %v1475, 0.20019531
    %v1732 = vmul.f32 %v1476, 0.20019531
    %v1733 = vmul.f32 %v1477, 0.20019531
    %v1734 = vmul.f32 %v1478, 0.20019531
    %v1735 = vmul.f32 %v1479, 0.20019531
    %v1736 = vmul.f32 %v1480, 0.20019531
    %v1737 = vmul.f32 %v1481, 0.20019531
    %v1738 = vmul.f32 %v1482, 0.20019531
    %v1739 = vmul.f32 %v1483, 0.20019531
    %v1740 = vmul.f32 %v1484, 0.20019531
    %v1741 = vmul.f32 %v1485, 0.20019531
    %v1742 = vmul.f32 %v1486, 0.20019531
    %v1743 = vmul.f32 %v1487, 0.20019531
    %v1744 = vmul.f32 %v1488, 0.20019531
    %v1745 = vmul.f32 %v1489, 0.20019531
    %v1746 = vmul.f32 %v1490, 0.20019531
    %v1747 = vmul.f32 %v1491, 0.20019531
    %v1748 = vmul.f32 %v1492, 0.20019531
    %v1749 = vmul.f32 %v1493, 0.20019531
    %v1750 = vmul.f32 %v1494, 0.20019531
    %v1751 = vmul.f32 %v1495, 0.20019531
    %v1752 = vmul.f32 %v1496, 0.20019531
    %v1753 = vmul.f32 %v1497, 0.20019531
    %v1754 = vmul.f32 %v1498, 0.20019531
    %v1755 = vmul.f32 %v1499, 0.20019531
    %v1756 = vmul.f32 %v1500, 0.20019531
    %v1757 = vmul.f32 %v1501, 0.20019531
    %v1758 = vmul.f32 %v1502, 0.20019531
    %v1759 = vmul.f32 %v1503, 0.20019531
    %v1760 = vmul.f32 %v1504, 0.20019531
    %v1761 = vmul.f32 %v1505, 0.20019531
    %v1762 = vmul.f32 %v1506, 0.20019531
    %v1763 = vmul.f32 %v1507, 0.20019531
    %v1764 = vmul.f32 %v1508, 0.20019531
    %v1765 = vmul.f32 %v1509, 0.20019531
    %v1766 = vmul.f32 %v1510, 0.20019531
    %v1767 = vmul.f32 %v1511, 0.20019531
    %v1768 = vmul.f32 %v1512, 0.20019531
    %v1769 = vmul.f32 %v1513, 0.20019531
    %v1770 = vmul.f32 %v1514, 0.20019531
    %v1771 = vmul.f32 %v1515, 0.20019531
    %v1772 = vmul.f32 %v1516, 0.20019531
    %v1773 = vmul.f32 %v1517, 0.20019531
    %v1774 = vmul.f32 %v1518, 0.20019531
    %v1775 = vmul.f32 %v1519, 0.20019531
    %v1776 = vmul.f32 %v1520, 0.20019531
    %v1777 = vmul.f32 %v1521, 0.20019531
    %v1778 = vmul.f32 %v1522, 0.20019531
    %v1779 = vmul.f32 %v1523, 0.20019531
    %v1780 = vmul.f32 %v1524, 0.20019531
    %v1781 = vmul.f32 %v1525, 0.20019531
    %v1782 = vmul.f32 %v1526, 0.20019531
    %v1783 = vmul.f32 %v1527, 0.20019531
    %v1784 = vmul.f32 %v1528, 0.20019531
    %v1785 = vmul.f32 %v1529, 0.20019531
    %v1786 = vmul.f32 %v1530, 0.20019531
    %v1787 = vmul.f32 %v1531, 0.20019531
    %v1788 = vmul.f32 %v1532, 0.20019531
    %v1789 = vmul.f32 %v1533, 0.20019531
    %v1790 = vmul.f32 %v1534, 0.20019531
    %v1791 = vmul.f32 %v1535, 0.20019531
    %v1792 = vmul.f32 %v1536, 0.20019531
    %v1793 = vmul.f32 %v1537, 0.20019531
    %v1794 = vmul.f32 %v1538, 0.20019531
    %v1795 = vmul.f32 %v1539, 0.20019531
    %v1796 = vmul.f32 %v1540, 0.20019531
    %v1797 = vmul.f32 %v1541, 0.20019531
    %v1798 = vmul.f32 %v1542, 0.20019531
    %v1799 = vmul.f32 %v1543, 0.20019531
    %v1800 = vmul.f32 %v1544, 0.20019531
    %v1801 = vmul.f32 %v1545, 0.20019531
    %v1802 = vmul.f32 %v1546, 0.20019531
    %v1803 = vmul.f32 %v1547, 0.20019531
    %v1804 = vmul.f32 %v1548, 0.20019531
    %v1805 = vmul.f32 %v1549, 0.20019531
    %v1806 = vmul.f32 %v1550, 0.20019531
    %v1807 = vmul.f32 %v1551, 0.20019531
    %v1808 = vmul.f32 %v1552, 0.20019531
    %v1809 = vmul.f32 %v1553, 0.20019531
    %v1810 = vmul.f32 %v1554, 0.20019531
    %v1811 = vmul.f32 %v1555, 0.20019531
    %v1812 = vmul.f32 %v1556, 0.20019531
    %v1813 = vmul.f32 %v1557, 0.20019531
    %v1814 = vmul.f32 %v1558, 0.20019531
    %v1815 = vmul.f32 %v1559, 0.20019531
    %v1816 = vmul.f32 %v1560, 0.20019531
    %v1817 = vmul.f32 %v1561, 0.20019531
    %v1818 = vmul.f32 %v1562, 0.20019531
    %v1819 = vmul.f32 %v1563, 0.20019531
    %v1820 = vmul.f32 %v1564, 0.20019531
    %v1821 = vmul.f32 %v1565, 0.20019531
    %v1822 = vmul.f32 %v1566, 0.20019531
    %v1823 = vmul.f32 %v1567, 0.20019531
    %v1824 = vmul.f32 %v1568, 0.20019531
    %v1825 = vmul.f32 %v1569, 0.20019531
    %v1826 = vmul.f32 %v1570, 0.20019531
    %v1827 = vmul.f32 %v1571, 0.20019531
    %v1828 = vmul.f32 %v1572, 0.20019531
    %v1829 = vmul.f32 %v1573, 0.20019531
    %v1830 = vmul.f32 %v1574, 0.20019531
    %v1831 = vmul.f32 %v1575, 0.20019531
    %v1832 = vmul.f32 %v1576, 0.20019531
    %v1833 = vmul.f32 %v1577, 0.20019531
    %v1834 = vmul.f32 %v1578, 0.20019531
    %v1835 = vmul.f32 %v1579, 0.20019531
    %v1836 = vmul.f32 %v1580, 0.20019531
    %v1837 = vmul.f32 %v1581, 0.20019531
    %v1838 = vmul.f32 %v1582, 0.20019531
    %v1839 = vmul.f32 %v1583, 0.20019531
    %v1840 = vmul.f32 %v1584, 0.20019531
    %v1841 = vmul.f32 %v1585, 0.20019531
    %v1842 = vmul.f32 %v1586, 0.20019531
    %v1843 = vmul.f32 %v1587, 0.20019531
    %v1844 = vmul.f32 %v1588, 0.20019531
    %v1845 = vmul.f32 %v1589, 0.20019531
    %v1846 = vmul.f32 %v1590, 0.20019531
    %v1847 = vmul.f32 %v1591, 0.20019531
    %v1848 = vmul.f32 %v1592, 0.20019531
    %v1849 = vmul.f32 %v1593, 0.20019531
    %v1850 = vmul.f32 %v1594, 0.20019531
    %v1851 = vmul.f32 %v1595, 0.20019531
    %v1852 = vmul.f32 %v1596, 0.20019531
    %v1853 = vmul.f32 %v1597, 0.20019531
    %v1854 = vmul.f32 %v1598, 0.20019531
    %v1855 = vmul.f32 %v1599, 0.20019531
    %v1856 = vmul.f32 %v1600, 0.20019531
    %v1857 = vmul.f32 %v1601, 0.20019531
    %v1858 = vmul.f32 %v1602, 0.20019531
    %v1859 = vmul.f32 %v1603, 0.20019531
    %v1860 = vmul.f32 %v1604, 0.20019531
    %v1861 = vmul.f32 %v1605, 0.20019531
    %v1862 = vmul.f32 %v1606, 0.20019531
    %v1863 = vmul.f32 %v1607, 0.20019531
    %v1864 = vmul.f32 %v1608, 0.20019531
    %v1865 = vmul.f32 %v1609, 0.20019531
    %v1866 = vmul.f32 %v1610, 0.20019531
    %v1867 = vmul.f32 %v1611, 0.20019531
    %v1868 = vmul.f32 %v1612, 0.20019531
    %v1869 = vmul.f32 %v1613, 0.20019531
    %v1870 = vmul.f32 %v1614, 0.20019531
    %v1871 = vmul.f32 %v1615, 0.20019531
    %v1872 = vmul.f32 %v1616, 0.20019531
    %v1873 = vmul.f32 %v1617, 0.20019531
    %v1874 = vmul.f32 %v1618, 0.20019531
    %v1875 = vmul.f32 %v1619, 0.20019531
    %v1876 = vmul.f32 %v1620, 0.20019531
    %v1877 = vmul.f32 %v1621, 0.20019531
    %v1878 = vmul.f32 %v1622, 0.20019531
    %v1879 = vmul.f32 %v1623, 0.20019531
    %v1880 = vmul.f32 %v1624, 0.20019531
    %v1881 = vmul.f32 %v1625, 0.20019531
    %v1882 = vmul.f32 %v1626, 0.20019531
    %v1883 = vmul.f32 %v1627, 0.20019531
    %v1884 = vmul.f32 %v1628, 0.20019531
    %v1885 = vmul.f32 %v1629, 0.20019531
    %v1886 = vmul.f32 %v1630, 0.20019531
    %v1887 = vmul.f32 %v1631, 0.20019531
    %v1888 = vmul.f32 %v1632, 0.20019531
    %v1889 = vmul.f32 %v1633, 0.20019531
    %v1890 = vmul.f32 %v1634, 0.20019531
    %v1891 = vmul.f32 %v1635, 0.20019531
    %v1892 = vmul.f32 %v1636, 0.20019531
    %v1893 = vmul.f32 %v1637, 0.20019531
    %v1894 = vmul.f32 %v1638, 0.20019531
    %v1895 = vmul.f32 %v1639, 0.20019531
    %v1896 = vmul.f32 %v1640, 0.20019531
    %v1897 = vmul.f32 %v1641, 0.20019531
    %v1898 = vmul.f32 %v1642, 0.20019531
    %v1899 = vpack.c.bf16 %v1644, %v1643
    %v1900 = vpack.c.bf16 %v1646, %v1645
    %v1901 = vpack.c.bf16 %v1648, %v1647
    %v1902 = vpack.c.bf16 %v1650, %v1649
    %v1903 = vpack.c.bf16 %v1652, %v1651
    %v1904 = vpack.c.bf16 %v1654, %v1653
    %v1905 = vpack.c.bf16 %v1656, %v1655
    %v1906 = vpack.c.bf16 %v1658, %v1657
    %v1907 = vpack.c.bf16 %v1660, %v1659
    %v1908 = vpack.c.bf16 %v1662, %v1661
    %v1909 = vpack.c.bf16 %v1664, %v1663
    %v1910 = vpack.c.bf16 %v1666, %v1665
    %v1911 = vpack.c.bf16 %v1668, %v1667
    %v1912 = vpack.c.bf16 %v1670, %v1669
    %v1913 = vpack.c.bf16 %v1672, %v1671
    %v1914 = vpack.c.bf16 %v1674, %v1673
    %v1915 = vpack.c.bf16 %v1676, %v1675
    %v1916 = vpack.c.bf16 %v1678, %v1677
    %v1917 = vpack.c.bf16 %v1680, %v1679
    %v1918 = vpack.c.bf16 %v1682, %v1681
    %v1919 = vpack.c.bf16 %v1684, %v1683
    %v1920 = vpack.c.bf16 %v1686, %v1685
    %v1921 = vpack.c.bf16 %v1688, %v1687
    %v1922 = vpack.c.bf16 %v1690, %v1689
    %v1923 = vpack.c.bf16 %v1692, %v1691
    %v1924 = vpack.c.bf16 %v1694, %v1693
    %v1925 = vpack.c.bf16 %v1696, %v1695
    %v1926 = vpack.c.bf16 %v1698, %v1697
    %v1927 = vpack.c.bf16 %v1700, %v1699
    %v1928 = vpack.c.bf16 %v1702, %v1701
    %v1929 = vpack.c.bf16 %v1704, %v1703
    %v1930 = vpack.c.bf16 %v1706, %v1705
    %v1931 = vpack.c.bf16 %v1708, %v1707
    %v1932 = vpack.c.bf16 %v1710, %v1709
    %v1933 = vpack.c.bf16 %v1712, %v1711
    %v1934 = vpack.c.bf16 %v1714, %v1713
    %v1935 = vpack.c.bf16 %v1716, %v1715
    %v1936 = vpack.c.bf16 %v1718, %v1717
    %v1937 = vpack.c.bf16 %v1720, %v1719
    %v1938 = vpack.c.bf16 %v1722, %v1721
    %v1939 = vpack.c.bf16 %v1724, %v1723
    %v1940 = vpack.c.bf16 %v1726, %v1725
    %v1941 = vpack.c.bf16 %v1728, %v1727
    %v1942 = vpack.c.bf16 %v1730, %v1729
    %v1943 = vpack.c.bf16 %v1732, %v1731
    %v1944 = vpack.c.bf16 %v1734, %v1733
    %v1945 = vpack.c.bf16 %v1736, %v1735
    %v1946 = vpack.c.bf16 %v1738, %v1737
    %v1947 = vpack.c.bf16 %v1740, %v1739
    %v1948 = vpack.c.bf16 %v1742, %v1741
    %v1949 = vpack.c.bf16 %v1744, %v1743
    %v1950 = vpack.c.bf16 %v1746, %v1745
    %v1951 = vpack.c.bf16 %v1748, %v1747
    %v1952 = vpack.c.bf16 %v1750, %v1749
    %v1953 = vpack.c.bf16 %v1752, %v1751
    %v1954 = vpack.c.bf16 %v1754, %v1753
    %v1955 = vpack.c.bf16 %v1756, %v1755
    %v1956 = vpack.c.bf16 %v1758, %v1757
    %v1957 = vpack.c.bf16 %v1760, %v1759
    %v1958 = vpack.c.bf16 %v1762, %v1761
    %v1959 = vpack.c.bf16 %v1764, %v1763
    %v1960 = vpack.c.bf16 %v1766, %v1765
    %v1961 = vpack.c.bf16 %v1768, %v1767
    %v1962 = vpack.c.bf16 %v1770, %v1769
    %v1963 = vpack.c.bf16 %v1772, %v1771
    %v1964 = vpack.c.bf16 %v1774, %v1773
    %v1965 = vpack.c.bf16 %v1776, %v1775
    %v1966 = vpack.c.bf16 %v1778, %v1777
    %v1967 = vpack.c.bf16 %v1780, %v1779
    %v1968 = vpack.c.bf16 %v1782, %v1781
    %v1969 = vpack.c.bf16 %v1784, %v1783
    %v1970 = vpack.c.bf16 %v1786, %v1785
    %v1971 = vpack.c.bf16 %v1788, %v1787
    %v1972 = vpack.c.bf16 %v1790, %v1789
    %v1973 = vpack.c.bf16 %v1792, %v1791
    %v1974 = vpack.c.bf16 %v1794, %v1793
    %v1975 = vpack.c.bf16 %v1796, %v1795
    %v1976 = vpack.c.bf16 %v1798, %v1797
    %v1977 = vpack.c.bf16 %v1800, %v1799
    %v1978 = vpack.c.bf16 %v1802, %v1801
    %v1979 = vpack.c.bf16 %v1804, %v1803
    %v1980 = vpack.c.bf16 %v1806, %v1805
    %v1981 = vpack.c.bf16 %v1808, %v1807
    %v1982 = vpack.c.bf16 %v1810, %v1809
    %v1983 = vpack.c.bf16 %v1812, %v1811
    %v1984 = vpack.c.bf16 %v1814, %v1813
    %v1985 = vpack.c.bf16 %v1816, %v1815
    %v1986 = vpack.c.bf16 %v1818, %v1817
    %v1987 = vpack.c.bf16 %v1820, %v1819
    %v1988 = vpack.c.bf16 %v1822, %v1821
    %v1989 = vpack.c.bf16 %v1824, %v1823
    %v1990 = vpack.c.bf16 %v1826, %v1825
    %v1991 = vpack.c.bf16 %v1828, %v1827
    %v1992 = vpack.c.bf16 %v1830, %v1829
    %v1993 = vpack.c.bf16 %v1832, %v1831
    %v1994 = vpack.c.bf16 %v1834, %v1833
    %v1995 = vpack.c.bf16 %v1836, %v1835
    %v1996 = vpack.c.bf16 %v1838, %v1837
    %v1997 = vpack.c.bf16 %v1840, %v1839
    %v1998 = vpack.c.bf16 %v1842, %v1841
    %v1999 = vpack.c.bf16 %v1844, %v1843
    %v2000 = vpack.c.bf16 %v1846, %v1845
    %v2001 = vpack.c.bf16 %v1848, %v1847
    %v2002 = vpack.c.bf16 %v1850, %v1849
    %v2003 = vpack.c.bf16 %v1852, %v1851
    %v2004 = vpack.c.bf16 %v1854, %v1853
    %v2005 = vpack.c.bf16 %v1856, %v1855
    %v2006 = vpack.c.bf16 %v1858, %v1857
    %v2007 = vpack.c.bf16 %v1860, %v1859
    %v2008 = vpack.c.bf16 %v1862, %v1861
    %v2009 = vpack.c.bf16 %v1864, %v1863
    %v2010 = vpack.c.bf16 %v1866, %v1865
    %v2011 = vpack.c.bf16 %v1868, %v1867
    %v2012 = vpack.c.bf16 %v1870, %v1869
    %v2013 = vpack.c.bf16 %v1872, %v1871
    %v2014 = vpack.c.bf16 %v1874, %v1873
    %v2015 = vpack.c.bf16 %v1876, %v1875
    %v2016 = vpack.c.bf16 %v1878, %v1877
    %v2017 = vpack.c.bf16 %v1880, %v1879
    %v2018 = vpack.c.bf16 %v1882, %v1881
    %v2019 = vpack.c.bf16 %v1884, %v1883
    %v2020 = vpack.c.bf16 %v1886, %v1885
    %v2021 = vpack.c.bf16 %v1888, %v1887
    %v2022 = vpack.c.bf16 %v1890, %v1889
    %v2023 = vpack.c.bf16 %v1892, %v1891
    %v2024 = vpack.c.bf16 %v1894, %v1893
    %v2025 = vpack.c.bf16 %v1896, %v1895
    %v2026 = vpack.c.bf16 %v1898, %v1897
    %v2027 = vunpack.c.l.bf16 %v1899
    %v2028 = vunpack.c.h.bf16 %v1899
    %v2029 = vunpack.c.l.bf16 %v1900
    %v2030 = vunpack.c.h.bf16 %v1900
    %v2031 = vunpack.c.l.bf16 %v1901
    %v2032 = vunpack.c.h.bf16 %v1901
    %v2033 = vunpack.c.l.bf16 %v1902
    %v2034 = vunpack.c.h.bf16 %v1902
    %v2035 = vunpack.c.l.bf16 %v1903
    %v2036 = vunpack.c.h.bf16 %v1903
    %v2037 = vunpack.c.l.bf16 %v1904
    %v2038 = vunpack.c.h.bf16 %v1904
    %v2039 = vunpack.c.l.bf16 %v1905
    %v2040 = vunpack.c.h.bf16 %v1905
    %v2041 = vunpack.c.l.bf16 %v1906
    %v2042 = vunpack.c.h.bf16 %v1906
    %v2043 = vunpack.c.l.bf16 %v1907
    %v2044 = vunpack.c.h.bf16 %v1907
    %v2045 = vunpack.c.l.bf16 %v1908
    %v2046 = vunpack.c.h.bf16 %v1908
    %v2047 = vunpack.c.l.bf16 %v1909
    %v2048 = vunpack.c.h.bf16 %v1909
    %v2049 = vunpack.c.l.bf16 %v1910
    %v2050 = vunpack.c.h.bf16 %v1910
    %v2051 = vunpack.c.l.bf16 %v1911
    %v2052 = vunpack.c.h.bf16 %v1911
    %v2053 = vunpack.c.l.bf16 %v1912
    %v2054 = vunpack.c.h.bf16 %v1912
    %v2055 = vunpack.c.l.bf16 %v1913
    %v2056 = vunpack.c.h.bf16 %v1913
    %v2057 = vunpack.c.l.bf16 %v1914
    %v2058 = vunpack.c.h.bf16 %v1914
    %v2059 = vunpack.c.l.bf16 %v1915
    %v2060 = vunpack.c.h.bf16 %v1915
    %v2061 = vunpack.c.l.bf16 %v1916
    %v2062 = vunpack.c.h.bf16 %v1916
    %v2063 = vunpack.c.l.bf16 %v1917
    %v2064 = vunpack.c.h.bf16 %v1917
    %v2065 = vunpack.c.l.bf16 %v1918
    %v2066 = vunpack.c.h.bf16 %v1918
    %v2067 = vunpack.c.l.bf16 %v1919
    %v2068 = vunpack.c.h.bf16 %v1919
    %v2069 = vunpack.c.l.bf16 %v1920
    %v2070 = vunpack.c.h.bf16 %v1920
    %v2071 = vunpack.c.l.bf16 %v1921
    %v2072 = vunpack.c.h.bf16 %v1921
    %v2073 = vunpack.c.l.bf16 %v1922
    %v2074 = vunpack.c.h.bf16 %v1922
    %v2075 = vunpack.c.l.bf16 %v1923
    %v2076 = vunpack.c.h.bf16 %v1923
    %v2077 = vunpack.c.l.bf16 %v1924
    %v2078 = vunpack.c.h.bf16 %v1924
    %v2079 = vunpack.c.l.bf16 %v1925
    %v2080 = vunpack.c.h.bf16 %v1925
    %v2081 = vunpack.c.l.bf16 %v1926
    %v2082 = vunpack.c.h.bf16 %v1926
    %v2083 = vunpack.c.l.bf16 %v1927
    %v2084 = vunpack.c.h.bf16 %v1927
    %v2085 = vunpack.c.l.bf16 %v1928
    %v2086 = vunpack.c.h.bf16 %v1928
    %v2087 = vunpack.c.l.bf16 %v1929
    %v2088 = vunpack.c.h.bf16 %v1929
    %v2089 = vunpack.c.l.bf16 %v1930
    %v2090 = vunpack.c.h.bf16 %v1930
    %v2091 = vunpack.c.l.bf16 %v1931
    %v2092 = vunpack.c.h.bf16 %v1931
    %v2093 = vunpack.c.l.bf16 %v1932
    %v2094 = vunpack.c.h.bf16 %v1932
    %v2095 = vunpack.c.l.bf16 %v1933
    %v2096 = vunpack.c.h.bf16 %v1933
    %v2097 = vunpack.c.l.bf16 %v1934
    %v2098 = vunpack.c.h.bf16 %v1934
    %v2099 = vunpack.c.l.bf16 %v1935
    %v2100 = vunpack.c.h.bf16 %v1935
    %v2101 = vunpack.c.l.bf16 %v1936
    %v2102 = vunpack.c.h.bf16 %v1936
    %v2103 = vunpack.c.l.bf16 %v1937
    %v2104 = vunpack.c.h.bf16 %v1937
    %v2105 = vunpack.c.l.bf16 %v1938
    %v2106 = vunpack.c.h.bf16 %v1938
    %v2107 = vunpack.c.l.bf16 %v1939
    %v2108 = vunpack.c.h.bf16 %v1939
    %v2109 = vunpack.c.l.bf16 %v1940
    %v2110 = vunpack.c.h.bf16 %v1940
    %v2111 = vunpack.c.l.bf16 %v1941
    %v2112 = vunpack.c.h.bf16 %v1941
    %v2113 = vunpack.c.l.bf16 %v1942
    %v2114 = vunpack.c.h.bf16 %v1942
    %v2115 = vunpack.c.l.bf16 %v1943
    %v2116 = vunpack.c.h.bf16 %v1943
    %v2117 = vunpack.c.l.bf16 %v1944
    %v2118 = vunpack.c.h.bf16 %v1944
    %v2119 = vunpack.c.l.bf16 %v1945
    %v2120 = vunpack.c.h.bf16 %v1945
    %v2121 = vunpack.c.l.bf16 %v1946
    %v2122 = vunpack.c.h.bf16 %v1946
    %v2123 = vunpack.c.l.bf16 %v1947
    %v2124 = vunpack.c.h.bf16 %v1947
    %v2125 = vunpack.c.l.bf16 %v1948
    %v2126 = vunpack.c.h.bf16 %v1948
    %v2127 = vunpack.c.l.bf16 %v1949
    %v2128 = vunpack.c.h.bf16 %v1949
    %v2129 = vunpack.c.l.bf16 %v1950
    %v2130 = vunpack.c.h.bf16 %v1950
    %v2131 = vunpack.c.l.bf16 %v1951
    %v2132 = vunpack.c.h.bf16 %v1951
    %v2133 = vunpack.c.l.bf16 %v1952
    %v2134 = vunpack.c.h.bf16 %v1952
    %v2135 = vunpack.c.l.bf16 %v1953
    %v2136 = vunpack.c.h.bf16 %v1953
    %v2137 = vunpack.c.l.bf16 %v1954
    %v2138 = vunpack.c.h.bf16 %v1954
    %v2139 = vunpack.c.l.bf16 %v1955
    %v2140 = vunpack.c.h.bf16 %v1955
    %v2141 = vunpack.c.l.bf16 %v1956
    %v2142 = vunpack.c.h.bf16 %v1956
    %v2143 = vunpack.c.l.bf16 %v1957
    %v2144 = vunpack.c.h.bf16 %v1957
    %v2145 = vunpack.c.l.bf16 %v1958
    %v2146 = vunpack.c.h.bf16 %v1958
    %v2147 = vunpack.c.l.bf16 %v1959
    %v2148 = vunpack.c.h.bf16 %v1959
    %v2149 = vunpack.c.l.bf16 %v1960
    %v2150 = vunpack.c.h.bf16 %v1960
    %v2151 = vunpack.c.l.bf16 %v1961
    %v2152 = vunpack.c.h.bf16 %v1961
    %v2153 = vunpack.c.l.bf16 %v1962
    %v2154 = vunpack.c.h.bf16 %v1962
    %v2155 = vunpack.c.l.bf16 %v1963
    %v2156 = vunpack.c.h.bf16 %v1963
    %v2157 = vunpack.c.l.bf16 %v1964
    %v2158 = vunpack.c.h.bf16 %v1964
    %v2159 = vunpack.c.l.bf16 %v1965
    %v2160 = vunpack.c.h.bf16 %v1965
    %v2161 = vunpack.c.l.bf16 %v1966
    %v2162 = vunpack.c.h.bf16 %v1966
    %v2163 = vunpack.c.l.bf16 %v1967
    %v2164 = vunpack.c.h.bf16 %v1967
    %v2165 = vunpack.c.l.bf16 %v1968
    %v2166 = vunpack.c.h.bf16 %v1968
    %v2167 = vunpack.c.l.bf16 %v1969
    %v2168 = vunpack.c.h.bf16 %v1969
    %v2169 = vunpack.c.l.bf16 %v1970
    %v2170 = vunpack.c.h.bf16 %v1970
    %v2171 = vunpack.c.l.bf16 %v1971
    %v2172 = vunpack.c.h.bf16 %v1971
    %v2173 = vunpack.c.l.bf16 %v1972
    %v2174 = vunpack.c.h.bf16 %v1972
    %v2175 = vunpack.c.l.bf16 %v1973
    %v2176 = vunpack.c.h.bf16 %v1973
    %v2177 = vunpack.c.l.bf16 %v1974
    %v2178 = vunpack.c.h.bf16 %v1974
    %v2179 = vunpack.c.l.bf16 %v1975
    %v2180 = vunpack.c.h.bf16 %v1975
    %v2181 = vunpack.c.l.bf16 %v1976
    %v2182 = vunpack.c.h.bf16 %v1976
    %v2183 = vunpack.c.l.bf16 %v1977
    %v2184 = vunpack.c.h.bf16 %v1977
    %v2185 = vunpack.c.l.bf16 %v1978
    %v2186 = vunpack.c.h.bf16 %v1978
    %v2187 = vunpack.c.l.bf16 %v1979
    %v2188 = vunpack.c.h.bf16 %v1979
    %v2189 = vunpack.c.l.bf16 %v1980
    %v2190 = vunpack.c.h.bf16 %v1980
    %v2191 = vunpack.c.l.bf16 %v1981
    %v2192 = vunpack.c.h.bf16 %v1981
    %v2193 = vunpack.c.l.bf16 %v1982
    %v2194 = vunpack.c.h.bf16 %v1982
    %v2195 = vunpack.c.l.bf16 %v1983
    %v2196 = vunpack.c.h.bf16 %v1983
    %v2197 = vunpack.c.l.bf16 %v1984
    %v2198 = vunpack.c.h.bf16 %v1984
    %v2199 = vunpack.c.l.bf16 %v1985
    %v2200 = vunpack.c.h.bf16 %v1985
    %v2201 = vunpack.c.l.bf16 %v1986
    %v2202 = vunpack.c.h.bf16 %v1986
    %v2203 = vunpack.c.l.bf16 %v1987
    %v2204 = vunpack.c.h.bf16 %v1987
    %v2205 = vunpack.c.l.bf16 %v1988
    %v2206 = vunpack.c.h.bf16 %v1988
    %v2207 = vunpack.c.l.bf16 %v1989
    %v2208 = vunpack.c.h.bf16 %v1989
    %v2209 = vunpack.c.l.bf16 %v1990
    %v2210 = vunpack.c.h.bf16 %v1990
    %v2211 = vunpack.c.l.bf16 %v1991
    %v2212 = vunpack.c.h.bf16 %v1991
    %v2213 = vunpack.c.l.bf16 %v1992
    %v2214 = vunpack.c.h.bf16 %v1992
    %v2215 = vunpack.c.l.bf16 %v1993
    %v2216 = vunpack.c.h.bf16 %v1993
    %v2217 = vunpack.c.l.bf16 %v1994
    %v2218 = vunpack.c.h.bf16 %v1994
    %v2219 = vunpack.c.l.bf16 %v1995
    %v2220 = vunpack.c.h.bf16 %v1995
    %v2221 = vunpack.c.l.bf16 %v1996
    %v2222 = vunpack.c.h.bf16 %v1996
    %v2223 = vunpack.c.l.bf16 %v1997
    %v2224 = vunpack.c.h.bf16 %v1997
    %v2225 = vunpack.c.l.bf16 %v1998
    %v2226 = vunpack.c.h.bf16 %v1998
    %v2227 = vunpack.c.l.bf16 %v1999
    %v2228 = vunpack.c.h.bf16 %v1999
    %v2229 = vunpack.c.l.bf16 %v2000
    %v2230 = vunpack.c.h.bf16 %v2000
    %v2231 = vunpack.c.l.bf16 %v2001
    %v2232 = vunpack.c.h.bf16 %v2001
    %v2233 = vunpack.c.l.bf16 %v2002
    %v2234 = vunpack.c.h.bf16 %v2002
    %v2235 = vunpack.c.l.bf16 %v2003
    %v2236 = vunpack.c.h.bf16 %v2003
    %v2237 = vunpack.c.l.bf16 %v2004
    %v2238 = vunpack.c.h.bf16 %v2004
    %v2239 = vunpack.c.l.bf16 %v2005
    %v2240 = vunpack.c.h.bf16 %v2005
    %v2241 = vunpack.c.l.bf16 %v2006
    %v2242 = vunpack.c.h.bf16 %v2006
    %v2243 = vunpack.c.l.bf16 %v2007
    %v2244 = vunpack.c.h.bf16 %v2007
    %v2245 = vunpack.c.l.bf16 %v2008
    %v2246 = vunpack.c.h.bf16 %v2008
    %v2247 = vunpack.c.l.bf16 %v2009
    %v2248 = vunpack.c.h.bf16 %v2009
    %v2249 = vunpack.c.l.bf16 %v2010
    %v2250 = vunpack.c.h.bf16 %v2010
    %v2251 = vunpack.c.l.bf16 %v2011
    %v2252 = vunpack.c.h.bf16 %v2011
    %v2253 = vunpack.c.l.bf16 %v2012
    %v2254 = vunpack.c.h.bf16 %v2012
    %v2255 = vunpack.c.l.bf16 %v2013
    %v2256 = vunpack.c.h.bf16 %v2013
    %v2257 = vunpack.c.l.bf16 %v2014
    %v2258 = vunpack.c.h.bf16 %v2014
    %v2259 = vunpack.c.l.bf16 %v2015
    %v2260 = vunpack.c.h.bf16 %v2015
    %v2261 = vunpack.c.l.bf16 %v2016
    %v2262 = vunpack.c.h.bf16 %v2016
    %v2263 = vunpack.c.l.bf16 %v2017
    %v2264 = vunpack.c.h.bf16 %v2017
    %v2265 = vunpack.c.l.bf16 %v2018
    %v2266 = vunpack.c.h.bf16 %v2018
    %v2267 = vunpack.c.l.bf16 %v2019
    %v2268 = vunpack.c.h.bf16 %v2019
    %v2269 = vunpack.c.l.bf16 %v2020
    %v2270 = vunpack.c.h.bf16 %v2020
    %v2271 = vunpack.c.l.bf16 %v2021
    %v2272 = vunpack.c.h.bf16 %v2021
    %v2273 = vunpack.c.l.bf16 %v2022
    %v2274 = vunpack.c.h.bf16 %v2022
    %v2275 = vunpack.c.l.bf16 %v2023
    %v2276 = vunpack.c.h.bf16 %v2023
    %v2277 = vunpack.c.l.bf16 %v2024
    %v2278 = vunpack.c.h.bf16 %v2024
    %v2279 = vunpack.c.l.bf16 %v2025
    %v2280 = vunpack.c.h.bf16 %v2025
    %v2281 = vunpack.c.l.bf16 %v2026
    %v2282 = vunpack.c.h.bf16 %v2026
    %v2283 = vmax.f32 %v1387, %v2027
    %v2284 = vmax.f32 %v1388, %v2028
    %v2285 = vmax.f32 %v1389, %v2029
    %v2286 = vmax.f32 %v1390, %v2030
    %v2287 = vmax.f32 %v1391, %v2031
    %v2288 = vmax.f32 %v1392, %v2032
    %v2289 = vmax.f32 %v1393, %v2033
    %v2290 = vmax.f32 %v1394, %v2034
    %v2291 = vmax.f32 %v1395, %v2035
    %v2292 = vmax.f32 %v1396, %v2036
    %v2293 = vmax.f32 %v1397, %v2037
    %v2294 = vmax.f32 %v1398, %v2038
    %v2295 = vmax.f32 %v1399, %v2039
    %v2296 = vmax.f32 %v1400, %v2040
    %v2297 = vmax.f32 %v1401, %v2041
    %v2298 = vmax.f32 %v1402, %v2042
    %v2299 = vmax.f32 %v1403, %v2043
    %v2300 = vmax.f32 %v1404, %v2044
    %v2301 = vmax.f32 %v1405, %v2045
    %v2302 = vmax.f32 %v1406, %v2046
    %v2303 = vmax.f32 %v1407, %v2047
    %v2304 = vmax.f32 %v1408, %v2048
    %v2305 = vmax.f32 %v1409, %v2049
    %v2306 = vmax.f32 %v1410, %v2050
    %v2307 = vmax.f32 %v1411, %v2051
    %v2308 = vmax.f32 %v1412, %v2052
    %v2309 = vmax.f32 %v1413, %v2053
    %v2310 = vmax.f32 %v1414, %v2054
    %v2311 = vmax.f32 %v1415, %v2055
    %v2312 = vmax.f32 %v1416, %v2056
    %v2313 = vmax.f32 %v1417, %v2057
    %v2314 = vmax.f32 %v1418, %v2058
    %v2315 = vmax.f32 %v1419, %v2059
    %v2316 = vmax.f32 %v1420, %v2060
    %v2317 = vmax.f32 %v1421, %v2061
    %v2318 = vmax.f32 %v1422, %v2062
    %v2319 = vmax.f32 %v1423, %v2063
    %v2320 = vmax.f32 %v1424, %v2064
    %v2321 = vmax.f32 %v1425, %v2065
    %v2322 = vmax.f32 %v1426, %v2066
    %v2323 = vmax.f32 %v1427, %v2067
    %v2324 = vmax.f32 %v1428, %v2068
    %v2325 = vmax.f32 %v1429, %v2069
    %v2326 = vmax.f32 %v1430, %v2070
    %v2327 = vmax.f32 %v1431, %v2071
    %v2328 = vmax.f32 %v1432, %v2072
    %v2329 = vmax.f32 %v1433, %v2073
    %v2330 = vmax.f32 %v1434, %v2074
    %v2331 = vmax.f32 %v1435, %v2075
    %v2332 = vmax.f32 %v1436, %v2076
    %v2333 = vmax.f32 %v1437, %v2077
    %v2334 = vmax.f32 %v1438, %v2078
    %v2335 = vmax.f32 %v1439, %v2079
    %v2336 = vmax.f32 %v1440, %v2080
    %v2337 = vmax.f32 %v1441, %v2081
    %v2338 = vmax.f32 %v1442, %v2082
    %v2339 = vmax.f32 %v1443, %v2083
    %v2340 = vmax.f32 %v1444, %v2084
    %v2341 = vmax.f32 %v1445, %v2085
    %v2342 = vmax.f32 %v1446, %v2086
    %v2343 = vmax.f32 %v1447, %v2087
    %v2344 = vmax.f32 %v1448, %v2088
    %v2345 = vmax.f32 %v1449, %v2089
    %v2346 = vmax.f32 %v1450, %v2090
    %v2347 = vmax.f32 %v1451, %v2091
    %v2348 = vmax.f32 %v1452, %v2092
    %v2349 = vmax.f32 %v1453, %v2093
    %v2350 = vmax.f32 %v1454, %v2094
    %v2351 = vmax.f32 %v1455, %v2095
    %v2352 = vmax.f32 %v1456, %v2096
    %v2353 = vmax.f32 %v1457, %v2097
    %v2354 = vmax.f32 %v1458, %v2098
    %v2355 = vmax.f32 %v1459, %v2099
    %v2356 = vmax.f32 %v1460, %v2100
    %v2357 = vmax.f32 %v1461, %v2101
    %v2358 = vmax.f32 %v1462, %v2102
    %v2359 = vmax.f32 %v1463, %v2103
    %v2360 = vmax.f32 %v1464, %v2104
    %v2361 = vmax.f32 %v1465, %v2105
    %v2362 = vmax.f32 %v1466, %v2106
    %v2363 = vmax.f32 %v1467, %v2107
    %v2364 = vmax.f32 %v1468, %v2108
    %v2365 = vmax.f32 %v1469, %v2109
    %v2366 = vmax.f32 %v1470, %v2110
    %v2367 = vmax.f32 %v1471, %v2111
    %v2368 = vmax.f32 %v1472, %v2112
    %v2369 = vmax.f32 %v1473, %v2113
    %v2370 = vmax.f32 %v1474, %v2114
    %v2371 = vmax.f32 %v1475, %v2115
    %v2372 = vmax.f32 %v1476, %v2116
    %v2373 = vmax.f32 %v1477, %v2117
    %v2374 = vmax.f32 %v1478, %v2118
    %v2375 = vmax.f32 %v1479, %v2119
    %v2376 = vmax.f32 %v1480, %v2120
    %v2377 = vmax.f32 %v1481, %v2121
    %v2378 = vmax.f32 %v1482, %v2122
    %v2379 = vmax.f32 %v1483, %v2123
    %v2380 = vmax.f32 %v1484, %v2124
    %v2381 = vmax.f32 %v1485, %v2125
    %v2382 = vmax.f32 %v1486, %v2126
    %v2383 = vmax.f32 %v1487, %v2127
    %v2384 = vmax.f32 %v1488, %v2128
    %v2385 = vmax.f32 %v1489, %v2129
    %v2386 = vmax.f32 %v1490, %v2130
    %v2387 = vmax.f32 %v1491, %v2131
    %v2388 = vmax.f32 %v1492, %v2132
    %v2389 = vmax.f32 %v1493, %v2133
    %v2390 = vmax.f32 %v1494, %v2134
    %v2391 = vmax.f32 %v1495, %v2135
    %v2392 = vmax.f32 %v1496, %v2136
    %v2393 = vmax.f32 %v1497, %v2137
    %v2394 = vmax.f32 %v1498, %v2138
    %v2395 = vmax.f32 %v1499, %v2139
    %v2396 = vmax.f32 %v1500, %v2140
    %v2397 = vmax.f32 %v1501, %v2141
    %v2398 = vmax.f32 %v1502, %v2142
    %v2399 = vmax.f32 %v1503, %v2143
    %v2400 = vmax.f32 %v1504, %v2144
    %v2401 = vmax.f32 %v1505, %v2145
    %v2402 = vmax.f32 %v1506, %v2146
    %v2403 = vmax.f32 %v1507, %v2147
    %v2404 = vmax.f32 %v1508, %v2148
    %v2405 = vmax.f32 %v1509, %v2149
    %v2406 = vmax.f32 %v1510, %v2150
    %v2407 = vmax.f32 %v1511, %v2151
    %v2408 = vmax.f32 %v1512, %v2152
    %v2409 = vmax.f32 %v1513, %v2153
    %v2410 = vmax.f32 %v1514, %v2154
    %v2411 = vmax.f32 %v1515, %v2155
    %v2412 = vmax.f32 %v1516, %v2156
    %v2413 = vmax.f32 %v1517, %v2157
    %v2414 = vmax.f32 %v1518, %v2158
    %v2415 = vmax.f32 %v1519, %v2159
    %v2416 = vmax.f32 %v1520, %v2160
    %v2417 = vmax.f32 %v1521, %v2161
    %v2418 = vmax.f32 %v1522, %v2162
    %v2419 = vmax.f32 %v1523, %v2163
    %v2420 = vmax.f32 %v1524, %v2164
    %v2421 = vmax.f32 %v1525, %v2165
    %v2422 = vmax.f32 %v1526, %v2166
    %v2423 = vmax.f32 %v1527, %v2167
    %v2424 = vmax.f32 %v1528, %v2168
    %v2425 = vmax.f32 %v1529, %v2169
    %v2426 = vmax.f32 %v1530, %v2170
    %v2427 = vmax.f32 %v1531, %v2171
    %v2428 = vmax.f32 %v1532, %v2172
    %v2429 = vmax.f32 %v1533, %v2173
    %v2430 = vmax.f32 %v1534, %v2174
    %v2431 = vmax.f32 %v1535, %v2175
    %v2432 = vmax.f32 %v1536, %v2176
    %v2433 = vmax.f32 %v1537, %v2177
    %v2434 = vmax.f32 %v1538, %v2178
    %v2435 = vmax.f32 %v1539, %v2179
    %v2436 = vmax.f32 %v1540, %v2180
    %v2437 = vmax.f32 %v1541, %v2181
    %v2438 = vmax.f32 %v1542, %v2182
    %v2439 = vmax.f32 %v1543, %v2183
    %v2440 = vmax.f32 %v1544, %v2184
    %v2441 = vmax.f32 %v1545, %v2185
    %v2442 = vmax.f32 %v1546, %v2186
    %v2443 = vmax.f32 %v1547, %v2187
    %v2444 = vmax.f32 %v1548, %v2188
    %v2445 = vmax.f32 %v1549, %v2189
    %v2446 = vmax.f32 %v1550, %v2190
    %v2447 = vmax.f32 %v1551, %v2191
    %v2448 = vmax.f32 %v1552, %v2192
    %v2449 = vmax.f32 %v1553, %v2193
    %v2450 = vmax.f32 %v1554, %v2194
    %v2451 = vmax.f32 %v1555, %v2195
    %v2452 = vmax.f32 %v1556, %v2196
    %v2453 = vmax.f32 %v1557, %v2197
    %v2454 = vmax.f32 %v1558, %v2198
    %v2455 = vmax.f32 %v1559, %v2199
    %v2456 = vmax.f32 %v1560, %v2200
    %v2457 = vmax.f32 %v1561, %v2201
    %v2458 = vmax.f32 %v1562, %v2202
    %v2459 = vmax.f32 %v1563, %v2203
    %v2460 = vmax.f32 %v1564, %v2204
    %v2461 = vmax.f32 %v1565, %v2205
    %v2462 = vmax.f32 %v1566, %v2206
    %v2463 = vmax.f32 %v1567, %v2207
    %v2464 = vmax.f32 %v1568, %v2208
    %v2465 = vmax.f32 %v1569, %v2209
    %v2466 = vmax.f32 %v1570, %v2210
    %v2467 = vmax.f32 %v1571, %v2211
    %v2468 = vmax.f32 %v1572, %v2212
    %v2469 = vmax.f32 %v1573, %v2213
    %v2470 = vmax.f32 %v1574, %v2214
    %v2471 = vmax.f32 %v1575, %v2215
    %v2472 = vmax.f32 %v1576, %v2216
    %v2473 = vmax.f32 %v1577, %v2217
    %v2474 = vmax.f32 %v1578, %v2218
    %v2475 = vmax.f32 %v1579, %v2219
    %v2476 = vmax.f32 %v1580, %v2220
    %v2477 = vmax.f32 %v1581, %v2221
    %v2478 = vmax.f32 %v1582, %v2222
    %v2479 = vmax.f32 %v1583, %v2223
    %v2480 = vmax.f32 %v1584, %v2224
    %v2481 = vmax.f32 %v1585, %v2225
    %v2482 = vmax.f32 %v1586, %v2226
    %v2483 = vmax.f32 %v1587, %v2227
    %v2484 = vmax.f32 %v1588, %v2228
    %v2485 = vmax.f32 %v1589, %v2229
    %v2486 = vmax.f32 %v1590, %v2230
    %v2487 = vmax.f32 %v1591, %v2231
    %v2488 = vmax.f32 %v1592, %v2232
    %v2489 = vmax.f32 %v1593, %v2233
    %v2490 = vmax.f32 %v1594, %v2234
    %v2491 = vmax.f32 %v1595, %v2235
    %v2492 = vmax.f32 %v1596, %v2236
    %v2493 = vmax.f32 %v1597, %v2237
    %v2494 = vmax.f32 %v1598, %v2238
    %v2495 = vmax.f32 %v1599, %v2239
    %v2496 = vmax.f32 %v1600, %v2240
    %v2497 = vmax.f32 %v1601, %v2241
    %v2498 = vmax.f32 %v1602, %v2242
    %v2499 = vmax.f32 %v1603, %v2243
    %v2500 = vmax.f32 %v1604, %v2244
    %v2501 = vmax.f32 %v1605, %v2245
    %v2502 = vmax.f32 %v1606, %v2246
    %v2503 = vmax.f32 %v1607, %v2247
    %v2504 = vmax.f32 %v1608, %v2248
    %v2505 = vmax.f32 %v1609, %v2249
    %v2506 = vmax.f32 %v1610, %v2250
    %v2507 = vmax.f32 %v1611, %v2251
    %v2508 = vmax.f32 %v1612, %v2252
    %v2509 = vmax.f32 %v1613, %v2253
    %v2510 = vmax.f32 %v1614, %v2254
    %v2511 = vmax.f32 %v1615, %v2255
    %v2512 = vmax.f32 %v1616, %v2256
    %v2513 = vmax.f32 %v1617, %v2257
    %v2514 = vmax.f32 %v1618, %v2258
    %v2515 = vmax.f32 %v1619, %v2259
    %v2516 = vmax.f32 %v1620, %v2260
    %v2517 = vmax.f32 %v1621, %v2261
    %v2518 = vmax.f32 %v1622, %v2262
    %v2519 = vmax.f32 %v1623, %v2263
    %v2520 = vmax.f32 %v1624, %v2264
    %v2521 = vmax.f32 %v1625, %v2265
    %v2522 = vmax.f32 %v1626, %v2266
    %v2523 = vmax.f32 %v1627, %v2267
    %v2524 = vmax.f32 %v1628, %v2268
    %v2525 = vmax.f32 %v1629, %v2269
    %v2526 = vmax.f32 %v1630, %v2270
    %v2527 = vmax.f32 %v1631, %v2271
    %v2528 = vmax.f32 %v1632, %v2272
    %v2529 = vmax.f32 %v1633, %v2273
    %v2530 = vmax.f32 %v1634, %v2274
    %v2531 = vmax.f32 %v1635, %v2275
    %v2532 = vmax.f32 %v1636, %v2276
    %v2533 = vmax.f32 %v1637, %v2277
    %v2534 = vmax.f32 %v1638, %v2278
    %v2535 = vmax.f32 %v1639, %v2279
    %v2536 = vmax.f32 %v1640, %v2280
    %v2537 = vmax.f32 %v1641, %v2281
    %v2538 = vmax.f32 %v1642, %v2282
    %v2539 = vpack.c.bf16 %v2291, %v2283
    %v2540 = vpack.c.bf16 %v2292, %v2284
    %v2541 = vpack.c.bf16 %v2293, %v2285
    %v2542 = vpack.c.bf16 %v2294, %v2286
    %v2543 = vpack.c.bf16 %v2295, %v2287
    %v2544 = vpack.c.bf16 %v2296, %v2288
    %v2545 = vpack.c.bf16 %v2297, %v2289
    %v2546 = vpack.c.bf16 %v2298, %v2290
    %v2547 = vpack.c.bf16 %v2307, %v2299
    %v2548 = vpack.c.bf16 %v2308, %v2300
    %v2549 = vpack.c.bf16 %v2309, %v2301
    %v2550 = vpack.c.bf16 %v2310, %v2302
    %v2551 = vpack.c.bf16 %v2311, %v2303
    %v2552 = vpack.c.bf16 %v2312, %v2304
    %v2553 = vpack.c.bf16 %v2313, %v2305
    %v2554 = vpack.c.bf16 %v2314, %v2306
    %v2555 = vpack.c.bf16 %v2323, %v2315
    %v2556 = vpack.c.bf16 %v2324, %v2316
    %v2557 = vpack.c.bf16 %v2325, %v2317
    %v2558 = vpack.c.bf16 %v2326, %v2318
    %v2559 = vpack.c.bf16 %v2327, %v2319
    %v2560 = vpack.c.bf16 %v2328, %v2320
    %v2561 = vpack.c.bf16 %v2329, %v2321
    %v2562 = vpack.c.bf16 %v2330, %v2322
    %v2563 = vpack.c.bf16 %v2339, %v2331
    %v2564 = vpack.c.bf16 %v2340, %v2332
    %v2565 = vpack.c.bf16 %v2341, %v2333
    %v2566 = vpack.c.bf16 %v2342, %v2334
    %v2567 = vpack.c.bf16 %v2343, %v2335
    %v2568 = vpack.c.bf16 %v2344, %v2336
    %v2569 = vpack.c.bf16 %v2345, %v2337
    %v2570 = vpack.c.bf16 %v2346, %v2338
    %v2571 = vpack.c.bf16 %v2355, %v2347
    %v2572 = vpack.c.bf16 %v2356, %v2348
    %v2573 = vpack.c.bf16 %v2357, %v2349
    %v2574 = vpack.c.bf16 %v2358, %v2350
    %v2575 = vpack.c.bf16 %v2359, %v2351
    %v2576 = vpack.c.bf16 %v2360, %v2352
    %v2577 = vpack.c.bf16 %v2361, %v2353
    %v2578 = vpack.c.bf16 %v2362, %v2354
    %v2579 = vpack.c.bf16 %v2371, %v2363
    %v2580 = vpack.c.bf16 %v2372, %v2364
    %v2581 = vpack.c.bf16 %v2373, %v2365
    %v2582 = vpack.c.bf16 %v2374, %v2366
    %v2583 = vpack.c.bf16 %v2375, %v2367
    %v2584 = vpack.c.bf16 %v2376, %v2368
    %v2585 = vpack.c.bf16 %v2377, %v2369
    %v2586 = vpack.c.bf16 %v2378, %v2370
    %v2587 = vpack.c.bf16 %v2387, %v2379
    %v2588 = vpack.c.bf16 %v2388, %v2380
    %v2589 = vpack.c.bf16 %v2389, %v2381
    %v2590 = vpack.c.bf16 %v2390, %v2382
    %v2591 = vpack.c.bf16 %v2391, %v2383
    %v2592 = vpack.c.bf16 %v2392, %v2384
    %v2593 = vpack.c.bf16 %v2393, %v2385
    %v2594 = vpack.c.bf16 %v2394, %v2386
    %v2595 = vpack.c.bf16 %v2403, %v2395
    %v2596 = vpack.c.bf16 %v2404, %v2396
    %v2597 = vpack.c.bf16 %v2405, %v2397
    %v2598 = vpack.c.bf16 %v2406, %v2398
    %v2599 = vpack.c.bf16 %v2407, %v2399
    %v2600 = vpack.c.bf16 %v2408, %v2400
    %v2601 = vpack.c.bf16 %v2409, %v2401
    %v2602 = vpack.c.bf16 %v2410, %v2402
    %v2603 = vpack.c.bf16 %v2419, %v2411
    %v2604 = vpack.c.bf16 %v2420, %v2412
    %v2605 = vpack.c.bf16 %v2421, %v2413
    %v2606 = vpack.c.bf16 %v2422, %v2414
    %v2607 = vpack.c.bf16 %v2423, %v2415
    %v2608 = vpack.c.bf16 %v2424, %v2416
    %v2609 = vpack.c.bf16 %v2425, %v2417
    %v2610 = vpack.c.bf16 %v2426, %v2418
    %v2611 = vpack.c.bf16 %v2435, %v2427
    %v2612 = vpack.c.bf16 %v2436, %v2428
    %v2613 = vpack.c.bf16 %v2437, %v2429
    %v2614 = vpack.c.bf16 %v2438, %v2430
    %v2615 = vpack.c.bf16 %v2439, %v2431
    %v2616 = vpack.c.bf16 %v2440, %v2432
    %v2617 = vpack.c.bf16 %v2441, %v2433
    %v2618 = vpack.c.bf16 %v2442, %v2434
    %v2619 = vpack.c.bf16 %v2451, %v2443
    %v2620 = vpack.c.bf16 %v2452, %v2444
    %v2621 = vpack.c.bf16 %v2453, %v2445
    %v2622 = vpack.c.bf16 %v2454, %v2446
    %v2623 = vpack.c.bf16 %v2455, %v2447
    %v2624 = vpack.c.bf16 %v2456, %v2448
    %v2625 = vpack.c.bf16 %v2457, %v2449
    %v2626 = vpack.c.bf16 %v2458, %v2450
    %v2627 = vpack.c.bf16 %v2467, %v2459
    %v2628 = vpack.c.bf16 %v2468, %v2460
    %v2629 = vpack.c.bf16 %v2469, %v2461
    %v2630 = vpack.c.bf16 %v2470, %v2462
    %v2631 = vpack.c.bf16 %v2471, %v2463
    %v2632 = vpack.c.bf16 %v2472, %v2464
    %v2633 = vpack.c.bf16 %v2473, %v2465
    %v2634 = vpack.c.bf16 %v2474, %v2466
    %v2635 = vpack.c.bf16 %v2483, %v2475
    %v2636 = vpack.c.bf16 %v2484, %v2476
    %v2637 = vpack.c.bf16 %v2485, %v2477
    %v2638 = vpack.c.bf16 %v2486, %v2478
    %v2639 = vpack.c.bf16 %v2487, %v2479
    %v2640 = vpack.c.bf16 %v2488, %v2480
    %v2641 = vpack.c.bf16 %v2489, %v2481
    %v2642 = vpack.c.bf16 %v2490, %v2482
    %v2643 = vpack.c.bf16 %v2499, %v2491
    %v2644 = vpack.c.bf16 %v2500, %v2492
    %v2645 = vpack.c.bf16 %v2501, %v2493
    %v2646 = vpack.c.bf16 %v2502, %v2494
    %v2647 = vpack.c.bf16 %v2503, %v2495
    %v2648 = vpack.c.bf16 %v2504, %v2496
    %v2649 = vpack.c.bf16 %v2505, %v2497
    %v2650 = vpack.c.bf16 %v2506, %v2498
    %v2651 = vpack.c.bf16 %v2515, %v2507
    %v2652 = vpack.c.bf16 %v2516, %v2508
    %v2653 = vpack.c.bf16 %v2517, %v2509
    %v2654 = vpack.c.bf16 %v2518, %v2510
    %v2655 = vpack.c.bf16 %v2519, %v2511
    %v2656 = vpack.c.bf16 %v2520, %v2512
    %v2657 = vpack.c.bf16 %v2521, %v2513
    %v2658 = vpack.c.bf16 %v2522, %v2514
    %v2659 = vpack.c.bf16 %v2531, %v2523
    %v2660 = vpack.c.bf16 %v2532, %v2524
    %v2661 = vpack.c.bf16 %v2533, %v2525
    %v2662 = vpack.c.bf16 %v2534, %v2526
    %v2663 = vpack.c.bf16 %v2535, %v2527
    %v2664 = vpack.c.bf16 %v2536, %v2528
    %v2665 = vpack.c.bf16 %v2537, %v2529
    %v2666 = vpack.c.bf16 %v2538, %v2530
    %v2699 = vunpack.c.l.b16 %v105
    %v2700 = vunpack.c.h.b16 %v105
    %v2701 = vunpack.c.l.b16 %v106
    %v2702 = vunpack.c.h.b16 %v106
    %v2703 = vunpack.c.l.b16 %v107
    %v2704 = vunpack.c.h.b16 %v107
    %v2705 = vunpack.c.l.b16 %v108
    %v2706 = vunpack.c.h.b16 %v108
    %v2707 = vunpack.c.l.b16 %v109
    %v2708 = vunpack.c.h.b16 %v109
    %v2709 = vunpack.c.l.b16 %v110
    %v2710 = vunpack.c.h.b16 %v110
    %v2711 = vunpack.c.l.b16 %v111
    %v2712 = vunpack.c.h.b16 %v111
    %v2713 = vunpack.c.l.b16 %v112
    %v2714 = vunpack.c.h.b16 %v112
    %v2715 = vunpack.c.l.b16 %v113
    %v2716 = vunpack.c.h.b16 %v113
    %v2717 = vunpack.c.l.b16 %v114
    %v2718 = vunpack.c.h.b16 %v114
    %v2719 = vunpack.c.l.b16 %v115
    %v2720 = vunpack.c.h.b16 %v115
    %v2721 = vunpack.c.l.b16 %v116
    %v2722 = vunpack.c.h.b16 %v116
    %v2723 = vunpack.c.l.b16 %v117
    %v2724 = vunpack.c.h.b16 %v117
    %v2725 = vunpack.c.l.b16 %v118
    %v2726 = vunpack.c.h.b16 %v118
    %v2727 = vunpack.c.l.b16 %v119
    %v2728 = vunpack.c.h.b16 %v119
    %v2729 = vunpack.c.l.b16 %v120
    %v2730 = vunpack.c.h.b16 %v120
    %v2731 = vunpack.c.l.b16 %v121
    %v2732 = vunpack.c.h.b16 %v121
    %v2733 = vunpack.c.l.b16 %v122
    %v2734 = vunpack.c.h.b16 %v122
    %v2735 = vunpack.c.l.b16 %v123
    %v2736 = vunpack.c.h.b16 %v123
    %v2737 = vunpack.c.l.b16 %v124
    %v2738 = vunpack.c.h.b16 %v124
    %v2739 = vunpack.c.l.b16 %v125
    %v2740 = vunpack.c.h.b16 %v125
    %v2741 = vunpack.c.l.b16 %v126
    %v2742 = vunpack.c.h.b16 %v126
    %v2743 = vunpack.c.l.b16 %v127
    %v2744 = vunpack.c.h.b16 %v127
    %v2745 = vunpack.c.l.b16 %v128
    %v2746 = vunpack.c.h.b16 %v128
    %v2747 = vunpack.c.l.b16 %v129
    %v2748 = vunpack.c.h.b16 %v129
    %v2749 = vunpack.c.l.b16 %v130
    %v2750 = vunpack.c.h.b16 %v130
    %v2751 = vunpack.c.l.b16 %v131
    %v2752 = vunpack.c.h.b16 %v131
    %v2753 = vunpack.c.l.b16 %v132
    %v2754 = vunpack.c.h.b16 %v132
    %v2755 = vunpack.c.l.b16 %v133
    %v2756 = vunpack.c.h.b16 %v133
    %v2757 = vunpack.c.l.b16 %v134
    %v2758 = vunpack.c.h.b16 %v134
    %v2759 = vunpack.c.l.b16 %v135
    %v2760 = vunpack.c.h.b16 %v135
    %v2761 = vunpack.c.l.b16 %v136
    %v2762 = vunpack.c.h.b16 %v136
    %v2763 = vpack.c.b16 %v2701, %v2699
    %v2764 = vpack.c.b16 %v2702, %v2700
    %v2765 = vpack.c.b16 %v2705, %v2703
    %v2766 = vpack.c.b16 %v2706, %v2704
    %v2767 = vpack.c.b16 %v2709, %v2707
    %v2768 = vpack.c.b16 %v2710, %v2708
    %v2769 = vpack.c.b16 %v2713, %v2711
    %v2770 = vpack.c.b16 %v2714, %v2712
    %v2771 = vpack.c.b16 %v2717, %v2715
    %v2772 = vpack.c.b16 %v2718, %v2716
    %v2773 = vpack.c.b16 %v2721, %v2719
    %v2774 = vpack.c.b16 %v2722, %v2720
    %v2775 = vpack.c.b16 %v2725, %v2723
    %v2776 = vpack.c.b16 %v2726, %v2724
    %v2777 = vpack.c.b16 %v2729, %v2727
    %v2778 = vpack.c.b16 %v2730, %v2728
    %v2779 = vpack.c.b16 %v2733, %v2731
    %v2780 = vpack.c.b16 %v2734, %v2732
    %v2781 = vpack.c.b16 %v2737, %v2735
    %v2782 = vpack.c.b16 %v2738, %v2736
    %v2783 = vpack.c.b16 %v2741, %v2739
    %v2784 = vpack.c.b16 %v2742, %v2740
    %v2785 = vpack.c.b16 %v2745, %v2743
    %v2786 = vpack.c.b16 %v2746, %v2744
    %v2787 = vpack.c.b16 %v2749, %v2747
    %v2788 = vpack.c.b16 %v2750, %v2748
    %v2789 = vpack.c.b16 %v2753, %v2751
    %v2790 = vpack.c.b16 %v2754, %v2752
    %v2791 = vpack.c.b16 %v2757, %v2755
    %v2792 = vpack.c.b16 %v2758, %v2756
    %v2793 = vpack.c.b16 %v2761, %v2759
    %v2794 = vpack.c.b16 %v2762, %v2760
    %2827 = vmatpush.bf16.msra.mxu0 %v2595
    %2828 = vmatpush.bf16.msra.mxu0 %v2587
    %2829 = vmatpush.bf16.msra.mxu0 %v2579
    %2830 = vmatpush.bf16.msra.mxu0 %v2571
    %2831 = vmatpush.bf16.msra.mxu0 %v2563
    %2832 = vmatpush.bf16.msra.mxu0 %v2555
    %2833 = vmatpush.bf16.msra.mxu0 %v2547
    %2834 = vmatpush.bf16.msra.mxu0 %v2539
    %2835 = vmatmul.bf16.gmra.mxu0 %v2763
    %v2836 = vpop.f32.mrf.mxu0
    %v2837 = vadd.f32 0.0, %v2836
    %v2838 = vpop.f32.mrf.mxu0
    %v2839 = vadd.f32 0.0, %v2838
    %2840 = vmatmul.bf16.gmra.mxu0 %v2765
    %v2841 = vpop.f32.mrf.mxu0
    %v2842 = vadd.f32 0.0, %v2841
    %v2843 = vpop.f32.mrf.mxu0
    %v2844 = vadd.f32 0.0, %v2843
    %2845 = vmatmul.bf16.gmra.mxu0 %v2767
    %v2846 = vpop.f32.mrf.mxu0
    %v2847 = vadd.f32 0.0, %v2846
    %v2848 = vpop.f32.mrf.mxu0
    %v2849 = vadd.f32 0.0, %v2848
    %2850 = vmatmul.bf16.gmra.mxu0 %v2769
    %v2851 = vpop.f32.mrf.mxu0
    %v2852 = vadd.f32 0.0, %v2851
    %v2853 = vpop.f32.mrf.mxu0
    %v2854 = vadd.f32 0.0, %v2853
    %2855 = vmatmul.bf16.gmra.mxu0 %v2771
    %v2856 = vpop.f32.mrf.mxu0
    %v2857 = vadd.f32 0.0, %v2856
    %v2858 = vpop.f32.mrf.mxu0
    %v2859 = vadd.f32 0.0, %v2858
    %2860 = vmatmul.bf16.gmra.mxu0 %v2773
    %v2861 = vpop.f32.mrf.mxu0
    %v2862 = vadd.f32 0.0, %v2861
    %v2863 = vpop.f32.mrf.mxu0
    %v2864 = vadd.f32 0.0, %v2863
    %2865 = vmatmul.bf16.gmra.mxu0 %v2775
    %v2866 = vpop.f32.mrf.mxu0
    %v2867 = vadd.f32 0.0, %v2866
    %v2868 = vpop.f32.mrf.mxu0
    %v2869 = vadd.f32 0.0, %v2868
    %2870 = vmatmul.bf16.gmra.mxu0 %v2777
    %v2871 = vpop.f32.mrf.mxu0
    %v2872 = vadd.f32 0.0, %v2871
    %v2873 = vpop.f32.mrf.mxu0
    %v2874 = vadd.f32 0.0, %v2873
    %2875 = vmatmul.bf16.gmra.mxu0 %v2779
    %v2876 = vpop.f32.mrf.mxu0
    %v2877 = vadd.f32 0.0, %v2876
    %v2878 = vpop.f32.mrf.mxu0
    %v2879 = vadd.f32 0.0, %v2878
    %2880 = vmatmul.bf16.gmra.mxu0 %v2781
    %v2881 = vpop.f32.mrf.mxu0
    %v2882 = vadd.f32 0.0, %v2881
    %v2883 = vpop.f32.mrf.mxu0
    %v2884 = vadd.f32 0.0, %v2883
    %2885 = vmatmul.bf16.gmra.mxu0 %v2783
    %v2886 = vpop.f32.mrf.mxu0
    %v2887 = vadd.f32 0.0, %v2886
    %v2888 = vpop.f32.mrf.mxu0
    %v2889 = vadd.f32 0.0, %v2888
    %2890 = vmatmul.bf16.gmra.mxu0 %v2785
    %v2891 = vpop.f32.mrf.mxu0
    %v2892 = vadd.f32 0.0, %v2891
    %v2893 = vpop.f32.mrf.mxu0
    %v2894 = vadd.f32 0.0, %v2893
    %2895 = vmatmul.bf16.gmra.mxu0 %v2787
    %v2896 = vpop.f32.mrf.mxu0
    %v2897 = vadd.f32 0.0, %v2896
    %v2898 = vpop.f32.mrf.mxu0
    %v2899 = vadd.f32 0.0, %v2898
    %2900 = vmatmul.bf16.gmra.mxu0 %v2789
    %v2901 = vpop.f32.mrf.mxu0
    %v2902 = vadd.f32 0.0, %v2901
    %v2903 = vpop.f32.mrf.mxu0
    %v2904 = vadd.f32 0.0, %v2903
    %2905 = vmatmul.bf16.gmra.mxu0 %v2791
    %v2906 = vpop.f32.mrf.mxu0
    %v2907 = vadd.f32 0.0, %v2906
    %v2908 = vpop.f32.mrf.mxu0
    %v2909 = vadd.f32 0.0, %v2908
    %2910 = vmatmul.bf16.gmra.mxu0 %v2793
    %v2911 = vpop.f32.mrf.mxu0
    %v2912 = vadd.f32 0.0, %v2911
    %v2913 = vpop.f32.mrf.mxu0
    %v2914 = vadd.f32 0.0, %v2913
    %2915 = vdwg.mxu0
    %2916 = vmatpush.bf16.msra.mxu0 %v2659
    %2917 = vmatpush.bf16.msra.mxu0 %v2651
    %2918 = vmatpush.bf16.msra.mxu0 %v2643
    %2919 = vmatpush.bf16.msra.mxu0 %v2635
    %2920 = vmatpush.bf16.msra.mxu0 %v2627
    %2921 = vmatpush.bf16.msra.mxu0 %v2619
    %2922 = vmatpush.bf16.msra.mxu0 %v2611
    %2923 = vmatpush.bf16.msra.mxu0 %v2603
    %2924 = vmatmul.bf16.gmra.mxu0 %v2764
    %v2925 = vpop.f32.mrf.mxu0
    %v2926 = vadd.f32 %v2837, %v2925
    %v2927 = vpop.f32.mrf.mxu0
    %v2928 = vadd.f32 %v2839, %v2927
    %2929 = vmatmul.bf16.gmra.mxu0 %v2766
    %v2930 = vpop.f32.mrf.mxu0
    %v2931 = vadd.f32 %v2842, %v2930
    %v2932 = vpop.f32.mrf.mxu0
    %v2933 = vadd.f32 %v2844, %v2932
    %2934 = vmatmul.bf16.gmra.mxu0 %v2768
    %v2935 = vpop.f32.mrf.mxu0
    %v2936 = vadd.f32 %v2847, %v2935
    %v2937 = vpop.f32.mrf.mxu0
    %v2938 = vadd.f32 %v2849, %v2937
    %2939 = vmatmul.bf16.gmra.mxu0 %v2770
    %v2940 = vpop.f32.mrf.mxu0
    %v2941 = vadd.f32 %v2852, %v2940
    %v2942 = vpop.f32.mrf.mxu0
    %v2943 = vadd.f32 %v2854, %v2942
    %2944 = vmatmul.bf16.gmra.mxu0 %v2772
    %v2945 = vpop.f32.mrf.mxu0
    %v2946 = vadd.f32 %v2857, %v2945
    %v2947 = vpop.f32.mrf.mxu0
    %v2948 = vadd.f32 %v2859, %v2947
    %2949 = vmatmul.bf16.gmra.mxu0 %v2774
    %v2950 = vpop.f32.mrf.mxu0
    %v2951 = vadd.f32 %v2862, %v2950
    %v2952 = vpop.f32.mrf.mxu0
    %v2953 = vadd.f32 %v2864, %v2952
    %2954 = vmatmul.bf16.gmra.mxu0 %v2776
    %v2955 = vpop.f32.mrf.mxu0
    %v2956 = vadd.f32 %v2867, %v2955
    %v2957 = vpop.f32.mrf.mxu0
    %v2958 = vadd.f32 %v2869, %v2957
    %2959 = vmatmul.bf16.gmra.mxu0 %v2778
    %v2960 = vpop.f32.mrf.mxu0
    %v2961 = vadd.f32 %v2872, %v2960
    %v2962 = vpop.f32.mrf.mxu0
    %v2963 = vadd.f32 %v2874, %v2962
    %2964 = vmatmul.bf16.gmra.mxu0 %v2780
    %v2965 = vpop.f32.mrf.mxu0
    %v2966 = vadd.f32 %v2877, %v2965
    %v2967 = vpop.f32.mrf.mxu0
    %v2968 = vadd.f32 %v2879, %v2967
    %2969 = vmatmul.bf16.gmra.mxu0 %v2782
    %v2970 = vpop.f32.mrf.mxu0
    %v2971 = vadd.f32 %v2882, %v2970
    %v2972 = vpop.f32.mrf.mxu0
    %v2973 = vadd.f32 %v2884, %v2972
    %2974 = vmatmul.bf16.gmra.mxu0 %v2784
    %v2975 = vpop.f32.mrf.mxu0
    %v2976 = vadd.f32 %v2887, %v2975
    %v2977 = vpop.f32.mrf.mxu0
    %v2978 = vadd.f32 %v2889, %v2977
    %2979 = vmatmul.bf16.gmra.mxu0 %v2786
    %v2980 = vpop.f32.mrf.mxu0
    %v2981 = vadd.f32 %v2892, %v2980
    %v2982 = vpop.f32.mrf.mxu0
    %v2983 = vadd.f32 %v2894, %v2982
    %2984 = vmatmul.bf16.gmra.mxu0 %v2788
    %v2985 = vpop.f32.mrf.mxu0
    %v2986 = vadd.f32 %v2897, %v2985
    %v2987 = vpop.f32.mrf.mxu0
    %v2988 = vadd.f32 %v2899, %v2987
    %2989 = vmatmul.bf16.gmra.mxu0 %v2790
    %v2990 = vpop.f32.mrf.mxu0
    %v2991 = vadd.f32 %v2902, %v2990
    %v2992 = vpop.f32.mrf.mxu0
    %v2993 = vadd.f32 %v2904, %v2992
    %2994 = vmatmul.bf16.gmra.mxu0 %v2792
    %v2995 = vpop.f32.mrf.mxu0
    %v2996 = vadd.f32 %v2907, %v2995
    %v2997 = vpop.f32.mrf.mxu0
    %v2998 = vadd.f32 %v2909, %v2997
    %2999 = vmatmul.bf16.gmra.mxu0 %v2794
    %v3000 = vpop.f32.mrf.mxu0
    %v3001 = vadd.f32 %v2912, %v3000
    %v3002 = vpop.f32.mrf.mxu0
    %v3003 = vadd.f32 %v2914, %v3002
    %3004 = vdwg.mxu0
    %3005 = vmatpush.bf16.msra.mxu0 %v2596
    %3006 = vmatpush.bf16.msra.mxu0 %v2588
    %3007 = vmatpush.bf16.msra.mxu0 %v2580
    %3008 = vmatpush.bf16.msra.mxu0 %v2572
    %3009 = vmatpush.bf16.msra.mxu0 %v2564
    %3010 = vmatpush.bf16.msra.mxu0 %v2556
    %3011 = vmatpush.bf16.msra.mxu0 %v2548
    %3012 = vmatpush.bf16.msra.mxu0 %v2540
    %3013 = vmatmul.bf16.gmra.mxu0 %v2763
    %v3014 = vpop.f32.mrf.mxu0
    %v3015 = vadd.f32 0.0, %v3014
    %v3016 = vpop.f32.mrf.mxu0
    %v3017 = vadd.f32 0.0, %v3016
    %3018 = vmatmul.bf16.gmra.mxu0 %v2765
    %v3019 = vpop.f32.mrf.mxu0
    %v3020 = vadd.f32 0.0, %v3019
    %v3021 = vpop.f32.mrf.mxu0
    %v3022 = vadd.f32 0.0, %v3021
    %3023 = vmatmul.bf16.gmra.mxu0 %v2767
    %v3024 = vpop.f32.mrf.mxu0
    %v3025 = vadd.f32 0.0, %v3024
    %v3026 = vpop.f32.mrf.mxu0
    %v3027 = vadd.f32 0.0, %v3026
    %3028 = vmatmul.bf16.gmra.mxu0 %v2769
    %v3029 = vpop.f32.mrf.mxu0
    %v3030 = vadd.f32 0.0, %v3029
    %v3031 = vpop.f32.mrf.mxu0
    %v3032 = vadd.f32 0.0, %v3031
    %3033 = vmatmul.bf16.gmra.mxu0 %v2771
    %v3034 = vpop.f32.mrf.mxu0
    %v3035 = vadd.f32 0.0, %v3034
    %v3036 = vpop.f32.mrf.mxu0
    %v3037 = vadd.f32 0.0, %v3036
    %3038 = vmatmul.bf16.gmra.mxu0 %v2773
    %v3039 = vpop.f32.mrf.mxu0
    %v3040 = vadd.f32 0.0, %v3039
    %v3041 = vpop.f32.mrf.mxu0
    %v3042 = vadd.f32 0.0, %v3041
    %3043 = vmatmul.bf16.gmra.mxu0 %v2775
    %v3044 = vpop.f32.mrf.mxu0
    %v3045 = vadd.f32 0.0, %v3044
    %v3046 = vpop.f32.mrf.mxu0
    %v3047 = vadd.f32 0.0, %v3046
    %3048 = vmatmul.bf16.gmra.mxu0 %v2777
    %v3049 = vpop.f32.mrf.mxu0
    %v3050 = vadd.f32 0.0, %v3049
    %v3051 = vpop.f32.mrf.mxu0
    %v3052 = vadd.f32 0.0, %v3051
    %3053 = vmatmul.bf16.gmra.mxu0 %v2779
    %v3054 = vpop.f32.mrf.mxu0
    %v3055 = vadd.f32 0.0, %v3054
    %v3056 = vpop.f32.mrf.mxu0
    %v3057 = vadd.f32 0.0, %v3056
    %3058 = vmatmul.bf16.gmra.mxu0 %v2781
    %v3059 = vpop.f32.mrf.mxu0
    %v3060 = vadd.f32 0.0, %v3059
    %v3061 = vpop.f32.mrf.mxu0
    %v3062 = vadd.f32 0.0, %v3061
    %3063 = vmatmul.bf16.gmra.mxu0 %v2783
    %v3064 = vpop.f32.mrf.mxu0
    %v3065 = vadd.f32 0.0, %v3064
    %v3066 = vpop.f32.mrf.mxu0
    %v3067 = vadd.f32 0.0, %v3066
    %3068 = vmatmul.bf16.gmra.mxu0 %v2785
    %v3069 = vpop.f32.mrf.mxu0
    %v3070 = vadd.f32 0.0, %v3069
    %v3071 = vpop.f32.mrf.mxu0
    %v3072 = vadd.f32 0.0, %v3071
    %3073 = vmatmul.bf16.gmra.mxu0 %v2787
    %v3074 = vpop.f32.mrf.mxu0
    %v3075 = vadd.f32 0.0, %v3074
    %v3076 = vpop.f32.mrf.mxu0
    %v3077 = vadd.f32 0.0, %v3076
    %3078 = vmatmul.bf16.gmra.mxu0 %v2789
    %v3079 = vpop.f32.mrf.mxu0
    %v3080 = vadd.f32 0.0, %v3079
    %v3081 = vpop.f32.mrf.mxu0
    %v3082 = vadd.f32 0.0, %v3081
    %3083 = vmatmul.bf16.gmra.mxu0 %v2791
    %v3084 = vpop.f32.mrf.mxu0
    %v3085 = vadd.f32 0.0, %v3084
    %v3086 = vpop.f32.mrf.mxu0
    %v3087 = vadd.f32 0.0, %v3086
    %3088 = vmatmul.bf16.gmra.mxu0 %v2793
    %v3089 = vpop.f32.mrf.mxu0
    %v3090 = vadd.f32 0.0, %v3089
    %v3091 = vpop.f32.mrf.mxu0
    %v3092 = vadd.f32 0.0, %v3091
    %3093 = vdwg.mxu0
    %3094 = vmatpush.bf16.msra.mxu0 %v2660
    %3095 = vmatpush.bf16.msra.mxu0 %v2652
    %3096 = vmatpush.bf16.msra.mxu0 %v2644
    %3097 = vmatpush.bf16.msra.mxu0 %v2636
    %3098 = vmatpush.bf16.msra.mxu0 %v2628
    %3099 = vmatpush.bf16.msra.mxu0 %v2620
    %3100 = vmatpush.bf16.msra.mxu0 %v2612
    %3101 = vmatpush.bf16.msra.mxu0 %v2604
    %3102 = vmatmul.bf16.gmra.mxu0 %v2764
    %v3103 = vpop.f32.mrf.mxu0
    %v3104 = vadd.f32 %v3015, %v3103
    %v3105 = vpop.f32.mrf.mxu0
    %v3106 = vadd.f32 %v3017, %v3105
    %3107 = vmatmul.bf16.gmra.mxu0 %v2766
    %v3108 = vpop.f32.mrf.mxu0
    %v3109 = vadd.f32 %v3020, %v3108
    %v3110 = vpop.f32.mrf.mxu0
    %v3111 = vadd.f32 %v3022, %v3110
    %3112 = vmatmul.bf16.gmra.mxu0 %v2768
    %v3113 = vpop.f32.mrf.mxu0
    %v3114 = vadd.f32 %v3025, %v3113
    %v3115 = vpop.f32.mrf.mxu0
    %v3116 = vadd.f32 %v3027, %v3115
    %3117 = vmatmul.bf16.gmra.mxu0 %v2770
    %v3118 = vpop.f32.mrf.mxu0
    %v3119 = vadd.f32 %v3030, %v3118
    %v3120 = vpop.f32.mrf.mxu0
    %v3121 = vadd.f32 %v3032, %v3120
    %3122 = vmatmul.bf16.gmra.mxu0 %v2772
    %v3123 = vpop.f32.mrf.mxu0
    %v3124 = vadd.f32 %v3035, %v3123
    %v3125 = vpop.f32.mrf.mxu0
    %v3126 = vadd.f32 %v3037, %v3125
    %3127 = vmatmul.bf16.gmra.mxu0 %v2774
    %v3128 = vpop.f32.mrf.mxu0
    %v3129 = vadd.f32 %v3040, %v3128
    %v3130 = vpop.f32.mrf.mxu0
    %v3131 = vadd.f32 %v3042, %v3130
    %3132 = vmatmul.bf16.gmra.mxu0 %v2776
    %v3133 = vpop.f32.mrf.mxu0
    %v3134 = vadd.f32 %v3045, %v3133
    %v3135 = vpop.f32.mrf.mxu0
    %v3136 = vadd.f32 %v3047, %v3135
    %3137 = vmatmul.bf16.gmra.mxu0 %v2778
    %v3138 = vpop.f32.mrf.mxu0
    %v3139 = vadd.f32 %v3050, %v3138
    %v3140 = vpop.f32.mrf.mxu0
    %v3141 = vadd.f32 %v3052, %v3140
    %3142 = vmatmul.bf16.gmra.mxu0 %v2780
    %v3143 = vpop.f32.mrf.mxu0
    %v3144 = vadd.f32 %v3055, %v3143
    %v3145 = vpop.f32.mrf.mxu0
    %v3146 = vadd.f32 %v3057, %v3145
    %3147 = vmatmul.bf16.gmra.mxu0 %v2782
    %v3148 = vpop.f32.mrf.mxu0
    %v3149 = vadd.f32 %v3060, %v3148
    %v3150 = vpop.f32.mrf.mxu0
    %v3151 = vadd.f32 %v3062, %v3150
    %3152 = vmatmul.bf16.gmra.mxu0 %v2784
    %v3153 = vpop.f32.mrf.mxu0
    %v3154 = vadd.f32 %v3065, %v3153
    %v3155 = vpop.f32.mrf.mxu0
    %v3156 = vadd.f32 %v3067, %v3155
    %3157 = vmatmul.bf16.gmra.mxu0 %v2786
    %v3158 = vpop.f32.mrf.mxu0
    %v3159 = vadd.f32 %v3070, %v3158
    %v3160 = vpop.f32.mrf.mxu0
    %v3161 = vadd.f32 %v3072, %v3160
    %3162 = vmatmul.bf16.gmra.mxu0 %v2788
    %v3163 = vpop.f32.mrf.mxu0
    %v3164 = vadd.f32 %v3075, %v3163
    %v3165 = vpop.f32.mrf.mxu0
    %v3166 = vadd.f32 %v3077, %v3165
    %3167 = vmatmul.bf16.gmra.mxu0 %v2790
    %v3168 = vpop.f32.mrf.mxu0
    %v3169 = vadd.f32 %v3080, %v3168
    %v3170 = vpop.f32.mrf.mxu0
    %v3171 = vadd.f32 %v3082, %v3170
    %3172 = vmatmul.bf16.gmra.mxu0 %v2792
    %v3173 = vpop.f32.mrf.mxu0
    %v3174 = vadd.f32 %v3085, %v3173
    %v3175 = vpop.f32.mrf.mxu0
    %v3176 = vadd.f32 %v3087, %v3175
    %3177 = vmatmul.bf16.gmra.mxu0 %v2794
    %v3178 = vpop.f32.mrf.mxu0
    %v3179 = vadd.f32 %v3090, %v3178
    %v3180 = vpop.f32.mrf.mxu0
    %v3181 = vadd.f32 %v3092, %v3180
    %3182 = vdwg.mxu0
    %3183 = vmatpush.bf16.msra.mxu0 %v2597
    %3184 = vmatpush.bf16.msra.mxu0 %v2589
    %3185 = vmatpush.bf16.msra.mxu0 %v2581
    %3186 = vmatpush.bf16.msra.mxu0 %v2573
    %3187 = vmatpush.bf16.msra.mxu0 %v2565
    %3188 = vmatpush.bf16.msra.mxu0 %v2557
    %3189 = vmatpush.bf16.msra.mxu0 %v2549
    %3190 = vmatpush.bf16.msra.mxu0 %v2541
    %3191 = vmatmul.bf16.gmra.mxu0 %v2763
    %v3192 = vpop.f32.mrf.mxu0
    %v3193 = vadd.f32 0.0, %v3192
    %v3194 = vpop.f32.mrf.mxu0
    %v3195 = vadd.f32 0.0, %v3194
    %3196 = vmatmul.bf16.gmra.mxu0 %v2765
    %v3197 = vpop.f32.mrf.mxu0
    %v3198 = vadd.f32 0.0, %v3197
    %v3199 = vpop.f32.mrf.mxu0
    %v3200 = vadd.f32 0.0, %v3199
    %3201 = vmatmul.bf16.gmra.mxu0 %v2767
    %v3202 = vpop.f32.mrf.mxu0
    %v3203 = vadd.f32 0.0, %v3202
    %v3204 = vpop.f32.mrf.mxu0
    %v3205 = vadd.f32 0.0, %v3204
    %3206 = vmatmul.bf16.gmra.mxu0 %v2769
    %v3207 = vpop.f32.mrf.mxu0
    %v3208 = vadd.f32 0.0, %v3207
    %v3209 = vpop.f32.mrf.mxu0
    %v3210 = vadd.f32 0.0, %v3209
    %3211 = vmatmul.bf16.gmra.mxu0 %v2771
    %v3212 = vpop.f32.mrf.mxu0
    %v3213 = vadd.f32 0.0, %v3212
    %v3214 = vpop.f32.mrf.mxu0
    %v3215 = vadd.f32 0.0, %v3214
    %3216 = vmatmul.bf16.gmra.mxu0 %v2773
    %v3217 = vpop.f32.mrf.mxu0
    %v3218 = vadd.f32 0.0, %v3217
    %v3219 = vpop.f32.mrf.mxu0
    %v3220 = vadd.f32 0.0, %v3219
    %3221 = vmatmul.bf16.gmra.mxu0 %v2775
    %v3222 = vpop.f32.mrf.mxu0
    %v3223 = vadd.f32 0.0, %v3222
    %v3224 = vpop.f32.mrf.mxu0
    %v3225 = vadd.f32 0.0, %v3224
    %3226 = vmatmul.bf16.gmra.mxu0 %v2777
    %v3227 = vpop.f32.mrf.mxu0
    %v3228 = vadd.f32 0.0, %v3227
    %v3229 = vpop.f32.mrf.mxu0
    %v3230 = vadd.f32 0.0, %v3229
    %3231 = vmatmul.bf16.gmra.mxu0 %v2779
    %v3232 = vpop.f32.mrf.mxu0
    %v3233 = vadd.f32 0.0, %v3232
    %v3234 = vpop.f32.mrf.mxu0
    %v3235 = vadd.f32 0.0, %v3234
    %3236 = vmatmul.bf16.gmra.mxu0 %v2781
    %v3237 = vpop.f32.mrf.mxu0
    %v3238 = vadd.f32 0.0, %v3237
    %v3239 = vpop.f32.mrf.mxu0
    %v3240 = vadd.f32 0.0, %v3239
    %3241 = vmatmul.bf16.gmra.mxu0 %v2783
    %v3242 = vpop.f32.mrf.mxu0
    %v3243 = vadd.f32 0.0, %v3242
    %v3244 = vpop.f32.mrf.mxu0
    %v3245 = vadd.f32 0.0, %v3244
    %3246 = vmatmul.bf16.gmra.mxu0 %v2785
    %v3247 = vpop.f32.mrf.mxu0
    %v3248 = vadd.f32 0.0, %v3247
    %v3249 = vpop.f32.mrf.mxu0
    %v3250 = vadd.f32 0.0, %v3249
    %3251 = vmatmul.bf16.gmra.mxu0 %v2787
    %v3252 = vpop.f32.mrf.mxu0
    %v3253 = vadd.f32 0.0, %v3252
    %v3254 = vpop.f32.mrf.mxu0
    %v3255 = vadd.f32 0.0, %v3254
    %3256 = vmatmul.bf16.gmra.mxu0 %v2789
    %v3257 = vpop.f32.mrf.mxu0
    %v3258 = vadd.f32 0.0, %v3257
    %v3259 = vpop.f32.mrf.mxu0
    %v3260 = vadd.f32 0.0, %v3259
    %3261 = vmatmul.bf16.gmra.mxu0 %v2791
    %v3262 = vpop.f32.mrf.mxu0
    %v3263 = vadd.f32 0.0, %v3262
    %v3264 = vpop.f32.mrf.mxu0
    %v3265 = vadd.f32 0.0, %v3264
    %3266 = vmatmul.bf16.gmra.mxu0 %v2793
    %v3267 = vpop.f32.mrf.mxu0
    %v3268 = vadd.f32 0.0, %v3267
    %v3269 = vpop.f32.mrf.mxu0
    %v3270 = vadd.f32 0.0, %v3269
    %3271 = vdwg.mxu0
    %3272 = vmatpush.bf16.msra.mxu0 %v2661
    %3273 = vmatpush.bf16.msra.mxu0 %v2653
    %3274 = vmatpush.bf16.msra.mxu0 %v2645
    %3275 = vmatpush.bf16.msra.mxu0 %v2637
    %3276 = vmatpush.bf16.msra.mxu0 %v2629
    %3277 = vmatpush.bf16.msra.mxu0 %v2621
    %3278 = vmatpush.bf16.msra.mxu0 %v2613
    %3279 = vmatpush.bf16.msra.mxu0 %v2605
    %3280 = vmatmul.bf16.gmra.mxu0 %v2764
    %v3281 = vpop.f32.mrf.mxu0
    %v3282 = vadd.f32 %v3193, %v3281
    %v3283 = vpop.f32.mrf.mxu0
    %v3284 = vadd.f32 %v3195, %v3283
    %3285 = vmatmul.bf16.gmra.mxu0 %v2766
    %v3286 = vpop.f32.mrf.mxu0
    %v3287 = vadd.f32 %v3198, %v3286
    %v3288 = vpop.f32.mrf.mxu0
    %v3289 = vadd.f32 %v3200, %v3288
    %3290 = vmatmul.bf16.gmra.mxu0 %v2768
    %v3291 = vpop.f32.mrf.mxu0
    %v3292 = vadd.f32 %v3203, %v3291
    %v3293 = vpop.f32.mrf.mxu0
    %v3294 = vadd.f32 %v3205, %v3293
    %3295 = vmatmul.bf16.gmra.mxu0 %v2770
    %v3296 = vpop.f32.mrf.mxu0
    %v3297 = vadd.f32 %v3208, %v3296
    %v3298 = vpop.f32.mrf.mxu0
    %v3299 = vadd.f32 %v3210, %v3298
    %3300 = vmatmul.bf16.gmra.mxu0 %v2772
    %v3301 = vpop.f32.mrf.mxu0
    %v3302 = vadd.f32 %v3213, %v3301
    %v3303 = vpop.f32.mrf.mxu0
    %v3304 = vadd.f32 %v3215, %v3303
    %3305 = vmatmul.bf16.gmra.mxu0 %v2774
    %v3306 = vpop.f32.mrf.mxu0
    %v3307 = vadd.f32 %v3218, %v3306
    %v3308 = vpop.f32.mrf.mxu0
    %v3309 = vadd.f32 %v3220, %v3308
    %3310 = vmatmul.bf16.gmra.mxu0 %v2776
    %v3311 = vpop.f32.mrf.mxu0
    %v3312 = vadd.f32 %v3223, %v3311
    %v3313 = vpop.f32.mrf.mxu0
    %v3314 = vadd.f32 %v3225, %v3313
    %3315 = vmatmul.bf16.gmra.mxu0 %v2778
    %v3316 = vpop.f32.mrf.mxu0
    %v3317 = vadd.f32 %v3228, %v3316
    %v3318 = vpop.f32.mrf.mxu0
    %v3319 = vadd.f32 %v3230, %v3318
    %3320 = vmatmul.bf16.gmra.mxu0 %v2780
    %v3321 = vpop.f32.mrf.mxu0
    %v3322 = vadd.f32 %v3233, %v3321
    %v3323 = vpop.f32.mrf.mxu0
    %v3324 = vadd.f32 %v3235, %v3323
    %3325 = vmatmul.bf16.gmra.mxu0 %v2782
    %v3326 = vpop.f32.mrf.mxu0
    %v3327 = vadd.f32 %v3238, %v3326
    %v3328 = vpop.f32.mrf.mxu0
    %v3329 = vadd.f32 %v3240, %v3328
    %3330 = vmatmul.bf16.gmra.mxu0 %v2784
    %v3331 = vpop.f32.mrf.mxu0
    %v3332 = vadd.f32 %v3243, %v3331
    %v3333 = vpop.f32.mrf.mxu0
    %v3334 = vadd.f32 %v3245, %v3333
    %3335 = vmatmul.bf16.gmra.mxu0 %v2786
    %v3336 = vpop.f32.mrf.mxu0
    %v3337 = vadd.f32 %v3248, %v3336
    %v3338 = vpop.f32.mrf.mxu0
    %v3339 = vadd.f32 %v3250, %v3338
    %3340 = vmatmul.bf16.gmra.mxu0 %v2788
    %v3341 = vpop.f32.mrf.mxu0
    %v3342 = vadd.f32 %v3253, %v3341
    %v3343 = vpop.f32.mrf.mxu0
    %v3344 = vadd.f32 %v3255, %v3343
    %3345 = vmatmul.bf16.gmra.mxu0 %v2790
    %v3346 = vpop.f32.mrf.mxu0
    %v3347 = vadd.f32 %v3258, %v3346
    %v3348 = vpop.f32.mrf.mxu0
    %v3349 = vadd.f32 %v3260, %v3348
    %3350 = vmatmul.bf16.gmra.mxu0 %v2792
    %v3351 = vpop.f32.mrf.mxu0
    %v3352 = vadd.f32 %v3263, %v3351
    %v3353 = vpop.f32.mrf.mxu0
    %v3354 = vadd.f32 %v3265, %v3353
    %3355 = vmatmul.bf16.gmra.mxu0 %v2794
    %v3356 = vpop.f32.mrf.mxu0
    %v3357 = vadd.f32 %v3268, %v3356
    %v3358 = vpop.f32.mrf.mxu0
    %v3359 = vadd.f32 %v3270, %v3358
    %3360 = vdwg.mxu0
    %3361 = vmatpush.bf16.msra.mxu0 %v2598
    %3362 = vmatpush.bf16.msra.mxu0 %v2590
    %3363 = vmatpush.bf16.msra.mxu0 %v2582
    %3364 = vmatpush.bf16.msra.mxu0 %v2574
    %3365 = vmatpush.bf16.msra.mxu0 %v2566
    %3366 = vmatpush.bf16.msra.mxu0 %v2558
    %3367 = vmatpush.bf16.msra.mxu0 %v2550
    %3368 = vmatpush.bf16.msra.mxu0 %v2542
    %3369 = vmatmul.bf16.gmra.mxu0 %v2763
    %v3370 = vpop.f32.mrf.mxu0
    %v3371 = vadd.f32 0.0, %v3370
    %v3372 = vpop.f32.mrf.mxu0
    %v3373 = vadd.f32 0.0, %v3372
    %3374 = vmatmul.bf16.gmra.mxu0 %v2765
    %v3375 = vpop.f32.mrf.mxu0
    %v3376 = vadd.f32 0.0, %v3375
    %v3377 = vpop.f32.mrf.mxu0
    %v3378 = vadd.f32 0.0, %v3377
    %3379 = vmatmul.bf16.gmra.mxu0 %v2767
    %v3380 = vpop.f32.mrf.mxu0
    %v3381 = vadd.f32 0.0, %v3380
    %v3382 = vpop.f32.mrf.mxu0
    %v3383 = vadd.f32 0.0, %v3382
    %3384 = vmatmul.bf16.gmra.mxu0 %v2769
    %v3385 = vpop.f32.mrf.mxu0
    %v3386 = vadd.f32 0.0, %v3385
    %v3387 = vpop.f32.mrf.mxu0
    %v3388 = vadd.f32 0.0, %v3387
    %3389 = vmatmul.bf16.gmra.mxu0 %v2771
    %v3390 = vpop.f32.mrf.mxu0
    %v3391 = vadd.f32 0.0, %v3390
    %v3392 = vpop.f32.mrf.mxu0
    %v3393 = vadd.f32 0.0, %v3392
    %3394 = vmatmul.bf16.gmra.mxu0 %v2773
    %v3395 = vpop.f32.mrf.mxu0
    %v3396 = vadd.f32 0.0, %v3395
    %v3397 = vpop.f32.mrf.mxu0
    %v3398 = vadd.f32 0.0, %v3397
    %3399 = vmatmul.bf16.gmra.mxu0 %v2775
    %v3400 = vpop.f32.mrf.mxu0
    %v3401 = vadd.f32 0.0, %v3400
    %v3402 = vpop.f32.mrf.mxu0
    %v3403 = vadd.f32 0.0, %v3402
    %3404 = vmatmul.bf16.gmra.mxu0 %v2777
    %v3405 = vpop.f32.mrf.mxu0
    %v3406 = vadd.f32 0.0, %v3405
    %v3407 = vpop.f32.mrf.mxu0
    %v3408 = vadd.f32 0.0, %v3407
    %3409 = vmatmul.bf16.gmra.mxu0 %v2779
    %v3410 = vpop.f32.mrf.mxu0
    %v3411 = vadd.f32 0.0, %v3410
    %v3412 = vpop.f32.mrf.mxu0
    %v3413 = vadd.f32 0.0, %v3412
    %3414 = vmatmul.bf16.gmra.mxu0 %v2781
    %v3415 = vpop.f32.mrf.mxu0
    %v3416 = vadd.f32 0.0, %v3415
    %v3417 = vpop.f32.mrf.mxu0
    %v3418 = vadd.f32 0.0, %v3417
    %3419 = vmatmul.bf16.gmra.mxu0 %v2783
    %v3420 = vpop.f32.mrf.mxu0
    %v3421 = vadd.f32 0.0, %v3420
    %v3422 = vpop.f32.mrf.mxu0
    %v3423 = vadd.f32 0.0, %v3422
    %3424 = vmatmul.bf16.gmra.mxu0 %v2785
    %v3425 = vpop.f32.mrf.mxu0
    %v3426 = vadd.f32 0.0, %v3425
    %v3427 = vpop.f32.mrf.mxu0
    %v3428 = vadd.f32 0.0, %v3427
    %3429 = vmatmul.bf16.gmra.mxu0 %v2787
    %v3430 = vpop.f32.mrf.mxu0
    %v3431 = vadd.f32 0.0, %v3430
    %v3432 = vpop.f32.mrf.mxu0
    %v3433 = vadd.f32 0.0, %v3432
    %3434 = vmatmul.bf16.gmra.mxu0 %v2789
    %v3435 = vpop.f32.mrf.mxu0
    %v3436 = vadd.f32 0.0, %v3435
    %v3437 = vpop.f32.mrf.mxu0
    %v3438 = vadd.f32 0.0, %v3437
    %3439 = vmatmul.bf16.gmra.mxu0 %v2791
    %v3440 = vpop.f32.mrf.mxu0
    %v3441 = vadd.f32 0.0, %v3440
    %v3442 = vpop.f32.mrf.mxu0
    %v3443 = vadd.f32 0.0, %v3442
    %3444 = vmatmul.bf16.gmra.mxu0 %v2793
    %v3445 = vpop.f32.mrf.mxu0
    %v3446 = vadd.f32 0.0, %v3445
    %v3447 = vpop.f32.mrf.mxu0
    %v3448 = vadd.f32 0.0, %v3447
    %3449 = vdwg.mxu0
    %3450 = vmatpush.bf16.msra.mxu0 %v2662
    %3451 = vmatpush.bf16.msra.mxu0 %v2654
    %3452 = vmatpush.bf16.msra.mxu0 %v2646
    %3453 = vmatpush.bf16.msra.mxu0 %v2638
    %3454 = vmatpush.bf16.msra.mxu0 %v2630
    %3455 = vmatpush.bf16.msra.mxu0 %v2622
    %3456 = vmatpush.bf16.msra.mxu0 %v2614
    %3457 = vmatpush.bf16.msra.mxu0 %v2606
    %3458 = vmatmul.bf16.gmra.mxu0 %v2764
    %v3459 = vpop.f32.mrf.mxu0
    %v3460 = vadd.f32 %v3371, %v3459
    %v3461 = vpop.f32.mrf.mxu0
    %v3462 = vadd.f32 %v3373, %v3461
    %3463 = vmatmul.bf16.gmra.mxu0 %v2766
    %v3464 = vpop.f32.mrf.mxu0
    %v3465 = vadd.f32 %v3376, %v3464
    %v3466 = vpop.f32.mrf.mxu0
    %v3467 = vadd.f32 %v3378, %v3466
    %3468 = vmatmul.bf16.gmra.mxu0 %v2768
    %v3469 = vpop.f32.mrf.mxu0
    %v3470 = vadd.f32 %v3381, %v3469
    %v3471 = vpop.f32.mrf.mxu0
    %v3472 = vadd.f32 %v3383, %v3471
    %3473 = vmatmul.bf16.gmra.mxu0 %v2770
    %v3474 = vpop.f32.mrf.mxu0
    %v3475 = vadd.f32 %v3386, %v3474
    %v3476 = vpop.f32.mrf.mxu0
    %v3477 = vadd.f32 %v3388, %v3476
    %3478 = vmatmul.bf16.gmra.mxu0 %v2772
    %v3479 = vpop.f32.mrf.mxu0
    %v3480 = vadd.f32 %v3391, %v3479
    %v3481 = vpop.f32.mrf.mxu0
    %v3482 = vadd.f32 %v3393, %v3481
    %3483 = vmatmul.bf16.gmra.mxu0 %v2774
    %v3484 = vpop.f32.mrf.mxu0
    %v3485 = vadd.f32 %v3396, %v3484
    %v3486 = vpop.f32.mrf.mxu0
    %v3487 = vadd.f32 %v3398, %v3486
    %3488 = vmatmul.bf16.gmra.mxu0 %v2776
    %v3489 = vpop.f32.mrf.mxu0
    %v3490 = vadd.f32 %v3401, %v3489
    %v3491 = vpop.f32.mrf.mxu0
    %v3492 = vadd.f32 %v3403, %v3491
    %3493 = vmatmul.bf16.gmra.mxu0 %v2778
    %v3494 = vpop.f32.mrf.mxu0
    %v3495 = vadd.f32 %v3406, %v3494
    %v3496 = vpop.f32.mrf.mxu0
    %v3497 = vadd.f32 %v3408, %v3496
    %3498 = vmatmul.bf16.gmra.mxu0 %v2780
    %v3499 = vpop.f32.mrf.mxu0
    %v3500 = vadd.f32 %v3411, %v3499
    %v3501 = vpop.f32.mrf.mxu0
    %v3502 = vadd.f32 %v3413, %v3501
    %3503 = vmatmul.bf16.gmra.mxu0 %v2782
    %v3504 = vpop.f32.mrf.mxu0
    %v3505 = vadd.f32 %v3416, %v3504
    %v3506 = vpop.f32.mrf.mxu0
    %v3507 = vadd.f32 %v3418, %v3506
    %3508 = vmatmul.bf16.gmra.mxu0 %v2784
    %v3509 = vpop.f32.mrf.mxu0
    %v3510 = vadd.f32 %v3421, %v3509
    %v3511 = vpop.f32.mrf.mxu0
    %v3512 = vadd.f32 %v3423, %v3511
    %3513 = vmatmul.bf16.gmra.mxu0 %v2786
    %v3514 = vpop.f32.mrf.mxu0
    %v3515 = vadd.f32 %v3426, %v3514
    %v3516 = vpop.f32.mrf.mxu0
    %v3517 = vadd.f32 %v3428, %v3516
    %3518 = vmatmul.bf16.gmra.mxu0 %v2788
    %v3519 = vpop.f32.mrf.mxu0
    %v3520 = vadd.f32 %v3431, %v3519
    %v3521 = vpop.f32.mrf.mxu0
    %v3522 = vadd.f32 %v3433, %v3521
    %3523 = vmatmul.bf16.gmra.mxu0 %v2790
    %v3524 = vpop.f32.mrf.mxu0
    %v3525 = vadd.f32 %v3436, %v3524
    %v3526 = vpop.f32.mrf.mxu0
    %v3527 = vadd.f32 %v3438, %v3526
    %3528 = vmatmul.bf16.gmra.mxu0 %v2792
    %v3529 = vpop.f32.mrf.mxu0
    %v3530 = vadd.f32 %v3441, %v3529
    %v3531 = vpop.f32.mrf.mxu0
    %v3532 = vadd.f32 %v3443, %v3531
    %3533 = vmatmul.bf16.gmra.mxu0 %v2794
    %v3534 = vpop.f32.mrf.mxu0
    %v3535 = vadd.f32 %v3446, %v3534
    %v3536 = vpop.f32.mrf.mxu0
    %v3537 = vadd.f32 %v3448, %v3536
    %3538 = vdwg.mxu0
    %3539 = vmatpush.bf16.msra.mxu0 %v2599
    %3540 = vmatpush.bf16.msra.mxu0 %v2591
    %3541 = vmatpush.bf16.msra.mxu0 %v2583
    %3542 = vmatpush.bf16.msra.mxu0 %v2575
    %3543 = vmatpush.bf16.msra.mxu0 %v2567
    %3544 = vmatpush.bf16.msra.mxu0 %v2559
    %3545 = vmatpush.bf16.msra.mxu0 %v2551
    %3546 = vmatpush.bf16.msra.mxu0 %v2543
    %3547 = vmatmul.bf16.gmra.mxu0 %v2763
    %v3548 = vpop.f32.mrf.mxu0
    %v3549 = vadd.f32 0.0, %v3548
    %v3550 = vpop.f32.mrf.mxu0
    %v3551 = vadd.f32 0.0, %v3550
    %3552 = vmatmul.bf16.gmra.mxu0 %v2765
    %v3553 = vpop.f32.mrf.mxu0
    %v3554 = vadd.f32 0.0, %v3553
    %v3555 = vpop.f32.mrf.mxu0
    %v3556 = vadd.f32 0.0, %v3555
    %3557 = vmatmul.bf16.gmra.mxu0 %v2767
    %v3558 = vpop.f32.mrf.mxu0
    %v3559 = vadd.f32 0.0, %v3558
    %v3560 = vpop.f32.mrf.mxu0
    %v3561 = vadd.f32 0.0, %v3560
    %3562 = vmatmul.bf16.gmra.mxu0 %v2769
    %v3563 = vpop.f32.mrf.mxu0
    %v3564 = vadd.f32 0.0, %v3563
    %v3565 = vpop.f32.mrf.mxu0
    %v3566 = vadd.f32 0.0, %v3565
    %3567 = vmatmul.bf16.gmra.mxu0 %v2771
    %v3568 = vpop.f32.mrf.mxu0
    %v3569 = vadd.f32 0.0, %v3568
    %v3570 = vpop.f32.mrf.mxu0
    %v3571 = vadd.f32 0.0, %v3570
    %3572 = vmatmul.bf16.gmra.mxu0 %v2773
    %v3573 = vpop.f32.mrf.mxu0
    %v3574 = vadd.f32 0.0, %v3573
    %v3575 = vpop.f32.mrf.mxu0
    %v3576 = vadd.f32 0.0, %v3575
    %3577 = vmatmul.bf16.gmra.mxu0 %v2775
    %v3578 = vpop.f32.mrf.mxu0
    %v3579 = vadd.f32 0.0, %v3578
    %v3580 = vpop.f32.mrf.mxu0
    %v3581 = vadd.f32 0.0, %v3580
    %3582 = vmatmul.bf16.gmra.mxu0 %v2777
    %v3583 = vpop.f32.mrf.mxu0
    %v3584 = vadd.f32 0.0, %v3583
    %v3585 = vpop.f32.mrf.mxu0
    %v3586 = vadd.f32 0.0, %v3585
    %3587 = vmatmul.bf16.gmra.mxu0 %v2779
    %v3588 = vpop.f32.mrf.mxu0
    %v3589 = vadd.f32 0.0, %v3588
    %v3590 = vpop.f32.mrf.mxu0
    %v3591 = vadd.f32 0.0, %v3590
    %3592 = vmatmul.bf16.gmra.mxu0 %v2781
    %v3593 = vpop.f32.mrf.mxu0
    %v3594 = vadd.f32 0.0, %v3593
    %v3595 = vpop.f32.mrf.mxu0
    %v3596 = vadd.f32 0.0, %v3595
    %3597 = vmatmul.bf16.gmra.mxu0 %v2783
    %v3598 = vpop.f32.mrf.mxu0
    %v3599 = vadd.f32 0.0, %v3598
    %v3600 = vpop.f32.mrf.mxu0
    %v3601 = vadd.f32 0.0, %v3600
    %3602 = vmatmul.bf16.gmra.mxu0 %v2785
    %v3603 = vpop.f32.mrf.mxu0
    %v3604 = vadd.f32 0.0, %v3603
    %v3605 = vpop.f32.mrf.mxu0
    %v3606 = vadd.f32 0.0, %v3605
    %3607 = vmatmul.bf16.gmra.mxu0 %v2787
    %v3608 = vpop.f32.mrf.mxu0
    %v3609 = vadd.f32 0.0, %v3608
    %v3610 = vpop.f32.mrf.mxu0
    %v3611 = vadd.f32 0.0, %v3610
    %3612 = vmatmul.bf16.gmra.mxu0 %v2789
    %v3613 = vpop.f32.mrf.mxu0
    %v3614 = vadd.f32 0.0, %v3613
    %v3615 = vpop.f32.mrf.mxu0
    %v3616 = vadd.f32 0.0, %v3615
    %3617 = vmatmul.bf16.gmra.mxu0 %v2791
    %v3618 = vpop.f32.mrf.mxu0
    %v3619 = vadd.f32 0.0, %v3618
    %v3620 = vpop.f32.mrf.mxu0
    %v3621 = vadd.f32 0.0, %v3620
    %3622 = vmatmul.bf16.gmra.mxu0 %v2793
    %v3623 = vpop.f32.mrf.mxu0
    %v3624 = vadd.f32 0.0, %v3623
    %v3625 = vpop.f32.mrf.mxu0
    %v3626 = vadd.f32 0.0, %v3625
    %3627 = vdwg.mxu0
    %3628 = vmatpush.bf16.msra.mxu0 %v2663
    %3629 = vmatpush.bf16.msra.mxu0 %v2655
    %3630 = vmatpush.bf16.msra.mxu0 %v2647
    %3631 = vmatpush.bf16.msra.mxu0 %v2639
    %3632 = vmatpush.bf16.msra.mxu0 %v2631
    %3633 = vmatpush.bf16.msra.mxu0 %v2623
    %3634 = vmatpush.bf16.msra.mxu0 %v2615
    %3635 = vmatpush.bf16.msra.mxu0 %v2607
    %3636 = vmatmul.bf16.gmra.mxu0 %v2764
    %v3637 = vpop.f32.mrf.mxu0
    %v3638 = vadd.f32 %v3549, %v3637
    %v3639 = vpop.f32.mrf.mxu0
    %v3640 = vadd.f32 %v3551, %v3639
    %3641 = vmatmul.bf16.gmra.mxu0 %v2766
    %v3642 = vpop.f32.mrf.mxu0
    %v3643 = vadd.f32 %v3554, %v3642
    %v3644 = vpop.f32.mrf.mxu0
    %v3645 = vadd.f32 %v3556, %v3644
    %3646 = vmatmul.bf16.gmra.mxu0 %v2768
    %v3647 = vpop.f32.mrf.mxu0
    %v3648 = vadd.f32 %v3559, %v3647
    %v3649 = vpop.f32.mrf.mxu0
    %v3650 = vadd.f32 %v3561, %v3649
    %3651 = vmatmul.bf16.gmra.mxu0 %v2770
    %v3652 = vpop.f32.mrf.mxu0
    %v3653 = vadd.f32 %v3564, %v3652
    %v3654 = vpop.f32.mrf.mxu0
    %v3655 = vadd.f32 %v3566, %v3654
    %3656 = vmatmul.bf16.gmra.mxu0 %v2772
    %v3657 = vpop.f32.mrf.mxu0
    %v3658 = vadd.f32 %v3569, %v3657
    %v3659 = vpop.f32.mrf.mxu0
    %v3660 = vadd.f32 %v3571, %v3659
    %3661 = vmatmul.bf16.gmra.mxu0 %v2774
    %v3662 = vpop.f32.mrf.mxu0
    %v3663 = vadd.f32 %v3574, %v3662
    %v3664 = vpop.f32.mrf.mxu0
    %v3665 = vadd.f32 %v3576, %v3664
    %3666 = vmatmul.bf16.gmra.mxu0 %v2776
    %v3667 = vpop.f32.mrf.mxu0
    %v3668 = vadd.f32 %v3579, %v3667
    %v3669 = vpop.f32.mrf.mxu0
    %v3670 = vadd.f32 %v3581, %v3669
    %3671 = vmatmul.bf16.gmra.mxu0 %v2778
    %v3672 = vpop.f32.mrf.mxu0
    %v3673 = vadd.f32 %v3584, %v3672
    %v3674 = vpop.f32.mrf.mxu0
    %v3675 = vadd.f32 %v3586, %v3674
    %3676 = vmatmul.bf16.gmra.mxu0 %v2780
    %v3677 = vpop.f32.mrf.mxu0
    %v3678 = vadd.f32 %v3589, %v3677
    %v3679 = vpop.f32.mrf.mxu0
    %v3680 = vadd.f32 %v3591, %v3679
    %3681 = vmatmul.bf16.gmra.mxu0 %v2782
    %v3682 = vpop.f32.mrf.mxu0
    %v3683 = vadd.f32 %v3594, %v3682
    %v3684 = vpop.f32.mrf.mxu0
    %v3685 = vadd.f32 %v3596, %v3684
    %3686 = vmatmul.bf16.gmra.mxu0 %v2784
    %v3687 = vpop.f32.mrf.mxu0
    %v3688 = vadd.f32 %v3599, %v3687
    %v3689 = vpop.f32.mrf.mxu0
    %v3690 = vadd.f32 %v3601, %v3689
    %3691 = vmatmul.bf16.gmra.mxu0 %v2786
    %v3692 = vpop.f32.mrf.mxu0
    %v3693 = vadd.f32 %v3604, %v3692
    %v3694 = vpop.f32.mrf.mxu0
    %v3695 = vadd.f32 %v3606, %v3694
    %3696 = vmatmul.bf16.gmra.mxu0 %v2788
    %v3697 = vpop.f32.mrf.mxu0
    %v3698 = vadd.f32 %v3609, %v3697
    %v3699 = vpop.f32.mrf.mxu0
    %v3700 = vadd.f32 %v3611, %v3699
    %3701 = vmatmul.bf16.gmra.mxu0 %v2790
    %v3702 = vpop.f32.mrf.mxu0
    %v3703 = vadd.f32 %v3614, %v3702
    %v3704 = vpop.f32.mrf.mxu0
    %v3705 = vadd.f32 %v3616, %v3704
    %3706 = vmatmul.bf16.gmra.mxu0 %v2792
    %v3707 = vpop.f32.mrf.mxu0
    %v3708 = vadd.f32 %v3619, %v3707
    %v3709 = vpop.f32.mrf.mxu0
    %v3710 = vadd.f32 %v3621, %v3709
    %3711 = vmatmul.bf16.gmra.mxu0 %v2794
    %v3712 = vpop.f32.mrf.mxu0
    %v3713 = vadd.f32 %v3624, %v3712
    %v3714 = vpop.f32.mrf.mxu0
    %v3715 = vadd.f32 %v3626, %v3714
    %3716 = vdwg.mxu0
    %3717 = vmatpush.bf16.msra.mxu0 %v2600
    %3718 = vmatpush.bf16.msra.mxu0 %v2592
    %3719 = vmatpush.bf16.msra.mxu0 %v2584
    %3720 = vmatpush.bf16.msra.mxu0 %v2576
    %3721 = vmatpush.bf16.msra.mxu0 %v2568
    %3722 = vmatpush.bf16.msra.mxu0 %v2560
    %3723 = vmatpush.bf16.msra.mxu0 %v2552
    %3724 = vmatpush.bf16.msra.mxu0 %v2544
    %3725 = vmatmul.bf16.gmra.mxu0 %v2763
    %v3726 = vpop.f32.mrf.mxu0
    %v3727 = vadd.f32 0.0, %v3726
    %v3728 = vpop.f32.mrf.mxu0
    %v3729 = vadd.f32 0.0, %v3728
    %3730 = vmatmul.bf16.gmra.mxu0 %v2765
    %v3731 = vpop.f32.mrf.mxu0
    %v3732 = vadd.f32 0.0, %v3731
    %v3733 = vpop.f32.mrf.mxu0
    %v3734 = vadd.f32 0.0, %v3733
    %3735 = vmatmul.bf16.gmra.mxu0 %v2767
    %v3736 = vpop.f32.mrf.mxu0
    %v3737 = vadd.f32 0.0, %v3736
    %v3738 = vpop.f32.mrf.mxu0
    %v3739 = vadd.f32 0.0, %v3738
    %3740 = vmatmul.bf16.gmra.mxu0 %v2769
    %v3741 = vpop.f32.mrf.mxu0
    %v3742 = vadd.f32 0.0, %v3741
    %v3743 = vpop.f32.mrf.mxu0
    %v3744 = vadd.f32 0.0, %v3743
    %3745 = vmatmul.bf16.gmra.mxu0 %v2771
    %v3746 = vpop.f32.mrf.mxu0
    %v3747 = vadd.f32 0.0, %v3746
    %v3748 = vpop.f32.mrf.mxu0
    %v3749 = vadd.f32 0.0, %v3748
    %3750 = vmatmul.bf16.gmra.mxu0 %v2773
    %v3751 = vpop.f32.mrf.mxu0
    %v3752 = vadd.f32 0.0, %v3751
    %v3753 = vpop.f32.mrf.mxu0
    %v3754 = vadd.f32 0.0, %v3753
    %3755 = vmatmul.bf16.gmra.mxu0 %v2775
    %v3756 = vpop.f32.mrf.mxu0
    %v3757 = vadd.f32 0.0, %v3756
    %v3758 = vpop.f32.mrf.mxu0
    %v3759 = vadd.f32 0.0, %v3758
    %3760 = vmatmul.bf16.gmra.mxu0 %v2777
    %v3761 = vpop.f32.mrf.mxu0
    %v3762 = vadd.f32 0.0, %v3761
    %v3763 = vpop.f32.mrf.mxu0
    %v3764 = vadd.f32 0.0, %v3763
    %3765 = vmatmul.bf16.gmra.mxu0 %v2779
    %v3766 = vpop.f32.mrf.mxu0
    %v3767 = vadd.f32 0.0, %v3766
    %v3768 = vpop.f32.mrf.mxu0
    %v3769 = vadd.f32 0.0, %v3768
    %3770 = vmatmul.bf16.gmra.mxu0 %v2781
    %v3771 = vpop.f32.mrf.mxu0
    %v3772 = vadd.f32 0.0, %v3771
    %v3773 = vpop.f32.mrf.mxu0
    %v3774 = vadd.f32 0.0, %v3773
    %3775 = vmatmul.bf16.gmra.mxu0 %v2783
    %v3776 = vpop.f32.mrf.mxu0
    %v3777 = vadd.f32 0.0, %v3776
    %v3778 = vpop.f32.mrf.mxu0
    %v3779 = vadd.f32 0.0, %v3778
    %3780 = vmatmul.bf16.gmra.mxu0 %v2785
    %v3781 = vpop.f32.mrf.mxu0
    %v3782 = vadd.f32 0.0, %v3781
    %v3783 = vpop.f32.mrf.mxu0
    %v3784 = vadd.f32 0.0, %v3783
    %3785 = vmatmul.bf16.gmra.mxu0 %v2787
    %v3786 = vpop.f32.mrf.mxu0
    %v3787 = vadd.f32 0.0, %v3786
    %v3788 = vpop.f32.mrf.mxu0
    %v3789 = vadd.f32 0.0, %v3788
    %3790 = vmatmul.bf16.gmra.mxu0 %v2789
    %v3791 = vpop.f32.mrf.mxu0
    %v3792 = vadd.f32 0.0, %v3791
    %v3793 = vpop.f32.mrf.mxu0
    %v3794 = vadd.f32 0.0, %v3793
    %3795 = vmatmul.bf16.gmra.mxu0 %v2791
    %v3796 = vpop.f32.mrf.mxu0
    %v3797 = vadd.f32 0.0, %v3796
    %v3798 = vpop.f32.mrf.mxu0
    %v3799 = vadd.f32 0.0, %v3798
    %3800 = vmatmul.bf16.gmra.mxu0 %v2793
    %v3801 = vpop.f32.mrf.mxu0
    %v3802 = vadd.f32 0.0, %v3801
    %v3803 = vpop.f32.mrf.mxu0
    %v3804 = vadd.f32 0.0, %v3803
    %3805 = vdwg.mxu0
    %3806 = vmatpush.bf16.msra.mxu0 %v2664
    %3807 = vmatpush.bf16.msra.mxu0 %v2656
    %3808 = vmatpush.bf16.msra.mxu0 %v2648
    %3809 = vmatpush.bf16.msra.mxu0 %v2640
    %3810 = vmatpush.bf16.msra.mxu0 %v2632
    %3811 = vmatpush.bf16.msra.mxu0 %v2624
    %3812 = vmatpush.bf16.msra.mxu0 %v2616
    %3813 = vmatpush.bf16.msra.mxu0 %v2608
    %3814 = vmatmul.bf16.gmra.mxu0 %v2764
    %v3815 = vpop.f32.mrf.mxu0
    %v3816 = vadd.f32 %v3727, %v3815
    %v3817 = vpop.f32.mrf.mxu0
    %v3818 = vadd.f32 %v3729, %v3817
    %3819 = vmatmul.bf16.gmra.mxu0 %v2766
    %v3820 = vpop.f32.mrf.mxu0
    %v3821 = vadd.f32 %v3732, %v3820
    %v3822 = vpop.f32.mrf.mxu0
    %v3823 = vadd.f32 %v3734, %v3822
    %3824 = vmatmul.bf16.gmra.mxu0 %v2768
    %v3825 = vpop.f32.mrf.mxu0
    %v3826 = vadd.f32 %v3737, %v3825
    %v3827 = vpop.f32.mrf.mxu0
    %v3828 = vadd.f32 %v3739, %v3827
    %3829 = vmatmul.bf16.gmra.mxu0 %v2770
    %v3830 = vpop.f32.mrf.mxu0
    %v3831 = vadd.f32 %v3742, %v3830
    %v3832 = vpop.f32.mrf.mxu0
    %v3833 = vadd.f32 %v3744, %v3832
    %3834 = vmatmul.bf16.gmra.mxu0 %v2772
    %v3835 = vpop.f32.mrf.mxu0
    %v3836 = vadd.f32 %v3747, %v3835
    %v3837 = vpop.f32.mrf.mxu0
    %v3838 = vadd.f32 %v3749, %v3837
    %3839 = vmatmul.bf16.gmra.mxu0 %v2774
    %v3840 = vpop.f32.mrf.mxu0
    %v3841 = vadd.f32 %v3752, %v3840
    %v3842 = vpop.f32.mrf.mxu0
    %v3843 = vadd.f32 %v3754, %v3842
    %3844 = vmatmul.bf16.gmra.mxu0 %v2776
    %v3845 = vpop.f32.mrf.mxu0
    %v3846 = vadd.f32 %v3757, %v3845
    %v3847 = vpop.f32.mrf.mxu0
    %v3848 = vadd.f32 %v3759, %v3847
    %3849 = vmatmul.bf16.gmra.mxu0 %v2778
    %v3850 = vpop.f32.mrf.mxu0
    %v3851 = vadd.f32 %v3762, %v3850
    %v3852 = vpop.f32.mrf.mxu0
    %v3853 = vadd.f32 %v3764, %v3852
    %3854 = vmatmul.bf16.gmra.mxu0 %v2780
    %v3855 = vpop.f32.mrf.mxu0
    %v3856 = vadd.f32 %v3767, %v3855
    %v3857 = vpop.f32.mrf.mxu0
    %v3858 = vadd.f32 %v3769, %v3857
    %3859 = vmatmul.bf16.gmra.mxu0 %v2782
    %v3860 = vpop.f32.mrf.mxu0
    %v3861 = vadd.f32 %v3772, %v3860
    %v3862 = vpop.f32.mrf.mxu0
    %v3863 = vadd.f32 %v3774, %v3862
    %3864 = vmatmul.bf16.gmra.mxu0 %v2784
    %v3865 = vpop.f32.mrf.mxu0
    %v3866 = vadd.f32 %v3777, %v3865
    %v3867 = vpop.f32.mrf.mxu0
    %v3868 = vadd.f32 %v3779, %v3867
    %3869 = vmatmul.bf16.gmra.mxu0 %v2786
    %v3870 = vpop.f32.mrf.mxu0
    %v3871 = vadd.f32 %v3782, %v3870
    %v3872 = vpop.f32.mrf.mxu0
    %v3873 = vadd.f32 %v3784, %v3872
    %3874 = vmatmul.bf16.gmra.mxu0 %v2788
    %v3875 = vpop.f32.mrf.mxu0
    %v3876 = vadd.f32 %v3787, %v3875
    %v3877 = vpop.f32.mrf.mxu0
    %v3878 = vadd.f32 %v3789, %v3877
    %3879 = vmatmul.bf16.gmra.mxu0 %v2790
    %v3880 = vpop.f32.mrf.mxu0
    %v3881 = vadd.f32 %v3792, %v3880
    %v3882 = vpop.f32.mrf.mxu0
    %v3883 = vadd.f32 %v3794, %v3882
    %3884 = vmatmul.bf16.gmra.mxu0 %v2792
    %v3885 = vpop.f32.mrf.mxu0
    %v3886 = vadd.f32 %v3797, %v3885
    %v3887 = vpop.f32.mrf.mxu0
    %v3888 = vadd.f32 %v3799, %v3887
    %3889 = vmatmul.bf16.gmra.mxu0 %v2794
    %v3890 = vpop.f32.mrf.mxu0
    %v3891 = vadd.f32 %v3802, %v3890
    %v3892 = vpop.f32.mrf.mxu0
    %v3893 = vadd.f32 %v3804, %v3892
    %3894 = vdwg.mxu0
    %3895 = vmatpush.bf16.msra.mxu0 %v2601
    %3896 = vmatpush.bf16.msra.mxu0 %v2593
    %3897 = vmatpush.bf16.msra.mxu0 %v2585
    %3898 = vmatpush.bf16.msra.mxu0 %v2577
    %3899 = vmatpush.bf16.msra.mxu0 %v2569
    %3900 = vmatpush.bf16.msra.mxu0 %v2561
    %3901 = vmatpush.bf16.msra.mxu0 %v2553
    %3902 = vmatpush.bf16.msra.mxu0 %v2545
    %3903 = vmatmul.bf16.gmra.mxu0 %v2763
    %v3904 = vpop.f32.mrf.mxu0
    %v3905 = vadd.f32 0.0, %v3904
    %v3906 = vpop.f32.mrf.mxu0
    %v3907 = vadd.f32 0.0, %v3906
    %3908 = vmatmul.bf16.gmra.mxu0 %v2765
    %v3909 = vpop.f32.mrf.mxu0
    %v3910 = vadd.f32 0.0, %v3909
    %v3911 = vpop.f32.mrf.mxu0
    %v3912 = vadd.f32 0.0, %v3911
    %3913 = vmatmul.bf16.gmra.mxu0 %v2767
    %v3914 = vpop.f32.mrf.mxu0
    %v3915 = vadd.f32 0.0, %v3914
    %v3916 = vpop.f32.mrf.mxu0
    %v3917 = vadd.f32 0.0, %v3916
    %3918 = vmatmul.bf16.gmra.mxu0 %v2769
    %v3919 = vpop.f32.mrf.mxu0
    %v3920 = vadd.f32 0.0, %v3919
    %v3921 = vpop.f32.mrf.mxu0
    %v3922 = vadd.f32 0.0, %v3921
    %3923 = vmatmul.bf16.gmra.mxu0 %v2771
    %v3924 = vpop.f32.mrf.mxu0
    %v3925 = vadd.f32 0.0, %v3924
    %v3926 = vpop.f32.mrf.mxu0
    %v3927 = vadd.f32 0.0, %v3926
    %3928 = vmatmul.bf16.gmra.mxu0 %v2773
    %v3929 = vpop.f32.mrf.mxu0
    %v3930 = vadd.f32 0.0, %v3929
    %v3931 = vpop.f32.mrf.mxu0
    %v3932 = vadd.f32 0.0, %v3931
    %3933 = vmatmul.bf16.gmra.mxu0 %v2775
    %v3934 = vpop.f32.mrf.mxu0
    %v3935 = vadd.f32 0.0, %v3934
    %v3936 = vpop.f32.mrf.mxu0
    %v3937 = vadd.f32 0.0, %v3936
    %3938 = vmatmul.bf16.gmra.mxu0 %v2777
    %v3939 = vpop.f32.mrf.mxu0
    %v3940 = vadd.f32 0.0, %v3939
    %v3941 = vpop.f32.mrf.mxu0
    %v3942 = vadd.f32 0.0, %v3941
    %3943 = vmatmul.bf16.gmra.mxu0 %v2779
    %v3944 = vpop.f32.mrf.mxu0
    %v3945 = vadd.f32 0.0, %v3944
    %v3946 = vpop.f32.mrf.mxu0
    %v3947 = vadd.f32 0.0, %v3946
    %3948 = vmatmul.bf16.gmra.mxu0 %v2781
    %v3949 = vpop.f32.mrf.mxu0
    %v3950 = vadd.f32 0.0, %v3949
    %v3951 = vpop.f32.mrf.mxu0
    %v3952 = vadd.f32 0.0, %v3951
    %3953 = vmatmul.bf16.gmra.mxu0 %v2783
    %v3954 = vpop.f32.mrf.mxu0
    %v3955 = vadd.f32 0.0, %v3954
    %v3956 = vpop.f32.mrf.mxu0
    %v3957 = vadd.f32 0.0, %v3956
    %3958 = vmatmul.bf16.gmra.mxu0 %v2785
    %v3959 = vpop.f32.mrf.mxu0
    %v3960 = vadd.f32 0.0, %v3959
    %v3961 = vpop.f32.mrf.mxu0
    %v3962 = vadd.f32 0.0, %v3961
    %3963 = vmatmul.bf16.gmra.mxu0 %v2787
    %v3964 = vpop.f32.mrf.mxu0
    %v3965 = vadd.f32 0.0, %v3964
    %v3966 = vpop.f32.mrf.mxu0
    %v3967 = vadd.f32 0.0, %v3966
    %3968 = vmatmul.bf16.gmra.mxu0 %v2789
    %v3969 = vpop.f32.mrf.mxu0
    %v3970 = vadd.f32 0.0, %v3969
    %v3971 = vpop.f32.mrf.mxu0
    %v3972 = vadd.f32 0.0, %v3971
    %3973 = vmatmul.bf16.gmra.mxu0 %v2791
    %v3974 = vpop.f32.mrf.mxu0
    %v3975 = vadd.f32 0.0, %v3974
    %v3976 = vpop.f32.mrf.mxu0
    %v3977 = vadd.f32 0.0, %v3976
    %3978 = vmatmul.bf16.gmra.mxu0 %v2793
    %v3979 = vpop.f32.mrf.mxu0
    %v3980 = vadd.f32 0.0, %v3979
    %v3981 = vpop.f32.mrf.mxu0
    %v3982 = vadd.f32 0.0, %v3981
    %3983 = vdwg.mxu0
    %3984 = vmatpush.bf16.msra.mxu0 %v2665
    %3985 = vmatpush.bf16.msra.mxu0 %v2657
    %3986 = vmatpush.bf16.msra.mxu0 %v2649
    %3987 = vmatpush.bf16.msra.mxu0 %v2641
    %3988 = vmatpush.bf16.msra.mxu0 %v2633
    %3989 = vmatpush.bf16.msra.mxu0 %v2625
    %3990 = vmatpush.bf16.msra.mxu0 %v2617
    %3991 = vmatpush.bf16.msra.mxu0 %v2609
    %3992 = vmatmul.bf16.gmra.mxu0 %v2764
    %v3993 = vpop.f32.mrf.mxu0
    %v3994 = vadd.f32 %v3905, %v3993
    %v3995 = vpop.f32.mrf.mxu0
    %v3996 = vadd.f32 %v3907, %v3995
    %3997 = vmatmul.bf16.gmra.mxu0 %v2766
    %v3998 = vpop.f32.mrf.mxu0
    %v3999 = vadd.f32 %v3910, %v3998
    %v4000 = vpop.f32.mrf.mxu0
    %v4001 = vadd.f32 %v3912, %v4000
    %4002 = vmatmul.bf16.gmra.mxu0 %v2768
    %v4003 = vpop.f32.mrf.mxu0
    %v4004 = vadd.f32 %v3915, %v4003
    %v4005 = vpop.f32.mrf.mxu0
    %v4006 = vadd.f32 %v3917, %v4005
    %4007 = vmatmul.bf16.gmra.mxu0 %v2770
    %v4008 = vpop.f32.mrf.mxu0
    %v4009 = vadd.f32 %v3920, %v4008
    %v4010 = vpop.f32.mrf.mxu0
    %v4011 = vadd.f32 %v3922, %v4010
    %4012 = vmatmul.bf16.gmra.mxu0 %v2772
    %v4013 = vpop.f32.mrf.mxu0
    %v4014 = vadd.f32 %v3925, %v4013
    %v4015 = vpop.f32.mrf.mxu0
    %v4016 = vadd.f32 %v3927, %v4015
    %4017 = vmatmul.bf16.gmra.mxu0 %v2774
    %v4018 = vpop.f32.mrf.mxu0
    %v4019 = vadd.f32 %v3930, %v4018
    %v4020 = vpop.f32.mrf.mxu0
    %v4021 = vadd.f32 %v3932, %v4020
    %4022 = vmatmul.bf16.gmra.mxu0 %v2776
    %v4023 = vpop.f32.mrf.mxu0
    %v4024 = vadd.f32 %v3935, %v4023
    %v4025 = vpop.f32.mrf.mxu0
    %v4026 = vadd.f32 %v3937, %v4025
    %4027 = vmatmul.bf16.gmra.mxu0 %v2778
    %v4028 = vpop.f32.mrf.mxu0
    %v4029 = vadd.f32 %v3940, %v4028
    %v4030 = vpop.f32.mrf.mxu0
    %v4031 = vadd.f32 %v3942, %v4030
    %4032 = vmatmul.bf16.gmra.mxu0 %v2780
    %v4033 = vpop.f32.mrf.mxu0
    %v4034 = vadd.f32 %v3945, %v4033
    %v4035 = vpop.f32.mrf.mxu0
    %v4036 = vadd.f32 %v3947, %v4035
    %4037 = vmatmul.bf16.gmra.mxu0 %v2782
    %v4038 = vpop.f32.mrf.mxu0
    %v4039 = vadd.f32 %v3950, %v4038
    %v4040 = vpop.f32.mrf.mxu0
    %v4041 = vadd.f32 %v3952, %v4040
    %4042 = vmatmul.bf16.gmra.mxu0 %v2784
    %v4043 = vpop.f32.mrf.mxu0
    %v4044 = vadd.f32 %v3955, %v4043
    %v4045 = vpop.f32.mrf.mxu0
    %v4046 = vadd.f32 %v3957, %v4045
    %4047 = vmatmul.bf16.gmra.mxu0 %v2786
    %v4048 = vpop.f32.mrf.mxu0
    %v4049 = vadd.f32 %v3960, %v4048
    %v4050 = vpop.f32.mrf.mxu0
    %v4051 = vadd.f32 %v3962, %v4050
    %4052 = vmatmul.bf16.gmra.mxu0 %v2788
    %v4053 = vpop.f32.mrf.mxu0
    %v4054 = vadd.f32 %v3965, %v4053
    %v4055 = vpop.f32.mrf.mxu0
    %v4056 = vadd.f32 %v3967, %v4055
    %4057 = vmatmul.bf16.gmra.mxu0 %v2790
    %v4058 = vpop.f32.mrf.mxu0
    %v4059 = vadd.f32 %v3970, %v4058
    %v4060 = vpop.f32.mrf.mxu0
    %v4061 = vadd.f32 %v3972, %v4060
    %4062 = vmatmul.bf16.gmra.mxu0 %v2792
    %v4063 = vpop.f32.mrf.mxu0
    %v4064 = vadd.f32 %v3975, %v4063
    %v4065 = vpop.f32.mrf.mxu0
    %v4066 = vadd.f32 %v3977, %v4065
    %4067 = vmatmul.bf16.gmra.mxu0 %v2794
    %v4068 = vpop.f32.mrf.mxu0
    %v4069 = vadd.f32 %v3980, %v4068
    %v4070 = vpop.f32.mrf.mxu0
    %v4071 = vadd.f32 %v3982, %v4070
    %4072 = vdwg.mxu0
    %4073 = vmatpush.bf16.msra.mxu0 %v2602
    %4074 = vmatpush.bf16.msra.mxu0 %v2594
    %4075 = vmatpush.bf16.msra.mxu0 %v2586
    %4076 = vmatpush.bf16.msra.mxu0 %v2578
    %4077 = vmatpush.bf16.msra.mxu0 %v2570
    %4078 = vmatpush.bf16.msra.mxu0 %v2562
    %4079 = vmatpush.bf16.msra.mxu0 %v2554
    %4080 = vmatpush.bf16.msra.mxu0 %v2546
    %4081 = vmatmul.bf16.gmra.mxu0 %v2763
    %v4082 = vpop.f32.mrf.mxu0
    %v4083 = vadd.f32 0.0, %v4082
    %v4084 = vpop.f32.mrf.mxu0
    %v4085 = vadd.f32 0.0, %v4084
    %4086 = vmatmul.bf16.gmra.mxu0 %v2765
    %v4087 = vpop.f32.mrf.mxu0
    %v4088 = vadd.f32 0.0, %v4087
    %v4089 = vpop.f32.mrf.mxu0
    %v4090 = vadd.f32 0.0, %v4089
    %4091 = vmatmul.bf16.gmra.mxu0 %v2767
    %v4092 = vpop.f32.mrf.mxu0
    %v4093 = vadd.f32 0.0, %v4092
    %v4094 = vpop.f32.mrf.mxu0
    %v4095 = vadd.f32 0.0, %v4094
    %4096 = vmatmul.bf16.gmra.mxu0 %v2769
    %v4097 = vpop.f32.mrf.mxu0
    %v4098 = vadd.f32 0.0, %v4097
    %v4099 = vpop.f32.mrf.mxu0
    %v4100 = vadd.f32 0.0, %v4099
    %4101 = vmatmul.bf16.gmra.mxu0 %v2771
    %v4102 = vpop.f32.mrf.mxu0
    %v4103 = vadd.f32 0.0, %v4102
    %v4104 = vpop.f32.mrf.mxu0
    %v4105 = vadd.f32 0.0, %v4104
    %4106 = vmatmul.bf16.gmra.mxu0 %v2773
    %v4107 = vpop.f32.mrf.mxu0
    %v4108 = vadd.f32 0.0, %v4107
    %v4109 = vpop.f32.mrf.mxu0
    %v4110 = vadd.f32 0.0, %v4109
    %4111 = vmatmul.bf16.gmra.mxu0 %v2775
    %v4112 = vpop.f32.mrf.mxu0
    %v4113 = vadd.f32 0.0, %v4112
    %v4114 = vpop.f32.mrf.mxu0
    %v4115 = vadd.f32 0.0, %v4114
    %4116 = vmatmul.bf16.gmra.mxu0 %v2777
    %v4117 = vpop.f32.mrf.mxu0
    %v4118 = vadd.f32 0.0, %v4117
    %v4119 = vpop.f32.mrf.mxu0
    %v4120 = vadd.f32 0.0, %v4119
    %4121 = vmatmul.bf16.gmra.mxu0 %v2779
    %v4122 = vpop.f32.mrf.mxu0
    %v4123 = vadd.f32 0.0, %v4122
    %v4124 = vpop.f32.mrf.mxu0
    %v4125 = vadd.f32 0.0, %v4124
    %4126 = vmatmul.bf16.gmra.mxu0 %v2781
    %v4127 = vpop.f32.mrf.mxu0
    %v4128 = vadd.f32 0.0, %v4127
    %v4129 = vpop.f32.mrf.mxu0
    %v4130 = vadd.f32 0.0, %v4129
    %4131 = vmatmul.bf16.gmra.mxu0 %v2783
    %v4132 = vpop.f32.mrf.mxu0
    %v4133 = vadd.f32 0.0, %v4132
    %v4134 = vpop.f32.mrf.mxu0
    %v4135 = vadd.f32 0.0, %v4134
    %4136 = vmatmul.bf16.gmra.mxu0 %v2785
    %v4137 = vpop.f32.mrf.mxu0
    %v4138 = vadd.f32 0.0, %v4137
    %v4139 = vpop.f32.mrf.mxu0
    %v4140 = vadd.f32 0.0, %v4139
    %4141 = vmatmul.bf16.gmra.mxu0 %v2787
    %v4142 = vpop.f32.mrf.mxu0
    %v4143 = vadd.f32 0.0, %v4142
    %v4144 = vpop.f32.mrf.mxu0
    %v4145 = vadd.f32 0.0, %v4144
    %4146 = vmatmul.bf16.gmra.mxu0 %v2789
    %v4147 = vpop.f32.mrf.mxu0
    %v4148 = vadd.f32 0.0, %v4147
    %v4149 = vpop.f32.mrf.mxu0
    %v4150 = vadd.f32 0.0, %v4149
    %4151 = vmatmul.bf16.gmra.mxu0 %v2791
    %v4152 = vpop.f32.mrf.mxu0
    %v4153 = vadd.f32 0.0, %v4152
    %v4154 = vpop.f32.mrf.mxu0
    %v4155 = vadd.f32 0.0, %v4154
    %4156 = vmatmul.bf16.gmra.mxu0 %v2793
    %v4157 = vpop.f32.mrf.mxu0
    %v4158 = vadd.f32 0.0, %v4157
    %v4159 = vpop.f32.mrf.mxu0
    %v4160 = vadd.f32 0.0, %v4159
    %4161 = vdwg.mxu0
    %4162 = vmatpush.bf16.msra.mxu0 %v2666
    %4163 = vmatpush.bf16.msra.mxu0 %v2658
    %4164 = vmatpush.bf16.msra.mxu0 %v2650
    %4165 = vmatpush.bf16.msra.mxu0 %v2642
    %4166 = vmatpush.bf16.msra.mxu0 %v2634
    %4167 = vmatpush.bf16.msra.mxu0 %v2626
    %4168 = vmatpush.bf16.msra.mxu0 %v2618
    %4169 = vmatpush.bf16.msra.mxu0 %v2610
    %4170 = vmatmul.bf16.gmra.mxu0 %v2764
    %v4171 = vpop.f32.mrf.mxu0
    %v4172 = vadd.f32 %v4083, %v4171
    %v4173 = vpop.f32.mrf.mxu0
    %v4174 = vadd.f32 %v4085, %v4173
    %4175 = vmatmul.bf16.gmra.mxu0 %v2766
    %v4176 = vpop.f32.mrf.mxu0
    %v4177 = vadd.f32 %v4088, %v4176
    %v4178 = vpop.f32.mrf.mxu0
    %v4179 = vadd.f32 %v4090, %v4178
    %4180 = vmatmul.bf16.gmra.mxu0 %v2768
    %v4181 = vpop.f32.mrf.mxu0
    %v4182 = vadd.f32 %v4093, %v4181
    %v4183 = vpop.f32.mrf.mxu0
    %v4184 = vadd.f32 %v4095, %v4183
    %4185 = vmatmul.bf16.gmra.mxu0 %v2770
    %v4186 = vpop.f32.mrf.mxu0
    %v4187 = vadd.f32 %v4098, %v4186
    %v4188 = vpop.f32.mrf.mxu0
    %v4189 = vadd.f32 %v4100, %v4188
    %4190 = vmatmul.bf16.gmra.mxu0 %v2772
    %v4191 = vpop.f32.mrf.mxu0
    %v4192 = vadd.f32 %v4103, %v4191
    %v4193 = vpop.f32.mrf.mxu0
    %v4194 = vadd.f32 %v4105, %v4193
    %4195 = vmatmul.bf16.gmra.mxu0 %v2774
    %v4196 = vpop.f32.mrf.mxu0
    %v4197 = vadd.f32 %v4108, %v4196
    %v4198 = vpop.f32.mrf.mxu0
    %v4199 = vadd.f32 %v4110, %v4198
    %4200 = vmatmul.bf16.gmra.mxu0 %v2776
    %v4201 = vpop.f32.mrf.mxu0
    %v4202 = vadd.f32 %v4113, %v4201
    %v4203 = vpop.f32.mrf.mxu0
    %v4204 = vadd.f32 %v4115, %v4203
    %4205 = vmatmul.bf16.gmra.mxu0 %v2778
    %v4206 = vpop.f32.mrf.mxu0
    %v4207 = vadd.f32 %v4118, %v4206
    %v4208 = vpop.f32.mrf.mxu0
    %v4209 = vadd.f32 %v4120, %v4208
    %4210 = vmatmul.bf16.gmra.mxu0 %v2780
    %v4211 = vpop.f32.mrf.mxu0
    %v4212 = vadd.f32 %v4123, %v4211
    %v4213 = vpop.f32.mrf.mxu0
    %v4214 = vadd.f32 %v4125, %v4213
    %4215 = vmatmul.bf16.gmra.mxu0 %v2782
    %v4216 = vpop.f32.mrf.mxu0
    %v4217 = vadd.f32 %v4128, %v4216
    %v4218 = vpop.f32.mrf.mxu0
    %v4219 = vadd.f32 %v4130, %v4218
    %4220 = vmatmul.bf16.gmra.mxu0 %v2784
    %v4221 = vpop.f32.mrf.mxu0
    %v4222 = vadd.f32 %v4133, %v4221
    %v4223 = vpop.f32.mrf.mxu0
    %v4224 = vadd.f32 %v4135, %v4223
    %4225 = vmatmul.bf16.gmra.mxu0 %v2786
    %v4226 = vpop.f32.mrf.mxu0
    %v4227 = vadd.f32 %v4138, %v4226
    %v4228 = vpop.f32.mrf.mxu0
    %v4229 = vadd.f32 %v4140, %v4228
    %4230 = vmatmul.bf16.gmra.mxu0 %v2788
    %v4231 = vpop.f32.mrf.mxu0
    %v4232 = vadd.f32 %v4143, %v4231
    %v4233 = vpop.f32.mrf.mxu0
    %v4234 = vadd.f32 %v4145, %v4233
    %4235 = vmatmul.bf16.gmra.mxu0 %v2790
    %v4236 = vpop.f32.mrf.mxu0
    %v4237 = vadd.f32 %v4148, %v4236
    %v4238 = vpop.f32.mrf.mxu0
    %v4239 = vadd.f32 %v4150, %v4238
    %4240 = vmatmul.bf16.gmra.mxu0 %v2792
    %v4241 = vpop.f32.mrf.mxu0
    %v4242 = vadd.f32 %v4153, %v4241
    %v4243 = vpop.f32.mrf.mxu0
    %v4244 = vadd.f32 %v4155, %v4243
    %4245 = vmatmul.bf16.gmra.mxu0 %v2794
    %v4246 = vpop.f32.mrf.mxu0
    %v4247 = vadd.f32 %v4158, %v4246
    %v4248 = vpop.f32.mrf.mxu0
    %v4249 = vadd.f32 %v4160, %v4248
    %4250 = vdwg.mxu0
    %v4251 = vpack.c.bf16 %v3104, %v2926
    %v4252 = vpack.c.bf16 %v3460, %v3282
    %v4253 = vpack.c.bf16 %v3816, %v3638
    %v4254 = vpack.c.bf16 %v4172, %v3994
    %v4255 = vpack.c.bf16 %v3106, %v2928
    %v4256 = vpack.c.bf16 %v3462, %v3284
    %v4257 = vpack.c.bf16 %v3818, %v3640
    %v4258 = vpack.c.bf16 %v4174, %v3996
    %v4259 = vpack.c.bf16 %v3109, %v2931
    %v4260 = vpack.c.bf16 %v3465, %v3287
    %v4261 = vpack.c.bf16 %v3821, %v3643
    %v4262 = vpack.c.bf16 %v4177, %v3999
    %v4263 = vpack.c.bf16 %v3111, %v2933
    %v4264 = vpack.c.bf16 %v3467, %v3289
    %v4265 = vpack.c.bf16 %v3823, %v3645
    %v4266 = vpack.c.bf16 %v4179, %v4001
    %v4267 = vpack.c.bf16 %v3114, %v2936
    %v4268 = vpack.c.bf16 %v3470, %v3292
    %v4269 = vpack.c.bf16 %v3826, %v3648
    %v4270 = vpack.c.bf16 %v4182, %v4004
    %v4271 = vpack.c.bf16 %v3116, %v2938
    %v4272 = vpack.c.bf16 %v3472, %v3294
    %v4273 = vpack.c.bf16 %v3828, %v3650
    %v4274 = vpack.c.bf16 %v4184, %v4006
    %v4275 = vpack.c.bf16 %v3119, %v2941
    %v4276 = vpack.c.bf16 %v3475, %v3297
    %v4277 = vpack.c.bf16 %v3831, %v3653
    %v4278 = vpack.c.bf16 %v4187, %v4009
    %v4279 = vpack.c.bf16 %v3121, %v2943
    %v4280 = vpack.c.bf16 %v3477, %v3299
    %v4281 = vpack.c.bf16 %v3833, %v3655
    %v4282 = vpack.c.bf16 %v4189, %v4011
    %v4283 = vpack.c.bf16 %v3124, %v2946
    %v4284 = vpack.c.bf16 %v3480, %v3302
    %v4285 = vpack.c.bf16 %v3836, %v3658
    %v4286 = vpack.c.bf16 %v4192, %v4014
    %v4287 = vpack.c.bf16 %v3126, %v2948
    %v4288 = vpack.c.bf16 %v3482, %v3304
    %v4289 = vpack.c.bf16 %v3838, %v3660
    %v4290 = vpack.c.bf16 %v4194, %v4016
    %v4291 = vpack.c.bf16 %v3129, %v2951
    %v4292 = vpack.c.bf16 %v3485, %v3307
    %v4293 = vpack.c.bf16 %v3841, %v3663
    %v4294 = vpack.c.bf16 %v4197, %v4019
    %v4295 = vpack.c.bf16 %v3131, %v2953
    %v4296 = vpack.c.bf16 %v3487, %v3309
    %v4297 = vpack.c.bf16 %v3843, %v3665
    %v4298 = vpack.c.bf16 %v4199, %v4021
    %v4299 = vpack.c.bf16 %v3134, %v2956
    %v4300 = vpack.c.bf16 %v3490, %v3312
    %v4301 = vpack.c.bf16 %v3846, %v3668
    %v4302 = vpack.c.bf16 %v4202, %v4024
    %v4303 = vpack.c.bf16 %v3136, %v2958
    %v4304 = vpack.c.bf16 %v3492, %v3314
    %v4305 = vpack.c.bf16 %v3848, %v3670
    %v4306 = vpack.c.bf16 %v4204, %v4026
    %v4307 = vpack.c.bf16 %v3139, %v2961
    %v4308 = vpack.c.bf16 %v3495, %v3317
    %v4309 = vpack.c.bf16 %v3851, %v3673
    %v4310 = vpack.c.bf16 %v4207, %v4029
    %v4311 = vpack.c.bf16 %v3141, %v2963
    %v4312 = vpack.c.bf16 %v3497, %v3319
    %v4313 = vpack.c.bf16 %v3853, %v3675
    %v4314 = vpack.c.bf16 %v4209, %v4031
    %v4315 = vpack.c.bf16 %v3144, %v2966
    %v4316 = vpack.c.bf16 %v3500, %v3322
    %v4317 = vpack.c.bf16 %v3856, %v3678
    %v4318 = vpack.c.bf16 %v4212, %v4034
    %v4319 = vpack.c.bf16 %v3146, %v2968
    %v4320 = vpack.c.bf16 %v3502, %v3324
    %v4321 = vpack.c.bf16 %v3858, %v3680
    %v4322 = vpack.c.bf16 %v4214, %v4036
    %v4323 = vpack.c.bf16 %v3149, %v2971
    %v4324 = vpack.c.bf16 %v3505, %v3327
    %v4325 = vpack.c.bf16 %v3861, %v3683
    %v4326 = vpack.c.bf16 %v4217, %v4039
    %v4327 = vpack.c.bf16 %v3151, %v2973
    %v4328 = vpack.c.bf16 %v3507, %v3329
    %v4329 = vpack.c.bf16 %v3863, %v3685
    %v4330 = vpack.c.bf16 %v4219, %v4041
    %v4331 = vpack.c.bf16 %v3154, %v2976
    %v4332 = vpack.c.bf16 %v3510, %v3332
    %v4333 = vpack.c.bf16 %v3866, %v3688
    %v4334 = vpack.c.bf16 %v4222, %v4044
    %v4335 = vpack.c.bf16 %v3156, %v2978
    %v4336 = vpack.c.bf16 %v3512, %v3334
    %v4337 = vpack.c.bf16 %v3868, %v3690
    %v4338 = vpack.c.bf16 %v4224, %v4046
    %v4339 = vpack.c.bf16 %v3159, %v2981
    %v4340 = vpack.c.bf16 %v3515, %v3337
    %v4341 = vpack.c.bf16 %v3871, %v3693
    %v4342 = vpack.c.bf16 %v4227, %v4049
    %v4343 = vpack.c.bf16 %v3161, %v2983
    %v4344 = vpack.c.bf16 %v3517, %v3339
    %v4345 = vpack.c.bf16 %v3873, %v3695
    %v4346 = vpack.c.bf16 %v4229, %v4051
    %v4347 = vpack.c.bf16 %v3164, %v2986
    %v4348 = vpack.c.bf16 %v3520, %v3342
    %v4349 = vpack.c.bf16 %v3876, %v3698
    %v4350 = vpack.c.bf16 %v4232, %v4054
    %v4351 = vpack.c.bf16 %v3166, %v2988
    %v4352 = vpack.c.bf16 %v3522, %v3344
    %v4353 = vpack.c.bf16 %v3878, %v3700
    %v4354 = vpack.c.bf16 %v4234, %v4056
    %v4355 = vpack.c.bf16 %v3169, %v2991
    %v4356 = vpack.c.bf16 %v3525, %v3347
    %v4357 = vpack.c.bf16 %v3881, %v3703
    %v4358 = vpack.c.bf16 %v4237, %v4059
    %v4359 = vpack.c.bf16 %v3171, %v2993
    %v4360 = vpack.c.bf16 %v3527, %v3349
    %v4361 = vpack.c.bf16 %v3883, %v3705
    %v4362 = vpack.c.bf16 %v4239, %v4061
    %v4363 = vpack.c.bf16 %v3174, %v2996
    %v4364 = vpack.c.bf16 %v3530, %v3352
    %v4365 = vpack.c.bf16 %v3886, %v3708
    %v4366 = vpack.c.bf16 %v4242, %v4064
    %v4367 = vpack.c.bf16 %v3176, %v2998
    %v4368 = vpack.c.bf16 %v3532, %v3354
    %v4369 = vpack.c.bf16 %v3888, %v3710
    %v4370 = vpack.c.bf16 %v4244, %v4066
    %v4371 = vpack.c.bf16 %v3179, %v3001
    %v4372 = vpack.c.bf16 %v3535, %v3357
    %v4373 = vpack.c.bf16 %v3891, %v3713
    %v4374 = vpack.c.bf16 %v4247, %v4069
    %v4375 = vpack.c.bf16 %v3181, %v3003
    %v4376 = vpack.c.bf16 %v3537, %v3359
    %v4377 = vpack.c.bf16 %v3893, %v3715
    %v4378 = vpack.c.bf16 %v4249, %v4071
    %v4379 = vunpack.c.l.bf16 %v4251
    %v4380 = vunpack.c.h.bf16 %v4251
    %v4381 = vunpack.c.l.bf16 %v4252
    %v4382 = vunpack.c.h.bf16 %v4252
    %v4383 = vunpack.c.l.bf16 %v4253
    %v4384 = vunpack.c.h.bf16 %v4253
    %v4385 = vunpack.c.l.bf16 %v4254
    %v4386 = vunpack.c.h.bf16 %v4254
    %v4387 = vunpack.c.l.bf16 %v4255
    %v4388 = vunpack.c.h.bf16 %v4255
    %v4389 = vunpack.c.l.bf16 %v4256
    %v4390 = vunpack.c.h.bf16 %v4256
    %v4391 = vunpack.c.l.bf16 %v4257
    %v4392 = vunpack.c.h.bf16 %v4257
    %v4393 = vunpack.c.l.bf16 %v4258
    %v4394 = vunpack.c.h.bf16 %v4258
    %v4395 = vunpack.c.l.bf16 %v4259
    %v4396 = vunpack.c.h.bf16 %v4259
    %v4397 = vunpack.c.l.bf16 %v4260
    %v4398 = vunpack.c.h.bf16 %v4260
    %v4399 = vunpack.c.l.bf16 %v4261
    %v4400 = vunpack.c.h.bf16 %v4261
    %v4401 = vunpack.c.l.bf16 %v4262
    %v4402 = vunpack.c.h.bf16 %v4262
    %v4403 = vunpack.c.l.bf16 %v4263
    %v4404 = vunpack.c.h.bf16 %v4263
    %v4405 = vunpack.c.l.bf16 %v4264
    %v4406 = vunpack.c.h.bf16 %v4264
    %v4407 = vunpack.c.l.bf16 %v4265
    %v4408 = vunpack.c.h.bf16 %v4265
    %v4409 = vunpack.c.l.bf16 %v4266
    %v4410 = vunpack.c.h.bf16 %v4266
    %v4411 = vunpack.c.l.bf16 %v4267
    %v4412 = vunpack.c.h.bf16 %v4267
    %v4413 = vunpack.c.l.bf16 %v4268
    %v4414 = vunpack.c.h.bf16 %v4268
    %v4415 = vunpack.c.l.bf16 %v4269
    %v4416 = vunpack.c.h.bf16 %v4269
    %v4417 = vunpack.c.l.bf16 %v4270
    %v4418 = vunpack.c.h.bf16 %v4270
    %v4419 = vunpack.c.l.bf16 %v4271
    %v4420 = vunpack.c.h.bf16 %v4271
    %v4421 = vunpack.c.l.bf16 %v4272
    %v4422 = vunpack.c.h.bf16 %v4272
    %v4423 = vunpack.c.l.bf16 %v4273
    %v4424 = vunpack.c.h.bf16 %v4273
    %v4425 = vunpack.c.l.bf16 %v4274
    %v4426 = vunpack.c.h.bf16 %v4274
    %v4427 = vunpack.c.l.bf16 %v4275
    %v4428 = vunpack.c.h.bf16 %v4275
    %v4429 = vunpack.c.l.bf16 %v4276
    %v4430 = vunpack.c.h.bf16 %v4276
    %v4431 = vunpack.c.l.bf16 %v4277
    %v4432 = vunpack.c.h.bf16 %v4277
    %v4433 = vunpack.c.l.bf16 %v4278
    %v4434 = vunpack.c.h.bf16 %v4278
    %v4435 = vunpack.c.l.bf16 %v4279
    %v4436 = vunpack.c.h.bf16 %v4279
    %v4437 = vunpack.c.l.bf16 %v4280
    %v4438 = vunpack.c.h.bf16 %v4280
    %v4439 = vunpack.c.l.bf16 %v4281
    %v4440 = vunpack.c.h.bf16 %v4281
    %v4441 = vunpack.c.l.bf16 %v4282
    %v4442 = vunpack.c.h.bf16 %v4282
    %v4443 = vunpack.c.l.bf16 %v4283
    %v4444 = vunpack.c.h.bf16 %v4283
    %v4445 = vunpack.c.l.bf16 %v4284
    %v4446 = vunpack.c.h.bf16 %v4284
    %v4447 = vunpack.c.l.bf16 %v4285
    %v4448 = vunpack.c.h.bf16 %v4285
    %v4449 = vunpack.c.l.bf16 %v4286
    %v4450 = vunpack.c.h.bf16 %v4286
    %v4451 = vunpack.c.l.bf16 %v4287
    %v4452 = vunpack.c.h.bf16 %v4287
    %v4453 = vunpack.c.l.bf16 %v4288
    %v4454 = vunpack.c.h.bf16 %v4288
    %v4455 = vunpack.c.l.bf16 %v4289
    %v4456 = vunpack.c.h.bf16 %v4289
    %v4457 = vunpack.c.l.bf16 %v4290
    %v4458 = vunpack.c.h.bf16 %v4290
    %v4459 = vunpack.c.l.bf16 %v4291
    %v4460 = vunpack.c.h.bf16 %v4291
    %v4461 = vunpack.c.l.bf16 %v4292
    %v4462 = vunpack.c.h.bf16 %v4292
    %v4463 = vunpack.c.l.bf16 %v4293
    %v4464 = vunpack.c.h.bf16 %v4293
    %v4465 = vunpack.c.l.bf16 %v4294
    %v4466 = vunpack.c.h.bf16 %v4294
    %v4467 = vunpack.c.l.bf16 %v4295
    %v4468 = vunpack.c.h.bf16 %v4295
    %v4469 = vunpack.c.l.bf16 %v4296
    %v4470 = vunpack.c.h.bf16 %v4296
    %v4471 = vunpack.c.l.bf16 %v4297
    %v4472 = vunpack.c.h.bf16 %v4297
    %v4473 = vunpack.c.l.bf16 %v4298
    %v4474 = vunpack.c.h.bf16 %v4298
    %v4475 = vunpack.c.l.bf16 %v4299
    %v4476 = vunpack.c.h.bf16 %v4299
    %v4477 = vunpack.c.l.bf16 %v4300
    %v4478 = vunpack.c.h.bf16 %v4300
    %v4479 = vunpack.c.l.bf16 %v4301
    %v4480 = vunpack.c.h.bf16 %v4301
    %v4481 = vunpack.c.l.bf16 %v4302
    %v4482 = vunpack.c.h.bf16 %v4302
    %v4483 = vunpack.c.l.bf16 %v4303
    %v4484 = vunpack.c.h.bf16 %v4303
    %v4485 = vunpack.c.l.bf16 %v4304
    %v4486 = vunpack.c.h.bf16 %v4304
    %v4487 = vunpack.c.l.bf16 %v4305
    %v4488 = vunpack.c.h.bf16 %v4305
    %v4489 = vunpack.c.l.bf16 %v4306
    %v4490 = vunpack.c.h.bf16 %v4306
    %v4491 = vunpack.c.l.bf16 %v4307
    %v4492 = vunpack.c.h.bf16 %v4307
    %v4493 = vunpack.c.l.bf16 %v4308
    %v4494 = vunpack.c.h.bf16 %v4308
    %v4495 = vunpack.c.l.bf16 %v4309
    %v4496 = vunpack.c.h.bf16 %v4309
    %v4497 = vunpack.c.l.bf16 %v4310
    %v4498 = vunpack.c.h.bf16 %v4310
    %v4499 = vunpack.c.l.bf16 %v4311
    %v4500 = vunpack.c.h.bf16 %v4311
    %v4501 = vunpack.c.l.bf16 %v4312
    %v4502 = vunpack.c.h.bf16 %v4312
    %v4503 = vunpack.c.l.bf16 %v4313
    %v4504 = vunpack.c.h.bf16 %v4313
    %v4505 = vunpack.c.l.bf16 %v4314
    %v4506 = vunpack.c.h.bf16 %v4314
    %v4507 = vunpack.c.l.bf16 %v4315
    %v4508 = vunpack.c.h.bf16 %v4315
    %v4509 = vunpack.c.l.bf16 %v4316
    %v4510 = vunpack.c.h.bf16 %v4316
    %v4511 = vunpack.c.l.bf16 %v4317
    %v4512 = vunpack.c.h.bf16 %v4317
    %v4513 = vunpack.c.l.bf16 %v4318
    %v4514 = vunpack.c.h.bf16 %v4318
    %v4515 = vunpack.c.l.bf16 %v4319
    %v4516 = vunpack.c.h.bf16 %v4319
    %v4517 = vunpack.c.l.bf16 %v4320
    %v4518 = vunpack.c.h.bf16 %v4320
    %v4519 = vunpack.c.l.bf16 %v4321
    %v4520 = vunpack.c.h.bf16 %v4321
    %v4521 = vunpack.c.l.bf16 %v4322
    %v4522 = vunpack.c.h.bf16 %v4322
    %v4523 = vunpack.c.l.bf16 %v4323
    %v4524 = vunpack.c.h.bf16 %v4323
    %v4525 = vunpack.c.l.bf16 %v4324
    %v4526 = vunpack.c.h.bf16 %v4324
    %v4527 = vunpack.c.l.bf16 %v4325
    %v4528 = vunpack.c.h.bf16 %v4325
    %v4529 = vunpack.c.l.bf16 %v4326
    %v4530 = vunpack.c.h.bf16 %v4326
    %v4531 = vunpack.c.l.bf16 %v4327
    %v4532 = vunpack.c.h.bf16 %v4327
    %v4533 = vunpack.c.l.bf16 %v4328
    %v4534 = vunpack.c.h.bf16 %v4328
    %v4535 = vunpack.c.l.bf16 %v4329
    %v4536 = vunpack.c.h.bf16 %v4329
    %v4537 = vunpack.c.l.bf16 %v4330
    %v4538 = vunpack.c.h.bf16 %v4330
    %v4539 = vunpack.c.l.bf16 %v4331
    %v4540 = vunpack.c.h.bf16 %v4331
    %v4541 = vunpack.c.l.bf16 %v4332
    %v4542 = vunpack.c.h.bf16 %v4332
    %v4543 = vunpack.c.l.bf16 %v4333
    %v4544 = vunpack.c.h.bf16 %v4333
    %v4545 = vunpack.c.l.bf16 %v4334
    %v4546 = vunpack.c.h.bf16 %v4334
    %v4547 = vunpack.c.l.bf16 %v4335
    %v4548 = vunpack.c.h.bf16 %v4335
    %v4549 = vunpack.c.l.bf16 %v4336
    %v4550 = vunpack.c.h.bf16 %v4336
    %v4551 = vunpack.c.l.bf16 %v4337
    %v4552 = vunpack.c.h.bf16 %v4337
    %v4553 = vunpack.c.l.bf16 %v4338
    %v4554 = vunpack.c.h.bf16 %v4338
    %v4555 = vunpack.c.l.bf16 %v4339
    %v4556 = vunpack.c.h.bf16 %v4339
    %v4557 = vunpack.c.l.bf16 %v4340
    %v4558 = vunpack.c.h.bf16 %v4340
    %v4559 = vunpack.c.l.bf16 %v4341
    %v4560 = vunpack.c.h.bf16 %v4341
    %v4561 = vunpack.c.l.bf16 %v4342
    %v4562 = vunpack.c.h.bf16 %v4342
    %v4563 = vunpack.c.l.bf16 %v4343
    %v4564 = vunpack.c.h.bf16 %v4343
    %v4565 = vunpack.c.l.bf16 %v4344
    %v4566 = vunpack.c.h.bf16 %v4344
    %v4567 = vunpack.c.l.bf16 %v4345
    %v4568 = vunpack.c.h.bf16 %v4345
    %v4569 = vunpack.c.l.bf16 %v4346
    %v4570 = vunpack.c.h.bf16 %v4346
    %v4571 = vunpack.c.l.bf16 %v4347
    %v4572 = vunpack.c.h.bf16 %v4347
    %v4573 = vunpack.c.l.bf16 %v4348
    %v4574 = vunpack.c.h.bf16 %v4348
    %v4575 = vunpack.c.l.bf16 %v4349
    %v4576 = vunpack.c.h.bf16 %v4349
    %v4577 = vunpack.c.l.bf16 %v4350
    %v4578 = vunpack.c.h.bf16 %v4350
    %v4579 = vunpack.c.l.bf16 %v4351
    %v4580 = vunpack.c.h.bf16 %v4351
    %v4581 = vunpack.c.l.bf16 %v4352
    %v4582 = vunpack.c.h.bf16 %v4352
    %v4583 = vunpack.c.l.bf16 %v4353
    %v4584 = vunpack.c.h.bf16 %v4353
    %v4585 = vunpack.c.l.bf16 %v4354
    %v4586 = vunpack.c.h.bf16 %v4354
    %v4587 = vunpack.c.l.bf16 %v4355
    %v4588 = vunpack.c.h.bf16 %v4355
    %v4589 = vunpack.c.l.bf16 %v4356
    %v4590 = vunpack.c.h.bf16 %v4356
    %v4591 = vunpack.c.l.bf16 %v4357
    %v4592 = vunpack.c.h.bf16 %v4357
    %v4593 = vunpack.c.l.bf16 %v4358
    %v4594 = vunpack.c.h.bf16 %v4358
    %v4595 = vunpack.c.l.bf16 %v4359
    %v4596 = vunpack.c.h.bf16 %v4359
    %v4597 = vunpack.c.l.bf16 %v4360
    %v4598 = vunpack.c.h.bf16 %v4360
    %v4599 = vunpack.c.l.bf16 %v4361
    %v4600 = vunpack.c.h.bf16 %v4361
    %v4601 = vunpack.c.l.bf16 %v4362
    %v4602 = vunpack.c.h.bf16 %v4362
    %v4603 = vunpack.c.l.bf16 %v4363
    %v4604 = vunpack.c.h.bf16 %v4363
    %v4605 = vunpack.c.l.bf16 %v4364
    %v4606 = vunpack.c.h.bf16 %v4364
    %v4607 = vunpack.c.l.bf16 %v4365
    %v4608 = vunpack.c.h.bf16 %v4365
    %v4609 = vunpack.c.l.bf16 %v4366
    %v4610 = vunpack.c.h.bf16 %v4366
    %v4611 = vunpack.c.l.bf16 %v4367
    %v4612 = vunpack.c.h.bf16 %v4367
    %v4613 = vunpack.c.l.bf16 %v4368
    %v4614 = vunpack.c.h.bf16 %v4368
    %v4615 = vunpack.c.l.bf16 %v4369
    %v4616 = vunpack.c.h.bf16 %v4369
    %v4617 = vunpack.c.l.bf16 %v4370
    %v4618 = vunpack.c.h.bf16 %v4370
    %v4619 = vunpack.c.l.bf16 %v4371
    %v4620 = vunpack.c.h.bf16 %v4371
    %v4621 = vunpack.c.l.bf16 %v4372
    %v4622 = vunpack.c.h.bf16 %v4372
    %v4623 = vunpack.c.l.bf16 %v4373
    %v4624 = vunpack.c.h.bf16 %v4373
    %v4625 = vunpack.c.l.bf16 %v4374
    %v4626 = vunpack.c.h.bf16 %v4374
    %v4627 = vunpack.c.l.bf16 %v4375
    %v4628 = vunpack.c.h.bf16 %v4375
    %v4629 = vunpack.c.l.bf16 %v4376
    %v4630 = vunpack.c.h.bf16 %v4376
    %v4631 = vunpack.c.l.bf16 %v4377
    %v4632 = vunpack.c.h.bf16 %v4377
    %v4633 = vunpack.c.l.bf16 %v4378
    %v4634 = vunpack.c.h.bf16 %v4378
    %v4635 = vunpack.c.l.bf16 %v138
    %v4636 = vunpack.c.h.bf16 %v138
    %v4637 = vunpack.c.l.bf16 %v139
    %v4638 = vunpack.c.h.bf16 %v139
    %v4639 = vunpack.c.l.bf16 %v140
    %v4640 = vunpack.c.h.bf16 %v140
    %v4641 = vunpack.c.l.bf16 %v141
    %v4642 = vunpack.c.h.bf16 %v141
    %v4643 = vunpack.c.l.bf16 %v142
    %v4644 = vunpack.c.h.bf16 %v142
    %v4645 = vunpack.c.l.bf16 %v143
    %v4646 = vunpack.c.h.bf16 %v143
    %v4647 = vunpack.c.l.bf16 %v144
    %v4648 = vunpack.c.h.bf16 %v144
    %v4649 = vunpack.c.l.bf16 %v145
    %v4650 = vunpack.c.h.bf16 %v145
    %v4651 = vunpack.c.l.bf16 %v146
    %v4652 = vunpack.c.h.bf16 %v146
    %v4653 = vunpack.c.l.bf16 %v147
    %v4654 = vunpack.c.h.bf16 %v147
    %v4655 = vunpack.c.l.bf16 %v148
    %v4656 = vunpack.c.h.bf16 %v148
    %v4657 = vunpack.c.l.bf16 %v149
    %v4658 = vunpack.c.h.bf16 %v149
    %v4659 = vunpack.c.l.bf16 %v150
    %v4660 = vunpack.c.h.bf16 %v150
    %v4661 = vunpack.c.l.bf16 %v151
    %v4662 = vunpack.c.h.bf16 %v151
    %v4663 = vunpack.c.l.bf16 %v152
    %v4664 = vunpack.c.h.bf16 %v152
    %v4665 = vunpack.c.l.bf16 %v153
    %v4666 = vunpack.c.h.bf16 %v153
    %v4667 = vunpack.c.l.bf16 %v154
    %v4668 = vunpack.c.h.bf16 %v154
    %v4669 = vunpack.c.l.bf16 %v155
    %v4670 = vunpack.c.h.bf16 %v155
    %v4671 = vunpack.c.l.bf16 %v156
    %v4672 = vunpack.c.h.bf16 %v156
    %v4673 = vunpack.c.l.bf16 %v157
    %v4674 = vunpack.c.h.bf16 %v157
    %v4675 = vunpack.c.l.bf16 %v158
    %v4676 = vunpack.c.h.bf16 %v158
    %v4677 = vunpack.c.l.bf16 %v159
    %v4678 = vunpack.c.h.bf16 %v159
    %v4679 = vunpack.c.l.bf16 %v160
    %v4680 = vunpack.c.h.bf16 %v160
    %v4681 = vunpack.c.l.bf16 %v161
    %v4682 = vunpack.c.h.bf16 %v161
    %v4683 = vunpack.c.l.bf16 %v162
    %v4684 = vunpack.c.h.bf16 %v162
    %v4685 = vunpack.c.l.bf16 %v163
    %v4686 = vunpack.c.h.bf16 %v163
    %v4687 = vunpack.c.l.bf16 %v164
    %v4688 = vunpack.c.h.bf16 %v164
    %v4689 = vunpack.c.l.bf16 %v165
    %v4690 = vunpack.c.h.bf16 %v165
    %v4691 = vunpack.c.l.bf16 %v166
    %v4692 = vunpack.c.h.bf16 %v166
    %v4693 = vunpack.c.l.bf16 %v167
    %v4694 = vunpack.c.h.bf16 %v167
    %v4695 = vunpack.c.l.bf16 %v168
    %v4696 = vunpack.c.h.bf16 %v168
    %v4697 = vunpack.c.l.bf16 %v169
    %v4698 = vunpack.c.h.bf16 %v169
    %v4699 = vunpack.c.l.bf16 %v170
    %v4700 = vunpack.c.h.bf16 %v170
    %v4701 = vunpack.c.l.bf16 %v171
    %v4702 = vunpack.c.h.bf16 %v171
    %v4703 = vunpack.c.l.bf16 %v172
    %v4704 = vunpack.c.h.bf16 %v172
    %v4705 = vunpack.c.l.bf16 %v173
    %v4706 = vunpack.c.h.bf16 %v173
    %v4707 = vunpack.c.l.bf16 %v174
    %v4708 = vunpack.c.h.bf16 %v174
    %v4709 = vunpack.c.l.bf16 %v175
    %v4710 = vunpack.c.h.bf16 %v175
    %v4711 = vunpack.c.l.bf16 %v176
    %v4712 = vunpack.c.h.bf16 %v176
    %v4713 = vunpack.c.l.bf16 %v177
    %v4714 = vunpack.c.h.bf16 %v177
    %v4715 = vunpack.c.l.bf16 %v178
    %v4716 = vunpack.c.h.bf16 %v178
    %v4717 = vunpack.c.l.bf16 %v179
    %v4718 = vunpack.c.h.bf16 %v179
    %v4719 = vunpack.c.l.bf16 %v180
    %v4720 = vunpack.c.h.bf16 %v180
    %v4721 = vunpack.c.l.bf16 %v181
    %v4722 = vunpack.c.h.bf16 %v181
    %v4723 = vunpack.c.l.bf16 %v182
    %v4724 = vunpack.c.h.bf16 %v182
    %v4725 = vunpack.c.l.bf16 %v183
    %v4726 = vunpack.c.h.bf16 %v183
    %v4727 = vunpack.c.l.bf16 %v184
    %v4728 = vunpack.c.h.bf16 %v184
    %v4729 = vunpack.c.l.bf16 %v185
    %v4730 = vunpack.c.h.bf16 %v185
    %v4731 = vunpack.c.l.bf16 %v186
    %v4732 = vunpack.c.h.bf16 %v186
    %v4733 = vunpack.c.l.bf16 %v187
    %v4734 = vunpack.c.h.bf16 %v187
    %v4735 = vunpack.c.l.bf16 %v188
    %v4736 = vunpack.c.h.bf16 %v188
    %v4737 = vunpack.c.l.bf16 %v189
    %v4738 = vunpack.c.h.bf16 %v189
    %v4739 = vunpack.c.l.bf16 %v190
    %v4740 = vunpack.c.h.bf16 %v190
    %v4741 = vunpack.c.l.bf16 %v191
    %v4742 = vunpack.c.h.bf16 %v191
    %v4743 = vunpack.c.l.bf16 %v192
    %v4744 = vunpack.c.h.bf16 %v192
    %v4745 = vunpack.c.l.bf16 %v193
    %v4746 = vunpack.c.h.bf16 %v193
    %v4747 = vunpack.c.l.bf16 %v194
    %v4748 = vunpack.c.h.bf16 %v194
    %v4749 = vunpack.c.l.bf16 %v195
    %v4750 = vunpack.c.h.bf16 %v195
    %v4751 = vunpack.c.l.bf16 %v196
    %v4752 = vunpack.c.h.bf16 %v196
    %v4753 = vunpack.c.l.bf16 %v197
    %v4754 = vunpack.c.h.bf16 %v197
    %v4755 = vunpack.c.l.bf16 %v198
    %v4756 = vunpack.c.h.bf16 %v198
    %v4757 = vunpack.c.l.bf16 %v199
    %v4758 = vunpack.c.h.bf16 %v199
    %v4759 = vunpack.c.l.bf16 %v200
    %v4760 = vunpack.c.h.bf16 %v200
    %v4761 = vunpack.c.l.bf16 %v201
    %v4762 = vunpack.c.h.bf16 %v201
    %v4763 = vunpack.c.l.bf16 %v202
    %v4764 = vunpack.c.h.bf16 %v202
    %v4765 = vunpack.c.l.bf16 %v203
    %v4766 = vunpack.c.h.bf16 %v203
    %v4767 = vunpack.c.l.bf16 %v204
    %v4768 = vunpack.c.h.bf16 %v204
    %v4769 = vunpack.c.l.bf16 %v205
    %v4770 = vunpack.c.h.bf16 %v205
    %v4771 = vunpack.c.l.bf16 %v206
    %v4772 = vunpack.c.h.bf16 %v206
    %v4773 = vunpack.c.l.bf16 %v207
    %v4774 = vunpack.c.h.bf16 %v207
    %v4775 = vunpack.c.l.bf16 %v208
    %v4776 = vunpack.c.h.bf16 %v208
    %v4777 = vunpack.c.l.bf16 %v209
    %v4778 = vunpack.c.h.bf16 %v209
    %v4779 = vunpack.c.l.bf16 %v210
    %v4780 = vunpack.c.h.bf16 %v210
    %v4781 = vunpack.c.l.bf16 %v211
    %v4782 = vunpack.c.h.bf16 %v211
    %v4783 = vunpack.c.l.bf16 %v212
    %v4784 = vunpack.c.h.bf16 %v212
    %v4785 = vunpack.c.l.bf16 %v213
    %v4786 = vunpack.c.h.bf16 %v213
    %v4787 = vunpack.c.l.bf16 %v214
    %v4788 = vunpack.c.h.bf16 %v214
    %v4789 = vunpack.c.l.bf16 %v215
    %v4790 = vunpack.c.h.bf16 %v215
    %v4791 = vunpack.c.l.bf16 %v216
    %v4792 = vunpack.c.h.bf16 %v216
    %v4793 = vunpack.c.l.bf16 %v217
    %v4794 = vunpack.c.h.bf16 %v217
    %v4795 = vunpack.c.l.bf16 %v218
    %v4796 = vunpack.c.h.bf16 %v218
    %v4797 = vunpack.c.l.bf16 %v219
    %v4798 = vunpack.c.h.bf16 %v219
    %v4799 = vunpack.c.l.bf16 %v220
    %v4800 = vunpack.c.h.bf16 %v220
    %v4801 = vunpack.c.l.bf16 %v221
    %v4802 = vunpack.c.h.bf16 %v221
    %v4803 = vunpack.c.l.bf16 %v222
    %v4804 = vunpack.c.h.bf16 %v222
    %v4805 = vunpack.c.l.bf16 %v223
    %v4806 = vunpack.c.h.bf16 %v223
    %v4807 = vunpack.c.l.bf16 %v224
    %v4808 = vunpack.c.h.bf16 %v224
    %v4809 = vunpack.c.l.bf16 %v225
    %v4810 = vunpack.c.h.bf16 %v225
    %v4811 = vunpack.c.l.bf16 %v226
    %v4812 = vunpack.c.h.bf16 %v226
    %v4813 = vunpack.c.l.bf16 %v227
    %v4814 = vunpack.c.h.bf16 %v227
    %v4815 = vunpack.c.l.bf16 %v228
    %v4816 = vunpack.c.h.bf16 %v228
    %v4817 = vunpack.c.l.bf16 %v229
    %v4818 = vunpack.c.h.bf16 %v229
    %v4819 = vunpack.c.l.bf16 %v230
    %v4820 = vunpack.c.h.bf16 %v230
    %v4821 = vunpack.c.l.bf16 %v231
    %v4822 = vunpack.c.h.bf16 %v231
    %v4823 = vunpack.c.l.bf16 %v232
    %v4824 = vunpack.c.h.bf16 %v232
    %v4825 = vunpack.c.l.bf16 %v233
    %v4826 = vunpack.c.h.bf16 %v233
    %v4827 = vunpack.c.l.bf16 %v234
    %v4828 = vunpack.c.h.bf16 %v234
    %v4829 = vunpack.c.l.bf16 %v235
    %v4830 = vunpack.c.h.bf16 %v235
    %v4831 = vunpack.c.l.bf16 %v236
    %v4832 = vunpack.c.h.bf16 %v236
    %v4833 = vunpack.c.l.bf16 %v237
    %v4834 = vunpack.c.h.bf16 %v237
    %v4835 = vunpack.c.l.bf16 %v238
    %v4836 = vunpack.c.h.bf16 %v238
    %v4837 = vunpack.c.l.bf16 %v239
    %v4838 = vunpack.c.h.bf16 %v239
    %v4839 = vunpack.c.l.bf16 %v240
    %v4840 = vunpack.c.h.bf16 %v240
    %v4841 = vunpack.c.l.bf16 %v241
    %v4842 = vunpack.c.h.bf16 %v241
    %v4843 = vunpack.c.l.bf16 %v242
    %v4844 = vunpack.c.h.bf16 %v242
    %v4845 = vunpack.c.l.bf16 %v243
    %v4846 = vunpack.c.h.bf16 %v243
    %v4847 = vunpack.c.l.bf16 %v244
    %v4848 = vunpack.c.h.bf16 %v244
    %v4849 = vunpack.c.l.bf16 %v245
    %v4850 = vunpack.c.h.bf16 %v245
    %v4851 = vunpack.c.l.bf16 %v246
    %v4852 = vunpack.c.h.bf16 %v246
    %v4853 = vunpack.c.l.bf16 %v247
    %v4854 = vunpack.c.h.bf16 %v247
    %v4855 = vunpack.c.l.bf16 %v248
    %v4856 = vunpack.c.h.bf16 %v248
    %v4857 = vunpack.c.l.bf16 %v249
    %v4858 = vunpack.c.h.bf16 %v249
    %v4859 = vunpack.c.l.bf16 %v250
    %v4860 = vunpack.c.h.bf16 %v250
    %v4861 = vunpack.c.l.bf16 %v251
    %v4862 = vunpack.c.h.bf16 %v251
    %v4863 = vunpack.c.l.bf16 %v252
    %v4864 = vunpack.c.h.bf16 %v252
    %v4865 = vunpack.c.l.bf16 %v253
    %v4866 = vunpack.c.h.bf16 %v253
    %v4867 = vunpack.c.l.bf16 %v254
    %v4868 = vunpack.c.h.bf16 %v254
    %v4869 = vunpack.c.l.bf16 %v255
    %v4870 = vunpack.c.h.bf16 %v255
    %v4871 = vunpack.c.l.bf16 %v256
    %v4872 = vunpack.c.h.bf16 %v256
    %v4873 = vunpack.c.l.bf16 %v257
    %v4874 = vunpack.c.h.bf16 %v257
    %v4875 = vunpack.c.l.bf16 %v258
    %v4876 = vunpack.c.h.bf16 %v258
    %v4877 = vunpack.c.l.bf16 %v259
    %v4878 = vunpack.c.h.bf16 %v259
    %v4879 = vunpack.c.l.bf16 %v260
    %v4880 = vunpack.c.h.bf16 %v260
    %v4881 = vunpack.c.l.bf16 %v261
    %v4882 = vunpack.c.h.bf16 %v261
    %v4883 = vunpack.c.l.bf16 %v262
    %v4884 = vunpack.c.h.bf16 %v262
    %v4885 = vunpack.c.l.bf16 %v263
    %v4886 = vunpack.c.h.bf16 %v263
    %v4887 = vunpack.c.l.bf16 %v264
    %v4888 = vunpack.c.h.bf16 %v264
    %v4889 = vunpack.c.l.bf16 %v265
    %v4890 = vunpack.c.h.bf16 %v265
    %v4891 = vadd.f32 %v4379, %v4635
    %v4892 = vadd.f32 %v4380, %v4636
    %v4893 = vadd.f32 %v4381, %v4637
    %v4894 = vadd.f32 %v4382, %v4638
    %v4895 = vadd.f32 %v4383, %v4639
    %v4896 = vadd.f32 %v4384, %v4640
    %v4897 = vadd.f32 %v4385, %v4641
    %v4898 = vadd.f32 %v4386, %v4642
    %v4899 = vadd.f32 %v4387, %v4643
    %v4900 = vadd.f32 %v4388, %v4644
    %v4901 = vadd.f32 %v4389, %v4645
    %v4902 = vadd.f32 %v4390, %v4646
    %v4903 = vadd.f32 %v4391, %v4647
    %v4904 = vadd.f32 %v4392, %v4648
    %v4905 = vadd.f32 %v4393, %v4649
    %v4906 = vadd.f32 %v4394, %v4650
    %v4907 = vadd.f32 %v4395, %v4651
    %v4908 = vadd.f32 %v4396, %v4652
    %v4909 = vadd.f32 %v4397, %v4653
    %v4910 = vadd.f32 %v4398, %v4654
    %v4911 = vadd.f32 %v4399, %v4655
    %v4912 = vadd.f32 %v4400, %v4656
    %v4913 = vadd.f32 %v4401, %v4657
    %v4914 = vadd.f32 %v4402, %v4658
    %v4915 = vadd.f32 %v4403, %v4659
    %v4916 = vadd.f32 %v4404, %v4660
    %v4917 = vadd.f32 %v4405, %v4661
    %v4918 = vadd.f32 %v4406, %v4662
    %v4919 = vadd.f32 %v4407, %v4663
    %v4920 = vadd.f32 %v4408, %v4664
    %v4921 = vadd.f32 %v4409, %v4665
    %v4922 = vadd.f32 %v4410, %v4666
    %v4923 = vadd.f32 %v4411, %v4667
    %v4924 = vadd.f32 %v4412, %v4668
    %v4925 = vadd.f32 %v4413, %v4669
    %v4926 = vadd.f32 %v4414, %v4670
    %v4927 = vadd.f32 %v4415, %v4671
    %v4928 = vadd.f32 %v4416, %v4672
    %v4929 = vadd.f32 %v4417, %v4673
    %v4930 = vadd.f32 %v4418, %v4674
    %v4931 = vadd.f32 %v4419, %v4675
    %v4932 = vadd.f32 %v4420, %v4676
    %v4933 = vadd.f32 %v4421, %v4677
    %v4934 = vadd.f32 %v4422, %v4678
    %v4935 = vadd.f32 %v4423, %v4679
    %v4936 = vadd.f32 %v4424, %v4680
    %v4937 = vadd.f32 %v4425, %v4681
    %v4938 = vadd.f32 %v4426, %v4682
    %v4939 = vadd.f32 %v4427, %v4683
    %v4940 = vadd.f32 %v4428, %v4684
    %v4941 = vadd.f32 %v4429, %v4685
    %v4942 = vadd.f32 %v4430, %v4686
    %v4943 = vadd.f32 %v4431, %v4687
    %v4944 = vadd.f32 %v4432, %v4688
    %v4945 = vadd.f32 %v4433, %v4689
    %v4946 = vadd.f32 %v4434, %v4690
    %v4947 = vadd.f32 %v4435, %v4691
    %v4948 = vadd.f32 %v4436, %v4692
    %v4949 = vadd.f32 %v4437, %v4693
    %v4950 = vadd.f32 %v4438, %v4694
    %v4951 = vadd.f32 %v4439, %v4695
    %v4952 = vadd.f32 %v4440, %v4696
    %v4953 = vadd.f32 %v4441, %v4697
    %v4954 = vadd.f32 %v4442, %v4698
    %v4955 = vadd.f32 %v4443, %v4699
    %v4956 = vadd.f32 %v4444, %v4700
    %v4957 = vadd.f32 %v4445, %v4701
    %v4958 = vadd.f32 %v4446, %v4702
    %v4959 = vadd.f32 %v4447, %v4703
    %v4960 = vadd.f32 %v4448, %v4704
    %v4961 = vadd.f32 %v4449, %v4705
    %v4962 = vadd.f32 %v4450, %v4706
    %v4963 = vadd.f32 %v4451, %v4707
    %v4964 = vadd.f32 %v4452, %v4708
    %v4965 = vadd.f32 %v4453, %v4709
    %v4966 = vadd.f32 %v4454, %v4710
    %v4967 = vadd.f32 %v4455, %v4711
    %v4968 = vadd.f32 %v4456, %v4712
    %v4969 = vadd.f32 %v4457, %v4713
    %v4970 = vadd.f32 %v4458, %v4714
    %v4971 = vadd.f32 %v4459, %v4715
    %v4972 = vadd.f32 %v4460, %v4716
    %v4973 = vadd.f32 %v4461, %v4717
    %v4974 = vadd.f32 %v4462, %v4718
    %v4975 = vadd.f32 %v4463, %v4719
    %v4976 = vadd.f32 %v4464, %v4720
    %v4977 = vadd.f32 %v4465, %v4721
    %v4978 = vadd.f32 %v4466, %v4722
    %v4979 = vadd.f32 %v4467, %v4723
    %v4980 = vadd.f32 %v4468, %v4724
    %v4981 = vadd.f32 %v4469, %v4725
    %v4982 = vadd.f32 %v4470, %v4726
    %v4983 = vadd.f32 %v4471, %v4727
    %v4984 = vadd.f32 %v4472, %v4728
    %v4985 = vadd.f32 %v4473, %v4729
    %v4986 = vadd.f32 %v4474, %v4730
    %v4987 = vadd.f32 %v4475, %v4731
    %v4988 = vadd.f32 %v4476, %v4732
    %v4989 = vadd.f32 %v4477, %v4733
    %v4990 = vadd.f32 %v4478, %v4734
    %v4991 = vadd.f32 %v4479, %v4735
    %v4992 = vadd.f32 %v4480, %v4736
    %v4993 = vadd.f32 %v4481, %v4737
    %v4994 = vadd.f32 %v4482, %v4738
    %v4995 = vadd.f32 %v4483, %v4739
    %v4996 = vadd.f32 %v4484, %v4740
    %v4997 = vadd.f32 %v4485, %v4741
    %v4998 = vadd.f32 %v4486, %v4742
    %v4999 = vadd.f32 %v4487, %v4743
    %v5000 = vadd.f32 %v4488, %v4744
    %v5001 = vadd.f32 %v4489, %v4745
    %v5002 = vadd.f32 %v4490, %v4746
    %v5003 = vadd.f32 %v4491, %v4747
    %v5004 = vadd.f32 %v4492, %v4748
    %v5005 = vadd.f32 %v4493, %v4749
    %v5006 = vadd.f32 %v4494, %v4750
    %v5007 = vadd.f32 %v4495, %v4751
    %v5008 = vadd.f32 %v4496, %v4752
    %v5009 = vadd.f32 %v4497, %v4753
    %v5010 = vadd.f32 %v4498, %v4754
    %v5011 = vadd.f32 %v4499, %v4755
    %v5012 = vadd.f32 %v4500, %v4756
    %v5013 = vadd.f32 %v4501, %v4757
    %v5014 = vadd.f32 %v4502, %v4758
    %v5015 = vadd.f32 %v4503, %v4759
    %v5016 = vadd.f32 %v4504, %v4760
    %v5017 = vadd.f32 %v4505, %v4761
    %v5018 = vadd.f32 %v4506, %v4762
    %v5019 = vadd.f32 %v4507, %v4763
    %v5020 = vadd.f32 %v4508, %v4764
    %v5021 = vadd.f32 %v4509, %v4765
    %v5022 = vadd.f32 %v4510, %v4766
    %v5023 = vadd.f32 %v4511, %v4767
    %v5024 = vadd.f32 %v4512, %v4768
    %v5025 = vadd.f32 %v4513, %v4769
    %v5026 = vadd.f32 %v4514, %v4770
    %v5027 = vadd.f32 %v4515, %v4771
    %v5028 = vadd.f32 %v4516, %v4772
    %v5029 = vadd.f32 %v4517, %v4773
    %v5030 = vadd.f32 %v4518, %v4774
    %v5031 = vadd.f32 %v4519, %v4775
    %v5032 = vadd.f32 %v4520, %v4776
    %v5033 = vadd.f32 %v4521, %v4777
    %v5034 = vadd.f32 %v4522, %v4778
    %v5035 = vadd.f32 %v4523, %v4779
    %v5036 = vadd.f32 %v4524, %v4780
    %v5037 = vadd.f32 %v4525, %v4781
    %v5038 = vadd.f32 %v4526, %v4782
    %v5039 = vadd.f32 %v4527, %v4783
    %v5040 = vadd.f32 %v4528, %v4784
    %v5041 = vadd.f32 %v4529, %v4785
    %v5042 = vadd.f32 %v4530, %v4786
    %v5043 = vadd.f32 %v4531, %v4787
    %v5044 = vadd.f32 %v4532, %v4788
    %v5045 = vadd.f32 %v4533, %v4789
    %v5046 = vadd.f32 %v4534, %v4790
    %v5047 = vadd.f32 %v4535, %v4791
    %v5048 = vadd.f32 %v4536, %v4792
    %v5049 = vadd.f32 %v4537, %v4793
    %v5050 = vadd.f32 %v4538, %v4794
    %v5051 = vadd.f32 %v4539, %v4795
    %v5052 = vadd.f32 %v4540, %v4796
    %v5053 = vadd.f32 %v4541, %v4797
    %v5054 = vadd.f32 %v4542, %v4798
    %v5055 = vadd.f32 %v4543, %v4799
    %v5056 = vadd.f32 %v4544, %v4800
    %v5057 = vadd.f32 %v4545, %v4801
    %v5058 = vadd.f32 %v4546, %v4802
    %v5059 = vadd.f32 %v4547, %v4803
    %v5060 = vadd.f32 %v4548, %v4804
    %v5061 = vadd.f32 %v4549, %v4805
    %v5062 = vadd.f32 %v4550, %v4806
    %v5063 = vadd.f32 %v4551, %v4807
    %v5064 = vadd.f32 %v4552, %v4808
    %v5065 = vadd.f32 %v4553, %v4809
    %v5066 = vadd.f32 %v4554, %v4810
    %v5067 = vadd.f32 %v4555, %v4811
    %v5068 = vadd.f32 %v4556, %v4812
    %v5069 = vadd.f32 %v4557, %v4813
    %v5070 = vadd.f32 %v4558, %v4814
    %v5071 = vadd.f32 %v4559, %v4815
    %v5072 = vadd.f32 %v4560, %v4816
    %v5073 = vadd.f32 %v4561, %v4817
    %v5074 = vadd.f32 %v4562, %v4818
    %v5075 = vadd.f32 %v4563, %v4819
    %v5076 = vadd.f32 %v4564, %v4820
    %v5077 = vadd.f32 %v4565, %v4821
    %v5078 = vadd.f32 %v4566, %v4822
    %v5079 = vadd.f32 %v4567, %v4823
    %v5080 = vadd.f32 %v4568, %v4824
    %v5081 = vadd.f32 %v4569, %v4825
    %v5082 = vadd.f32 %v4570, %v4826
    %v5083 = vadd.f32 %v4571, %v4827
    %v5084 = vadd.f32 %v4572, %v4828
    %v5085 = vadd.f32 %v4573, %v4829
    %v5086 = vadd.f32 %v4574, %v4830
    %v5087 = vadd.f32 %v4575, %v4831
    %v5088 = vadd.f32 %v4576, %v4832
    %v5089 = vadd.f32 %v4577, %v4833
    %v5090 = vadd.f32 %v4578, %v4834
    %v5091 = vadd.f32 %v4579, %v4835
    %v5092 = vadd.f32 %v4580, %v4836
    %v5093 = vadd.f32 %v4581, %v4837
    %v5094 = vadd.f32 %v4582, %v4838
    %v5095 = vadd.f32 %v4583, %v4839
    %v5096 = vadd.f32 %v4584, %v4840
    %v5097 = vadd.f32 %v4585, %v4841
    %v5098 = vadd.f32 %v4586, %v4842
    %v5099 = vadd.f32 %v4587, %v4843
    %v5100 = vadd.f32 %v4588, %v4844
    %v5101 = vadd.f32 %v4589, %v4845
    %v5102 = vadd.f32 %v4590, %v4846
    %v5103 = vadd.f32 %v4591, %v4847
    %v5104 = vadd.f32 %v4592, %v4848
    %v5105 = vadd.f32 %v4593, %v4849
    %v5106 = vadd.f32 %v4594, %v4850
    %v5107 = vadd.f32 %v4595, %v4851
    %v5108 = vadd.f32 %v4596, %v4852
    %v5109 = vadd.f32 %v4597, %v4853
    %v5110 = vadd.f32 %v4598, %v4854
    %v5111 = vadd.f32 %v4599, %v4855
    %v5112 = vadd.f32 %v4600, %v4856
    %v5113 = vadd.f32 %v4601, %v4857
    %v5114 = vadd.f32 %v4602, %v4858
    %v5115 = vadd.f32 %v4603, %v4859
    %v5116 = vadd.f32 %v4604, %v4860
    %v5117 = vadd.f32 %v4605, %v4861
    %v5118 = vadd.f32 %v4606, %v4862
    %v5119 = vadd.f32 %v4607, %v4863
    %v5120 = vadd.f32 %v4608, %v4864
    %v5121 = vadd.f32 %v4609, %v4865
    %v5122 = vadd.f32 %v4610, %v4866
    %v5123 = vadd.f32 %v4611, %v4867
    %v5124 = vadd.f32 %v4612, %v4868
    %v5125 = vadd.f32 %v4613, %v4869
    %v5126 = vadd.f32 %v4614, %v4870
    %v5127 = vadd.f32 %v4615, %v4871
    %v5128 = vadd.f32 %v4616, %v4872
    %v5129 = vadd.f32 %v4617, %v4873
    %v5130 = vadd.f32 %v4618, %v4874
    %v5131 = vadd.f32 %v4619, %v4875
    %v5132 = vadd.f32 %v4620, %v4876
    %v5133 = vadd.f32 %v4621, %v4877
    %v5134 = vadd.f32 %v4622, %v4878
    %v5135 = vadd.f32 %v4623, %v4879
    %v5136 = vadd.f32 %v4624, %v4880
    %v5137 = vadd.f32 %v4625, %v4881
    %v5138 = vadd.f32 %v4626, %v4882
    %v5139 = vadd.f32 %v4627, %v4883
    %v5140 = vadd.f32 %v4628, %v4884
    %v5141 = vadd.f32 %v4629, %v4885
    %v5142 = vadd.f32 %v4630, %v4886
    %v5143 = vadd.f32 %v4631, %v4887
    %v5144 = vadd.f32 %v4632, %v4888
    %v5145 = vadd.f32 %v4633, %v4889
    %v5146 = vadd.f32 %v4634, %v4890
    %v5147 = vpack.c.bf16 %v4892, %v4891
    %v5148 = vpack.c.bf16 %v4894, %v4893
    %v5149 = vpack.c.bf16 %v4896, %v4895
    %v5150 = vpack.c.bf16 %v4898, %v4897
    %v5151 = vpack.c.bf16 %v4900, %v4899
    %v5152 = vpack.c.bf16 %v4902, %v4901
    %v5153 = vpack.c.bf16 %v4904, %v4903
    %v5154 = vpack.c.bf16 %v4906, %v4905
    %v5155 = vpack.c.bf16 %v4908, %v4907
    %v5156 = vpack.c.bf16 %v4910, %v4909
    %v5157 = vpack.c.bf16 %v4912, %v4911
    %v5158 = vpack.c.bf16 %v4914, %v4913
    %v5159 = vpack.c.bf16 %v4916, %v4915
    %v5160 = vpack.c.bf16 %v4918, %v4917
    %v5161 = vpack.c.bf16 %v4920, %v4919
    %v5162 = vpack.c.bf16 %v4922, %v4921
    %v5163 = vpack.c.bf16 %v4924, %v4923
    %v5164 = vpack.c.bf16 %v4926, %v4925
    %v5165 = vpack.c.bf16 %v4928, %v4927
    %v5166 = vpack.c.bf16 %v4930, %v4929
    %v5167 = vpack.c.bf16 %v4932, %v4931
    %v5168 = vpack.c.bf16 %v4934, %v4933
    %v5169 = vpack.c.bf16 %v4936, %v4935
    %v5170 = vpack.c.bf16 %v4938, %v4937
    %v5171 = vpack.c.bf16 %v4940, %v4939
    %v5172 = vpack.c.bf16 %v4942, %v4941
    %v5173 = vpack.c.bf16 %v4944, %v4943
    %v5174 = vpack.c.bf16 %v4946, %v4945
    %v5175 = vpack.c.bf16 %v4948, %v4947
    %v5176 = vpack.c.bf16 %v4950, %v4949
    %v5177 = vpack.c.bf16 %v4952, %v4951
    %v5178 = vpack.c.bf16 %v4954, %v4953
    %v5179 = vpack.c.bf16 %v4956, %v4955
    %v5180 = vpack.c.bf16 %v4958, %v4957
    %v5181 = vpack.c.bf16 %v4960, %v4959
    %v5182 = vpack.c.bf16 %v4962, %v4961
    %v5183 = vpack.c.bf16 %v4964, %v4963
    %v5184 = vpack.c.bf16 %v4966, %v4965
    %v5185 = vpack.c.bf16 %v4968, %v4967
    %v5186 = vpack.c.bf16 %v4970, %v4969
    %v5187 = vpack.c.bf16 %v4972, %v4971
    %v5188 = vpack.c.bf16 %v4974, %v4973
    %v5189 = vpack.c.bf16 %v4976, %v4975
    %v5190 = vpack.c.bf16 %v4978, %v4977
    %v5191 = vpack.c.bf16 %v4980, %v4979
    %v5192 = vpack.c.bf16 %v4982, %v4981
    %v5193 = vpack.c.bf16 %v4984, %v4983
    %v5194 = vpack.c.bf16 %v4986, %v4985
    %v5195 = vpack.c.bf16 %v4988, %v4987
    %v5196 = vpack.c.bf16 %v4990, %v4989
    %v5197 = vpack.c.bf16 %v4992, %v4991
    %v5198 = vpack.c.bf16 %v4994, %v4993
    %v5199 = vpack.c.bf16 %v4996, %v4995
    %v5200 = vpack.c.bf16 %v4998, %v4997
    %v5201 = vpack.c.bf16 %v5000, %v4999
    %v5202 = vpack.c.bf16 %v5002, %v5001
    %v5203 = vpack.c.bf16 %v5004, %v5003
    %v5204 = vpack.c.bf16 %v5006, %v5005
    %v5205 = vpack.c.bf16 %v5008, %v5007
    %v5206 = vpack.c.bf16 %v5010, %v5009
    %v5207 = vpack.c.bf16 %v5012, %v5011
    %v5208 = vpack.c.bf16 %v5014, %v5013
    %v5209 = vpack.c.bf16 %v5016, %v5015
    %v5210 = vpack.c.bf16 %v5018, %v5017
    %v5211 = vpack.c.bf16 %v5020, %v5019
    %v5212 = vpack.c.bf16 %v5022, %v5021
    %v5213 = vpack.c.bf16 %v5024, %v5023
    %v5214 = vpack.c.bf16 %v5026, %v5025
    %v5215 = vpack.c.bf16 %v5028, %v5027
    %v5216 = vpack.c.bf16 %v5030, %v5029
    %v5217 = vpack.c.bf16 %v5032, %v5031
    %v5218 = vpack.c.bf16 %v5034, %v5033
    %v5219 = vpack.c.bf16 %v5036, %v5035
    %v5220 = vpack.c.bf16 %v5038, %v5037
    %v5221 = vpack.c.bf16 %v5040, %v5039
    %v5222 = vpack.c.bf16 %v5042, %v5041
    %v5223 = vpack.c.bf16 %v5044, %v5043
    %v5224 = vpack.c.bf16 %v5046, %v5045
    %v5225 = vpack.c.bf16 %v5048, %v5047
    %v5226 = vpack.c.bf16 %v5050, %v5049
    %v5227 = vpack.c.bf16 %v5052, %v5051
    %v5228 = vpack.c.bf16 %v5054, %v5053
    %v5229 = vpack.c.bf16 %v5056, %v5055
    %v5230 = vpack.c.bf16 %v5058, %v5057
    %v5231 = vpack.c.bf16 %v5060, %v5059
    %v5232 = vpack.c.bf16 %v5062, %v5061
    %v5233 = vpack.c.bf16 %v5064, %v5063
    %v5234 = vpack.c.bf16 %v5066, %v5065
    %v5235 = vpack.c.bf16 %v5068, %v5067
    %v5236 = vpack.c.bf16 %v5070, %v5069
    %v5237 = vpack.c.bf16 %v5072, %v5071
    %v5238 = vpack.c.bf16 %v5074, %v5073
    %v5239 = vpack.c.bf16 %v5076, %v5075
    %v5240 = vpack.c.bf16 %v5078, %v5077
    %v5241 = vpack.c.bf16 %v5080, %v5079
    %v5242 = vpack.c.bf16 %v5082, %v5081
    %v5243 = vpack.c.bf16 %v5084, %v5083
    %v5244 = vpack.c.bf16 %v5086, %v5085
    %v5245 = vpack.c.bf16 %v5088, %v5087
    %v5246 = vpack.c.bf16 %v5090, %v5089
    %v5247 = vpack.c.bf16 %v5092, %v5091
    %v5248 = vpack.c.bf16 %v5094, %v5093
    %v5249 = vpack.c.bf16 %v5096, %v5095
    %v5250 = vpack.c.bf16 %v5098, %v5097
    %v5251 = vpack.c.bf16 %v5100, %v5099
    %v5252 = vpack.c.bf16 %v5102, %v5101
    %v5253 = vpack.c.bf16 %v5104, %v5103
    %v5254 = vpack.c.bf16 %v5106, %v5105
    %v5255 = vpack.c.bf16 %v5108, %v5107
    %v5256 = vpack.c.bf16 %v5110, %v5109
    %v5257 = vpack.c.bf16 %v5112, %v5111
    %v5258 = vpack.c.bf16 %v5114, %v5113
    %v5259 = vpack.c.bf16 %v5116, %v5115
    %v5260 = vpack.c.bf16 %v5118, %v5117
    %v5261 = vpack.c.bf16 %v5120, %v5119
    %v5262 = vpack.c.bf16 %v5122, %v5121
    %v5263 = vpack.c.bf16 %v5124, %v5123
    %v5264 = vpack.c.bf16 %v5126, %v5125
    %v5265 = vpack.c.bf16 %v5128, %v5127
    %v5266 = vpack.c.bf16 %v5130, %v5129
    %v5267 = vpack.c.bf16 %v5132, %v5131
    %v5268 = vpack.c.bf16 %v5134, %v5133
    %v5269 = vpack.c.bf16 %v5136, %v5135
    %v5270 = vpack.c.bf16 %v5138, %v5137
    %v5271 = vpack.c.bf16 %v5140, %v5139
    %v5272 = vpack.c.bf16 %v5142, %v5141
    %v5273 = vpack.c.bf16 %v5144, %v5143
    %v5274 = vpack.c.bf16 %v5146, %v5145
    %v5275 = vunpack.c.l.bf16 %v5147
    %v5276 = vunpack.c.h.bf16 %v5147
    %v5277 = vunpack.c.l.bf16 %v5148
    %v5278 = vunpack.c.h.bf16 %v5148
    %v5279 = vunpack.c.l.bf16 %v5149
    %v5280 = vunpack.c.h.bf16 %v5149
    %v5281 = vunpack.c.l.bf16 %v5150
    %v5282 = vunpack.c.h.bf16 %v5150
    %v5283 = vunpack.c.l.bf16 %v5151
    %v5284 = vunpack.c.h.bf16 %v5151
    %v5285 = vunpack.c.l.bf16 %v5152
    %v5286 = vunpack.c.h.bf16 %v5152
    %v5287 = vunpack.c.l.bf16 %v5153
    %v5288 = vunpack.c.h.bf16 %v5153
    %v5289 = vunpack.c.l.bf16 %v5154
    %v5290 = vunpack.c.h.bf16 %v5154
    %v5291 = vunpack.c.l.bf16 %v5155
    %v5292 = vunpack.c.h.bf16 %v5155
    %v5293 = vunpack.c.l.bf16 %v5156
    %v5294 = vunpack.c.h.bf16 %v5156
    %v5295 = vunpack.c.l.bf16 %v5157
    %v5296 = vunpack.c.h.bf16 %v5157
    %v5297 = vunpack.c.l.bf16 %v5158
    %v5298 = vunpack.c.h.bf16 %v5158
    %v5299 = vunpack.c.l.bf16 %v5159
    %v5300 = vunpack.c.h.bf16 %v5159
    %v5301 = vunpack.c.l.bf16 %v5160
    %v5302 = vunpack.c.h.bf16 %v5160
    %v5303 = vunpack.c.l.bf16 %v5161
    %v5304 = vunpack.c.h.bf16 %v5161
    %v5305 = vunpack.c.l.bf16 %v5162
    %v5306 = vunpack.c.h.bf16 %v5162
    %v5307 = vunpack.c.l.bf16 %v5163
    %v5308 = vunpack.c.h.bf16 %v5163
    %v5309 = vunpack.c.l.bf16 %v5164
    %v5310 = vunpack.c.h.bf16 %v5164
    %v5311 = vunpack.c.l.bf16 %v5165
    %v5312 = vunpack.c.h.bf16 %v5165
    %v5313 = vunpack.c.l.bf16 %v5166
    %v5314 = vunpack.c.h.bf16 %v5166
    %v5315 = vunpack.c.l.bf16 %v5167
    %v5316 = vunpack.c.h.bf16 %v5167
    %v5317 = vunpack.c.l.bf16 %v5168
    %v5318 = vunpack.c.h.bf16 %v5168
    %v5319 = vunpack.c.l.bf16 %v5169
    %v5320 = vunpack.c.h.bf16 %v5169
    %v5321 = vunpack.c.l.bf16 %v5170
    %v5322 = vunpack.c.h.bf16 %v5170
    %v5323 = vunpack.c.l.bf16 %v5171
    %v5324 = vunpack.c.h.bf16 %v5171
    %v5325 = vunpack.c.l.bf16 %v5172
    %v5326 = vunpack.c.h.bf16 %v5172
    %v5327 = vunpack.c.l.bf16 %v5173
    %v5328 = vunpack.c.h.bf16 %v5173
    %v5329 = vunpack.c.l.bf16 %v5174
    %v5330 = vunpack.c.h.bf16 %v5174
    %v5331 = vunpack.c.l.bf16 %v5175
    %v5332 = vunpack.c.h.bf16 %v5175
    %v5333 = vunpack.c.l.bf16 %v5176
    %v5334 = vunpack.c.h.bf16 %v5176
    %v5335 = vunpack.c.l.bf16 %v5177
    %v5336 = vunpack.c.h.bf16 %v5177
    %v5337 = vunpack.c.l.bf16 %v5178
    %v5338 = vunpack.c.h.bf16 %v5178
    %v5339 = vunpack.c.l.bf16 %v5179
    %v5340 = vunpack.c.h.bf16 %v5179
    %v5341 = vunpack.c.l.bf16 %v5180
    %v5342 = vunpack.c.h.bf16 %v5180
    %v5343 = vunpack.c.l.bf16 %v5181
    %v5344 = vunpack.c.h.bf16 %v5181
    %v5345 = vunpack.c.l.bf16 %v5182
    %v5346 = vunpack.c.h.bf16 %v5182
    %v5347 = vunpack.c.l.bf16 %v5183
    %v5348 = vunpack.c.h.bf16 %v5183
    %v5349 = vunpack.c.l.bf16 %v5184
    %v5350 = vunpack.c.h.bf16 %v5184
    %v5351 = vunpack.c.l.bf16 %v5185
    %v5352 = vunpack.c.h.bf16 %v5185
    %v5353 = vunpack.c.l.bf16 %v5186
    %v5354 = vunpack.c.h.bf16 %v5186
    %v5355 = vunpack.c.l.bf16 %v5187
    %v5356 = vunpack.c.h.bf16 %v5187
    %v5357 = vunpack.c.l.bf16 %v5188
    %v5358 = vunpack.c.h.bf16 %v5188
    %v5359 = vunpack.c.l.bf16 %v5189
    %v5360 = vunpack.c.h.bf16 %v5189
    %v5361 = vunpack.c.l.bf16 %v5190
    %v5362 = vunpack.c.h.bf16 %v5190
    %v5363 = vunpack.c.l.bf16 %v5191
    %v5364 = vunpack.c.h.bf16 %v5191
    %v5365 = vunpack.c.l.bf16 %v5192
    %v5366 = vunpack.c.h.bf16 %v5192
    %v5367 = vunpack.c.l.bf16 %v5193
    %v5368 = vunpack.c.h.bf16 %v5193
    %v5369 = vunpack.c.l.bf16 %v5194
    %v5370 = vunpack.c.h.bf16 %v5194
    %v5371 = vunpack.c.l.bf16 %v5195
    %v5372 = vunpack.c.h.bf16 %v5195
    %v5373 = vunpack.c.l.bf16 %v5196
    %v5374 = vunpack.c.h.bf16 %v5196
    %v5375 = vunpack.c.l.bf16 %v5197
    %v5376 = vunpack.c.h.bf16 %v5197
    %v5377 = vunpack.c.l.bf16 %v5198
    %v5378 = vunpack.c.h.bf16 %v5198
    %v5379 = vunpack.c.l.bf16 %v5199
    %v5380 = vunpack.c.h.bf16 %v5199
    %v5381 = vunpack.c.l.bf16 %v5200
    %v5382 = vunpack.c.h.bf16 %v5200
    %v5383 = vunpack.c.l.bf16 %v5201
    %v5384 = vunpack.c.h.bf16 %v5201
    %v5385 = vunpack.c.l.bf16 %v5202
    %v5386 = vunpack.c.h.bf16 %v5202
    %v5387 = vunpack.c.l.bf16 %v5203
    %v5388 = vunpack.c.h.bf16 %v5203
    %v5389 = vunpack.c.l.bf16 %v5204
    %v5390 = vunpack.c.h.bf16 %v5204
    %v5391 = vunpack.c.l.bf16 %v5205
    %v5392 = vunpack.c.h.bf16 %v5205
    %v5393 = vunpack.c.l.bf16 %v5206
    %v5394 = vunpack.c.h.bf16 %v5206
    %v5395 = vunpack.c.l.bf16 %v5207
    %v5396 = vunpack.c.h.bf16 %v5207
    %v5397 = vunpack.c.l.bf16 %v5208
    %v5398 = vunpack.c.h.bf16 %v5208
    %v5399 = vunpack.c.l.bf16 %v5209
    %v5400 = vunpack.c.h.bf16 %v5209
    %v5401 = vunpack.c.l.bf16 %v5210
    %v5402 = vunpack.c.h.bf16 %v5210
    %v5403 = vunpack.c.l.bf16 %v5211
    %v5404 = vunpack.c.h.bf16 %v5211
    %v5405 = vunpack.c.l.bf16 %v5212
    %v5406 = vunpack.c.h.bf16 %v5212
    %v5407 = vunpack.c.l.bf16 %v5213
    %v5408 = vunpack.c.h.bf16 %v5213
    %v5409 = vunpack.c.l.bf16 %v5214
    %v5410 = vunpack.c.h.bf16 %v5214
    %v5411 = vunpack.c.l.bf16 %v5215
    %v5412 = vunpack.c.h.bf16 %v5215
    %v5413 = vunpack.c.l.bf16 %v5216
    %v5414 = vunpack.c.h.bf16 %v5216
    %v5415 = vunpack.c.l.bf16 %v5217
    %v5416 = vunpack.c.h.bf16 %v5217
    %v5417 = vunpack.c.l.bf16 %v5218
    %v5418 = vunpack.c.h.bf16 %v5218
    %v5419 = vunpack.c.l.bf16 %v5219
    %v5420 = vunpack.c.h.bf16 %v5219
    %v5421 = vunpack.c.l.bf16 %v5220
    %v5422 = vunpack.c.h.bf16 %v5220
    %v5423 = vunpack.c.l.bf16 %v5221
    %v5424 = vunpack.c.h.bf16 %v5221
    %v5425 = vunpack.c.l.bf16 %v5222
    %v5426 = vunpack.c.h.bf16 %v5222
    %v5427 = vunpack.c.l.bf16 %v5223
    %v5428 = vunpack.c.h.bf16 %v5223
    %v5429 = vunpack.c.l.bf16 %v5224
    %v5430 = vunpack.c.h.bf16 %v5224
    %v5431 = vunpack.c.l.bf16 %v5225
    %v5432 = vunpack.c.h.bf16 %v5225
    %v5433 = vunpack.c.l.bf16 %v5226
    %v5434 = vunpack.c.h.bf16 %v5226
    %v5435 = vunpack.c.l.bf16 %v5227
    %v5436 = vunpack.c.h.bf16 %v5227
    %v5437 = vunpack.c.l.bf16 %v5228
    %v5438 = vunpack.c.h.bf16 %v5228
    %v5439 = vunpack.c.l.bf16 %v5229
    %v5440 = vunpack.c.h.bf16 %v5229
    %v5441 = vunpack.c.l.bf16 %v5230
    %v5442 = vunpack.c.h.bf16 %v5230
    %v5443 = vunpack.c.l.bf16 %v5231
    %v5444 = vunpack.c.h.bf16 %v5231
    %v5445 = vunpack.c.l.bf16 %v5232
    %v5446 = vunpack.c.h.bf16 %v5232
    %v5447 = vunpack.c.l.bf16 %v5233
    %v5448 = vunpack.c.h.bf16 %v5233
    %v5449 = vunpack.c.l.bf16 %v5234
    %v5450 = vunpack.c.h.bf16 %v5234
    %v5451 = vunpack.c.l.bf16 %v5235
    %v5452 = vunpack.c.h.bf16 %v5235
    %v5453 = vunpack.c.l.bf16 %v5236
    %v5454 = vunpack.c.h.bf16 %v5236
    %v5455 = vunpack.c.l.bf16 %v5237
    %v5456 = vunpack.c.h.bf16 %v5237
    %v5457 = vunpack.c.l.bf16 %v5238
    %v5458 = vunpack.c.h.bf16 %v5238
    %v5459 = vunpack.c.l.bf16 %v5239
    %v5460 = vunpack.c.h.bf16 %v5239
    %v5461 = vunpack.c.l.bf16 %v5240
    %v5462 = vunpack.c.h.bf16 %v5240
    %v5463 = vunpack.c.l.bf16 %v5241
    %v5464 = vunpack.c.h.bf16 %v5241
    %v5465 = vunpack.c.l.bf16 %v5242
    %v5466 = vunpack.c.h.bf16 %v5242
    %v5467 = vunpack.c.l.bf16 %v5243
    %v5468 = vunpack.c.h.bf16 %v5243
    %v5469 = vunpack.c.l.bf16 %v5244
    %v5470 = vunpack.c.h.bf16 %v5244
    %v5471 = vunpack.c.l.bf16 %v5245
    %v5472 = vunpack.c.h.bf16 %v5245
    %v5473 = vunpack.c.l.bf16 %v5246
    %v5474 = vunpack.c.h.bf16 %v5246
    %v5475 = vunpack.c.l.bf16 %v5247
    %v5476 = vunpack.c.h.bf16 %v5247
    %v5477 = vunpack.c.l.bf16 %v5248
    %v5478 = vunpack.c.h.bf16 %v5248
    %v5479 = vunpack.c.l.bf16 %v5249
    %v5480 = vunpack.c.h.bf16 %v5249
    %v5481 = vunpack.c.l.bf16 %v5250
    %v5482 = vunpack.c.h.bf16 %v5250
    %v5483 = vunpack.c.l.bf16 %v5251
    %v5484 = vunpack.c.h.bf16 %v5251
    %v5485 = vunpack.c.l.bf16 %v5252
    %v5486 = vunpack.c.h.bf16 %v5252
    %v5487 = vunpack.c.l.bf16 %v5253
    %v5488 = vunpack.c.h.bf16 %v5253
    %v5489 = vunpack.c.l.bf16 %v5254
    %v5490 = vunpack.c.h.bf16 %v5254
    %v5491 = vunpack.c.l.bf16 %v5255
    %v5492 = vunpack.c.h.bf16 %v5255
    %v5493 = vunpack.c.l.bf16 %v5256
    %v5494 = vunpack.c.h.bf16 %v5256
    %v5495 = vunpack.c.l.bf16 %v5257
    %v5496 = vunpack.c.h.bf16 %v5257
    %v5497 = vunpack.c.l.bf16 %v5258
    %v5498 = vunpack.c.h.bf16 %v5258
    %v5499 = vunpack.c.l.bf16 %v5259
    %v5500 = vunpack.c.h.bf16 %v5259
    %v5501 = vunpack.c.l.bf16 %v5260
    %v5502 = vunpack.c.h.bf16 %v5260
    %v5503 = vunpack.c.l.bf16 %v5261
    %v5504 = vunpack.c.h.bf16 %v5261
    %v5505 = vunpack.c.l.bf16 %v5262
    %v5506 = vunpack.c.h.bf16 %v5262
    %v5507 = vunpack.c.l.bf16 %v5263
    %v5508 = vunpack.c.h.bf16 %v5263
    %v5509 = vunpack.c.l.bf16 %v5264
    %v5510 = vunpack.c.h.bf16 %v5264
    %v5511 = vunpack.c.l.bf16 %v5265
    %v5512 = vunpack.c.h.bf16 %v5265
    %v5513 = vunpack.c.l.bf16 %v5266
    %v5514 = vunpack.c.h.bf16 %v5266
    %v5515 = vunpack.c.l.bf16 %v5267
    %v5516 = vunpack.c.h.bf16 %v5267
    %v5517 = vunpack.c.l.bf16 %v5268
    %v5518 = vunpack.c.h.bf16 %v5268
    %v5519 = vunpack.c.l.bf16 %v5269
    %v5520 = vunpack.c.h.bf16 %v5269
    %v5521 = vunpack.c.l.bf16 %v5270
    %v5522 = vunpack.c.h.bf16 %v5270
    %v5523 = vunpack.c.l.bf16 %v5271
    %v5524 = vunpack.c.h.bf16 %v5271
    %v5525 = vunpack.c.l.bf16 %v5272
    %v5526 = vunpack.c.h.bf16 %v5272
    %v5527 = vunpack.c.l.bf16 %v5273
    %v5528 = vunpack.c.h.bf16 %v5273
    %v5529 = vunpack.c.l.bf16 %v5274
    %v5530 = vunpack.c.h.bf16 %v5274
    %v5531 = vmul.f32 %v5275, 0.20019531
    %v5532 = vmul.f32 %v5276, 0.20019531
    %v5533 = vmul.f32 %v5277, 0.20019531
    %v5534 = vmul.f32 %v5278, 0.20019531
    %v5535 = vmul.f32 %v5279, 0.20019531
    %v5536 = vmul.f32 %v5280, 0.20019531
    %v5537 = vmul.f32 %v5281, 0.20019531
    %v5538 = vmul.f32 %v5282, 0.20019531
    %v5539 = vmul.f32 %v5283, 0.20019531
    %v5540 = vmul.f32 %v5284, 0.20019531
    %v5541 = vmul.f32 %v5285, 0.20019531
    %v5542 = vmul.f32 %v5286, 0.20019531
    %v5543 = vmul.f32 %v5287, 0.20019531
    %v5544 = vmul.f32 %v5288, 0.20019531
    %v5545 = vmul.f32 %v5289, 0.20019531
    %v5546 = vmul.f32 %v5290, 0.20019531
    %v5547 = vmul.f32 %v5291, 0.20019531
    %v5548 = vmul.f32 %v5292, 0.20019531
    %v5549 = vmul.f32 %v5293, 0.20019531
    %v5550 = vmul.f32 %v5294, 0.20019531
    %v5551 = vmul.f32 %v5295, 0.20019531
    %v5552 = vmul.f32 %v5296, 0.20019531
    %v5553 = vmul.f32 %v5297, 0.20019531
    %v5554 = vmul.f32 %v5298, 0.20019531
    %v5555 = vmul.f32 %v5299, 0.20019531
    %v5556 = vmul.f32 %v5300, 0.20019531
    %v5557 = vmul.f32 %v5301, 0.20019531
    %v5558 = vmul.f32 %v5302, 0.20019531
    %v5559 = vmul.f32 %v5303, 0.20019531
    %v5560 = vmul.f32 %v5304, 0.20019531
    %v5561 = vmul.f32 %v5305, 0.20019531
    %v5562 = vmul.f32 %v5306, 0.20019531
    %v5563 = vmul.f32 %v5307, 0.20019531
    %v5564 = vmul.f32 %v5308, 0.20019531
    %v5565 = vmul.f32 %v5309, 0.20019531
    %v5566 = vmul.f32 %v5310, 0.20019531
    %v5567 = vmul.f32 %v5311, 0.20019531
    %v5568 = vmul.f32 %v5312, 0.20019531
    %v5569 = vmul.f32 %v5313, 0.20019531
    %v5570 = vmul.f32 %v5314, 0.20019531
    %v5571 = vmul.f32 %v5315, 0.20019531
    %v5572 = vmul.f32 %v5316, 0.20019531
    %v5573 = vmul.f32 %v5317, 0.20019531
    %v5574 = vmul.f32 %v5318, 0.20019531
    %v5575 = vmul.f32 %v5319, 0.20019531
    %v5576 = vmul.f32 %v5320, 0.20019531
    %v5577 = vmul.f32 %v5321, 0.20019531
    %v5578 = vmul.f32 %v5322, 0.20019531
    %v5579 = vmul.f32 %v5323, 0.20019531
    %v5580 = vmul.f32 %v5324, 0.20019531
    %v5581 = vmul.f32 %v5325, 0.20019531
    %v5582 = vmul.f32 %v5326, 0.20019531
    %v5583 = vmul.f32 %v5327, 0.20019531
    %v5584 = vmul.f32 %v5328, 0.20019531
    %v5585 = vmul.f32 %v5329, 0.20019531
    %v5586 = vmul.f32 %v5330, 0.20019531
    %v5587 = vmul.f32 %v5331, 0.20019531
    %v5588 = vmul.f32 %v5332, 0.20019531
    %v5589 = vmul.f32 %v5333, 0.20019531
    %v5590 = vmul.f32 %v5334, 0.20019531
    %v5591 = vmul.f32 %v5335, 0.20019531
    %v5592 = vmul.f32 %v5336, 0.20019531
    %v5593 = vmul.f32 %v5337, 0.20019531
    %v5594 = vmul.f32 %v5338, 0.20019531
    %v5595 = vmul.f32 %v5339, 0.20019531
    %v5596 = vmul.f32 %v5340, 0.20019531
    %v5597 = vmul.f32 %v5341, 0.20019531
    %v5598 = vmul.f32 %v5342, 0.20019531
    %v5599 = vmul.f32 %v5343, 0.20019531
    %v5600 = vmul.f32 %v5344, 0.20019531
    %v5601 = vmul.f32 %v5345, 0.20019531
    %v5602 = vmul.f32 %v5346, 0.20019531
    %v5603 = vmul.f32 %v5347, 0.20019531
    %v5604 = vmul.f32 %v5348, 0.20019531
    %v5605 = vmul.f32 %v5349, 0.20019531
    %v5606 = vmul.f32 %v5350, 0.20019531
    %v5607 = vmul.f32 %v5351, 0.20019531
    %v5608 = vmul.f32 %v5352, 0.20019531
    %v5609 = vmul.f32 %v5353, 0.20019531
    %v5610 = vmul.f32 %v5354, 0.20019531
    %v5611 = vmul.f32 %v5355, 0.20019531
    %v5612 = vmul.f32 %v5356, 0.20019531
    %v5613 = vmul.f32 %v5357, 0.20019531
    %v5614 = vmul.f32 %v5358, 0.20019531
    %v5615 = vmul.f32 %v5359, 0.20019531
    %v5616 = vmul.f32 %v5360, 0.20019531
    %v5617 = vmul.f32 %v5361, 0.20019531
    %v5618 = vmul.f32 %v5362, 0.20019531
    %v5619 = vmul.f32 %v5363, 0.20019531
    %v5620 = vmul.f32 %v5364, 0.20019531
    %v5621 = vmul.f32 %v5365, 0.20019531
    %v5622 = vmul.f32 %v5366, 0.20019531
    %v5623 = vmul.f32 %v5367, 0.20019531
    %v5624 = vmul.f32 %v5368, 0.20019531
    %v5625 = vmul.f32 %v5369, 0.20019531
    %v5626 = vmul.f32 %v5370, 0.20019531
    %v5627 = vmul.f32 %v5371, 0.20019531
    %v5628 = vmul.f32 %v5372, 0.20019531
    %v5629 = vmul.f32 %v5373, 0.20019531
    %v5630 = vmul.f32 %v5374, 0.20019531
    %v5631 = vmul.f32 %v5375, 0.20019531
    %v5632 = vmul.f32 %v5376, 0.20019531
    %v5633 = vmul.f32 %v5377, 0.20019531
    %v5634 = vmul.f32 %v5378, 0.20019531
    %v5635 = vmul.f32 %v5379, 0.20019531
    %v5636 = vmul.f32 %v5380, 0.20019531
    %v5637 = vmul.f32 %v5381, 0.20019531
    %v5638 = vmul.f32 %v5382, 0.20019531
    %v5639 = vmul.f32 %v5383, 0.20019531
    %v5640 = vmul.f32 %v5384, 0.20019531
    %v5641 = vmul.f32 %v5385, 0.20019531
    %v5642 = vmul.f32 %v5386, 0.20019531
    %v5643 = vmul.f32 %v5387, 0.20019531
    %v5644 = vmul.f32 %v5388, 0.20019531
    %v5645 = vmul.f32 %v5389, 0.20019531
    %v5646 = vmul.f32 %v5390, 0.20019531
    %v5647 = vmul.f32 %v5391, 0.20019531
    %v5648 = vmul.f32 %v5392, 0.20019531
    %v5649 = vmul.f32 %v5393, 0.20019531
    %v5650 = vmul.f32 %v5394, 0.20019531
    %v5651 = vmul.f32 %v5395, 0.20019531
    %v5652 = vmul.f32 %v5396, 0.20019531
    %v5653 = vmul.f32 %v5397, 0.20019531
    %v5654 = vmul.f32 %v5398, 0.20019531
    %v5655 = vmul.f32 %v5399, 0.20019531
    %v5656 = vmul.f32 %v5400, 0.20019531
    %v5657 = vmul.f32 %v5401, 0.20019531
    %v5658 = vmul.f32 %v5402, 0.20019531
    %v5659 = vmul.f32 %v5403, 0.20019531
    %v5660 = vmul.f32 %v5404, 0.20019531
    %v5661 = vmul.f32 %v5405, 0.20019531
    %v5662 = vmul.f32 %v5406, 0.20019531
    %v5663 = vmul.f32 %v5407, 0.20019531
    %v5664 = vmul.f32 %v5408, 0.20019531
    %v5665 = vmul.f32 %v5409, 0.20019531
    %v5666 = vmul.f32 %v5410, 0.20019531
    %v5667 = vmul.f32 %v5411, 0.20019531
    %v5668 = vmul.f32 %v5412, 0.20019531
    %v5669 = vmul.f32 %v5413, 0.20019531
    %v5670 = vmul.f32 %v5414, 0.20019531
    %v5671 = vmul.f32 %v5415, 0.20019531
    %v5672 = vmul.f32 %v5416, 0.20019531
    %v5673 = vmul.f32 %v5417, 0.20019531
    %v5674 = vmul.f32 %v5418, 0.20019531
    %v5675 = vmul.f32 %v5419, 0.20019531
    %v5676 = vmul.f32 %v5420, 0.20019531
    %v5677 = vmul.f32 %v5421, 0.20019531
    %v5678 = vmul.f32 %v5422, 0.20019531
    %v5679 = vmul.f32 %v5423, 0.20019531
    %v5680 = vmul.f32 %v5424, 0.20019531
    %v5681 = vmul.f32 %v5425, 0.20019531
    %v5682 = vmul.f32 %v5426, 0.20019531
    %v5683 = vmul.f32 %v5427, 0.20019531
    %v5684 = vmul.f32 %v5428, 0.20019531
    %v5685 = vmul.f32 %v5429, 0.20019531
    %v5686 = vmul.f32 %v5430, 0.20019531
    %v5687 = vmul.f32 %v5431, 0.20019531
    %v5688 = vmul.f32 %v5432, 0.20019531
    %v5689 = vmul.f32 %v5433, 0.20019531
    %v5690 = vmul.f32 %v5434, 0.20019531
    %v5691 = vmul.f32 %v5435, 0.20019531
    %v5692 = vmul.f32 %v5436, 0.20019531
    %v5693 = vmul.f32 %v5437, 0.20019531
    %v5694 = vmul.f32 %v5438, 0.20019531
    %v5695 = vmul.f32 %v5439, 0.20019531
    %v5696 = vmul.f32 %v5440, 0.20019531
    %v5697 = vmul.f32 %v5441, 0.20019531
    %v5698 = vmul.f32 %v5442, 0.20019531
    %v5699 = vmul.f32 %v5443, 0.20019531
    %v5700 = vmul.f32 %v5444, 0.20019531
    %v5701 = vmul.f32 %v5445, 0.20019531
    %v5702 = vmul.f32 %v5446, 0.20019531
    %v5703 = vmul.f32 %v5447, 0.20019531
    %v5704 = vmul.f32 %v5448, 0.20019531
    %v5705 = vmul.f32 %v5449, 0.20019531
    %v5706 = vmul.f32 %v5450, 0.20019531
    %v5707 = vmul.f32 %v5451, 0.20019531
    %v5708 = vmul.f32 %v5452, 0.20019531
    %v5709 = vmul.f32 %v5453, 0.20019531
    %v5710 = vmul.f32 %v5454, 0.20019531
    %v5711 = vmul.f32 %v5455, 0.20019531
    %v5712 = vmul.f32 %v5456, 0.20019531
    %v5713 = vmul.f32 %v5457, 0.20019531
    %v5714 = vmul.f32 %v5458, 0.20019531
    %v5715 = vmul.f32 %v5459, 0.20019531
    %v5716 = vmul.f32 %v5460, 0.20019531
    %v5717 = vmul.f32 %v5461, 0.20019531
    %v5718 = vmul.f32 %v5462, 0.20019531
    %v5719 = vmul.f32 %v5463, 0.20019531
    %v5720 = vmul.f32 %v5464, 0.20019531
    %v5721 = vmul.f32 %v5465, 0.20019531
    %v5722 = vmul.f32 %v5466, 0.20019531
    %v5723 = vmul.f32 %v5467, 0.20019531
    %v5724 = vmul.f32 %v5468, 0.20019531
    %v5725 = vmul.f32 %v5469, 0.20019531
    %v5726 = vmul.f32 %v5470, 0.20019531
    %v5727 = vmul.f32 %v5471, 0.20019531
    %v5728 = vmul.f32 %v5472, 0.20019531
    %v5729 = vmul.f32 %v5473, 0.20019531
    %v5730 = vmul.f32 %v5474, 0.20019531
    %v5731 = vmul.f32 %v5475, 0.20019531
    %v5732 = vmul.f32 %v5476, 0.20019531
    %v5733 = vmul.f32 %v5477, 0.20019531
    %v5734 = vmul.f32 %v5478, 0.20019531
    %v5735 = vmul.f32 %v5479, 0.20019531
    %v5736 = vmul.f32 %v5480, 0.20019531
    %v5737 = vmul.f32 %v5481, 0.20019531
    %v5738 = vmul.f32 %v5482, 0.20019531
    %v5739 = vmul.f32 %v5483, 0.20019531
    %v5740 = vmul.f32 %v5484, 0.20019531
    %v5741 = vmul.f32 %v5485, 0.20019531
    %v5742 = vmul.f32 %v5486, 0.20019531
    %v5743 = vmul.f32 %v5487, 0.20019531
    %v5744 = vmul.f32 %v5488, 0.20019531
    %v5745 = vmul.f32 %v5489, 0.20019531
    %v5746 = vmul.f32 %v5490, 0.20019531
    %v5747 = vmul.f32 %v5491, 0.20019531
    %v5748 = vmul.f32 %v5492, 0.20019531
    %v5749 = vmul.f32 %v5493, 0.20019531
    %v5750 = vmul.f32 %v5494, 0.20019531
    %v5751 = vmul.f32 %v5495, 0.20019531
    %v5752 = vmul.f32 %v5496, 0.20019531
    %v5753 = vmul.f32 %v5497, 0.20019531
    %v5754 = vmul.f32 %v5498, 0.20019531
    %v5755 = vmul.f32 %v5499, 0.20019531
    %v5756 = vmul.f32 %v5500, 0.20019531
    %v5757 = vmul.f32 %v5501, 0.20019531
    %v5758 = vmul.f32 %v5502, 0.20019531
    %v5759 = vmul.f32 %v5503, 0.20019531
    %v5760 = vmul.f32 %v5504, 0.20019531
    %v5761 = vmul.f32 %v5505, 0.20019531
    %v5762 = vmul.f32 %v5506, 0.20019531
    %v5763 = vmul.f32 %v5507, 0.20019531
    %v5764 = vmul.f32 %v5508, 0.20019531
    %v5765 = vmul.f32 %v5509, 0.20019531
    %v5766 = vmul.f32 %v5510, 0.20019531
    %v5767 = vmul.f32 %v5511, 0.20019531
    %v5768 = vmul.f32 %v5512, 0.20019531
    %v5769 = vmul.f32 %v5513, 0.20019531
    %v5770 = vmul.f32 %v5514, 0.20019531
    %v5771 = vmul.f32 %v5515, 0.20019531
    %v5772 = vmul.f32 %v5516, 0.20019531
    %v5773 = vmul.f32 %v5517, 0.20019531
    %v5774 = vmul.f32 %v5518, 0.20019531
    %v5775 = vmul.f32 %v5519, 0.20019531
    %v5776 = vmul.f32 %v5520, 0.20019531
    %v5777 = vmul.f32 %v5521, 0.20019531
    %v5778 = vmul.f32 %v5522, 0.20019531
    %v5779 = vmul.f32 %v5523, 0.20019531
    %v5780 = vmul.f32 %v5524, 0.20019531
    %v5781 = vmul.f32 %v5525, 0.20019531
    %v5782 = vmul.f32 %v5526, 0.20019531
    %v5783 = vmul.f32 %v5527, 0.20019531
    %v5784 = vmul.f32 %v5528, 0.20019531
    %v5785 = vmul.f32 %v5529, 0.20019531
    %v5786 = vmul.f32 %v5530, 0.20019531
    %v5787 = vpack.c.bf16 %v5532, %v5531
    %v5788 = vpack.c.bf16 %v5534, %v5533
    %v5789 = vpack.c.bf16 %v5536, %v5535
    %v5790 = vpack.c.bf16 %v5538, %v5537
    %v5791 = vpack.c.bf16 %v5540, %v5539
    %v5792 = vpack.c.bf16 %v5542, %v5541
    %v5793 = vpack.c.bf16 %v5544, %v5543
    %v5794 = vpack.c.bf16 %v5546, %v5545
    %v5795 = vpack.c.bf16 %v5548, %v5547
    %v5796 = vpack.c.bf16 %v5550, %v5549
    %v5797 = vpack.c.bf16 %v5552, %v5551
    %v5798 = vpack.c.bf16 %v5554, %v5553
    %v5799 = vpack.c.bf16 %v5556, %v5555
    %v5800 = vpack.c.bf16 %v5558, %v5557
    %v5801 = vpack.c.bf16 %v5560, %v5559
    %v5802 = vpack.c.bf16 %v5562, %v5561
    %v5803 = vpack.c.bf16 %v5564, %v5563
    %v5804 = vpack.c.bf16 %v5566, %v5565
    %v5805 = vpack.c.bf16 %v5568, %v5567
    %v5806 = vpack.c.bf16 %v5570, %v5569
    %v5807 = vpack.c.bf16 %v5572, %v5571
    %v5808 = vpack.c.bf16 %v5574, %v5573
    %v5809 = vpack.c.bf16 %v5576, %v5575
    %v5810 = vpack.c.bf16 %v5578, %v5577
    %v5811 = vpack.c.bf16 %v5580, %v5579
    %v5812 = vpack.c.bf16 %v5582, %v5581
    %v5813 = vpack.c.bf16 %v5584, %v5583
    %v5814 = vpack.c.bf16 %v5586, %v5585
    %v5815 = vpack.c.bf16 %v5588, %v5587
    %v5816 = vpack.c.bf16 %v5590, %v5589
    %v5817 = vpack.c.bf16 %v5592, %v5591
    %v5818 = vpack.c.bf16 %v5594, %v5593
    %v5819 = vpack.c.bf16 %v5596, %v5595
    %v5820 = vpack.c.bf16 %v5598, %v5597
    %v5821 = vpack.c.bf16 %v5600, %v5599
    %v5822 = vpack.c.bf16 %v5602, %v5601
    %v5823 = vpack.c.bf16 %v5604, %v5603
    %v5824 = vpack.c.bf16 %v5606, %v5605
    %v5825 = vpack.c.bf16 %v5608, %v5607
    %v5826 = vpack.c.bf16 %v5610, %v5609
    %v5827 = vpack.c.bf16 %v5612, %v5611
    %v5828 = vpack.c.bf16 %v5614, %v5613
    %v5829 = vpack.c.bf16 %v5616, %v5615
    %v5830 = vpack.c.bf16 %v5618, %v5617
    %v5831 = vpack.c.bf16 %v5620, %v5619
    %v5832 = vpack.c.bf16 %v5622, %v5621
    %v5833 = vpack.c.bf16 %v5624, %v5623
    %v5834 = vpack.c.bf16 %v5626, %v5625
    %v5835 = vpack.c.bf16 %v5628, %v5627
    %v5836 = vpack.c.bf16 %v5630, %v5629
    %v5837 = vpack.c.bf16 %v5632, %v5631
    %v5838 = vpack.c.bf16 %v5634, %v5633
    %v5839 = vpack.c.bf16 %v5636, %v5635
    %v5840 = vpack.c.bf16 %v5638, %v5637
    %v5841 = vpack.c.bf16 %v5640, %v5639
    %v5842 = vpack.c.bf16 %v5642, %v5641
    %v5843 = vpack.c.bf16 %v5644, %v5643
    %v5844 = vpack.c.bf16 %v5646, %v5645
    %v5845 = vpack.c.bf16 %v5648, %v5647
    %v5846 = vpack.c.bf16 %v5650, %v5649
    %v5847 = vpack.c.bf16 %v5652, %v5651
    %v5848 = vpack.c.bf16 %v5654, %v5653
    %v5849 = vpack.c.bf16 %v5656, %v5655
    %v5850 = vpack.c.bf16 %v5658, %v5657
    %v5851 = vpack.c.bf16 %v5660, %v5659
    %v5852 = vpack.c.bf16 %v5662, %v5661
    %v5853 = vpack.c.bf16 %v5664, %v5663
    %v5854 = vpack.c.bf16 %v5666, %v5665
    %v5855 = vpack.c.bf16 %v5668, %v5667
    %v5856 = vpack.c.bf16 %v5670, %v5669
    %v5857 = vpack.c.bf16 %v5672, %v5671
    %v5858 = vpack.c.bf16 %v5674, %v5673
    %v5859 = vpack.c.bf16 %v5676, %v5675
    %v5860 = vpack.c.bf16 %v5678, %v5677
    %v5861 = vpack.c.bf16 %v5680, %v5679
    %v5862 = vpack.c.bf16 %v5682, %v5681
    %v5863 = vpack.c.bf16 %v5684, %v5683
    %v5864 = vpack.c.bf16 %v5686, %v5685
    %v5865 = vpack.c.bf16 %v5688, %v5687
    %v5866 = vpack.c.bf16 %v5690, %v5689
    %v5867 = vpack.c.bf16 %v5692, %v5691
    %v5868 = vpack.c.bf16 %v5694, %v5693
    %v5869 = vpack.c.bf16 %v5696, %v5695
    %v5870 = vpack.c.bf16 %v5698, %v5697
    %v5871 = vpack.c.bf16 %v5700, %v5699
    %v5872 = vpack.c.bf16 %v5702, %v5701
    %v5873 = vpack.c.bf16 %v5704, %v5703
    %v5874 = vpack.c.bf16 %v5706, %v5705
    %v5875 = vpack.c.bf16 %v5708, %v5707
    %v5876 = vpack.c.bf16 %v5710, %v5709
    %v5877 = vpack.c.bf16 %v5712, %v5711
    %v5878 = vpack.c.bf16 %v5714, %v5713
    %v5879 = vpack.c.bf16 %v5716, %v5715
    %v5880 = vpack.c.bf16 %v5718, %v5717
    %v5881 = vpack.c.bf16 %v5720, %v5719
    %v5882 = vpack.c.bf16 %v5722, %v5721
    %v5883 = vpack.c.bf16 %v5724, %v5723
    %v5884 = vpack.c.bf16 %v5726, %v5725
    %v5885 = vpack.c.bf16 %v5728, %v5727
    %v5886 = vpack.c.bf16 %v5730, %v5729
    %v5887 = vpack.c.bf16 %v5732, %v5731
    %v5888 = vpack.c.bf16 %v5734, %v5733
    %v5889 = vpack.c.bf16 %v5736, %v5735
    %v5890 = vpack.c.bf16 %v5738, %v5737
    %v5891 = vpack.c.bf16 %v5740, %v5739
    %v5892 = vpack.c.bf16 %v5742, %v5741
    %v5893 = vpack.c.bf16 %v5744, %v5743
    %v5894 = vpack.c.bf16 %v5746, %v5745
    %v5895 = vpack.c.bf16 %v5748, %v5747
    %v5896 = vpack.c.bf16 %v5750, %v5749
    %v5897 = vpack.c.bf16 %v5752, %v5751
    %v5898 = vpack.c.bf16 %v5754, %v5753
    %v5899 = vpack.c.bf16 %v5756, %v5755
    %v5900 = vpack.c.bf16 %v5758, %v5757
    %v5901 = vpack.c.bf16 %v5760, %v5759
    %v5902 = vpack.c.bf16 %v5762, %v5761
    %v5903 = vpack.c.bf16 %v5764, %v5763
    %v5904 = vpack.c.bf16 %v5766, %v5765
    %v5905 = vpack.c.bf16 %v5768, %v5767
    %v5906 = vpack.c.bf16 %v5770, %v5769
    %v5907 = vpack.c.bf16 %v5772, %v5771
    %v5908 = vpack.c.bf16 %v5774, %v5773
    %v5909 = vpack.c.bf16 %v5776, %v5775
    %v5910 = vpack.c.bf16 %v5778, %v5777
    %v5911 = vpack.c.bf16 %v5780, %v5779
    %v5912 = vpack.c.bf16 %v5782, %v5781
    %v5913 = vpack.c.bf16 %v5784, %v5783
    %v5914 = vpack.c.bf16 %v5786, %v5785
    %v5915 = vunpack.c.l.bf16 %v5787
    %v5916 = vunpack.c.h.bf16 %v5787
    %v5917 = vunpack.c.l.bf16 %v5788
    %v5918 = vunpack.c.h.bf16 %v5788
    %v5919 = vunpack.c.l.bf16 %v5789
    %v5920 = vunpack.c.h.bf16 %v5789
    %v5921 = vunpack.c.l.bf16 %v5790
    %v5922 = vunpack.c.h.bf16 %v5790
    %v5923 = vunpack.c.l.bf16 %v5791
    %v5924 = vunpack.c.h.bf16 %v5791
    %v5925 = vunpack.c.l.bf16 %v5792
    %v5926 = vunpack.c.h.bf16 %v5792
    %v5927 = vunpack.c.l.bf16 %v5793
    %v5928 = vunpack.c.h.bf16 %v5793
    %v5929 = vunpack.c.l.bf16 %v5794
    %v5930 = vunpack.c.h.bf16 %v5794
    %v5931 = vunpack.c.l.bf16 %v5795
    %v5932 = vunpack.c.h.bf16 %v5795
    %v5933 = vunpack.c.l.bf16 %v5796
    %v5934 = vunpack.c.h.bf16 %v5796
    %v5935 = vunpack.c.l.bf16 %v5797
    %v5936 = vunpack.c.h.bf16 %v5797
    %v5937 = vunpack.c.l.bf16 %v5798
    %v5938 = vunpack.c.h.bf16 %v5798
    %v5939 = vunpack.c.l.bf16 %v5799
    %v5940 = vunpack.c.h.bf16 %v5799
    %v5941 = vunpack.c.l.bf16 %v5800
    %v5942 = vunpack.c.h.bf16 %v5800
    %v5943 = vunpack.c.l.bf16 %v5801
    %v5944 = vunpack.c.h.bf16 %v5801
    %v5945 = vunpack.c.l.bf16 %v5802
    %v5946 = vunpack.c.h.bf16 %v5802
    %v5947 = vunpack.c.l.bf16 %v5803
    %v5948 = vunpack.c.h.bf16 %v5803
    %v5949 = vunpack.c.l.bf16 %v5804
    %v5950 = vunpack.c.h.bf16 %v5804
    %v5951 = vunpack.c.l.bf16 %v5805
    %v5952 = vunpack.c.h.bf16 %v5805
    %v5953 = vunpack.c.l.bf16 %v5806
    %v5954 = vunpack.c.h.bf16 %v5806
    %v5955 = vunpack.c.l.bf16 %v5807
    %v5956 = vunpack.c.h.bf16 %v5807
    %v5957 = vunpack.c.l.bf16 %v5808
    %v5958 = vunpack.c.h.bf16 %v5808
    %v5959 = vunpack.c.l.bf16 %v5809
    %v5960 = vunpack.c.h.bf16 %v5809
    %v5961 = vunpack.c.l.bf16 %v5810
    %v5962 = vunpack.c.h.bf16 %v5810
    %v5963 = vunpack.c.l.bf16 %v5811
    %v5964 = vunpack.c.h.bf16 %v5811
    %v5965 = vunpack.c.l.bf16 %v5812
    %v5966 = vunpack.c.h.bf16 %v5812
    %v5967 = vunpack.c.l.bf16 %v5813
    %v5968 = vunpack.c.h.bf16 %v5813
    %v5969 = vunpack.c.l.bf16 %v5814
    %v5970 = vunpack.c.h.bf16 %v5814
    %v5971 = vunpack.c.l.bf16 %v5815
    %v5972 = vunpack.c.h.bf16 %v5815
    %v5973 = vunpack.c.l.bf16 %v5816
    %v5974 = vunpack.c.h.bf16 %v5816
    %v5975 = vunpack.c.l.bf16 %v5817
    %v5976 = vunpack.c.h.bf16 %v5817
    %v5977 = vunpack.c.l.bf16 %v5818
    %v5978 = vunpack.c.h.bf16 %v5818
    %v5979 = vunpack.c.l.bf16 %v5819
    %v5980 = vunpack.c.h.bf16 %v5819
    %v5981 = vunpack.c.l.bf16 %v5820
    %v5982 = vunpack.c.h.bf16 %v5820
    %v5983 = vunpack.c.l.bf16 %v5821
    %v5984 = vunpack.c.h.bf16 %v5821
    %v5985 = vunpack.c.l.bf16 %v5822
    %v5986 = vunpack.c.h.bf16 %v5822
    %v5987 = vunpack.c.l.bf16 %v5823
    %v5988 = vunpack.c.h.bf16 %v5823
    %v5989 = vunpack.c.l.bf16 %v5824
    %v5990 = vunpack.c.h.bf16 %v5824
    %v5991 = vunpack.c.l.bf16 %v5825
    %v5992 = vunpack.c.h.bf16 %v5825
    %v5993 = vunpack.c.l.bf16 %v5826
    %v5994 = vunpack.c.h.bf16 %v5826
    %v5995 = vunpack.c.l.bf16 %v5827
    %v5996 = vunpack.c.h.bf16 %v5827
    %v5997 = vunpack.c.l.bf16 %v5828
    %v5998 = vunpack.c.h.bf16 %v5828
    %v5999 = vunpack.c.l.bf16 %v5829
    %v6000 = vunpack.c.h.bf16 %v5829
    %v6001 = vunpack.c.l.bf16 %v5830
    %v6002 = vunpack.c.h.bf16 %v5830
    %v6003 = vunpack.c.l.bf16 %v5831
    %v6004 = vunpack.c.h.bf16 %v5831
    %v6005 = vunpack.c.l.bf16 %v5832
    %v6006 = vunpack.c.h.bf16 %v5832
    %v6007 = vunpack.c.l.bf16 %v5833
    %v6008 = vunpack.c.h.bf16 %v5833
    %v6009 = vunpack.c.l.bf16 %v5834
    %v6010 = vunpack.c.h.bf16 %v5834
    %v6011 = vunpack.c.l.bf16 %v5835
    %v6012 = vunpack.c.h.bf16 %v5835
    %v6013 = vunpack.c.l.bf16 %v5836
    %v6014 = vunpack.c.h.bf16 %v5836
    %v6015 = vunpack.c.l.bf16 %v5837
    %v6016 = vunpack.c.h.bf16 %v5837
    %v6017 = vunpack.c.l.bf16 %v5838
    %v6018 = vunpack.c.h.bf16 %v5838
    %v6019 = vunpack.c.l.bf16 %v5839
    %v6020 = vunpack.c.h.bf16 %v5839
    %v6021 = vunpack.c.l.bf16 %v5840
    %v6022 = vunpack.c.h.bf16 %v5840
    %v6023 = vunpack.c.l.bf16 %v5841
    %v6024 = vunpack.c.h.bf16 %v5841
    %v6025 = vunpack.c.l.bf16 %v5842
    %v6026 = vunpack.c.h.bf16 %v5842
    %v6027 = vunpack.c.l.bf16 %v5843
    %v6028 = vunpack.c.h.bf16 %v5843
    %v6029 = vunpack.c.l.bf16 %v5844
    %v6030 = vunpack.c.h.bf16 %v5844
    %v6031 = vunpack.c.l.bf16 %v5845
    %v6032 = vunpack.c.h.bf16 %v5845
    %v6033 = vunpack.c.l.bf16 %v5846
    %v6034 = vunpack.c.h.bf16 %v5846
    %v6035 = vunpack.c.l.bf16 %v5847
    %v6036 = vunpack.c.h.bf16 %v5847
    %v6037 = vunpack.c.l.bf16 %v5848
    %v6038 = vunpack.c.h.bf16 %v5848
    %v6039 = vunpack.c.l.bf16 %v5849
    %v6040 = vunpack.c.h.bf16 %v5849
    %v6041 = vunpack.c.l.bf16 %v5850
    %v6042 = vunpack.c.h.bf16 %v5850
    %v6043 = vunpack.c.l.bf16 %v5851
    %v6044 = vunpack.c.h.bf16 %v5851
    %v6045 = vunpack.c.l.bf16 %v5852
    %v6046 = vunpack.c.h.bf16 %v5852
    %v6047 = vunpack.c.l.bf16 %v5853
    %v6048 = vunpack.c.h.bf16 %v5853
    %v6049 = vunpack.c.l.bf16 %v5854
    %v6050 = vunpack.c.h.bf16 %v5854
    %v6051 = vunpack.c.l.bf16 %v5855
    %v6052 = vunpack.c.h.bf16 %v5855
    %v6053 = vunpack.c.l.bf16 %v5856
    %v6054 = vunpack.c.h.bf16 %v5856
    %v6055 = vunpack.c.l.bf16 %v5857
    %v6056 = vunpack.c.h.bf16 %v5857
    %v6057 = vunpack.c.l.bf16 %v5858
    %v6058 = vunpack.c.h.bf16 %v5858
    %v6059 = vunpack.c.l.bf16 %v5859
    %v6060 = vunpack.c.h.bf16 %v5859
    %v6061 = vunpack.c.l.bf16 %v5860
    %v6062 = vunpack.c.h.bf16 %v5860
    %v6063 = vunpack.c.l.bf16 %v5861
    %v6064 = vunpack.c.h.bf16 %v5861
    %v6065 = vunpack.c.l.bf16 %v5862
    %v6066 = vunpack.c.h.bf16 %v5862
    %v6067 = vunpack.c.l.bf16 %v5863
    %v6068 = vunpack.c.h.bf16 %v5863
    %v6069 = vunpack.c.l.bf16 %v5864
    %v6070 = vunpack.c.h.bf16 %v5864
    %v6071 = vunpack.c.l.bf16 %v5865
    %v6072 = vunpack.c.h.bf16 %v5865
    %v6073 = vunpack.c.l.bf16 %v5866
    %v6074 = vunpack.c.h.bf16 %v5866
    %v6075 = vunpack.c.l.bf16 %v5867
    %v6076 = vunpack.c.h.bf16 %v5867
    %v6077 = vunpack.c.l.bf16 %v5868
    %v6078 = vunpack.c.h.bf16 %v5868
    %v6079 = vunpack.c.l.bf16 %v5869
    %v6080 = vunpack.c.h.bf16 %v5869
    %v6081 = vunpack.c.l.bf16 %v5870
    %v6082 = vunpack.c.h.bf16 %v5870
    %v6083 = vunpack.c.l.bf16 %v5871
    %v6084 = vunpack.c.h.bf16 %v5871
    %v6085 = vunpack.c.l.bf16 %v5872
    %v6086 = vunpack.c.h.bf16 %v5872
    %v6087 = vunpack.c.l.bf16 %v5873
    %v6088 = vunpack.c.h.bf16 %v5873
    %v6089 = vunpack.c.l.bf16 %v5874
    %v6090 = vunpack.c.h.bf16 %v5874
    %v6091 = vunpack.c.l.bf16 %v5875
    %v6092 = vunpack.c.h.bf16 %v5875
    %v6093 = vunpack.c.l.bf16 %v5876
    %v6094 = vunpack.c.h.bf16 %v5876
    %v6095 = vunpack.c.l.bf16 %v5877
    %v6096 = vunpack.c.h.bf16 %v5877
    %v6097 = vunpack.c.l.bf16 %v5878
    %v6098 = vunpack.c.h.bf16 %v5878
    %v6099 = vunpack.c.l.bf16 %v5879
    %v6100 = vunpack.c.h.bf16 %v5879
    %v6101 = vunpack.c.l.bf16 %v5880
    %v6102 = vunpack.c.h.bf16 %v5880
    %v6103 = vunpack.c.l.bf16 %v5881
    %v6104 = vunpack.c.h.bf16 %v5881
    %v6105 = vunpack.c.l.bf16 %v5882
    %v6106 = vunpack.c.h.bf16 %v5882
    %v6107 = vunpack.c.l.bf16 %v5883
    %v6108 = vunpack.c.h.bf16 %v5883
    %v6109 = vunpack.c.l.bf16 %v5884
    %v6110 = vunpack.c.h.bf16 %v5884
    %v6111 = vunpack.c.l.bf16 %v5885
    %v6112 = vunpack.c.h.bf16 %v5885
    %v6113 = vunpack.c.l.bf16 %v5886
    %v6114 = vunpack.c.h.bf16 %v5886
    %v6115 = vunpack.c.l.bf16 %v5887
    %v6116 = vunpack.c.h.bf16 %v5887
    %v6117 = vunpack.c.l.bf16 %v5888
    %v6118 = vunpack.c.h.bf16 %v5888
    %v6119 = vunpack.c.l.bf16 %v5889
    %v6120 = vunpack.c.h.bf16 %v5889
    %v6121 = vunpack.c.l.bf16 %v5890
    %v6122 = vunpack.c.h.bf16 %v5890
    %v6123 = vunpack.c.l.bf16 %v5891
    %v6124 = vunpack.c.h.bf16 %v5891
    %v6125 = vunpack.c.l.bf16 %v5892
    %v6126 = vunpack.c.h.bf16 %v5892
    %v6127 = vunpack.c.l.bf16 %v5893
    %v6128 = vunpack.c.h.bf16 %v5893
    %v6129 = vunpack.c.l.bf16 %v5894
    %v6130 = vunpack.c.h.bf16 %v5894
    %v6131 = vunpack.c.l.bf16 %v5895
    %v6132 = vunpack.c.h.bf16 %v5895
    %v6133 = vunpack.c.l.bf16 %v5896
    %v6134 = vunpack.c.h.bf16 %v5896
    %v6135 = vunpack.c.l.bf16 %v5897
    %v6136 = vunpack.c.h.bf16 %v5897
    %v6137 = vunpack.c.l.bf16 %v5898
    %v6138 = vunpack.c.h.bf16 %v5898
    %v6139 = vunpack.c.l.bf16 %v5899
    %v6140 = vunpack.c.h.bf16 %v5899
    %v6141 = vunpack.c.l.bf16 %v5900
    %v6142 = vunpack.c.h.bf16 %v5900
    %v6143 = vunpack.c.l.bf16 %v5901
    %v6144 = vunpack.c.h.bf16 %v5901
    %v6145 = vunpack.c.l.bf16 %v5902
    %v6146 = vunpack.c.h.bf16 %v5902
    %v6147 = vunpack.c.l.bf16 %v5903
    %v6148 = vunpack.c.h.bf16 %v5903
    %v6149 = vunpack.c.l.bf16 %v5904
    %v6150 = vunpack.c.h.bf16 %v5904
    %v6151 = vunpack.c.l.bf16 %v5905
    %v6152 = vunpack.c.h.bf16 %v5905
    %v6153 = vunpack.c.l.bf16 %v5906
    %v6154 = vunpack.c.h.bf16 %v5906
    %v6155 = vunpack.c.l.bf16 %v5907
    %v6156 = vunpack.c.h.bf16 %v5907
    %v6157 = vunpack.c.l.bf16 %v5908
    %v6158 = vunpack.c.h.bf16 %v5908
    %v6159 = vunpack.c.l.bf16 %v5909
    %v6160 = vunpack.c.h.bf16 %v5909
    %v6161 = vunpack.c.l.bf16 %v5910
    %v6162 = vunpack.c.h.bf16 %v5910
    %v6163 = vunpack.c.l.bf16 %v5911
    %v6164 = vunpack.c.h.bf16 %v5911
    %v6165 = vunpack.c.l.bf16 %v5912
    %v6166 = vunpack.c.h.bf16 %v5912
    %v6167 = vunpack.c.l.bf16 %v5913
    %v6168 = vunpack.c.h.bf16 %v5913
    %v6169 = vunpack.c.l.bf16 %v5914
    %v6170 = vunpack.c.h.bf16 %v5914
    %v6171 = vmax.f32 %v5275, %v5915
    %v6172 = vmax.f32 %v5276, %v5916
    %v6173 = vmax.f32 %v5277, %v5917
    %v6174 = vmax.f32 %v5278, %v5918
    %v6175 = vmax.f32 %v5279, %v5919
    %v6176 = vmax.f32 %v5280, %v5920
    %v6177 = vmax.f32 %v5281, %v5921
    %v6178 = vmax.f32 %v5282, %v5922
    %v6179 = vmax.f32 %v5283, %v5923
    %v6180 = vmax.f32 %v5284, %v5924
    %v6181 = vmax.f32 %v5285, %v5925
    %v6182 = vmax.f32 %v5286, %v5926
    %v6183 = vmax.f32 %v5287, %v5927
    %v6184 = vmax.f32 %v5288, %v5928
    %v6185 = vmax.f32 %v5289, %v5929
    %v6186 = vmax.f32 %v5290, %v5930
    %v6187 = vmax.f32 %v5291, %v5931
    %v6188 = vmax.f32 %v5292, %v5932
    %v6189 = vmax.f32 %v5293, %v5933
    %v6190 = vmax.f32 %v5294, %v5934
    %v6191 = vmax.f32 %v5295, %v5935
    %v6192 = vmax.f32 %v5296, %v5936
    %v6193 = vmax.f32 %v5297, %v5937
    %v6194 = vmax.f32 %v5298, %v5938
    %v6195 = vmax.f32 %v5299, %v5939
    %v6196 = vmax.f32 %v5300, %v5940
    %v6197 = vmax.f32 %v5301, %v5941
    %v6198 = vmax.f32 %v5302, %v5942
    %v6199 = vmax.f32 %v5303, %v5943
    %v6200 = vmax.f32 %v5304, %v5944
    %v6201 = vmax.f32 %v5305, %v5945
    %v6202 = vmax.f32 %v5306, %v5946
    %v6203 = vmax.f32 %v5307, %v5947
    %v6204 = vmax.f32 %v5308, %v5948
    %v6205 = vmax.f32 %v5309, %v5949
    %v6206 = vmax.f32 %v5310, %v5950
    %v6207 = vmax.f32 %v5311, %v5951
    %v6208 = vmax.f32 %v5312, %v5952
    %v6209 = vmax.f32 %v5313, %v5953
    %v6210 = vmax.f32 %v5314, %v5954
    %v6211 = vmax.f32 %v5315, %v5955
    %v6212 = vmax.f32 %v5316, %v5956
    %v6213 = vmax.f32 %v5317, %v5957
    %v6214 = vmax.f32 %v5318, %v5958
    %v6215 = vmax.f32 %v5319, %v5959
    %v6216 = vmax.f32 %v5320, %v5960
    %v6217 = vmax.f32 %v5321, %v5961
    %v6218 = vmax.f32 %v5322, %v5962
    %v6219 = vmax.f32 %v5323, %v5963
    %v6220 = vmax.f32 %v5324, %v5964
    %v6221 = vmax.f32 %v5325, %v5965
    %v6222 = vmax.f32 %v5326, %v5966
    %v6223 = vmax.f32 %v5327, %v5967
    %v6224 = vmax.f32 %v5328, %v5968
    %v6225 = vmax.f32 %v5329, %v5969
    %v6226 = vmax.f32 %v5330, %v5970
    %v6227 = vmax.f32 %v5331, %v5971
    %v6228 = vmax.f32 %v5332, %v5972
    %v6229 = vmax.f32 %v5333, %v5973
    %v6230 = vmax.f32 %v5334, %v5974
    %v6231 = vmax.f32 %v5335, %v5975
    %v6232 = vmax.f32 %v5336, %v5976
    %v6233 = vmax.f32 %v5337, %v5977
    %v6234 = vmax.f32 %v5338, %v5978
    %v6235 = vmax.f32 %v5339, %v5979
    %v6236 = vmax.f32 %v5340, %v5980
    %v6237 = vmax.f32 %v5341, %v5981
    %v6238 = vmax.f32 %v5342, %v5982
    %v6239 = vmax.f32 %v5343, %v5983
    %v6240 = vmax.f32 %v5344, %v5984
    %v6241 = vmax.f32 %v5345, %v5985
    %v6242 = vmax.f32 %v5346, %v5986
    %v6243 = vmax.f32 %v5347, %v5987
    %v6244 = vmax.f32 %v5348, %v5988
    %v6245 = vmax.f32 %v5349, %v5989
    %v6246 = vmax.f32 %v5350, %v5990
    %v6247 = vmax.f32 %v5351, %v5991
    %v6248 = vmax.f32 %v5352, %v5992
    %v6249 = vmax.f32 %v5353, %v5993
    %v6250 = vmax.f32 %v5354, %v5994
    %v6251 = vmax.f32 %v5355, %v5995
    %v6252 = vmax.f32 %v5356, %v5996
    %v6253 = vmax.f32 %v5357, %v5997
    %v6254 = vmax.f32 %v5358, %v5998
    %v6255 = vmax.f32 %v5359, %v5999
    %v6256 = vmax.f32 %v5360, %v6000
    %v6257 = vmax.f32 %v5361, %v6001
    %v6258 = vmax.f32 %v5362, %v6002
    %v6259 = vmax.f32 %v5363, %v6003
    %v6260 = vmax.f32 %v5364, %v6004
    %v6261 = vmax.f32 %v5365, %v6005
    %v6262 = vmax.f32 %v5366, %v6006
    %v6263 = vmax.f32 %v5367, %v6007
    %v6264 = vmax.f32 %v5368, %v6008
    %v6265 = vmax.f32 %v5369, %v6009
    %v6266 = vmax.f32 %v5370, %v6010
    %v6267 = vmax.f32 %v5371, %v6011
    %v6268 = vmax.f32 %v5372, %v6012
    %v6269 = vmax.f32 %v5373, %v6013
    %v6270 = vmax.f32 %v5374, %v6014
    %v6271 = vmax.f32 %v5375, %v6015
    %v6272 = vmax.f32 %v5376, %v6016
    %v6273 = vmax.f32 %v5377, %v6017
    %v6274 = vmax.f32 %v5378, %v6018
    %v6275 = vmax.f32 %v5379, %v6019
    %v6276 = vmax.f32 %v5380, %v6020
    %v6277 = vmax.f32 %v5381, %v6021
    %v6278 = vmax.f32 %v5382, %v6022
    %v6279 = vmax.f32 %v5383, %v6023
    %v6280 = vmax.f32 %v5384, %v6024
    %v6281 = vmax.f32 %v5385, %v6025
    %v6282 = vmax.f32 %v5386, %v6026
    %v6283 = vmax.f32 %v5387, %v6027
    %v6284 = vmax.f32 %v5388, %v6028
    %v6285 = vmax.f32 %v5389, %v6029
    %v6286 = vmax.f32 %v5390, %v6030
    %v6287 = vmax.f32 %v5391, %v6031
    %v6288 = vmax.f32 %v5392, %v6032
    %v6289 = vmax.f32 %v5393, %v6033
    %v6290 = vmax.f32 %v5394, %v6034
    %v6291 = vmax.f32 %v5395, %v6035
    %v6292 = vmax.f32 %v5396, %v6036
    %v6293 = vmax.f32 %v5397, %v6037
    %v6294 = vmax.f32 %v5398, %v6038
    %v6295 = vmax.f32 %v5399, %v6039
    %v6296 = vmax.f32 %v5400, %v6040
    %v6297 = vmax.f32 %v5401, %v6041
    %v6298 = vmax.f32 %v5402, %v6042
    %v6299 = vmax.f32 %v5403, %v6043
    %v6300 = vmax.f32 %v5404, %v6044
    %v6301 = vmax.f32 %v5405, %v6045
    %v6302 = vmax.f32 %v5406, %v6046
    %v6303 = vmax.f32 %v5407, %v6047
    %v6304 = vmax.f32 %v5408, %v6048
    %v6305 = vmax.f32 %v5409, %v6049
    %v6306 = vmax.f32 %v5410, %v6050
    %v6307 = vmax.f32 %v5411, %v6051
    %v6308 = vmax.f32 %v5412, %v6052
    %v6309 = vmax.f32 %v5413, %v6053
    %v6310 = vmax.f32 %v5414, %v6054
    %v6311 = vmax.f32 %v5415, %v6055
    %v6312 = vmax.f32 %v5416, %v6056
    %v6313 = vmax.f32 %v5417, %v6057
    %v6314 = vmax.f32 %v5418, %v6058
    %v6315 = vmax.f32 %v5419, %v6059
    %v6316 = vmax.f32 %v5420, %v6060
    %v6317 = vmax.f32 %v5421, %v6061
    %v6318 = vmax.f32 %v5422, %v6062
    %v6319 = vmax.f32 %v5423, %v6063
    %v6320 = vmax.f32 %v5424, %v6064
    %v6321 = vmax.f32 %v5425, %v6065
    %v6322 = vmax.f32 %v5426, %v6066
    %v6323 = vmax.f32 %v5427, %v6067
    %v6324 = vmax.f32 %v5428, %v6068
    %v6325 = vmax.f32 %v5429, %v6069
    %v6326 = vmax.f32 %v5430, %v6070
    %v6327 = vmax.f32 %v5431, %v6071
    %v6328 = vmax.f32 %v5432, %v6072
    %v6329 = vmax.f32 %v5433, %v6073
    %v6330 = vmax.f32 %v5434, %v6074
    %v6331 = vmax.f32 %v5435, %v6075
    %v6332 = vmax.f32 %v5436, %v6076
    %v6333 = vmax.f32 %v5437, %v6077
    %v6334 = vmax.f32 %v5438, %v6078
    %v6335 = vmax.f32 %v5439, %v6079
    %v6336 = vmax.f32 %v5440, %v6080
    %v6337 = vmax.f32 %v5441, %v6081
    %v6338 = vmax.f32 %v5442, %v6082
    %v6339 = vmax.f32 %v5443, %v6083
    %v6340 = vmax.f32 %v5444, %v6084
    %v6341 = vmax.f32 %v5445, %v6085
    %v6342 = vmax.f32 %v5446, %v6086
    %v6343 = vmax.f32 %v5447, %v6087
    %v6344 = vmax.f32 %v5448, %v6088
    %v6345 = vmax.f32 %v5449, %v6089
    %v6346 = vmax.f32 %v5450, %v6090
    %v6347 = vmax.f32 %v5451, %v6091
    %v6348 = vmax.f32 %v5452, %v6092
    %v6349 = vmax.f32 %v5453, %v6093
    %v6350 = vmax.f32 %v5454, %v6094
    %v6351 = vmax.f32 %v5455, %v6095
    %v6352 = vmax.f32 %v5456, %v6096
    %v6353 = vmax.f32 %v5457, %v6097
    %v6354 = vmax.f32 %v5458, %v6098
    %v6355 = vmax.f32 %v5459, %v6099
    %v6356 = vmax.f32 %v5460, %v6100
    %v6357 = vmax.f32 %v5461, %v6101
    %v6358 = vmax.f32 %v5462, %v6102
    %v6359 = vmax.f32 %v5463, %v6103
    %v6360 = vmax.f32 %v5464, %v6104
    %v6361 = vmax.f32 %v5465, %v6105
    %v6362 = vmax.f32 %v5466, %v6106
    %v6363 = vmax.f32 %v5467, %v6107
    %v6364 = vmax.f32 %v5468, %v6108
    %v6365 = vmax.f32 %v5469, %v6109
    %v6366 = vmax.f32 %v5470, %v6110
    %v6367 = vmax.f32 %v5471, %v6111
    %v6368 = vmax.f32 %v5472, %v6112
    %v6369 = vmax.f32 %v5473, %v6113
    %v6370 = vmax.f32 %v5474, %v6114
    %v6371 = vmax.f32 %v5475, %v6115
    %v6372 = vmax.f32 %v5476, %v6116
    %v6373 = vmax.f32 %v5477, %v6117
    %v6374 = vmax.f32 %v5478, %v6118
    %v6375 = vmax.f32 %v5479, %v6119
    %v6376 = vmax.f32 %v5480, %v6120
    %v6377 = vmax.f32 %v5481, %v6121
    %v6378 = vmax.f32 %v5482, %v6122
    %v6379 = vmax.f32 %v5483, %v6123
    %v6380 = vmax.f32 %v5484, %v6124
    %v6381 = vmax.f32 %v5485, %v6125
    %v6382 = vmax.f32 %v5486, %v6126
    %v6383 = vmax.f32 %v5487, %v6127
    %v6384 = vmax.f32 %v5488, %v6128
    %v6385 = vmax.f32 %v5489, %v6129
    %v6386 = vmax.f32 %v5490, %v6130
    %v6387 = vmax.f32 %v5491, %v6131
    %v6388 = vmax.f32 %v5492, %v6132
    %v6389 = vmax.f32 %v5493, %v6133
    %v6390 = vmax.f32 %v5494, %v6134
    %v6391 = vmax.f32 %v5495, %v6135
    %v6392 = vmax.f32 %v5496, %v6136
    %v6393 = vmax.f32 %v5497, %v6137
    %v6394 = vmax.f32 %v5498, %v6138
    %v6395 = vmax.f32 %v5499, %v6139
    %v6396 = vmax.f32 %v5500, %v6140
    %v6397 = vmax.f32 %v5501, %v6141
    %v6398 = vmax.f32 %v5502, %v6142
    %v6399 = vmax.f32 %v5503, %v6143
    %v6400 = vmax.f32 %v5504, %v6144
    %v6401 = vmax.f32 %v5505, %v6145
    %v6402 = vmax.f32 %v5506, %v6146
    %v6403 = vmax.f32 %v5507, %v6147
    %v6404 = vmax.f32 %v5508, %v6148
    %v6405 = vmax.f32 %v5509, %v6149
    %v6406 = vmax.f32 %v5510, %v6150
    %v6407 = vmax.f32 %v5511, %v6151
    %v6408 = vmax.f32 %v5512, %v6152
    %v6409 = vmax.f32 %v5513, %v6153
    %v6410 = vmax.f32 %v5514, %v6154
    %v6411 = vmax.f32 %v5515, %v6155
    %v6412 = vmax.f32 %v5516, %v6156
    %v6413 = vmax.f32 %v5517, %v6157
    %v6414 = vmax.f32 %v5518, %v6158
    %v6415 = vmax.f32 %v5519, %v6159
    %v6416 = vmax.f32 %v5520, %v6160
    %v6417 = vmax.f32 %v5521, %v6161
    %v6418 = vmax.f32 %v5522, %v6162
    %v6419 = vmax.f32 %v5523, %v6163
    %v6420 = vmax.f32 %v5524, %v6164
    %v6421 = vmax.f32 %v5525, %v6165
    %v6422 = vmax.f32 %v5526, %v6166
    %v6423 = vmax.f32 %v5527, %v6167
    %v6424 = vmax.f32 %v5528, %v6168
    %v6425 = vmax.f32 %v5529, %v6169
    %v6426 = vmax.f32 %v5530, %v6170
    %v6427 = vpack.c.bf16 %v6179, %v6171
    %v6428 = vpack.c.bf16 %v6180, %v6172
    %v6429 = vpack.c.bf16 %v6181, %v6173
    %v6430 = vpack.c.bf16 %v6182, %v6174
    %v6431 = vpack.c.bf16 %v6183, %v6175
    %v6432 = vpack.c.bf16 %v6184, %v6176
    %v6433 = vpack.c.bf16 %v6185, %v6177
    %v6434 = vpack.c.bf16 %v6186, %v6178
    %v6435 = vpack.c.bf16 %v6195, %v6187
    %v6436 = vpack.c.bf16 %v6196, %v6188
    %v6437 = vpack.c.bf16 %v6197, %v6189
    %v6438 = vpack.c.bf16 %v6198, %v6190
    %v6439 = vpack.c.bf16 %v6199, %v6191
    %v6440 = vpack.c.bf16 %v6200, %v6192
    %v6441 = vpack.c.bf16 %v6201, %v6193
    %v6442 = vpack.c.bf16 %v6202, %v6194
    %v6443 = vpack.c.bf16 %v6211, %v6203
    %v6444 = vpack.c.bf16 %v6212, %v6204
    %v6445 = vpack.c.bf16 %v6213, %v6205
    %v6446 = vpack.c.bf16 %v6214, %v6206
    %v6447 = vpack.c.bf16 %v6215, %v6207
    %v6448 = vpack.c.bf16 %v6216, %v6208
    %v6449 = vpack.c.bf16 %v6217, %v6209
    %v6450 = vpack.c.bf16 %v6218, %v6210
    %v6451 = vpack.c.bf16 %v6227, %v6219
    %v6452 = vpack.c.bf16 %v6228, %v6220
    %v6453 = vpack.c.bf16 %v6229, %v6221
    %v6454 = vpack.c.bf16 %v6230, %v6222
    %v6455 = vpack.c.bf16 %v6231, %v6223
    %v6456 = vpack.c.bf16 %v6232, %v6224
    %v6457 = vpack.c.bf16 %v6233, %v6225
    %v6458 = vpack.c.bf16 %v6234, %v6226
    %v6459 = vpack.c.bf16 %v6243, %v6235
    %v6460 = vpack.c.bf16 %v6244, %v6236
    %v6461 = vpack.c.bf16 %v6245, %v6237
    %v6462 = vpack.c.bf16 %v6246, %v6238
    %v6463 = vpack.c.bf16 %v6247, %v6239
    %v6464 = vpack.c.bf16 %v6248, %v6240
    %v6465 = vpack.c.bf16 %v6249, %v6241
    %v6466 = vpack.c.bf16 %v6250, %v6242
    %v6467 = vpack.c.bf16 %v6259, %v6251
    %v6468 = vpack.c.bf16 %v6260, %v6252
    %v6469 = vpack.c.bf16 %v6261, %v6253
    %v6470 = vpack.c.bf16 %v6262, %v6254
    %v6471 = vpack.c.bf16 %v6263, %v6255
    %v6472 = vpack.c.bf16 %v6264, %v6256
    %v6473 = vpack.c.bf16 %v6265, %v6257
    %v6474 = vpack.c.bf16 %v6266, %v6258
    %v6475 = vpack.c.bf16 %v6275, %v6267
    %v6476 = vpack.c.bf16 %v6276, %v6268
    %v6477 = vpack.c.bf16 %v6277, %v6269
    %v6478 = vpack.c.bf16 %v6278, %v6270
    %v6479 = vpack.c.bf16 %v6279, %v6271
    %v6480 = vpack.c.bf16 %v6280, %v6272
    %v6481 = vpack.c.bf16 %v6281, %v6273
    %v6482 = vpack.c.bf16 %v6282, %v6274
    %v6483 = vpack.c.bf16 %v6291, %v6283
    %v6484 = vpack.c.bf16 %v6292, %v6284
    %v6485 = vpack.c.bf16 %v6293, %v6285
    %v6486 = vpack.c.bf16 %v6294, %v6286
    %v6487 = vpack.c.bf16 %v6295, %v6287
    %v6488 = vpack.c.bf16 %v6296, %v6288
    %v6489 = vpack.c.bf16 %v6297, %v6289
    %v6490 = vpack.c.bf16 %v6298, %v6290
    %v6491 = vpack.c.bf16 %v6307, %v6299
    %v6492 = vpack.c.bf16 %v6308, %v6300
    %v6493 = vpack.c.bf16 %v6309, %v6301
    %v6494 = vpack.c.bf16 %v6310, %v6302
    %v6495 = vpack.c.bf16 %v6311, %v6303
    %v6496 = vpack.c.bf16 %v6312, %v6304
    %v6497 = vpack.c.bf16 %v6313, %v6305
    %v6498 = vpack.c.bf16 %v6314, %v6306
    %v6499 = vpack.c.bf16 %v6323, %v6315
    %v6500 = vpack.c.bf16 %v6324, %v6316
    %v6501 = vpack.c.bf16 %v6325, %v6317
    %v6502 = vpack.c.bf16 %v6326, %v6318
    %v6503 = vpack.c.bf16 %v6327, %v6319
    %v6504 = vpack.c.bf16 %v6328, %v6320
    %v6505 = vpack.c.bf16 %v6329, %v6321
    %v6506 = vpack.c.bf16 %v6330, %v6322
    %v6507 = vpack.c.bf16 %v6339, %v6331
    %v6508 = vpack.c.bf16 %v6340, %v6332
    %v6509 = vpack.c.bf16 %v6341, %v6333
    %v6510 = vpack.c.bf16 %v6342, %v6334
    %v6511 = vpack.c.bf16 %v6343, %v6335
    %v6512 = vpack.c.bf16 %v6344, %v6336
    %v6513 = vpack.c.bf16 %v6345, %v6337
    %v6514 = vpack.c.bf16 %v6346, %v6338
    %v6515 = vpack.c.bf16 %v6355, %v6347
    %v6516 = vpack.c.bf16 %v6356, %v6348
    %v6517 = vpack.c.bf16 %v6357, %v6349
    %v6518 = vpack.c.bf16 %v6358, %v6350
    %v6519 = vpack.c.bf16 %v6359, %v6351
    %v6520 = vpack.c.bf16 %v6360, %v6352
    %v6521 = vpack.c.bf16 %v6361, %v6353
    %v6522 = vpack.c.bf16 %v6362, %v6354
    %v6523 = vpack.c.bf16 %v6371, %v6363
    %v6524 = vpack.c.bf16 %v6372, %v6364
    %v6525 = vpack.c.bf16 %v6373, %v6365
    %v6526 = vpack.c.bf16 %v6374, %v6366
    %v6527 = vpack.c.bf16 %v6375, %v6367
    %v6528 = vpack.c.bf16 %v6376, %v6368
    %v6529 = vpack.c.bf16 %v6377, %v6369
    %v6530 = vpack.c.bf16 %v6378, %v6370
    %v6531 = vpack.c.bf16 %v6387, %v6379
    %v6532 = vpack.c.bf16 %v6388, %v6380
    %v6533 = vpack.c.bf16 %v6389, %v6381
    %v6534 = vpack.c.bf16 %v6390, %v6382
    %v6535 = vpack.c.bf16 %v6391, %v6383
    %v6536 = vpack.c.bf16 %v6392, %v6384
    %v6537 = vpack.c.bf16 %v6393, %v6385
    %v6538 = vpack.c.bf16 %v6394, %v6386
    %v6539 = vpack.c.bf16 %v6403, %v6395
    %v6540 = vpack.c.bf16 %v6404, %v6396
    %v6541 = vpack.c.bf16 %v6405, %v6397
    %v6542 = vpack.c.bf16 %v6406, %v6398
    %v6543 = vpack.c.bf16 %v6407, %v6399
    %v6544 = vpack.c.bf16 %v6408, %v6400
    %v6545 = vpack.c.bf16 %v6409, %v6401
    %v6546 = vpack.c.bf16 %v6410, %v6402
    %v6547 = vpack.c.bf16 %v6419, %v6411
    %v6548 = vpack.c.bf16 %v6420, %v6412
    %v6549 = vpack.c.bf16 %v6421, %v6413
    %v6550 = vpack.c.bf16 %v6422, %v6414
    %v6551 = vpack.c.bf16 %v6423, %v6415
    %v6552 = vpack.c.bf16 %v6424, %v6416
    %v6553 = vpack.c.bf16 %v6425, %v6417
    %v6554 = vpack.c.bf16 %v6426, %v6418
    %v6556 = vunpack.c.l.b16 %v137
    %v6557 = vunpack.c.h.b16 %v137
    %v6558 = vpack.c.b16 %v6556, %v6556
    %v6559 = vpack.c.b16 %v6557, %v6557
    %6562 = vmatpush.bf16.msra.mxu0 %v6483
    %6563 = vmatpush.bf16.msra.mxu0 %v6475
    %6564 = vmatpush.bf16.msra.mxu0 %v6467
    %6565 = vmatpush.bf16.msra.mxu0 %v6459
    %6566 = vmatpush.bf16.msra.mxu0 %v6451
    %6567 = vmatpush.bf16.msra.mxu0 %v6443
    %6568 = vmatpush.bf16.msra.mxu0 %v6435
    %6569 = vmatpush.bf16.msra.mxu0 %v6427
    %6570 = vmatmul.bf16.gmra.mxu0 %v6558
    %v6571 = vpop.f32.mrf.mxu0
    %v6572 = vadd.f32 %v266, %v6571
    %v6573 = vpop.f32.mrf.mxu0
    %6574 = vdwg.mxu0
    %6575 = vmatpush.bf16.msra.mxu0 %v6547
    %6576 = vmatpush.bf16.msra.mxu0 %v6539
    %6577 = vmatpush.bf16.msra.mxu0 %v6531
    %6578 = vmatpush.bf16.msra.mxu0 %v6523
    %6579 = vmatpush.bf16.msra.mxu0 %v6515
    %6580 = vmatpush.bf16.msra.mxu0 %v6507
    %6581 = vmatpush.bf16.msra.mxu0 %v6499
    %6582 = vmatpush.bf16.msra.mxu0 %v6491
    %6583 = vmatmul.bf16.gmra.mxu0 %v6559
    %v6584 = vpop.f32.mrf.mxu0
    %v6585 = vadd.f32 %v6572, %v6584
    %v6586 = vpop.f32.mrf.mxu0
    %6587 = vdwg.mxu0
    %6588 = vmatpush.bf16.msra.mxu0 %v6484
    %6589 = vmatpush.bf16.msra.mxu0 %v6476
    %6590 = vmatpush.bf16.msra.mxu0 %v6468
    %6591 = vmatpush.bf16.msra.mxu0 %v6460
    %6592 = vmatpush.bf16.msra.mxu0 %v6452
    %6593 = vmatpush.bf16.msra.mxu0 %v6444
    %6594 = vmatpush.bf16.msra.mxu0 %v6436
    %6595 = vmatpush.bf16.msra.mxu0 %v6428
    %6596 = vmatmul.bf16.gmra.mxu0 %v6558
    %v6597 = vpop.f32.mrf.mxu0
    %v6598 = vadd.f32 %v267, %v6597
    %v6599 = vpop.f32.mrf.mxu0
    %6600 = vdwg.mxu0
    %6601 = vmatpush.bf16.msra.mxu0 %v6548
    %6602 = vmatpush.bf16.msra.mxu0 %v6540
    %6603 = vmatpush.bf16.msra.mxu0 %v6532
    %6604 = vmatpush.bf16.msra.mxu0 %v6524
    %6605 = vmatpush.bf16.msra.mxu0 %v6516
    %6606 = vmatpush.bf16.msra.mxu0 %v6508
    %6607 = vmatpush.bf16.msra.mxu0 %v6500
    %6608 = vmatpush.bf16.msra.mxu0 %v6492
    %6609 = vmatmul.bf16.gmra.mxu0 %v6559
    %v6610 = vpop.f32.mrf.mxu0
    %v6611 = vadd.f32 %v6598, %v6610
    %v6612 = vpop.f32.mrf.mxu0
    %6613 = vdwg.mxu0
    %6614 = vmatpush.bf16.msra.mxu0 %v6485
    %6615 = vmatpush.bf16.msra.mxu0 %v6477
    %6616 = vmatpush.bf16.msra.mxu0 %v6469
    %6617 = vmatpush.bf16.msra.mxu0 %v6461
    %6618 = vmatpush.bf16.msra.mxu0 %v6453
    %6619 = vmatpush.bf16.msra.mxu0 %v6445
    %6620 = vmatpush.bf16.msra.mxu0 %v6437
    %6621 = vmatpush.bf16.msra.mxu0 %v6429
    %6622 = vmatmul.bf16.gmra.mxu0 %v6558
    %v6623 = vpop.f32.mrf.mxu0
    %v6624 = vadd.f32 %v268, %v6623
    %v6625 = vpop.f32.mrf.mxu0
    %6626 = vdwg.mxu0
    %6627 = vmatpush.bf16.msra.mxu0 %v6549
    %6628 = vmatpush.bf16.msra.mxu0 %v6541
    %6629 = vmatpush.bf16.msra.mxu0 %v6533
    %6630 = vmatpush.bf16.msra.mxu0 %v6525
    %6631 = vmatpush.bf16.msra.mxu0 %v6517
    %6632 = vmatpush.bf16.msra.mxu0 %v6509
    %6633 = vmatpush.bf16.msra.mxu0 %v6501
    %6634 = vmatpush.bf16.msra.mxu0 %v6493
    %6635 = vmatmul.bf16.gmra.mxu0 %v6559
    %v6636 = vpop.f32.mrf.mxu0
    %v6637 = vadd.f32 %v6624, %v6636
    %v6638 = vpop.f32.mrf.mxu0
    %6639 = vdwg.mxu0
    %6640 = vmatpush.bf16.msra.mxu0 %v6486
    %6641 = vmatpush.bf16.msra.mxu0 %v6478
    %6642 = vmatpush.bf16.msra.mxu0 %v6470
    %6643 = vmatpush.bf16.msra.mxu0 %v6462
    %6644 = vmatpush.bf16.msra.mxu0 %v6454
    %6645 = vmatpush.bf16.msra.mxu0 %v6446
    %6646 = vmatpush.bf16.msra.mxu0 %v6438
    %6647 = vmatpush.bf16.msra.mxu0 %v6430
    %6648 = vmatmul.bf16.gmra.mxu0 %v6558
    %v6649 = vpop.f32.mrf.mxu0
    %v6650 = vadd.f32 %v269, %v6649
    %v6651 = vpop.f32.mrf.mxu0
    %6652 = vdwg.mxu0
    %6653 = vmatpush.bf16.msra.mxu0 %v6550
    %6654 = vmatpush.bf16.msra.mxu0 %v6542
    %6655 = vmatpush.bf16.msra.mxu0 %v6534
    %6656 = vmatpush.bf16.msra.mxu0 %v6526
    %6657 = vmatpush.bf16.msra.mxu0 %v6518
    %6658 = vmatpush.bf16.msra.mxu0 %v6510
    %6659 = vmatpush.bf16.msra.mxu0 %v6502
    %6660 = vmatpush.bf16.msra.mxu0 %v6494
    %6661 = vmatmul.bf16.gmra.mxu0 %v6559
    %v6662 = vpop.f32.mrf.mxu0
    %v6663 = vadd.f32 %v6650, %v6662
    %v6664 = vpop.f32.mrf.mxu0
    %6665 = vdwg.mxu0
    %6666 = vmatpush.bf16.msra.mxu0 %v6487
    %6667 = vmatpush.bf16.msra.mxu0 %v6479
    %6668 = vmatpush.bf16.msra.mxu0 %v6471
    %6669 = vmatpush.bf16.msra.mxu0 %v6463
    %6670 = vmatpush.bf16.msra.mxu0 %v6455
    %6671 = vmatpush.bf16.msra.mxu0 %v6447
    %6672 = vmatpush.bf16.msra.mxu0 %v6439
    %6673 = vmatpush.bf16.msra.mxu0 %v6431
    %6674 = vmatmul.bf16.gmra.mxu0 %v6558
    %v6675 = vpop.f32.mrf.mxu0
    %v6676 = vadd.f32 %v270, %v6675
    %v6677 = vpop.f32.mrf.mxu0
    %6678 = vdwg.mxu0
    %6679 = vmatpush.bf16.msra.mxu0 %v6551
    %6680 = vmatpush.bf16.msra.mxu0 %v6543
    %6681 = vmatpush.bf16.msra.mxu0 %v6535
    %6682 = vmatpush.bf16.msra.mxu0 %v6527
    %6683 = vmatpush.bf16.msra.mxu0 %v6519
    %6684 = vmatpush.bf16.msra.mxu0 %v6511
    %6685 = vmatpush.bf16.msra.mxu0 %v6503
    %6686 = vmatpush.bf16.msra.mxu0 %v6495
    %6687 = vmatmul.bf16.gmra.mxu0 %v6559
    %v6688 = vpop.f32.mrf.mxu0
    %v6689 = vadd.f32 %v6676, %v6688
    %v6690 = vpop.f32.mrf.mxu0
    %6691 = vdwg.mxu0
    %6692 = vmatpush.bf16.msra.mxu0 %v6488
    %6693 = vmatpush.bf16.msra.mxu0 %v6480
    %6694 = vmatpush.bf16.msra.mxu0 %v6472
    %6695 = vmatpush.bf16.msra.mxu0 %v6464
    %6696 = vmatpush.bf16.msra.mxu0 %v6456
    %6697 = vmatpush.bf16.msra.mxu0 %v6448
    %6698 = vmatpush.bf16.msra.mxu0 %v6440
    %6699 = vmatpush.bf16.msra.mxu0 %v6432
    %6700 = vmatmul.bf16.gmra.mxu0 %v6558
    %v6701 = vpop.f32.mrf.mxu0
    %v6702 = vadd.f32 %v271, %v6701
    %v6703 = vpop.f32.mrf.mxu0
    %6704 = vdwg.mxu0
    %6705 = vmatpush.bf16.msra.mxu0 %v6552
    %6706 = vmatpush.bf16.msra.mxu0 %v6544
    %6707 = vmatpush.bf16.msra.mxu0 %v6536
    %6708 = vmatpush.bf16.msra.mxu0 %v6528
    %6709 = vmatpush.bf16.msra.mxu0 %v6520
    %6710 = vmatpush.bf16.msra.mxu0 %v6512
    %6711 = vmatpush.bf16.msra.mxu0 %v6504
    %6712 = vmatpush.bf16.msra.mxu0 %v6496
    %6713 = vmatmul.bf16.gmra.mxu0 %v6559
    %v6714 = vpop.f32.mrf.mxu0
    %v6715 = vadd.f32 %v6702, %v6714
    %v6716 = vpop.f32.mrf.mxu0
    %6717 = vdwg.mxu0
    %6718 = vmatpush.bf16.msra.mxu0 %v6489
    %6719 = vmatpush.bf16.msra.mxu0 %v6481
    %6720 = vmatpush.bf16.msra.mxu0 %v6473
    %6721 = vmatpush.bf16.msra.mxu0 %v6465
    %6722 = vmatpush.bf16.msra.mxu0 %v6457
    %6723 = vmatpush.bf16.msra.mxu0 %v6449
    %6724 = vmatpush.bf16.msra.mxu0 %v6441
    %6725 = vmatpush.bf16.msra.mxu0 %v6433
    %6726 = vmatmul.bf16.gmra.mxu0 %v6558
    %v6727 = vpop.f32.mrf.mxu0
    %v6728 = vadd.f32 %v272, %v6727
    %v6729 = vpop.f32.mrf.mxu0
    %6730 = vdwg.mxu0
    %6731 = vmatpush.bf16.msra.mxu0 %v6553
    %6732 = vmatpush.bf16.msra.mxu0 %v6545
    %6733 = vmatpush.bf16.msra.mxu0 %v6537
    %6734 = vmatpush.bf16.msra.mxu0 %v6529
    %6735 = vmatpush.bf16.msra.mxu0 %v6521
    %6736 = vmatpush.bf16.msra.mxu0 %v6513
    %6737 = vmatpush.bf16.msra.mxu0 %v6505
    %6738 = vmatpush.bf16.msra.mxu0 %v6497
    %6739 = vmatmul.bf16.gmra.mxu0 %v6559
    %v6740 = vpop.f32.mrf.mxu0
    %v6741 = vadd.f32 %v6728, %v6740
    %v6742 = vpop.f32.mrf.mxu0
    %6743 = vdwg.mxu0
    %6744 = vmatpush.bf16.msra.mxu0 %v6490
    %6745 = vmatpush.bf16.msra.mxu0 %v6482
    %6746 = vmatpush.bf16.msra.mxu0 %v6474
    %6747 = vmatpush.bf16.msra.mxu0 %v6466
    %6748 = vmatpush.bf16.msra.mxu0 %v6458
    %6749 = vmatpush.bf16.msra.mxu0 %v6450
    %6750 = vmatpush.bf16.msra.mxu0 %v6442
    %6751 = vmatpush.bf16.msra.mxu0 %v6434
    %6752 = vmatmul.bf16.gmra.mxu0 %v6558
    %v6753 = vpop.f32.mrf.mxu0
    %v6754 = vadd.f32 %v273, %v6753
    %v6755 = vpop.f32.mrf.mxu0
    %6756 = vdwg.mxu0
    %6757 = vmatpush.bf16.msra.mxu0 %v6554
    %6758 = vmatpush.bf16.msra.mxu0 %v6546
    %6759 = vmatpush.bf16.msra.mxu0 %v6538
    %6760 = vmatpush.bf16.msra.mxu0 %v6530
    %6761 = vmatpush.bf16.msra.mxu0 %v6522
    %6762 = vmatpush.bf16.msra.mxu0 %v6514
    %6763 = vmatpush.bf16.msra.mxu0 %v6506
    %6764 = vmatpush.bf16.msra.mxu0 %v6498
    %6765 = vmatmul.bf16.gmra.mxu0 %v6559
    %v6766 = vpop.f32.mrf.mxu0
    %v6767 = vadd.f32 %v6754, %v6766
    %v6768 = vpop.f32.mrf.mxu0
    %6769 = vdwg.mxu0
    %v6770 = vxor.u32 %v6585, 2147483648
    %v6771 = vxor.u32 %v6611, 2147483648
    %v6772 = vxor.u32 %v6637, 2147483648
    %v6773 = vxor.u32 %v6663, 2147483648
    %v6774 = vxor.u32 %v6689, 2147483648
    %v6775 = vxor.u32 %v6715, 2147483648
    %v6776 = vxor.u32 %v6741, 2147483648
    %v6777 = vxor.u32 %v6767, 2147483648
    %v6778 = vmul.f32 %v6770, 1.442695
    %v6779 = vpow.pop %v6778
    %v6780 = vmul.f32 %v6771, 1.442695
    %v6781 = vpow.pop %v6780
    %v6782 = vmul.f32 %v6772, 1.442695
    %v6783 = vpow.pop %v6782
    %v6784 = vmul.f32 %v6773, 1.442695
    %v6785 = vpow.pop %v6784
    %v6786 = vmul.f32 %v6774, 1.442695
    %v6787 = vpow.pop %v6786
    %v6788 = vmul.f32 %v6775, 1.442695
    %v6789 = vpow.pop %v6788
    %v6790 = vmul.f32 %v6776, 1.442695
    %v6791 = vpow.pop %v6790
    %v6792 = vmul.f32 %v6777, 1.442695
    %v6793 = vpow.pop %v6792
    %v6794 = vadd.f32 %v6779, 1.0
    %v6795 = vadd.f32 %v6781, 1.0
    %v6796 = vadd.f32 %v6783, 1.0
    %v6797 = vadd.f32 %v6785, 1.0
    %v6798 = vadd.f32 %v6787, 1.0
    %v6799 = vadd.f32 %v6789, 1.0
    %v6800 = vadd.f32 %v6791, 1.0
    %v6801 = vadd.f32 %v6793, 1.0
    %v6802 = vrcp.pop %v6794
    %v6803 = vmul.f32 %v6794, %v6802
    %v6804 = vsub.f32 1.0, %v6803
    %v6805 = vmul.f32 %v6802, %v6804
    %v6806 = vadd.f32 %v6802, %v6805
    %vm6807 = vweird.f32 %v6794
    %vm6808 = vweird.f32 %v6802
    %vm6809 = vmor %vm6807, %vm6808
    %v6810 = vsel %vm6809, %v6802, %v6806
    %v6811 = vand.u32 2147483647, %v6794
    %vm6812 = vcmp.eq.f32.partialorder %v6811, 8.507059e+37
    %v6813 = vand.u32 %v6794, 2147483648
    %v6814 = vor.u32 1.1754944e-38, %v6813
    %v6815 = vsel %vm6812, %v6814, %v6810
    %v6816 = vmul.f32 1.0, %v6815
    %v6817 = vrcp.pop %v6795
    %v6818 = vmul.f32 %v6795, %v6817
    %v6819 = vsub.f32 1.0, %v6818
    %v6820 = vmul.f32 %v6817, %v6819
    %v6821 = vadd.f32 %v6817, %v6820
    %vm6822 = vweird.f32 %v6795
    %vm6823 = vweird.f32 %v6817
    %vm6824 = vmor %vm6822, %vm6823
    %v6825 = vsel %vm6824, %v6817, %v6821
    %v6826 = vand.u32 2147483647, %v6795
    %vm6827 = vcmp.eq.f32.partialorder %v6826, 8.507059e+37
    %v6828 = vand.u32 %v6795, 2147483648
    %v6829 = vor.u32 1.1754944e-38, %v6828
    %v6830 = vsel %vm6827, %v6829, %v6825
    %v6831 = vmul.f32 1.0, %v6830
    %v6832 = vrcp.pop %v6796
    %v6833 = vmul.f32 %v6796, %v6832
    %v6834 = vsub.f32 1.0, %v6833
    %v6835 = vmul.f32 %v6832, %v6834
    %v6836 = vadd.f32 %v6832, %v6835
    %vm6837 = vweird.f32 %v6796
    %vm6838 = vweird.f32 %v6832
    %vm6839 = vmor %vm6837, %vm6838
    %v6840 = vsel %vm6839, %v6832, %v6836
    %v6841 = vand.u32 2147483647, %v6796
    %vm6842 = vcmp.eq.f32.partialorder %v6841, 8.507059e+37
    %v6843 = vand.u32 %v6796, 2147483648
    %v6844 = vor.u32 1.1754944e-38, %v6843
    %v6845 = vsel %vm6842, %v6844, %v6840
    %v6846 = vmul.f32 1.0, %v6845
    %v6847 = vrcp.pop %v6797
    %v6848 = vmul.f32 %v6797, %v6847
    %v6849 = vsub.f32 1.0, %v6848
    %v6850 = vmul.f32 %v6847, %v6849
    %v6851 = vadd.f32 %v6847, %v6850
    %vm6852 = vweird.f32 %v6797
    %vm6853 = vweird.f32 %v6847
    %vm6854 = vmor %vm6852, %vm6853
    %v6855 = vsel %vm6854, %v6847, %v6851
    %v6856 = vand.u32 2147483647, %v6797
    %vm6857 = vcmp.eq.f32.partialorder %v6856, 8.507059e+37
    %v6858 = vand.u32 %v6797, 2147483648
    %v6859 = vor.u32 1.1754944e-38, %v6858
    %v6860 = vsel %vm6857, %v6859, %v6855
    %v6861 = vmul.f32 1.0, %v6860
    %v6862 = vrcp.pop %v6798
    %v6863 = vmul.f32 %v6798, %v6862
    %v6864 = vsub.f32 1.0, %v6863
    %v6865 = vmul.f32 %v6862, %v6864
    %v6866 = vadd.f32 %v6862, %v6865
    %vm6867 = vweird.f32 %v6798
    %vm6868 = vweird.f32 %v6862
    %vm6869 = vmor %vm6867, %vm6868
    %v6870 = vsel %vm6869, %v6862, %v6866
    %v6871 = vand.u32 2147483647, %v6798
    %vm6872 = vcmp.eq.f32.partialorder %v6871, 8.507059e+37
    %v6873 = vand.u32 %v6798, 2147483648
    %v6874 = vor.u32 1.1754944e-38, %v6873
    %v6875 = vsel %vm6872, %v6874, %v6870
    %v6876 = vmul.f32 1.0, %v6875
    %v6877 = vrcp.pop %v6799
    %v6878 = vmul.f32 %v6799, %v6877
    %v6879 = vsub.f32 1.0, %v6878
    %v6880 = vmul.f32 %v6877, %v6879
    %v6881 = vadd.f32 %v6877, %v6880
    %vm6882 = vweird.f32 %v6799
    %vm6883 = vweird.f32 %v6877
    %vm6884 = vmor %vm6882, %vm6883
    %v6885 = vsel %vm6884, %v6877, %v6881
    %v6886 = vand.u32 2147483647, %v6799
    %vm6887 = vcmp.eq.f32.partialorder %v6886, 8.507059e+37
    %v6888 = vand.u32 %v6799, 2147483648
    %v6889 = vor.u32 1.1754944e-38, %v6888
    %v6890 = vsel %vm6887, %v6889, %v6885
    %v6891 = vmul.f32 1.0, %v6890
    %v6892 = vrcp.pop %v6800
    %v6893 = vmul.f32 %v6800, %v6892
    %v6894 = vsub.f32 1.0, %v6893
    %v6895 = vmul.f32 %v6892, %v6894
    %v6896 = vadd.f32 %v6892, %v6895
    %vm6897 = vweird.f32 %v6800
    %vm6898 = vweird.f32 %v6892
    %vm6899 = vmor %vm6897, %vm6898
    %v6900 = vsel %vm6899, %v6892, %v6896
    %v6901 = vand.u32 2147483647, %v6800
    %vm6902 = vcmp.eq.f32.partialorder %v6901, 8.507059e+37
    %v6903 = vand.u32 %v6800, 2147483648
    %v6904 = vor.u32 1.1754944e-38, %v6903
    %v6905 = vsel %vm6902, %v6904, %v6900
    %v6906 = vmul.f32 1.0, %v6905
    %v6907 = vrcp.pop %v6801
    %v6908 = vmul.f32 %v6801, %v6907
    %v6909 = vsub.f32 1.0, %v6908
    %v6910 = vmul.f32 %v6907, %v6909
    %v6911 = vadd.f32 %v6907, %v6910
    %vm6912 = vweird.f32 %v6801
    %vm6913 = vweird.f32 %v6907
    %vm6914 = vmor %vm6912, %vm6913
    %v6915 = vsel %vm6914, %v6907, %v6911
    %v6916 = vand.u32 2147483647, %v6801
    %vm6917 = vcmp.eq.f32.partialorder %v6916, 8.507059e+37
    %v6918 = vand.u32 %v6801, 2147483648
    %v6919 = vor.u32 1.1754944e-38, %v6918
    %v6920 = vsel %vm6917, %v6919, %v6915
    %v6921 = vmul.f32 1.0, %v6920
    %6922 = vst [vmem:[#allocation8] sm:$0xff] %v6816
    %6923 = vst [vmem:[#allocation8 + $0x8] sm:$0xff] %v6831
    %6924 = vst [vmem:[#allocation8 + $0x10] sm:$0xff] %v6846
    %6925 = vst [vmem:[#allocation8 + $0x18] sm:$0xff] %v6861
    %6926 = vst [vmem:[#allocation8 + $0x20] sm:$0xff] %v6876
    %6927 = vst [vmem:[#allocation8 + $0x28] sm:$0xff] %v6891
    %6928 = vst [vmem:[#allocation8 + $0x30] sm:$0xff] %v6906
    %6929 = vst [vmem:[#allocation8 + $0x38] sm:$0xff] %v6921
    // Predicated region
    $region42: #{tpu_custom_call.1} parent=1 // pred_check
      _
    $region43: #{tpu_custom_call.1} parent=1 // pred_check_branch
      %6931 = sbr.rel (0) target = $region45
    $region44: #{tpu_custom_call.1} parent=1 // pred_region
      %6933 = vsyncadd [#allocation4], 0
      %s6935 = sshll.u32 [#allocation8], 4
      %s6936 = int_to_ptr.vmem [resolvable:$true] %s6935
      %s6937 = sshll.u32 %s7, 4
      %s6938 = int_to_ptr.hbm [resolvable:$true] %s6937
      %6940 = dma.vmem_to_hbm [thread:$0]  %s6936, 1024, %s6938, [#allocation4]
    $region45: #{tpu_custom_call.1} parent=1 // pred_fallthru
      _
    // Predicated region
    $region46: #{tpu_custom_call.1} parent=1 // pred_check
      _
    $region47: #{tpu_custom_call.1} parent=1 // pred_check_branch
      %6942 = sbr.rel (0) target = $region49
    $region48: #{tpu_custom_call.1} parent=1 // pred_region
      %6944 = dma.done [#allocation4], 1024
    $region49: #{tpu_custom_call.1} parent=1 // pred_fallthru
      _
    %6945 = vsyncpa [#allocation3], 1
    %6946 = vsyncpa [#allocation6], 1
    %6947 = vsyncpa [#allocation4], 1

</llo_original>
